<compile_context>
chip_gen: v6e
topology: v6e:2x2x1
jax: 0.10.0
libtpu: 0.0.40
codegen_flags: <defaults>
</compile_context>

<pallas_src>
import math

import jax
import jax.numpy as jnp
from jax.experimental import pallas as pl
from jax.experimental.pallas import tpu as pltpu  # noqa: F401  (TPU backend)

# ----------------------------- config --------------------------------------
B          = 2          # batch
SEQ_LEN    = 8          # args.seq_len
PRED_LEN   = 4          # args.pred_len
FEAT_A     = 6          # args.feat_dims[0]  (aqi)
FEAT_M     = 5          # args.feat_dims[1]  (meo)
FEAT_O_C   = 3          # photo channels
IMG_H      = 8
IMG_W      = 8
MARK_DIM   = 4
D          = 32         # args.dst_feat_dim
NUM_HEADS  = 4
DH         = D // NUM_HEADS
NMOD       = 3
PHOTO_FLAT = FEAT_O_C * IMG_H * IMG_W
F_AMK      = FEAT_A + FEAT_M + MARK_DIM
OTHERS     = ((1, 2), (0, 2), (0, 1))   # (source modalities) per target modality


# --------------------------- fused Pallas kernel ----------------------------
def _immair_kernel(
    x_a_ref, x_m_ref, x_k_ref, x_o_ref,
    w_eamk_ref, b_eamk_ref, w_eo_ref, b_eo_ref,
    w_tr_ref, b_tr_ref, w_rc_ref, b_rc_ref,
    w_q_ref, b_q_ref, w_kv_ref, b_kv_ref,
    w_ao_ref, b_ao_ref, w_hd_ref, b_hd_ref,
    out_ref, loss_ref,
):
    f32 = jnp.float32
    BS = B * SEQ_LEN

    def mm(x, w_ref, b_ref):
        return jnp.dot(x, w_ref[...], preferred_element_type=f32) + b_ref[...]

    def mean_all(x):                                   # full mean -> [1, 1]
        n = x.shape[0] * x.shape[1]
        s = jnp.sum(x, axis=1, keepdims=True)
        s = jnp.sum(s, axis=0, keepdims=True)
        return s * (1.0 / n)

    # ----- frozen AirEmbedding -----
    # TODO(synk): reference wraps AirEmbedding in torch.no_grad(); this script is
    # forward-only, so the freeze (stop_gradient / custom VJP) is not emitted.
    x_amk = jnp.concatenate([x_a_ref[...], x_m_ref[...], x_k_ref[...]], axis=-1)
    z_amk = mm(x_amk, w_eamk_ref, b_eamk_ref)          # [BS, 3D] = z_a | z_m | z_mark
    z_a = z_amk[:, 0:D]
    z_m = z_amk[:, D:2 * D]
    z_mark = z_amk[:, 2 * D:3 * D]

    zo_flat = mm(x_o_ref[...], w_eo_ref, b_eo_ref)     # [B, S*D]
    zo_rows = []
    for b in range(B):                                 # layout-safe [B,S*D]->[B*S,D]
        for s in range(SEQ_LEN):
            zo_rows.append(zo_flat[b:b + 1, s * D:(s + 1) * D])
    z_o = jnp.concatenate(zo_rows, axis=0)             # [BS, D]

    # ----- cdr_layer: cross-modal translation + reconstruction -----
    proj = jnp.concatenate([z_a, z_m, z_o], axis=-1)   # [BS, 3D]
    trans = mm(proj, w_tr_ref, b_tr_ref)               # [BS, 3D]  (block-structured W)
    rec = mm(trans, w_rc_ref, b_rc_ref)                # [BS, 3D]  (block-diag W)
    loss_tr = mean_all((trans - proj) ** 2)
    loss_rc = mean_all((rec - proj) ** 2)
    loss_ref[...] = jnp.concatenate([loss_tr, loss_rc], axis=-1)   # [1, 2]

    # ----- temporal-mark conditioning -----
    infer = proj + jnp.concatenate([z_mark, z_mark, z_mark], axis=-1)  # [BS, 3D]

    # ----- CrossAttnTransformer ('cross' fusion) -----
    # Q of all modalities in one block-diag matmul (scale pre-folded into Wq).
    q_all = mm(infer, w_q_ref, b_q_ref)                               # [BS, 3D]
    # K/V of every (source, target) modality pair in one matmul.
    inf_rows = jnp.concatenate(
        [infer[:, 0:D], infer[:, D:2 * D], infer[:, 2 * D:3 * D]], axis=0)  # [3*BS, D]
    kv_all = mm(inf_rows, w_kv_ref, b_kv_ref)                          # [3*BS, 6D]

    q_blks, k_blks, v_blks = [], [], []
    for i in range(NMOD):
        q_i = q_all[:, i * D:(i + 1) * D]                              # [BS, D]
        kcol0 = i * 2 * D
        y, z = OTHERS[i]
        k_y = kv_all[y * BS:(y + 1) * BS, kcol0:kcol0 + D]
        k_z = kv_all[z * BS:(z + 1) * BS, kcol0:kcol0 + D]
        v_y = kv_all[y * BS:(y + 1) * BS, kcol0 + D:kcol0 + 2 * D]
        v_z = kv_all[z * BS:(z + 1) * BS, kcol0 + D:kcol0 + 2 * D]
        for h in range(NUM_HEADS):
            hs = slice(h * DH, (h + 1) * DH)
            q_blks.append(q_i[:, hs].reshape(B, SEQ_LEN, DH))
            k_blks.append(jnp.concatenate(
                [k_y[:, hs].reshape(B, SEQ_LEN, DH),
                 k_z[:, hs].reshape(B, SEQ_LEN, DH)], axis=1))
            v_blks.append(jnp.concatenate(
                [v_y[:, hs].reshape(B, SEQ_LEN, DH),
                 v_z[:, hs].reshape(B, SEQ_LEN, DH)], axis=1))

    qs = jnp.concatenate(q_blks, axis=0)               # [NMOD*H*B, S,  DH]
    ks = jnp.concatenate(k_blks, axis=0)               # [NMOD*H*B, 2S, DH]
    vs = jnp.concatenate(v_blks, axis=0)               # [NMOD*H*B, 2S, DH]

    # one batched contraction for every modality / head / batch element
    sc = jnp.einsum('bqd,bkd->bqk', qs, ks, preferred_element_type=f32)
    sc = sc - jnp.max(sc, axis=-1, keepdims=True)
    p = jnp.exp(sc)
    denom = jnp.sum(p, axis=-1, keepdims=True)
    p = p * pl.reciprocal(denom, approx=True)          # EUP reciprocal (free slot)
    ctx = jnp.einsum('bqk,bkd->bqd', p, vs, preferred_element_type=f32)

    mod_cols = []
    for i in range(NMOD):                              # merge heads back to lanes
        h_cols = []
        for h in range(NUM_HEADS):
            r0 = (i * NUM_HEADS + h) * B
            h_cols.append(ctx[r0:r0 + B].reshape(BS, DH))
        mod_cols.append(jnp.concatenate(h_cols, axis=-1))   # [BS, D]
    o_ctx = jnp.concatenate(mod_cols, axis=-1)              # [BS, 3D]
    o_proj = mm(o_ctx, w_ao_ref, b_ao_ref)                  # [BS, 3D]  (block-diag Wo)

    # per-modality temporal mean pooling -> [B, 3D]
    inv_s = 1.0 / SEQ_LEN
    pooled = []
    for b in range(B):
        pooled.append(jnp.sum(o_proj[b * SEQ_LEN:(b + 1) * SEQ_LEN, :],
                              axis=0, keepdims=True) * inv_s)
    h_pool = jnp.concatenate(pooled, axis=0)                # [B, 3D]

    # fused regression heads: columns = [out_a | out_m | out_o | y_hat]
    out_ref[...] = mm(h_pool, w_hd_ref, b_hd_ref)           # [B, 4*PRED_LEN]


# ------------------------- parameter init & packing -------------------------
def _init_linear(key, fan_in, fan_out):
    k1, k2 = jax.random.split(key)
    lim = 1.0 / math.sqrt(fan_in)
    w = jax.random.uniform(k1, (fan_in, fan_out), jnp.float32, -lim, lim)
    b = jax.random.uniform(k2, (fan_out,), jnp.float32, -lim, lim)
    return w, b


def init_params(seed=0):
    """Raw per-sub-layer weights (mirrors the PyTorch module structure)."""
    key = jax.random.PRNGKey(seed)
    keys = iter(jax.random.split(key, 64))
    p = {}
    p['emb_a'] = _init_linear(next(keys), FEAT_A, D)
    p['emb_m'] = _init_linear(next(keys), FEAT_M, D)
    p['emb_o'] = _init_linear(next(keys), PHOTO_FLAT, SEQ_LEN * D)
    p['emb_mark'] = _init_linear(next(keys), MARK_DIM, D)
    for m in ('a', 'm', 'o'):
        p[f'trans_{m}'] = _init_linear(next(keys), 2 * D, D)
        p[f'rec_{m}'] = _init_linear(next(keys), D, D)
    for m in ('a', 'm', 'o'):
        p[f'wq_{m}'] = _init_linear(next(keys), D, D)
        p[f'wk_{m}'] = _init_linear(next(keys), D, D)
        p[f'wv_{m}'] = _init_linear(next(keys), D, D)
        p[f'wo_{m}'] = _init_linear(next(keys), D, D)
        p[f'head_{m}'] = _init_linear(next(keys), D, PRED_LEN)
    p['head_all'] = _init_linear(next(keys), 3 * D, PRED_LEN)
    return p


def pack_params(raw):
    """Pack per-layer weights into block-structured matrices so the fused kernel
    runs a few lane-dense matmuls (N in {96, 192, 256}) instead of ~25 tiny ones."""
    mods = ('a', 'm', 'o')

    # fused (aqi | meo | mark) embedding  [15, 96]
    w_eamk = jnp.zeros((F_AMK, 3 * D), jnp.float32)
    w_eamk = w_eamk.at[0:FEAT_A, 0:D].set(raw['emb_a'][0])
    w_eamk = w_eamk.at[FEAT_A:FEAT_A + FEAT_M, D:2 * D].set(raw['emb_m'][0])
    w_eamk = w_eamk.at[FEAT_A + FEAT_M:F_AMK, 2 * D:3 * D].set(raw['emb_mark'][0])
    b_eamk = jnp.concatenate(
        [raw['emb_a'][1], raw['emb_m'][1], raw['emb_mark'][1]]).reshape(1, 3 * D)

    # translation: column block i is fed by the other two modalities
    w_tr = jnp.zeros((3 * D, 3 * D), jnp.float32)
    for i, m in enumerate(mods):
        y, z = OTHERS[i]
        tw = raw[f'trans_{m}'][0]
        w_tr = w_tr.at[y * D:(y + 1) * D, i * D:(i + 1) * D].set(tw[0:D])
        w_tr = w_tr.at[z * D:(z + 1) * D, i * D:(i + 1) * D].set(tw[D:2 * D])
    b_tr = jnp.concatenate([raw[f'trans_{m}'][1] for m in mods]).reshape(1, 3 * D)

    def block_diag(ws):
        w = jnp.zeros((3 * D, 3 * D), jnp.float32)
        for i, wi in enumerate(ws):
            w = w.at[i * D:(i + 1) * D, i * D:(i + 1) * D].set(wi)
        return w

    w_rc = block_diag([raw[f'rec_{m}'][0] for m in mods])
    b_rc = jnp.concatenate([raw[f'rec_{m}'][1] for m in mods]).reshape(1, 3 * D)

    scale = 1.0 / math.sqrt(DH)            # attention scale folded into Wq / bq
    w_q = block_diag([raw[f'wq_{m}'][0] * scale for m in mods])
    b_q = (jnp.concatenate([raw[f'wq_{m}'][1] for m in mods]) * scale).reshape(1, 3 * D)

    # K/V weights of all target modalities side-by-side: [D, 6D]
    w_kv = jnp.concatenate(
        [jnp.concatenate([raw[f'wk_{m}'][0], raw[f'wv_{m}'][0]], axis=1) for m in mods],
        axis=1)
    b_kv = jnp.concatenate(
        [jnp.concatenate([raw[f'wk_{m}'][1], raw[f'wv_{m}'][1]]) for m in mods]
    ).reshape(1, 6 * D)

    w_ao = block_diag([raw[f'wo_{m}'][0] for m in mods])
    b_ao = jnp.concatenate([raw[f'wo_{m}'][1] for m in mods]).reshape(1, 3 * D)

    # fused heads: columns = [out_a | out_m | out_o | y_hat]
    w_hd = jnp.zeros((3 * D, 4 * PRED_LEN), jnp.float32)
    for i, m in enumerate(mods):
        w_hd = w_hd.at[i * D:(i + 1) * D, i * PRED_LEN:(i + 1) * PRED_LEN].set(
            raw[f'head_{m}'][0])
    w_hd = w_hd.at[:, 3 * PRED_LEN:4 * PRED_LEN].set(raw['head_all'][0])
    b_hd = jnp.concatenate(
        [raw['head_a'][1], raw['head_m'][1], raw['head_o'][1], raw['head_all'][1]]
    ).reshape(1, 4 * PRED_LEN)

    return {
        'w_eamk': w_eamk, 'b_eamk': b_eamk,
        'w_eo': raw['emb_o'][0], 'b_eo': raw['emb_o'][1].reshape(1, SEQ_LEN * D),
        'w_tr': w_tr, 'b_tr': b_tr, 'w_rc': w_rc, 'b_rc': b_rc,
        'w_q': w_q, 'b_q': b_q, 'w_kv': w_kv, 'b_kv': b_kv,
        'w_ao': w_ao, 'b_ao': b_ao, 'w_hd': w_hd, 'b_hd': b_hd,
    }


# ------------------------------ forward --------------------------------------
@jax.jit
def _forward_core(packed, aqi, meo, photo, mark):
    bsz = aqi.shape[0]
    x_a = aqi.reshape(bsz * SEQ_LEN, FEAT_A)
    x_m = meo[:, :SEQ_LEN].reshape(bsz * SEQ_LEN, FEAT_M)
    x_k = mark.reshape(bsz * SEQ_LEN, MARK_DIM)
    x_o = photo[:, 0].reshape(bsz, PHOTO_FLAT)          # squeeze(1) + flatten
    out, losses = pl.pallas_call(
        _immair_kernel,
        out_shape=(jax.ShapeDtypeStruct((bsz, 4 * PRED_LEN), jnp.float32),
                   jax.ShapeDtypeStruct((1, 2), jnp.float32)),
    )(x_a, x_m, x_k, x_o,
      packed['w_eamk'], packed['b_eamk'], packed['w_eo'], packed['b_eo'],
      packed['w_tr'], packed['b_tr'], packed['w_rc'], packed['b_rc'],
      packed['w_q'], packed['b_q'], packed['w_kv'], packed['b_kv'],
      packed['w_ao'], packed['b_ao'], packed['w_hd'], packed['b_hd'])
    return out, losses


def immair_forward(packed, aqi, meo, photo, label=None, mark=None,
                   num_modal=3, is_train=True):
    assert aqi.shape == (B, SEQ_LEN, FEAT_A)
    if mark is None:
        mark = jnp.zeros((B, SEQ_LEN, MARK_DIM), jnp.float32)
    out, losses = _forward_core(packed, aqi, meo, photo, mark)
    uni = [out[:, i * PRED_LEN:(i + 1) * PRED_LEN] for i in range(3)]
    return {
        'ava_modal_idx': list(range(num_modal)),
        'loss_trans': losses[0, 0],
        'loss_rec': losses[0, 1],
        'uni_hat': uni,
        'y_hat': out[:, 3 * PRED_LEN:4 * PRED_LEN],
    }


# --------------------------------- main --------------------------------------
if __name__ == "__main__":
    key = jax.random.PRNGKey(0)
    k_aqi, k_meo, k_photo, k_mark, k_label = jax.random.split(key, 5)

    aqi = jax.random.normal(k_aqi, (B, SEQ_LEN, FEAT_A), jnp.float32)
    meo = jax.random.normal(k_meo, (B, SEQ_LEN + PRED_LEN, FEAT_M), jnp.float32)
    photo = jax.random.normal(k_photo, (B, 1, FEAT_O_C, IMG_H, IMG_W), jnp.float32)
    mark = jax.random.normal(k_mark, (B, SEQ_LEN, MARK_DIM), jnp.float32)
    label = jax.random.normal(k_label, (B, PRED_LEN), jnp.float32)

    params = pack_params(init_params(seed=0))

    res = immair_forward(params, aqi, meo, photo, label=label, mark=mark,
                         num_modal=3, is_train=True)

    jax.block_until_ready(res['y_hat'])
    jax.block_until_ready(res['loss_trans'])
    jax.block_until_ready(res['loss_rec'])
    for t in res['uni_hat']:
        jax.block_until_ready(t)

    assert res['y_hat'].shape == (B, PRED_LEN)
    assert all(t.shape == (B, PRED_LEN) for t in res['uni_hat'])
    assert bool(jnp.isfinite(res['y_hat']).all())
    print("KERNEL_OK")
</pallas_src>

<mosaic_0001>
module attributes {stable_mosaic.version = 11 : i64} {
  func.func @_immair_kernel(%arg0: memref<16x6xf32, #tpu.memory_space<vmem>>, %arg1: memref<16x5xf32, #tpu.memory_space<vmem>>, %arg2: memref<16x4xf32, #tpu.memory_space<vmem>>, %arg3: memref<2x192xf32, #tpu.memory_space<vmem>>, %arg4: memref<15x96xf32, #tpu.memory_space<vmem>>, %arg5: memref<1x96xf32, #tpu.memory_space<vmem>>, %arg6: memref<192x256xf32, #tpu.memory_space<vmem>>, %arg7: memref<1x256xf32, #tpu.memory_space<vmem>>, %arg8: memref<96x96xf32, #tpu.memory_space<vmem>>, %arg9: memref<1x96xf32, #tpu.memory_space<vmem>>, %arg10: memref<96x96xf32, #tpu.memory_space<vmem>>, %arg11: memref<1x96xf32, #tpu.memory_space<vmem>>, %arg12: memref<96x96xf32, #tpu.memory_space<vmem>>, %arg13: memref<1x96xf32, #tpu.memory_space<vmem>>, %arg14: memref<32x192xf32, #tpu.memory_space<vmem>>, %arg15: memref<1x192xf32, #tpu.memory_space<vmem>>, %arg16: memref<96x96xf32, #tpu.memory_space<vmem>>, %arg17: memref<1x96xf32, #tpu.memory_space<vmem>>, %arg18: memref<96x16xf32, #tpu.memory_space<vmem>>, %arg19: memref<1x16xf32, #tpu.memory_space<vmem>>, %arg20: memref<2x16xf32, #tpu.memory_space<vmem>>, %arg21: memref<1x2xf32, #tpu.memory_space<vmem>>) attributes {dimension_semantics = [], scalar_prefetch = 0 : i64, scratch_operands = 0 : i64, tpu.core_type = #tpu.core_type<tc>} {
    %c0 = arith.constant 0 : index
    %c0_0 = arith.constant 0 : index
    %0 = vector.load %arg0[%c0, %c0_0] : memref<16x6xf32, #tpu.memory_space<vmem>>, vector<16x6xf32>
    %c0_1 = arith.constant 0 : index
    %c0_2 = arith.constant 0 : index
    %1 = vector.load %arg1[%c0_1, %c0_2] : memref<16x5xf32, #tpu.memory_space<vmem>>, vector<16x5xf32>
    %c0_3 = arith.constant 0 : index
    %c0_4 = arith.constant 0 : index
    %2 = vector.load %arg2[%c0_3, %c0_4] : memref<16x4xf32, #tpu.memory_space<vmem>>, vector<16x4xf32>
    %3 = tpu.concatenate %0, %1, %2 in 1 : vector<16x6xf32>, vector<16x5xf32>, vector<16x4xf32> -> vector<16x15xf32>
    %c0_5 = arith.constant 0 : index
    %c0_6 = arith.constant 0 : index
    %4 = vector.load %arg4[%c0_5, %c0_6] : memref<15x96xf32, #tpu.memory_space<vmem>>, vector<15x96xf32>
    %cst = arith.constant dense<0.000000e+00> : vector<16x96xf32>
    %5 = tpu.matmul %3, %4, %cst {dimension_numbers = #tpu.dot_dimension_numbers<[1], [0], [0], [1], [0, 0, 1, 1], [], []>} : vector<16x15xf32>, vector<15x96xf32>, vector<16x96xf32> -> vector<16x96xf32>
    %c0_7 = arith.constant 0 : index
    %c0_8 = arith.constant 0 : index
    %6 = vector.load %arg5[%c0_7, %c0_8] : memref<1x96xf32, #tpu.memory_space<vmem>>, vector<1x96xf32>
    %7 = vector.broadcast %6 : vector<1x96xf32> to vector<16x96xf32>
    %8 = arith.addf %5, %7 : vector<16x96xf32>
    %9 = vector.extract_strided_slice %8 {offsets = [0, 0], sizes = [16, 32], strides = [1, 1]} : vector<16x96xf32> to vector<16x32xf32>
    %10 = vector.extract_strided_slice %8 {offsets = [0, 32], sizes = [16, 32], strides = [1, 1]} : vector<16x96xf32> to vector<16x32xf32>
    %11 = vector.extract_strided_slice %8 {offsets = [0, 64], sizes = [16, 32], strides = [1, 1]} : vector<16x96xf32> to vector<16x32xf32>
    %c0_9 = arith.constant 0 : index
    %c0_10 = arith.constant 0 : index
    %12 = vector.load %arg3[%c0_9, %c0_10] : memref<2x192xf32, #tpu.memory_space<vmem>>, vector<2x192xf32>
    %c0_11 = arith.constant 0 : index
    %c0_12 = arith.constant 0 : index
    %13 = vector.load %arg6[%c0_11, %c0_12] : memref<192x256xf32, #tpu.memory_space<vmem>>, vector<192x256xf32>
    %cst_13 = arith.constant dense<0.000000e+00> : vector<2x256xf32>
    %14 = tpu.matmul %12, %13, %cst_13 {dimension_numbers = #tpu.dot_dimension_numbers<[1], [0], [0], [1], [0, 0, 1, 1], [], []>} : vector<2x192xf32>, vector<192x256xf32>, vector<2x256xf32> -> vector<2x256xf32>
    %c0_14 = arith.constant 0 : index
    %c0_15 = arith.constant 0 : index
    %15 = vector.load %arg7[%c0_14, %c0_15] : memref<1x256xf32, #tpu.memory_space<vmem>>, vector<1x256xf32>
    %16 = vector.broadcast %15 : vector<1x256xf32> to vector<2x256xf32>
    %17 = arith.addf %14, %16 : vector<2x256xf32>
    %18 = vector.extract_strided_slice %17 {offsets = [0, 0], sizes = [1, 32], strides = [1, 1]} : vector<2x256xf32> to vector<1x32xf32>
    %19 = vector.extract_strided_slice %17 {offsets = [0, 32], sizes = [1, 32], strides = [1, 1]} : vector<2x256xf32> to vector<1x32xf32>
    %20 = vector.extract_strided_slice %17 {offsets = [0, 64], sizes = [1, 32], strides = [1, 1]} : vector<2x256xf32> to vector<1x32xf32>
    %21 = vector.extract_strided_slice %17 {offsets = [0, 96], sizes = [1, 32], strides = [1, 1]} : vector<2x256xf32> to vector<1x32xf32>
    %22 = vector.extract_strided_slice %17 {offsets = [0, 128], sizes = [1, 32], strides = [1, 1]} : vector<2x256xf32> to vector<1x32xf32>
    %23 = vector.extract_strided_slice %17 {offsets = [0, 160], sizes = [1, 32], strides = [1, 1]} : vector<2x256xf32> to vector<1x32xf32>
    %24 = vector.extract_strided_slice %17 {offsets = [0, 192], sizes = [1, 32], strides = [1, 1]} : vector<2x256xf32> to vector<1x32xf32>
    %25 = vector.extract_strided_slice %17 {offsets = [0, 224], sizes = [1, 32], strides = [1, 1]} : vector<2x256xf32> to vector<1x32xf32>
    %26 = vector.extract_strided_slice %17 {offsets = [1, 0], sizes = [1, 32], strides = [1, 1]} : vector<2x256xf32> to vector<1x32xf32>
    %27 = vector.extract_strided_slice %17 {offsets = [1, 32], sizes = [1, 32], strides = [1, 1]} : vector<2x256xf32> to vector<1x32xf32>
    %28 = vector.extract_strided_slice %17 {offsets = [1, 64], sizes = [1, 32], strides = [1, 1]} : vector<2x256xf32> to vector<1x32xf32>
    %29 = vector.extract_strided_slice %17 {offsets = [1, 96], sizes = [1, 32], strides = [1, 1]} : vector<2x256xf32> to vector<1x32xf32>
    %30 = vector.extract_strided_slice %17 {offsets = [1, 128], sizes = [1, 32], strides = [1, 1]} : vector<2x256xf32> to vector<1x32xf32>
    %31 = vector.extract_strided_slice %17 {offsets = [1, 160], sizes = [1, 32], strides = [1, 1]} : vector<2x256xf32> to vector<1x32xf32>
    %32 = vector.extract_strided_slice %17 {offsets = [1, 192], sizes = [1, 32], strides = [1, 1]} : vector<2x256xf32> to vector<1x32xf32>
    %33 = vector.extract_strided_slice %17 {offsets = [1, 224], sizes = [1, 32], strides = [1, 1]} : vector<2x256xf32> to vector<1x32xf32>
    %34 = tpu.concatenate %18, %19, %20, %21, %22, %23, %24, %25, %26, %27, %28, %29, %30, %31, %32, %33 in 0 : vector<1x32xf32>, vector<1x32xf32>, vector<1x32xf32>, vector<1x32xf32>, vector<1x32xf32>, vector<1x32xf32>, vector<1x32xf32>, vector<1x32xf32>, vector<1x32xf32>, vector<1x32xf32>, vector<1x32xf32>, vector<1x32xf32>, vector<1x32xf32>, vector<1x32xf32>, vector<1x32xf32>, vector<1x32xf32> -> vector<16x32xf32>
    %35 = tpu.concatenate %9, %10, %34 in 1 : vector<16x32xf32>, vector<16x32xf32>, vector<16x32xf32> -> vector<16x96xf32>
    %c0_16 = arith.constant 0 : index
    %c0_17 = arith.constant 0 : index
    %36 = vector.load %arg8[%c0_16, %c0_17] : memref<96x96xf32, #tpu.memory_space<vmem>>, vector<96x96xf32>
    %cst_18 = arith.constant dense<0.000000e+00> : vector<16x96xf32>
    %37 = tpu.matmul %35, %36, %cst_18 {dimension_numbers = #tpu.dot_dimension_numbers<[1], [0], [0], [1], [0, 0, 1, 1], [], []>} : vector<16x96xf32>, vector<96x96xf32>, vector<16x96xf32> -> vector<16x96xf32>
    %c0_19 = arith.constant 0 : index
    %c0_20 = arith.constant 0 : index
    %38 = vector.load %arg9[%c0_19, %c0_20] : memref<1x96xf32, #tpu.memory_space<vmem>>, vector<1x96xf32>
    %39 = vector.broadcast %38 : vector<1x96xf32> to vector<16x96xf32>
    %40 = arith.addf %37, %39 : vector<16x96xf32>
    %c0_21 = arith.constant 0 : index
    %c0_22 = arith.constant 0 : index
    %41 = vector.load %arg10[%c0_21, %c0_22] : memref<96x96xf32, #tpu.memory_space<vmem>>, vector<96x96xf32>
    %cst_23 = arith.constant dense<0.000000e+00> : vector<16x96xf32>
    %42 = tpu.matmul %40, %41, %cst_23 {dimension_numbers = #tpu.dot_dimension_numbers<[1], [0], [0], [1], [0, 0, 1, 1], [], []>} : vector<16x96xf32>, vector<96x96xf32>, vector<16x96xf32> -> vector<16x96xf32>
    %c0_24 = arith.constant 0 : index
    %c0_25 = arith.constant 0 : index
    %43 = vector.load %arg11[%c0_24, %c0_25] : memref<1x96xf32, #tpu.memory_space<vmem>>, vector<1x96xf32>
    %44 = vector.broadcast %43 : vector<1x96xf32> to vector<16x96xf32>
    %45 = arith.addf %42, %44 : vector<16x96xf32>
    %46 = arith.subf %40, %35 : vector<16x96xf32>
    %47 = arith.mulf %46, %46 : vector<16x96xf32>
    %cst_26 = arith.constant dense<0.000000e+00> : vector<16xf32>
    %48 = vector.multi_reduction <add>, %47, %cst_26 [1] : vector<16x96xf32> to vector<16xf32>
    %49 = vector.shape_cast %48 : vector<16xf32> to vector<16x1xf32>
    %cst_27 = arith.constant dense<0.000000e+00> : vector<1xf32>
    %50 = vector.multi_reduction <add>, %49, %cst_27 [0] : vector<16x1xf32> to vector<1xf32>
    %51 = vector.shape_cast %50 : vector<1xf32> to vector<1x1xf32>
    %cst_28 = arith.constant 6.51041686E-4 : f32
    %52 = vector.broadcast %cst_28 : f32 to vector<1x1xf32>
    %53 = arith.mulf %51, %52 : vector<1x1xf32>
    %54 = arith.subf %45, %35 : vector<16x96xf32>
    %55 = arith.mulf %54, %54 : vector<16x96xf32>
    %cst_29 = arith.constant dense<0.000000e+00> : vector<16xf32>
    %56 = vector.multi_reduction <add>, %55, %cst_29 [1] : vector<16x96xf32> to vector<16xf32>
    %57 = vector.shape_cast %56 : vector<16xf32> to vector<16x1xf32>
    %cst_30 = arith.constant dense<0.000000e+00> : vector<1xf32>
    %58 = vector.multi_reduction <add>, %57, %cst_30 [0] : vector<16x1xf32> to vector<1xf32>
    %59 = vector.shape_cast %58 : vector<1xf32> to vector<1x1xf32>
    %cst_31 = arith.constant 6.51041686E-4 : f32
    %60 = vector.broadcast %cst_31 : f32 to vector<1x1xf32>
    %61 = arith.mulf %59, %60 : vector<1x1xf32>
    %62 = tpu.concatenate %53, %61 in 1 : vector<1x1xf32>, vector<1x1xf32> -> vector<1x2xf32>
    %c0_32 = arith.constant 0 : index
    %c0_33 = arith.constant 0 : index
    %63 = vector.load %arg21[%c0_32, %c0_33] : memref<1x2xf32, #tpu.memory_space<vmem>>, vector<1x2xf32>
    tpu.vector_store %arg21[%c0_32, %c0_33], %62 {strides = array<i32>} : memref<1x2xf32, #tpu.memory_space<vmem>>, vector<1x2xf32>,
    %64 = tpu.concatenate %11, %11, %11 in 1 : vector<16x32xf32>, vector<16x32xf32>, vector<16x32xf32> -> vector<16x96xf32>
    %65 = arith.addf %35, %64 : vector<16x96xf32>
    %c0_34 = arith.constant 0 : index
    %c0_35 = arith.constant 0 : index
    %66 = vector.load %arg12[%c0_34, %c0_35] : memref<96x96xf32, #tpu.memory_space<vmem>>, vector<96x96xf32>
    %cst_36 = arith.constant dense<0.000000e+00> : vector<16x96xf32>
    %67 = tpu.matmul %65, %66, %cst_36 {dimension_numbers = #tpu.dot_dimension_numbers<[1], [0], [0], [1], [0, 0, 1, 1], [], []>} : vector<16x96xf32>, vector<96x96xf32>, vector<16x96xf32> -> vector<16x96xf32>
    %c0_37 = arith.constant 0 : index
    %c0_38 = arith.constant 0 : index
    %68 = vector.load %arg13[%c0_37, %c0_38] : memref<1x96xf32, #tpu.memory_space<vmem>>, vector<1x96xf32>
    %69 = vector.broadcast %68 : vector<1x96xf32> to vector<16x96xf32>
    %70 = arith.addf %67, %69 : vector<16x96xf32>
    %71 = vector.extract_strided_slice %65 {offsets = [0, 0], sizes = [16, 32], strides = [1, 1]} : vector<16x96xf32> to vector<16x32xf32>
    %72 = vector.extract_strided_slice %65 {offsets = [0, 32], sizes = [16, 32], strides = [1, 1]} : vector<16x96xf32> to vector<16x32xf32>
    %73 = vector.extract_strided_slice %65 {offsets = [0, 64], sizes = [16, 32], strides = [1, 1]} : vector<16x96xf32> to vector<16x32xf32>
    %74 = tpu.concatenate %71, %72, %73 in 0 : vector<16x32xf32>, vector<16x32xf32>, vector<16x32xf32> -> vector<48x32xf32>
    %c0_39 = arith.constant 0 : index
    %c0_40 = arith.constant 0 : index
    %75 = vector.load %arg14[%c0_39, %c0_40] : memref<32x192xf32, #tpu.memory_space<vmem>>, vector<32x192xf32>
    %cst_41 = arith.constant dense<0.000000e+00> : vector<48x192xf32>
    %76 = tpu.matmul %74, %75, %cst_41 {dimension_numbers = #tpu.dot_dimension_numbers<[1], [0], [0], [1], [0, 0, 1, 1], [], []>} : vector<48x32xf32>, vector<32x192xf32>, vector<48x192xf32> -> vector<48x192xf32>
    %c0_42 = arith.constant 0 : index
    %c0_43 = arith.constant 0 : index
    %77 = vector.load %arg15[%c0_42, %c0_43] : memref<1x192xf32, #tpu.memory_space<vmem>>, vector<1x192xf32>
    %78 = vector.broadcast %77 : vector<1x192xf32> to vector<48x192xf32>
    %79 = arith.addf %76, %78 : vector<48x192xf32>
    %80 = vector.extract_strided_slice %70 {offsets = [0, 0], sizes = [16, 32], strides = [1, 1]} : vector<16x96xf32> to vector<16x32xf32>
    %81 = vector.extract_strided_slice %79 {offsets = [16, 0], sizes = [16, 32], strides = [1, 1]} : vector<48x192xf32> to vector<16x32xf32>
    %82 = vector.extract_strided_slice %79 {offsets = [32, 0], sizes = [16, 32], strides = [1, 1]} : vector<48x192xf32> to vector<16x32xf32>
    %83 = vector.extract_strided_slice %79 {offsets = [16, 32], sizes = [16, 32], strides = [1, 1]} : vector<48x192xf32> to vector<16x32xf32>
    %84 = vector.extract_strided_slice %79 {offsets = [32, 32], sizes = [16, 32], strides = [1, 1]} : vector<48x192xf32> to vector<16x32xf32>
    %85 = vector.extract_strided_slice %80 {offsets = [0, 0], sizes = [16, 8], strides = [1, 1]} : vector<16x32xf32> to vector<16x8xf32>
    %86 = vector.shape_cast %85 : vector<16x8xf32> to vector<2x8x8xf32>
    %87 = vector.extract_strided_slice %81 {offsets = [0, 0], sizes = [16, 8], strides = [1, 1]} : vector<16x32xf32> to vector<16x8xf32>
    %88 = vector.shape_cast %87 : vector<16x8xf32> to vector<2x8x8xf32>
    %89 = vector.extract_strided_slice %82 {offsets = [0, 0], sizes = [16, 8], strides = [1, 1]} : vector<16x32xf32> to vector<16x8xf32>
    %90 = vector.shape_cast %89 : vector<16x8xf32> to vector<2x8x8xf32>
    %91 = tpu.concatenate %88, %90 in 1 : vector<2x8x8xf32>, vector<2x8x8xf32> -> vector<2x16x8xf32>
    %92 = vector.extract_strided_slice %83 {offsets = [0, 0], sizes = [16, 8], strides = [1, 1]} : vector<16x32xf32> to vector<16x8xf32>
    %93 = vector.shape_cast %92 : vector<16x8xf32> to vector<2x8x8xf32>
    %94 = vector.extract_strided_slice %84 {offsets = [0, 0], sizes = [16, 8], strides = [1, 1]} : vector<16x32xf32> to vector<16x8xf32>
    %95 = vector.shape_cast %94 : vector<16x8xf32> to vector<2x8x8xf32>
    %96 = tpu.concatenate %93, %95 in 1 : vector<2x8x8xf32>, vector<2x8x8xf32> -> vector<2x16x8xf32>
    %97 = vector.extract_strided_slice %80 {offsets = [0, 8], sizes = [16, 8], strides = [1, 1]} : vector<16x32xf32> to vector<16x8xf32>
    %98 = vector.shape_cast %97 : vector<16x8xf32> to vector<2x8x8xf32>
    %99 = vector.extract_strided_slice %81 {offsets = [0, 8], sizes = [16, 8], strides = [1, 1]} : vector<16x32xf32> to vector<16x8xf32>
    %100 = vector.shape_cast %99 : vector<16x8xf32> to vector<2x8x8xf32>
    %101 = vector.extract_strided_slice %82 {offsets = [0, 8], sizes = [16, 8], strides = [1, 1]} : vector<16x32xf32> to vector<16x8xf32>
    %102 = vector.shape_cast %101 : vector<16x8xf32> to vector<2x8x8xf32>
    %103 = tpu.concatenate %100, %102 in 1 : vector<2x8x8xf32>, vector<2x8x8xf32> -> vector<2x16x8xf32>
    %104 = vector.extract_strided_slice %83 {offsets = [0, 8], sizes = [16, 8], strides = [1, 1]} : vector<16x32xf32> to vector<16x8xf32>
    %105 = vector.shape_cast %104 : vector<16x8xf32> to vector<2x8x8xf32>
    %106 = vector.extract_strided_slice %84 {offsets = [0, 8], sizes = [16, 8], strides = [1, 1]} : vector<16x32xf32> to vector<16x8xf32>
    %107 = vector.shape_cast %106 : vector<16x8xf32> to vector<2x8x8xf32>
    %108 = tpu.concatenate %105, %107 in 1 : vector<2x8x8xf32>, vector<2x8x8xf32> -> vector<2x16x8xf32>
    %109 = vector.extract_strided_slice %80 {offsets = [0, 16], sizes = [16, 8], strides = [1, 1]} : vector<16x32xf32> to vector<16x8xf32>
    %110 = vector.shape_cast %109 : vector<16x8xf32> to vector<2x8x8xf32>
    %111 = vector.extract_strided_slice %81 {offsets = [0, 16], sizes = [16, 8], strides = [1, 1]} : vector<16x32xf32> to vector<16x8xf32>
    %112 = vector.shape_cast %111 : vector<16x8xf32> to vector<2x8x8xf32>
    %113 = vector.extract_strided_slice %82 {offsets = [0, 16], sizes = [16, 8], strides = [1, 1]} : vector<16x32xf32> to vector<16x8xf32>
    %114 = vector.shape_cast %113 : vector<16x8xf32> to vector<2x8x8xf32>
    %115 = tpu.concatenate %112, %114 in 1 : vector<2x8x8xf32>, vector<2x8x8xf32> -> vector<2x16x8xf32>
    %116 = vector.extract_strided_slice %83 {offsets = [0, 16], sizes = [16, 8], strides = [1, 1]} : vector<16x32xf32> to vector<16x8xf32>
    %117 = vector.shape_cast %116 : vector<16x8xf32> to vector<2x8x8xf32>
    %118 = vector.extract_strided_slice %84 {offsets = [0, 16], sizes = [16, 8], strides = [1, 1]} : vector<16x32xf32> to vector<16x8xf32>
    %119 = vector.shape_cast %118 : vector<16x8xf32> to vector<2x8x8xf32>
    %120 = tpu.concatenate %117, %119 in 1 : vector<2x8x8xf32>, vector<2x8x8xf32> -> vector<2x16x8xf32>
    %121 = vector.extract_strided_slice %80 {offsets = [0, 24], sizes = [16, 8], strides = [1, 1]} : vector<16x32xf32> to vector<16x8xf32>
    %122 = vector.shape_cast %121 : vector<16x8xf32> to vector<2x8x8xf32>
    %123 = vector.extract_strided_slice %81 {offsets = [0, 24], sizes = [16, 8], strides = [1, 1]} : vector<16x32xf32> to vector<16x8xf32>
    %124 = vector.shape_cast %123 : vector<16x8xf32> to vector<2x8x8xf32>
    %125 = vector.extract_strided_slice %82 {offsets = [0, 24], sizes = [16, 8], strides = [1, 1]} : vector<16x32xf32> to vector<16x8xf32>
    %126 = vector.shape_cast %125 : vector<16x8xf32> to vector<2x8x8xf32>
    %127 = tpu.concatenate %124, %126 in 1 : vector<2x8x8xf32>, vector<2x8x8xf32> -> vector<2x16x8xf32>
    %128 = vector.extract_strided_slice %83 {offsets = [0, 24], sizes = [16, 8], strides = [1, 1]} : vector<16x32xf32> to vector<16x8xf32>
    %129 = vector.shape_cast %128 : vector<16x8xf32> to vector<2x8x8xf32>
    %130 = vector.extract_strided_slice %84 {offsets = [0, 24], sizes = [16, 8], strides = [1, 1]} : vector<16x32xf32> to vector<16x8xf32>
    %131 = vector.shape_cast %130 : vector<16x8xf32> to vector<2x8x8xf32>
    %132 = tpu.concatenate %129, %131 in 1 : vector<2x8x8xf32>, vector<2x8x8xf32> -> vector<2x16x8xf32>
    %133 = vector.extract_strided_slice %70 {offsets = [0, 32], sizes = [16, 32], strides = [1, 1]} : vector<16x96xf32> to vector<16x32xf32>
    %134 = vector.extract_strided_slice %79 {offsets = [0, 64], sizes = [16, 32], strides = [1, 1]} : vector<48x192xf32> to vector<16x32xf32>
    %135 = vector.extract_strided_slice %79 {offsets = [32, 64], sizes = [16, 32], strides = [1, 1]} : vector<48x192xf32> to vector<16x32xf32>
    %136 = vector.extract_strided_slice %79 {offsets = [0, 96], sizes = [16, 32], strides = [1, 1]} : vector<48x192xf32> to vector<16x32xf32>
    %137 = vector.extract_strided_slice %79 {offsets = [32, 96], sizes = [16, 32], strides = [1, 1]} : vector<48x192xf32> to vector<16x32xf32>
    %138 = vector.extract_strided_slice %133 {offsets = [0, 0], sizes = [16, 8], strides = [1, 1]} : vector<16x32xf32> to vector<16x8xf32>
    %139 = vector.shape_cast %138 : vector<16x8xf32> to vector<2x8x8xf32>
    %140 = vector.extract_strided_slice %134 {offsets = [0, 0], sizes = [16, 8], strides = [1, 1]} : vector<16x32xf32> to vector<16x8xf32>
    %141 = vector.shape_cast %140 : vector<16x8xf32> to vector<2x8x8xf32>
    %142 = vector.extract_strided_slice %135 {offsets = [0, 0], sizes = [16, 8], strides = [1, 1]} : vector<16x32xf32> to vector<16x8xf32>
    %143 = vector.shape_cast %142 : vector<16x8xf32> to vector<2x8x8xf32>
    %144 = tpu.concatenate %141, %143 in 1 : vector<2x8x8xf32>, vector<2x8x8xf32> -> vector<2x16x8xf32>
    %145 = vector.extract_strided_slice %136 {offsets = [0, 0], sizes = [16, 8], strides = [1, 1]} : vector<16x32xf32> to vector<16x8xf32>
    %146 = vector.shape_cast %145 : vector<16x8xf32> to vector<2x8x8xf32>
    %147 = vector.extract_strided_slice %137 {offsets = [0, 0], sizes = [16, 8], strides = [1, 1]} : vector<16x32xf32> to vector<16x8xf32>
    %148 = vector.shape_cast %147 : vector<16x8xf32> to vector<2x8x8xf32>
    %149 = tpu.concatenate %146, %148 in 1 : vector<2x8x8xf32>, vector<2x8x8xf32> -> vector<2x16x8xf32>
    %150 = vector.extract_strided_slice %133 {offsets = [0, 8], sizes = [16, 8], strides = [1, 1]} : vector<16x32xf32> to vector<16x8xf32>
    %151 = vector.shape_cast %150 : vector<16x8xf32> to vector<2x8x8xf32>
    %152 = vector.extract_strided_slice %134 {offsets = [0, 8], sizes = [16, 8], strides = [1, 1]} : vector<16x32xf32> to vector<16x8xf32>
    %153 = vector.shape_cast %152 : vector<16x8xf32> to vector<2x8x8xf32>
    %154 = vector.extract_strided_slice %135 {offsets = [0, 8], sizes = [16, 8], strides = [1, 1]} : vector<16x32xf32> to vector<16x8xf32>
    %155 = vector.shape_cast %154 : vector<16x8xf32> to vector<2x8x8xf32>
    %156 = tpu.concatenate %153, %155 in 1 : vector<2x8x8xf32>, vector<2x8x8xf32> -> vector<2x16x8xf32>
    %157 = vector.extract_strided_slice %136 {offsets = [0, 8], sizes = [16, 8], strides = [1, 1]} : vector<16x32xf32> to vector<16x8xf32>
    %158 = vector.shape_cast %157 : vector<16x8xf32> to vector<2x8x8xf32>
    %159 = vector.extract_strided_slice %137 {offsets = [0, 8], sizes = [16, 8], strides = [1, 1]} : vector<16x32xf32> to vector<16x8xf32>
    %160 = vector.shape_cast %159 : vector<16x8xf32> to vector<2x8x8xf32>
    %161 = tpu.concatenate %158, %160 in 1 : vector<2x8x8xf32>, vector<2x8x8xf32> -> vector<2x16x8xf32>
    %162 = vector.extract_strided_slice %133 {offsets = [0, 16], sizes = [16, 8], strides = [1, 1]} : vector<16x32xf32> to vector<16x8xf32>
    %163 = vector.shape_cast %162 : vector<16x8xf32> to vector<2x8x8xf32>
    %164 = vector.extract_strided_slice %134 {offsets = [0, 16], sizes = [16, 8], strides = [1, 1]} : vector<16x32xf32> to vector<16x8xf32>
    %165 = vector.shape_cast %164 : vector<16x8xf32> to vector<2x8x8xf32>
    %166 = vector.extract_strided_slice %135 {offsets = [0, 16], sizes = [16, 8], strides = [1, 1]} : vector<16x32xf32> to vector<16x8xf32>
    %167 = vector.shape_cast %166 : vector<16x8xf32> to vector<2x8x8xf32>
    %168 = tpu.concatenate %165, %167 in 1 : vector<2x8x8xf32>, vector<2x8x8xf32> -> vector<2x16x8xf32>
    %169 = vector.extract_strided_slice %136 {offsets = [0, 16], sizes = [16, 8], strides = [1, 1]} : vector<16x32xf32> to vector<16x8xf32>
    %170 = vector.shape_cast %169 : vector<16x8xf32> to vector<2x8x8xf32>
    %171 = vector.extract_strided_slice %137 {offsets = [0, 16], sizes = [16, 8], strides = [1, 1]} : vector<16x32xf32> to vector<16x8xf32>
    %172 = vector.shape_cast %171 : vector<16x8xf32> to vector<2x8x8xf32>
    %173 = tpu.concatenate %170, %172 in 1 : vector<2x8x8xf32>, vector<2x8x8xf32> -> vector<2x16x8xf32>
    %174 = vector.extract_strided_slice %133 {offsets = [0, 24], sizes = [16, 8], strides = [1, 1]} : vector<16x32xf32> to vector<16x8xf32>
    %175 = vector.shape_cast %174 : vector<16x8xf32> to vector<2x8x8xf32>
    %176 = vector.extract_strided_slice %134 {offsets = [0, 24], sizes = [16, 8], strides = [1, 1]} : vector<16x32xf32> to vector<16x8xf32>
    %177 = vector.shape_cast %176 : vector<16x8xf32> to vector<2x8x8xf32>
    %178 = vector.extract_strided_slice %135 {offsets = [0, 24], sizes = [16, 8], strides = [1, 1]} : vector<16x32xf32> to vector<16x8xf32>
    %179 = vector.shape_cast %178 : vector<16x8xf32> to vector<2x8x8xf32>
    %180 = tpu.concatenate %177, %179 in 1 : vector<2x8x8xf32>, vector<2x8x8xf32> -> vector<2x16x8xf32>
    %181 = vector.extract_strided_slice %136 {offsets = [0, 24], sizes = [16, 8], strides = [1, 1]} : vector<16x32xf32> to vector<16x8xf32>
    %182 = vector.shape_cast %181 : vector<16x8xf32> to vector<2x8x8xf32>
    %183 = vector.extract_strided_slice %137 {offsets = [0, 24], sizes = [16, 8], strides = [1, 1]} : vector<16x32xf32> to vector<16x8xf32>
    %184 = vector.shape_cast %183 : vector<16x8xf32> to vector<2x8x8xf32>
    %185 = tpu.concatenate %182, %184 in 1 : vector<2x8x8xf32>, vector<2x8x8xf32> -> vector<2x16x8xf32>
    %186 = vector.extract_strided_slice %70 {offsets = [0, 64], sizes = [16, 32], strides = [1, 1]} : vector<16x96xf32> to vector<16x32xf32>
    %187 = vector.extract_strided_slice %79 {offsets = [0, 128], sizes = [16, 32], strides = [1, 1]} : vector<48x192xf32> to vector<16x32xf32>
    %188 = vector.extract_strided_slice %79 {offsets = [16, 128], sizes = [16, 32], strides = [1, 1]} : vector<48x192xf32> to vector<16x32xf32>
    %189 = vector.extract_strided_slice %79 {offsets = [0, 160], sizes = [16, 32], strides = [1, 1]} : vector<48x192xf32> to vector<16x32xf32>
    %190 = vector.extract_strided_slice %79 {offsets = [16, 160], sizes = [16, 32], strides = [1, 1]} : vector<48x192xf32> to vector<16x32xf32>
    %191 = vector.extract_strided_slice %186 {offsets = [0, 0], sizes = [16, 8], strides = [1, 1]} : vector<16x32xf32> to vector<16x8xf32>
    %192 = vector.shape_cast %191 : vector<16x8xf32> to vector<2x8x8xf32>
    %193 = vector.extract_strided_slice %187 {offsets = [0, 0], sizes = [16, 8], strides = [1, 1]} : vector<16x32xf32> to vector<16x8xf32>
    %194 = vector.shape_cast %193 : vector<16x8xf32> to vector<2x8x8xf32>
    %195 = vector.extract_strided_slice %188 {offsets = [0, 0], sizes = [16, 8], strides = [1, 1]} : vector<16x32xf32> to vector<16x8xf32>
    %196 = vector.shape_cast %195 : vector<16x8xf32> to vector<2x8x8xf32>
    %197 = tpu.concatenate %194, %196 in 1 : vector<2x8x8xf32>, vector<2x8x8xf32> -> vector<2x16x8xf32>
    %198 = vector.extract_strided_slice %189 {offsets = [0, 0], sizes = [16, 8], strides = [1, 1]} : vector<16x32xf32> to vector<16x8xf32>
    %199 = vector.shape_cast %198 : vector<16x8xf32> to vector<2x8x8xf32>
    %200 = vector.extract_strided_slice %190 {offsets = [0, 0], sizes = [16, 8], strides = [1, 1]} : vector<16x32xf32> to vector<16x8xf32>
    %201 = vector.shape_cast %200 : vector<16x8xf32> to vector<2x8x8xf32>
    %202 = tpu.concatenate %199, %201 in 1 : vector<2x8x8xf32>, vector<2x8x8xf32> -> vector<2x16x8xf32>
    %203 = vector.extract_strided_slice %186 {offsets = [0, 8], sizes = [16, 8], strides = [1, 1]} : vector<16x32xf32> to vector<16x8xf32>
    %204 = vector.shape_cast %203 : vector<16x8xf32> to vector<2x8x8xf32>
    %205 = vector.extract_strided_slice %187 {offsets = [0, 8], sizes = [16, 8], strides = [1, 1]} : vector<16x32xf32> to vector<16x8xf32>
    %206 = vector.shape_cast %205 : vector<16x8xf32> to vector<2x8x8xf32>
    %207 = vector.extract_strided_slice %188 {offsets = [0, 8], sizes = [16, 8], strides = [1, 1]} : vector<16x32xf32> to vector<16x8xf32>
    %208 = vector.shape_cast %207 : vector<16x8xf32> to vector<2x8x8xf32>
    %209 = tpu.concatenate %206, %208 in 1 : vector<2x8x8xf32>, vector<2x8x8xf32> -> vector<2x16x8xf32>
    %210 = vector.extract_strided_slice %189 {offsets = [0, 8], sizes = [16, 8], strides = [1, 1]} : vector<16x32xf32> to vector<16x8xf32>
    %211 = vector.shape_cast %210 : vector<16x8xf32> to vector<2x8x8xf32>
    %212 = vector.extract_strided_slice %190 {offsets = [0, 8], sizes = [16, 8], strides = [1, 1]} : vector<16x32xf32> to vector<16x8xf32>
    %213 = vector.shape_cast %212 : vector<16x8xf32> to vector<2x8x8xf32>
    %214 = tpu.concatenate %211, %213 in 1 : vector<2x8x8xf32>, vector<2x8x8xf32> -> vector<2x16x8xf32>
    %215 = vector.extract_strided_slice %186 {offsets = [0, 16], sizes = [16, 8], strides = [1, 1]} : vector<16x32xf32> to vector<16x8xf32>
    %216 = vector.shape_cast %215 : vector<16x8xf32> to vector<2x8x8xf32>
    %217 = vector.extract_strided_slice %187 {offsets = [0, 16], sizes = [16, 8], strides = [1, 1]} : vector<16x32xf32> to vector<16x8xf32>
    %218 = vector.shape_cast %217 : vector<16x8xf32> to vector<2x8x8xf32>
    %219 = vector.extract_strided_slice %188 {offsets = [0, 16], sizes = [16, 8], strides = [1, 1]} : vector<16x32xf32> to vector<16x8xf32>
    %220 = vector.shape_cast %219 : vector<16x8xf32> to vector<2x8x8xf32>
    %221 = tpu.concatenate %218, %220 in 1 : vector<2x8x8xf32>, vector<2x8x8xf32> -> vector<2x16x8xf32>
    %222 = vector.extract_strided_slice %189 {offsets = [0, 16], sizes = [16, 8], strides = [1, 1]} : vector<16x32xf32> to vector<16x8xf32>
    %223 = vector.shape_cast %222 : vector<16x8xf32> to vector<2x8x8xf32>
    %224 = vector.extract_strided_slice %190 {offsets = [0, 16], sizes = [16, 8], strides = [1, 1]} : vector<16x32xf32> to vector<16x8xf32>
    %225 = vector.shape_cast %224 : vector<16x8xf32> to vector<2x8x8xf32>
    %226 = tpu.concatenate %223, %225 in 1 : vector<2x8x8xf32>, vector<2x8x8xf32> -> vector<2x16x8xf32>
    %227 = vector.extract_strided_slice %186 {offsets = [0, 24], sizes = [16, 8], strides = [1, 1]} : vector<16x32xf32> to vector<16x8xf32>
    %228 = vector.shape_cast %227 : vector<16x8xf32> to vector<2x8x8xf32>
    %229 = vector.extract_strided_slice %187 {offsets = [0, 24], sizes = [16, 8], strides = [1, 1]} : vector<16x32xf32> to vector<16x8xf32>
    %230 = vector.shape_cast %229 : vector<16x8xf32> to vector<2x8x8xf32>
    %231 = vector.extract_strided_slice %188 {offsets = [0, 24], sizes = [16, 8], strides = [1, 1]} : vector<16x32xf32> to vector<16x8xf32>
    %232 = vector.shape_cast %231 : vector<16x8xf32> to vector<2x8x8xf32>
    %233 = tpu.concatenate %230, %232 in 1 : vector<2x8x8xf32>, vector<2x8x8xf32> -> vector<2x16x8xf32>
    %234 = vector.extract_strided_slice %189 {offsets = [0, 24], sizes = [16, 8], strides = [1, 1]} : vector<16x32xf32> to vector<16x8xf32>
    %235 = vector.shape_cast %234 : vector<16x8xf32> to vector<2x8x8xf32>
    %236 = vector.extract_strided_slice %190 {offsets = [0, 24], sizes = [16, 8], strides = [1, 1]} : vector<16x32xf32> to vector<16x8xf32>
    %237 = vector.shape_cast %236 : vector<16x8xf32> to vector<2x8x8xf32>
    %238 = tpu.concatenate %235, %237 in 1 : vector<2x8x8xf32>, vector<2x8x8xf32> -> vector<2x16x8xf32>
    %239 = tpu.concatenate %86, %98, %110, %122, %139, %151, %163, %175, %192, %204, %216, %228 in 0 : vector<2x8x8xf32>, vector<2x8x8xf32>, vector<2x8x8xf32>, vector<2x8x8xf32>, vector<2x8x8xf32>, vector<2x8x8xf32>, vector<2x8x8xf32>, vector<2x8x8xf32>, vector<2x8x8xf32>, vector<2x8x8xf32>, vector<2x8x8xf32>, vector<2x8x8xf32> -> vector<24x8x8xf32>
    %240 = tpu.concatenate %91, %103, %115, %127, %144, %156, %168, %180, %197, %209, %221, %233 in 0 : vector<2x16x8xf32>, vector<2x16x8xf32>, vector<2x16x8xf32>, vector<2x16x8xf32>, vector<2x16x8xf32>, vector<2x16x8xf32>, vector<2x16x8xf32>, vector<2x16x8xf32>, vector<2x16x8xf32>, vector<2x16x8xf32>, vector<2x16x8xf32>, vector<2x16x8xf32> -> vector<24x16x8xf32>
    %241 = tpu.concatenate %96, %108, %120, %132, %149, %161, %173, %185, %202, %214, %226, %238 in 0 : vector<2x16x8xf32>, vector<2x16x8xf32>, vector<2x16x8xf32>, vector<2x16x8xf32>, vector<2x16x8xf32>, vector<2x16x8xf32>, vector<2x16x8xf32>, vector<2x16x8xf32>, vector<2x16x8xf32>, vector<2x16x8xf32>, vector<2x16x8xf32>, vector<2x16x8xf32> -> vector<24x16x8xf32>
    "tpu.trace_start"() <{level = 10 : i32, message = "bqd,bkd->bqk"}> : () -> ()
    %cst_44 = arith.constant dense<0.000000e+00> : vector<24x8x16xf32>
    %242 = tpu.matmul %239, %240, %cst_44 {dimension_numbers = #tpu.dot_dimension_numbers<[2], [2], [1], [1], [0, 0, 0, 1, 1, 1], [0], [0]>} : vector<24x8x8xf32>, vector<24x16x8xf32>, vector<24x8x16xf32> -> vector<24x8x16xf32>
    "tpu.trace_stop"() : () -> ()
    %cst_45 = arith.constant dense<0xFF800000> : vector<24x8xf32>
    %243 = vector.multi_reduction <maximumf>, %242, %cst_45 [2] : vector<24x8x16xf32> to vector<24x8xf32>
    %244 = vector.shape_cast %243 : vector<24x8xf32> to vector<24x8x1xf32>
    %245 = vector.broadcast %244 : vector<24x8x1xf32> to vector<24x8x16xf32>
    %246 = arith.subf %242, %245 : vector<24x8x16xf32>
    %247 = math.exp %246 : vector<24x8x16xf32>
    %cst_46 = arith.constant dense<0.000000e+00> : vector<24x8xf32>
    %248 = vector.multi_reduction <add>, %247, %cst_46 [2] : vector<24x8x16xf32> to vector<24x8xf32>
    %249 = vector.shape_cast %248 : vector<24x8xf32> to vector<24x8x1xf32>
    %250 = tpu.reciprocal %249 {approx = true} : vector<24x8x1xf32> -> vector<24x8x1xf32>
    %251 = vector.broadcast %250 : vector<24x8x1xf32> to vector<24x8x16xf32>
    %252 = arith.mulf %247, %251 : vector<24x8x16xf32>
    "tpu.trace_start"() <{level = 10 : i32, message = "bqk,bkd->bqd"}> : () -> ()
    %cst_47 = arith.constant dense<0.000000e+00> : vector<24x8x8xf32>
    %253 = tpu.matmul %252, %241, %cst_47 {dimension_numbers = #tpu.dot_dimension_numbers<[2], [1], [1], [2], [0, 0, 0, 1, 1, 2], [0], [0]>} : vector<24x8x16xf32>, vector<24x16x8xf32>, vector<24x8x8xf32> -> vector<24x8x8xf32>
    "tpu.trace_stop"() : () -> ()
    %254 = vector.extract_strided_slice %253 {offsets = [0, 0, 0], sizes = [2, 8, 8], strides = [1, 1, 1]} : vector<24x8x8xf32> to vector<2x8x8xf32>
    %255 = vector.shape_cast %254 : vector<2x8x8xf32> to vector<16x8xf32>
    %256 = vector.extract_strided_slice %253 {offsets = [2, 0, 0], sizes = [2, 8, 8], strides = [1, 1, 1]} : vector<24x8x8xf32> to vector<2x8x8xf32>
    %257 = vector.shape_cast %256 : vector<2x8x8xf32> to vector<16x8xf32>
    %258 = vector.extract_strided_slice %253 {offsets = [4, 0, 0], sizes = [2, 8, 8], strides = [1, 1, 1]} : vector<24x8x8xf32> to vector<2x8x8xf32>
    %259 = vector.shape_cast %258 : vector<2x8x8xf32> to vector<16x8xf32>
    %260 = vector.extract_strided_slice %253 {offsets = [6, 0, 0], sizes = [2, 8, 8], strides = [1, 1, 1]} : vector<24x8x8xf32> to vector<2x8x8xf32>
    %261 = vector.shape_cast %260 : vector<2x8x8xf32> to vector<16x8xf32>
    %262 = tpu.concatenate %255, %257, %259, %261 in 1 : vector<16x8xf32>, vector<16x8xf32>, vector<16x8xf32>, vector<16x8xf32> -> vector<16x32xf32>
    %263 = vector.extract_strided_slice %253 {offsets = [8, 0, 0], sizes = [2, 8, 8], strides = [1, 1, 1]} : vector<24x8x8xf32> to vector<2x8x8xf32>
    %264 = vector.shape_cast %263 : vector<2x8x8xf32> to vector<16x8xf32>
    %265 = vector.extract_strided_slice %253 {offsets = [10, 0, 0], sizes = [2, 8, 8], strides = [1, 1, 1]} : vector<24x8x8xf32> to vector<2x8x8xf32>
    %266 = vector.shape_cast %265 : vector<2x8x8xf32> to vector<16x8xf32>
    %267 = vector.extract_strided_slice %253 {offsets = [12, 0, 0], sizes = [2, 8, 8], strides = [1, 1, 1]} : vector<24x8x8xf32> to vector<2x8x8xf32>
    %268 = vector.shape_cast %267 : vector<2x8x8xf32> to vector<16x8xf32>
    %269 = vector.extract_strided_slice %253 {offsets = [14, 0, 0], sizes = [2, 8, 8], strides = [1, 1, 1]} : vector<24x8x8xf32> to vector<2x8x8xf32>
    %270 = vector.shape_cast %269 : vector<2x8x8xf32> to vector<16x8xf32>
    %271 = tpu.concatenate %264, %266, %268, %270 in 1 : vector<16x8xf32>, vector<16x8xf32>, vector<16x8xf32>, vector<16x8xf32> -> vector<16x32xf32>
    %272 = vector.extract_strided_slice %253 {offsets = [16, 0, 0], sizes = [2, 8, 8], strides = [1, 1, 1]} : vector<24x8x8xf32> to vector<2x8x8xf32>
    %273 = vector.shape_cast %272 : vector<2x8x8xf32> to vector<16x8xf32>
    %274 = vector.extract_strided_slice %253 {offsets = [18, 0, 0], sizes = [2, 8, 8], strides = [1, 1, 1]} : vector<24x8x8xf32> to vector<2x8x8xf32>
    %275 = vector.shape_cast %274 : vector<2x8x8xf32> to vector<16x8xf32>
    %276 = vector.extract_strided_slice %253 {offsets = [20, 0, 0], sizes = [2, 8, 8], strides = [1, 1, 1]} : vector<24x8x8xf32> to vector<2x8x8xf32>
    %277 = vector.shape_cast %276 : vector<2x8x8xf32> to vector<16x8xf32>
    %278 = vector.extract_strided_slice %253 {offsets = [22, 0, 0], sizes = [2, 8, 8], strides = [1, 1, 1]} : vector<24x8x8xf32> to vector<2x8x8xf32>
    %279 = vector.shape_cast %278 : vector<2x8x8xf32> to vector<16x8xf32>
    %280 = tpu.concatenate %273, %275, %277, %279 in 1 : vector<16x8xf32>, vector<16x8xf32>, vector<16x8xf32>, vector<16x8xf32> -> vector<16x32xf32>
    %281 = tpu.concatenate %262, %271, %280 in 1 : vector<16x32xf32>, vector<16x32xf32>, vector<16x32xf32> -> vector<16x96xf32>
    %c0_48 = arith.constant 0 : index
    %c0_49 = arith.constant 0 : index
    %282 = vector.load %arg16[%c0_48, %c0_49] : memref<96x96xf32, #tpu.memory_space<vmem>>, vector<96x96xf32>
    %cst_50 = arith.constant dense<0.000000e+00> : vector<16x96xf32>
    %283 = tpu.matmul %281, %282, %cst_50 {dimension_numbers = #tpu.dot_dimension_numbers<[1], [0], [0], [1], [0, 0, 1, 1], [], []>} : vector<16x96xf32>, vector<96x96xf32>, vector<16x96xf32> -> vector<16x96xf32>
    %c0_51 = arith.constant 0 : index
    %c0_52 = arith.constant 0 : index
    %284 = vector.load %arg17[%c0_51, %c0_52] : memref<1x96xf32, #tpu.memory_space<vmem>>, vector<1x96xf32>
    %285 = vector.broadcast %284 : vector<1x96xf32> to vector<16x96xf32>
    %286 = arith.addf %283, %285 : vector<16x96xf32>
    %287 = vector.extract_strided_slice %286 {offsets = [0, 0], sizes = [8, 96], strides = [1, 1]} : vector<16x96xf32> to vector<8x96xf32>
    %cst_53 = arith.constant dense<0.000000e+00> : vector<96xf32>
    %288 = vector.multi_reduction <add>, %287, %cst_53 [0] : vector<8x96xf32> to vector<96xf32>
    %289 = vector.shape_cast %288 : vector<96xf32> to vector<1x96xf32>
    %cst_54 = arith.constant 1.250000e-01 : f32
    %290 = vector.broadcast %cst_54 : f32 to vector<1x96xf32>
    %291 = arith.mulf %289, %290 : vector<1x96xf32>
    %292 = vector.extract_strided_slice %286 {offsets = [8, 0], sizes = [8, 96], strides = [1, 1]} : vector<16x96xf32> to vector<8x96xf32>
    %cst_55 = arith.constant dense<0.000000e+00> : vector<96xf32>
    %293 = vector.multi_reduction <add>, %292, %cst_55 [0] : vector<8x96xf32> to vector<96xf32>
    %294 = vector.shape_cast %293 : vector<96xf32> to vector<1x96xf32>
    %cst_56 = arith.constant 1.250000e-01 : f32
    %295 = vector.broadcast %cst_56 : f32 to vector<1x96xf32>
    %296 = arith.mulf %294, %295 : vector<1x96xf32>
    %297 = tpu.concatenate %291, %296 in 0 : vector<1x96xf32>, vector<1x96xf32> -> vector<2x96xf32>
    %c0_57 = arith.constant 0 : index
    %c0_58 = arith.constant 0 : index
    %298 = vector.load %arg18[%c0_57, %c0_58] : memref<96x16xf32, #tpu.memory_space<vmem>>, vector<96x16xf32>
    %cst_59 = arith.constant dense<0.000000e+00> : vector<2x16xf32>
    %299 = tpu.matmul %297, %298, %cst_59 {dimension_numbers = #tpu.dot_dimension_numbers<[1], [0], [0], [1], [0, 0, 1, 1], [], []>} : vector<2x96xf32>, vector<96x16xf32>, vector<2x16xf32> -> vector<2x16xf32>
    %c0_60 = arith.constant 0 : index
    %c0_61 = arith.constant 0 : index
    %300 = vector.load %arg19[%c0_60, %c0_61] : memref<1x16xf32, #tpu.memory_space<vmem>>, vector<1x16xf32>
    %301 = vector.broadcast %300 : vector<1x16xf32> to vector<2x16xf32>
    %302 = arith.addf %299, %301 : vector<2x16xf32>
    %c0_62 = arith.constant 0 : index
    %c0_63 = arith.constant 0 : index
    %303 = vector.load %arg20[%c0_62, %c0_63] : memref<2x16xf32, #tpu.memory_space<vmem>>, vector<2x16xf32>
    tpu.vector_store %arg20[%c0_62, %c0_63], %302 {strides = array<i32>} : memref<2x16xf32, #tpu.memory_space<vmem>>, vector<2x16xf32>,
    return
  }
}

</mosaic_0001>

<llo_original>
// kernel: squeeze.1
$region0: #{squeeze.1}
  %s0 = inlined_call_operand.hbm [shape: f32[2,1,3,8,8], index: 0, kind: input, shape index: {}]
  %s1 = inlined_call_operand.vmem [shape: f32[2,192], index: 1, kind: output, shape index: {}]
  $region1: #{squeeze.1} parent=0
    #allocation0 [shape = 'u8[24576]{0}', space=vmem, size = 0x6000, scoped, tag = 'operand span for operand 0']
    #allocation1 [shape = 's32[1]{0}', space=sflag, size = 0x4, scoped, tag = 'scoped memory for squeeze.1']
    #allocation2 [shape = 'u8[8192]{0}', space=vmem, size = 0x2000, scoped, tag = 'scoped mem for output reshape']
    %2 = vsyncpa [#allocation1], 0
    %s4 = ssub.s32 768, 768
    %5 = vsyncadd [#allocation1], %s4
    %s7 = sshll.u32 [#allocation0], 4
    %s8 = int_to_ptr.vmem [resolvable:$true] %s7
    %10 = dma.hbm_to_vmem [thread:$0]  %s0, 768, %s8, [#allocation1]
    %11 = dma.done [#allocation1], 768
    %s12 = smov 3
    %v13 = vld [vmem:[#allocation0] ss:$16 sm:%s12]
    %vm14 = vcmask 64512
    %15 = vst.msk [vmem:[#allocation2] ss:$8 sm:$0x3] %vm14, %v13
    %s16 = scalar_lea.vmem [#allocation0], 24
    %s17 = smov 3
    %v18 = vld [vmem:[%s16] ss:$16 sm:%s17]
    %vm19 = vcmask 64512
    %s20 = scalar_lea.vmem [#allocation2], 1
    %21 = vst.msk [vmem:[%s20] ss:$8 sm:$0x3] %vm19, %v18
    %s22 = scalar_lea.vmem [#allocation0], 15
    %s23 = smov 3
    %v24 = vld [vmem:[%s22] ss:$24 sm:%s23]
    %25 = vrot.lane.b32.xlu0 %v24, 120
    %v26 = vpop.permute.xlu0 %25
    %vm27 = vcmask 1048512
    %28 = vst.msk [vmem:[#allocation2] sm:$0x3] %vm27, %v26
    %s29 = scalar_lea.vmem [#allocation0], 14
    %s30 = smov 3
    %v31 = vld [vmem:[%s29] ss:$24 sm:%s30]
    %32 = vrot.lane.b32.xlu0 %v31, 112
    %v33 = vpop.permute.xlu0 %32
    %vm34 = vcmask 982912
    %35 = vst.msk [vmem:[#allocation2] sm:$0x3] %vm34, %v33
    %s36 = scalar_lea.vmem [#allocation0], 13
    %s37 = smov 3
    %v38 = vld [vmem:[%s36] ss:$24 sm:%s37]
    %39 = vrot.lane.b32.xlu0 %v38, 104
    %v40 = vpop.permute.xlu0 %39
    %vm41 = vcmask 917312
    %42 = vst.msk [vmem:[#allocation2] sm:$0x3] %vm41, %v40
    %s43 = scalar_lea.vmem [#allocation0], 12
    %s44 = smov 3
    %v45 = vld [vmem:[%s43] ss:$24 sm:%s44]
    %46 = vrot.lane.b32.xlu0 %v45, 96
    %v47 = vpop.permute.xlu0 %46
    %vm48 = vcmask 851712
    %49 = vst.msk [vmem:[#allocation2] sm:$0x3] %vm48, %v47
    %s50 = scalar_lea.vmem [#allocation0], 11
    %s51 = smov 3
    %v52 = vld [vmem:[%s50] ss:$24 sm:%s51]
    %53 = vrot.lane.b32.xlu0 %v52, 88
    %v54 = vpop.permute.xlu0 %53
    %vm55 = vcmask 786112
    %56 = vst.msk [vmem:[#allocation2] sm:$0x3] %vm55, %v54
    %s57 = scalar_lea.vmem [#allocation0], 10
    %s58 = smov 3
    %v59 = vld [vmem:[%s57] ss:$24 sm:%s58]
    %60 = vrot.lane.b32.xlu0 %v59, 80
    %v61 = vpop.permute.xlu0 %60
    %vm62 = vcmask 720512
    %63 = vst.msk [vmem:[#allocation2] sm:$0x3] %vm62, %v61
    %s64 = scalar_lea.vmem [#allocation0], 9
    %s65 = smov 3
    %v66 = vld [vmem:[%s64] ss:$24 sm:%s65]
    %67 = vrot.lane.b32.xlu0 %v66, 72
    %v68 = vpop.permute.xlu0 %67
    %vm69 = vcmask 654912
    %70 = vst.msk [vmem:[#allocation2] sm:$0x3] %vm69, %v68
    %s71 = scalar_lea.vmem [#allocation0], 8
    %s72 = smov 3
    %v73 = vld [vmem:[%s71] ss:$24 sm:%s72]
    %74 = vrot.lane.b32.xlu0 %v73, 64
    %v75 = vpop.permute.xlu0 %74
    %vm76 = vcmask 589312
    %77 = vst.msk [vmem:[#allocation2] sm:$0x3] %vm76, %v75
    %s78 = scalar_lea.vmem [#allocation0], 7
    %s79 = smov 3
    %v80 = vld [vmem:[%s78] ss:$24 sm:%s79]
    %s81 = scalar_lea.vmem [#allocation0], 4294967271
    %s82 = smov 12
    %v83 = vld [vmem:[%s81] ss:$24 sm:%s82]
    %vm84 = vcmask 1043458
    %v85 = vsel %vm84, %v83, %v80
    %86 = vrot.lane.b32.xlu0 %v85, 56
    %v87 = vpop.permute.xlu0 %86
    %vm88 = vcmask 523712
    %89 = vst.msk [vmem:[#allocation2] sm:$0x3] %vm88, %v87
    %s90 = scalar_lea.vmem [#allocation2], 6
    %91 = vst.msk [vmem:[%s90] sm:$0xc] %vm88, %v87
    %s92 = scalar_lea.vmem [#allocation0], 6
    %s93 = smov 3
    %v94 = vld [vmem:[%s92] ss:$24 sm:%s93]
    %s95 = scalar_lea.vmem [#allocation0], 4294967270
    %s96 = smov 12
    %v97 = vld [vmem:[%s95] ss:$24 sm:%s96]
    %vm98 = vcmask 1043458
    %v99 = vsel %vm98, %v97, %v94
    %100 = vrot.lane.b32.xlu0 %v99, 48
    %v101 = vpop.permute.xlu0 %100
    %vm102 = vcmask 458112
    %103 = vst.msk [vmem:[#allocation2] sm:$0x3] %vm102, %v101
    %s104 = scalar_lea.vmem [#allocation2], 6
    %105 = vst.msk [vmem:[%s104] sm:$0xc] %vm102, %v101
    %s106 = scalar_lea.vmem [#allocation0], 5
    %s107 = smov 3
    %v108 = vld [vmem:[%s106] ss:$24 sm:%s107]
    %s109 = scalar_lea.vmem [#allocation0], 4294967269
    %s110 = smov 12
    %v111 = vld [vmem:[%s109] ss:$24 sm:%s110]
    %vm112 = vcmask 1043458
    %v113 = vsel %vm112, %v111, %v108
    %114 = vrot.lane.b32.xlu0 %v113, 40
    %v115 = vpop.permute.xlu0 %114
    %vm116 = vcmask 392512
    %117 = vst.msk [vmem:[#allocation2] sm:$0x3] %vm116, %v115
    %s118 = scalar_lea.vmem [#allocation2], 6
    %119 = vst.msk [vmem:[%s118] sm:$0xc] %vm116, %v115
    %s120 = scalar_lea.vmem [#allocation0], 4
    %s121 = smov 3
    %v122 = vld [vmem:[%s120] ss:$24 sm:%s121]
    %s123 = scalar_lea.vmem [#allocation0], 4294967268
    %s124 = smov 12
    %v125 = vld [vmem:[%s123] ss:$24 sm:%s124]
    %vm126 = vcmask 1043458
    %v127 = vsel %vm126, %v125, %v122
    %128 = vrot.lane.b32.xlu0 %v127, 32
    %v129 = vpop.permute.xlu0 %128
    %vm130 = vcmask 326912
    %131 = vst.msk [vmem:[#allocation2] sm:$0x3] %vm130, %v129
    %s132 = scalar_lea.vmem [#allocation2], 6
    %133 = vst.msk [vmem:[%s132] sm:$0xc] %vm130, %v129
    %s134 = scalar_lea.vmem [#allocation0], 3
    %s135 = smov 3
    %v136 = vld [vmem:[%s134] ss:$24 sm:%s135]
    %s137 = scalar_lea.vmem [#allocation0], 4294967267
    %s138 = smov 12
    %v139 = vld [vmem:[%s137] ss:$24 sm:%s138]
    %vm140 = vcmask 1043458
    %v141 = vsel %vm140, %v139, %v136
    %142 = vrot.lane.b32.xlu0 %v141, 24
    %v143 = vpop.permute.xlu0 %142
    %vm144 = vcmask 261312
    %145 = vst.msk [vmem:[#allocation2] sm:$0x3] %vm144, %v143
    %s146 = scalar_lea.vmem [#allocation2], 6
    %147 = vst.msk [vmem:[%s146] sm:$0xc] %vm144, %v143
    %s148 = scalar_lea.vmem [#allocation0], 2
    %s149 = smov 3
    %v150 = vld [vmem:[%s148] ss:$24 sm:%s149]
    %s151 = scalar_lea.vmem [#allocation0], 4294967266
    %s152 = smov 12
    %v153 = vld [vmem:[%s151] ss:$24 sm:%s152]
    %vm154 = vcmask 1043458
    %v155 = vsel %vm154, %v153, %v150
    %156 = vrot.lane.b32.xlu0 %v155, 16
    %v157 = vpop.permute.xlu0 %156
    %vm158 = vcmask 195712
    %159 = vst.msk [vmem:[#allocation2] sm:$0x3] %vm158, %v157
    %s160 = scalar_lea.vmem [#allocation2], 6
    %161 = vst.msk [vmem:[%s160] sm:$0xc] %vm158, %v157
    %s162 = scalar_lea.vmem [#allocation0], 1
    %s163 = smov 3
    %v164 = vld [vmem:[%s162] ss:$24 sm:%s163]
    %s165 = scalar_lea.vmem [#allocation0], 4294967265
    %s166 = smov 12
    %v167 = vld [vmem:[%s165] ss:$24 sm:%s166]
    %vm168 = vcmask 1043458
    %v169 = vsel %vm168, %v167, %v164
    %170 = vrot.lane.b32.xlu0 %v169, 8
    %v171 = vpop.permute.xlu0 %170
    %vm172 = vcmask 130112
    %173 = vst.msk [vmem:[#allocation2] sm:$0x3] %vm172, %v171
    %s174 = scalar_lea.vmem [#allocation2], 6
    %175 = vst.msk [vmem:[%s174] sm:$0xc] %vm172, %v171
    %s177 = sshll.u32 1, 2
    %s178 = ssub.s32 %s177, 1
    %v180 = vld [vmem:[#allocation2] sm:%s178]
    %s181 = sshll.u32 1, 2
    %s182 = ssub.s32 %s181, 1
    %183 = vst [vmem:[%s1] sm:%s182] %v180
    %s184 = scalar_lea.vmem [#allocation2], 8
    %v185 = vld [vmem:[%s184] sm:%s178]
    %s186 = sshll.u32 1, 2
    %s187 = ssub.s32 %s186, 1
    %s188 = scalar_lea.vmem %s1, 2
    %189 = vst [vmem:[%s188] sm:%s187] %v185
    %190 = vsyncpa [#allocation1], 1

// kernel: _forward_core.1
$region0: #{_forward_core.1}
  #allocation0 [shape = 'u32[]', space=smem, size = 0x4, offset = 0x4, fixed_abs, tag = 'smem constant byte address 0x4 - core index']
  #allocation1 [shape = 'u32[144,128]{1,0:T(1,128)}', space=vmem, size = 0x12000, scoped, tag = 'internal scratch']
  %s0 = inlined_call_operand.vmem [shape: f32[16,6], index: 0, kind: input, shape index: {}]
  %s1 = inlined_call_operand.vmem [shape: f32[16,5], index: 1, kind: input, shape index: {}]
  %s2 = inlined_call_operand.vmem [shape: f32[16,4], index: 2, kind: input, shape index: {}]
  %s3 = inlined_call_operand.vmem [shape: f32[2,192], index: 3, kind: input, shape index: {}]
  %s4 = inlined_call_operand.hbm [shape: f32[15,96], index: 4, kind: input, shape index: {}]
  %s5 = inlined_call_operand.hbm [shape: f32[1,96], index: 5, kind: input, shape index: {}]
  %s6 = inlined_call_operand.hbm [shape: f32[192,256], index: 6, kind: input, shape index: {}]
  %s7 = inlined_call_operand.hbm [shape: f32[1,256], index: 7, kind: input, shape index: {}]
  %s8 = inlined_call_operand.vmem [shape: f32[96,96], index: 8, kind: input, shape index: {}]
  %s9 = inlined_call_operand.hbm [shape: f32[1,96], index: 9, kind: input, shape index: {}]
  %s10 = inlined_call_operand.vmem [shape: f32[96,96], index: 10, kind: input, shape index: {}]
  %s11 = inlined_call_operand.hbm [shape: f32[1,96], index: 11, kind: input, shape index: {}]
  %s12 = inlined_call_operand.hbm [shape: f32[96,96], index: 12, kind: input, shape index: {}]
  %s13 = inlined_call_operand.hbm [shape: f32[1,96], index: 13, kind: input, shape index: {}]
  %s14 = inlined_call_operand.vmem [shape: f32[32,192], index: 14, kind: input, shape index: {}]
  %s15 = inlined_call_operand.hbm [shape: f32[1,192], index: 15, kind: input, shape index: {}]
  %s16 = inlined_call_operand.hbm [shape: f32[96,96], index: 16, kind: input, shape index: {}]
  %s17 = inlined_call_operand.hbm [shape: f32[1,96], index: 17, kind: input, shape index: {}]
  %s18 = inlined_call_operand.vmem [shape: f32[96,16], index: 18, kind: input, shape index: {}]
  %s19 = inlined_call_operand.hbm [shape: f32[1,16], index: 19, kind: input, shape index: {}]
  %s20 = inlined_call_operand.hbm [shape: f32[2,16], index: 20, kind: output, shape index: {0}]
  %s21 = inlined_call_operand.hbm [shape: f32[1,2], index: 21, kind: output, shape index: {1}]
  %22 = xla_tuple %s20, %s21
  %s23 = sld [smem:[#allocation0]]
  $region146: #{_forward_core.1} parent=0
    _
  %s25 = ssub.s32 1, %s23
  %s26 = scalar_select 0, %s25, %s23
  $region1: #{_forward_core.1} parent=0
    #allocation2 [shape = 'u8[8192]{0}', space=vmem, size = 0x2000, scoped, tag = 'input window, operand 4, single buffered']
    #allocation3 [shape = 's32[1]{0}', space=sflag, size = 0x4, scoped, tag = 'scoped memory for _forward_core.1']
    #allocation4 [shape = 's32[1]{0}', space=sflag, size = 0x4, scoped, tag = 'scoped memory for _forward_core.1']
    #allocation5 [shape = 'u8[512]{0}', space=vmem, size = 0x400, scoped, tag = 'input window, operand 5, single buffered']
    #allocation6 [shape = 's32[1]{0}', space=sflag, size = 0x4, scoped, tag = 'scoped memory for _forward_core.1']
    #allocation7 [shape = 'u8[196608]{0}', space=vmem, size = 0x30000, scoped, tag = 'input window, operand 6, single buffered']
    #allocation8 [shape = 'u8[1024]{0}', space=vmem, size = 0x400, scoped, tag = 'input window, operand 7, single buffered']
    #allocation9 [shape = 's32[1]{0}', space=sflag, size = 0x4, scoped, tag = 'scoped memory for _forward_core.1']
    #allocation10 [shape = 'u8[512]{0}', space=vmem, size = 0x400, scoped, tag = 'input window, operand 9, single buffered']
    #allocation11 [shape = 'u8[512]{0}', space=vmem, size = 0x400, scoped, tag = 'input window, operand 11, single buffered']
    #allocation12 [shape = 's32[1]{0}', space=sflag, size = 0x4, scoped, tag = 'scoped memory for _forward_core.1']
    #allocation13 [shape = 'u8[49152]{0}', space=vmem, size = 0xc000, scoped, tag = 'input window, operand 12, single buffered']
    #allocation14 [shape = 'u8[512]{0}', space=vmem, size = 0x400, scoped, tag = 'input window, operand 13, single buffered']
    #allocation15 [shape = 's32[1]{0}', space=sflag, size = 0x4, scoped, tag = 'scoped memory for _forward_core.1']
    #allocation16 [shape = 'u8[1024]{0}', space=vmem, size = 0x400, scoped, tag = 'input window, operand 15, single buffered']
    #allocation17 [shape = 'u8[49152]{0}', space=vmem, size = 0xc000, scoped, tag = 'input window, operand 16, single buffered']
    #allocation18 [shape = 's32[1]{0}', space=sflag, size = 0x4, scoped, tag = 'scoped memory for _forward_core.1']
    #allocation19 [shape = 'u8[512]{0}', space=vmem, size = 0x400, scoped, tag = 'input window, operand 17, single buffered']
    #allocation20 [shape = 'u8[512]{0}', space=vmem, size = 0x400, scoped, tag = 'input window, operand 19, single buffered']
    #allocation21 [shape = 's32[1]{0}', space=sflag, size = 0x4, scoped, tag = 'scoped memory for _forward_core.1']
    #allocation22 [shape = 'u8[1024]{0}', space=vmem, size = 0x400, scoped, tag = 'output window, operand 0, single buffered']
    #allocation23 [shape = 'u8[512]{0}', space=vmem, size = 0x400, scoped, tag = 'output window, operand 1, single buffered']
    #allocation24 [shape = 's32[1]{0}', space=sflag, size = 0x4, scoped, tag = 'scoped memory for _forward_core.1']
    %27 = vsyncpa [#allocation3], 0
    %28 = vsyncpa [#allocation6], 0
    %29 = vsyncpa [#allocation9], 0
    %30 = vsyncpa [#allocation12], 0
    %31 = vsyncpa [#allocation15], 0
    %32 = vsyncpa [#allocation18], 0
    %33 = vsyncpa [#allocation21], 0
    %34 = vsyncpa [#allocation4], 0
    %35 = vsyncpa [#allocation24], 0
    // Predicated region
    $region2: #{_forward_core.1} parent=1 // pred_check
      _
    $region3: #{_forward_core.1} parent=1 // pred_check_branch
      %37 = sbr.rel (0) target = $region5
    $region4: #{_forward_core.1} parent=1 // pred_region
      _
    $region5: #{_forward_core.1} parent=1 // pred_fallthru
      _
    // Predicated region
    $region6: #{_forward_core.1} parent=1 // pred_check
      _
    $region7: #{_forward_core.1} parent=1 // pred_check_branch
      %39 = sbr.rel (0) target = $region9
    $region8: #{_forward_core.1} parent=1 // pred_region
      _
    $region9: #{_forward_core.1} parent=1 // pred_fallthru
      _
    // Predicated region
    $region10: #{_forward_core.1} parent=1 // pred_check
      _
    $region11: #{_forward_core.1} parent=1 // pred_check_branch
      %41 = sbr.rel (0) target = $region13
    $region12: #{_forward_core.1} parent=1 // pred_region
      _
    $region13: #{_forward_core.1} parent=1 // pred_fallthru
      _
    // Predicated region
    $region14: #{_forward_core.1} parent=1 // pred_check
      _
    $region15: #{_forward_core.1} parent=1 // pred_check_branch
      %43 = sbr.rel (0) target = $region17
    $region16: #{_forward_core.1} parent=1 // pred_region
      _
    $region17: #{_forward_core.1} parent=1 // pred_fallthru
      _
    // Predicated region
    $region18: #{_forward_core.1} parent=1 // pred_check
      _
    $region19: #{_forward_core.1} parent=1 // pred_check_branch
      %45 = sbr.rel (0) target = $region21
    $region20: #{_forward_core.1} parent=1 // pred_region
      %s47 = ssub.s32 256, 256
      %48 = vsyncadd [#allocation3], %s47
      %s49 = sshll.u32 [#allocation2], 4
      %s50 = int_to_ptr.vmem [resolvable:$true] %s49
      %55 = dma.hbm_to_vmem [thread:$0]  %s4, 256, %s50, [#allocation3], 128, 128, 8
    $region21: #{_forward_core.1} parent=1 // pred_fallthru
      _
    // Predicated region
    $region22: #{_forward_core.1} parent=1 // pred_check
      _
    $region23: #{_forward_core.1} parent=1 // pred_check_branch
      %57 = sbr.rel (0) target = $region25
    $region24: #{_forward_core.1} parent=1 // pred_region
      %s59 = ssub.s32 16, 16
      %60 = vsyncadd [#allocation6], %s59
      %s62 = sshll.u32 [#allocation5], 4
      %s63 = int_to_ptr.vmem [resolvable:$true] %s62
      %65 = dma.hbm_to_vmem [thread:$0]  %s5, 16, %s63, [#allocation6]
    $region25: #{_forward_core.1} parent=1 // pred_fallthru
      _
    // Predicated region
    $region26: #{_forward_core.1} parent=1 // pred_check
      _
    $region27: #{_forward_core.1} parent=1 // pred_check_branch
      %67 = sbr.rel (0) target = $region29
    $region28: #{_forward_core.1} parent=1 // pred_region
      %s69 = ssub.s32 6144, 6144
      %70 = vsyncadd [#allocation6], %s69
      %s71 = sshll.u32 [#allocation7], 4
      %s72 = int_to_ptr.vmem [resolvable:$true] %s71
      %77 = dma.hbm_to_vmem [thread:$0]  %s6, 6144, %s72, [#allocation6], 256, 256, 16
    $region29: #{_forward_core.1} parent=1 // pred_fallthru
      _
    // Predicated region
    $region30: #{_forward_core.1} parent=1 // pred_check
      _
    $region31: #{_forward_core.1} parent=1 // pred_check_branch
      %79 = sbr.rel (0) target = $region33
    $region32: #{_forward_core.1} parent=1 // pred_region
      %s81 = ssub.s32 32, 32
      %82 = vsyncadd [#allocation9], %s81
      %s84 = sshll.u32 [#allocation8], 4
      %s85 = int_to_ptr.vmem [resolvable:$true] %s84
      %87 = dma.hbm_to_vmem [thread:$0]  %s7, 32, %s85, [#allocation9]
    $region33: #{_forward_core.1} parent=1 // pred_fallthru
      _
    // Predicated region
    $region34: #{_forward_core.1} parent=1 // pred_check
      _
    $region35: #{_forward_core.1} parent=1 // pred_check_branch
      %89 = sbr.rel (0) target = $region37
    $region36: #{_forward_core.1} parent=1 // pred_region
      _
    $region37: #{_forward_core.1} parent=1 // pred_fallthru
      _
    // Predicated region
    $region38: #{_forward_core.1} parent=1 // pred_check
      _
    $region39: #{_forward_core.1} parent=1 // pred_check_branch
      %91 = sbr.rel (0) target = $region41
    $region40: #{_forward_core.1} parent=1 // pred_region
      %s93 = ssub.s32 16, 16
      %94 = vsyncadd [#allocation9], %s93
      %s96 = sshll.u32 [#allocation10], 4
      %s97 = int_to_ptr.vmem [resolvable:$true] %s96
      %99 = dma.hbm_to_vmem [thread:$0]  %s9, 16, %s97, [#allocation9]
    $region41: #{_forward_core.1} parent=1 // pred_fallthru
      _
    // Predicated region
    $region42: #{_forward_core.1} parent=1 // pred_check
      _
    $region43: #{_forward_core.1} parent=1 // pred_check_branch
      %101 = sbr.rel (0) target = $region45
    $region44: #{_forward_core.1} parent=1 // pred_region
      _
    $region45: #{_forward_core.1} parent=1 // pred_fallthru
      _
    // Predicated region
    $region46: #{_forward_core.1} parent=1 // pred_check
      _
    $region47: #{_forward_core.1} parent=1 // pred_check_branch
      %103 = sbr.rel (0) target = $region49
    $region48: #{_forward_core.1} parent=1 // pred_region
      %s105 = ssub.s32 16, 16
      %106 = vsyncadd [#allocation12], %s105
      %s108 = sshll.u32 [#allocation11], 4
      %s109 = int_to_ptr.vmem [resolvable:$true] %s108
      %111 = dma.hbm_to_vmem [thread:$0]  %s11, 16, %s109, [#allocation12]
    $region49: #{_forward_core.1} parent=1 // pred_fallthru
      _
    // Predicated region
    $region50: #{_forward_core.1} parent=1 // pred_check
      _
    $region51: #{_forward_core.1} parent=1 // pred_check_branch
      %113 = sbr.rel (0) target = $region53
    $region52: #{_forward_core.1} parent=1 // pred_region
      %s115 = ssub.s32 1536, 1536
      %116 = vsyncadd [#allocation12], %s115
      %s117 = sshll.u32 [#allocation13], 4
      %s118 = int_to_ptr.vmem [resolvable:$true] %s117
      %123 = dma.hbm_to_vmem [thread:$0]  %s12, 1536, %s118, [#allocation12], 128, 128, 8
    $region53: #{_forward_core.1} parent=1 // pred_fallthru
      _
    // Predicated region
    $region54: #{_forward_core.1} parent=1 // pred_check
      _
    $region55: #{_forward_core.1} parent=1 // pred_check_branch
      %125 = sbr.rel (0) target = $region57
    $region56: #{_forward_core.1} parent=1 // pred_region
      %s127 = ssub.s32 16, 16
      %128 = vsyncadd [#allocation15], %s127
      %s130 = sshll.u32 [#allocation14], 4
      %s131 = int_to_ptr.vmem [resolvable:$true] %s130
      %133 = dma.hbm_to_vmem [thread:$0]  %s13, 16, %s131, [#allocation15]
    $region57: #{_forward_core.1} parent=1 // pred_fallthru
      _
    // Predicated region
    $region58: #{_forward_core.1} parent=1 // pred_check
      _
    $region59: #{_forward_core.1} parent=1 // pred_check_branch
      %135 = sbr.rel (0) target = $region61
    $region60: #{_forward_core.1} parent=1 // pred_region
      _
    $region61: #{_forward_core.1} parent=1 // pred_fallthru
      _
    // Predicated region
    $region62: #{_forward_core.1} parent=1 // pred_check
      _
    $region63: #{_forward_core.1} parent=1 // pred_check_branch
      %137 = sbr.rel (0) target = $region65
    $region64: #{_forward_core.1} parent=1 // pred_region
      %s139 = ssub.s32 32, 32
      %140 = vsyncadd [#allocation15], %s139
      %s142 = sshll.u32 [#allocation16], 4
      %s143 = int_to_ptr.vmem [resolvable:$true] %s142
      %145 = dma.hbm_to_vmem [thread:$0]  %s15, 32, %s143, [#allocation15]
    $region65: #{_forward_core.1} parent=1 // pred_fallthru
      _
    // Predicated region
    $region66: #{_forward_core.1} parent=1 // pred_check
      _
    $region67: #{_forward_core.1} parent=1 // pred_check_branch
      %147 = sbr.rel (0) target = $region69
    $region68: #{_forward_core.1} parent=1 // pred_region
      %s149 = ssub.s32 1536, 1536
      %150 = vsyncadd [#allocation18], %s149
      %s151 = sshll.u32 [#allocation17], 4
      %s152 = int_to_ptr.vmem [resolvable:$true] %s151
      %157 = dma.hbm_to_vmem [thread:$0]  %s16, 1536, %s152, [#allocation18], 128, 128, 8
    $region69: #{_forward_core.1} parent=1 // pred_fallthru
      _
    // Predicated region
    $region70: #{_forward_core.1} parent=1 // pred_check
      _
    $region71: #{_forward_core.1} parent=1 // pred_check_branch
      %159 = sbr.rel (0) target = $region73
    $region72: #{_forward_core.1} parent=1 // pred_region
      %s161 = ssub.s32 16, 16
      %162 = vsyncadd [#allocation18], %s161
      %s164 = sshll.u32 [#allocation19], 4
      %s165 = int_to_ptr.vmem [resolvable:$true] %s164
      %167 = dma.hbm_to_vmem [thread:$0]  %s17, 16, %s165, [#allocation18]
    $region73: #{_forward_core.1} parent=1 // pred_fallthru
      _
    // Predicated region
    $region74: #{_forward_core.1} parent=1 // pred_check
      _
    $region75: #{_forward_core.1} parent=1 // pred_check_branch
      %169 = sbr.rel (0) target = $region77
    $region76: #{_forward_core.1} parent=1 // pred_region
      _
    $region77: #{_forward_core.1} parent=1 // pred_fallthru
      _
    // Predicated region
    $region78: #{_forward_core.1} parent=1 // pred_check
      _
    $region79: #{_forward_core.1} parent=1 // pred_check_branch
      %171 = sbr.rel (0) target = $region81
    $region80: #{_forward_core.1} parent=1 // pred_region
      %s173 = ssub.s32 16, 16
      %174 = vsyncadd [#allocation21], %s173
      %s176 = sshll.u32 [#allocation20], 4
      %s177 = int_to_ptr.vmem [resolvable:$true] %s176
      %179 = dma.hbm_to_vmem [thread:$0]  %s19, 16, %s177, [#allocation21]
    $region81: #{_forward_core.1} parent=1 // pred_fallthru
      _
    // Predicated region
    $region82: #{_forward_core.1} parent=1 // pred_check
      _
    $region83: #{_forward_core.1} parent=1 // pred_check_branch
      %181 = sbr.rel (0) target = $region85
    $region84: #{_forward_core.1} parent=1 // pred_region
      %182 = dma.done [#allocation3], 256
    $region85: #{_forward_core.1} parent=1 // pred_fallthru
      _
    // Predicated region
    $region86: #{_forward_core.1} parent=1 // pred_check
      _
    $region87: #{_forward_core.1} parent=1 // pred_check_branch
      %184 = sbr.rel (0) target = $region89
    $region88: #{_forward_core.1} parent=1 // pred_region
      %185 = dma.done [#allocation6], 16
    $region89: #{_forward_core.1} parent=1 // pred_fallthru
      _
    // Predicated region
    $region90: #{_forward_core.1} parent=1 // pred_check
      _
    $region91: #{_forward_core.1} parent=1 // pred_check_branch
      %187 = sbr.rel (0) target = $region93
    $region92: #{_forward_core.1} parent=1 // pred_region
      %188 = dma.done [#allocation6], 6144
    $region93: #{_forward_core.1} parent=1 // pred_fallthru
      _
    // Predicated region
    $region94: #{_forward_core.1} parent=1 // pred_check
      _
    $region95: #{_forward_core.1} parent=1 // pred_check_branch
      %190 = sbr.rel (0) target = $region97
    $region96: #{_forward_core.1} parent=1 // pred_region
      %191 = dma.done [#allocation9], 32
    $region97: #{_forward_core.1} parent=1 // pred_fallthru
      _
    // Predicated region
    $region98: #{_forward_core.1} parent=1 // pred_check
      _
    $region99: #{_forward_core.1} parent=1 // pred_check_branch
      %193 = sbr.rel (0) target = $region101
    $region100: #{_forward_core.1} parent=1 // pred_region
      %194 = dma.done [#allocation9], 16
    $region101: #{_forward_core.1} parent=1 // pred_fallthru
      _
    // Predicated region
    $region102: #{_forward_core.1} parent=1 // pred_check
      _
    $region103: #{_forward_core.1} parent=1 // pred_check_branch
      %196 = sbr.rel (0) target = $region105
    $region104: #{_forward_core.1} parent=1 // pred_region
      %197 = dma.done [#allocation12], 16
    $region105: #{_forward_core.1} parent=1 // pred_fallthru
      _
    // Predicated region
    $region106: #{_forward_core.1} parent=1 // pred_check
      _
    $region107: #{_forward_core.1} parent=1 // pred_check_branch
      %199 = sbr.rel (0) target = $region109
    $region108: #{_forward_core.1} parent=1 // pred_region
      %200 = dma.done [#allocation12], 1536
    $region109: #{_forward_core.1} parent=1 // pred_fallthru
      _
    // Predicated region
    $region110: #{_forward_core.1} parent=1 // pred_check
      _
    $region111: #{_forward_core.1} parent=1 // pred_check_branch
      %202 = sbr.rel (0) target = $region113
    $region112: #{_forward_core.1} parent=1 // pred_region
      %203 = dma.done [#allocation15], 16
    $region113: #{_forward_core.1} parent=1 // pred_fallthru
      _
    // Predicated region
    $region114: #{_forward_core.1} parent=1 // pred_check
      _
    $region115: #{_forward_core.1} parent=1 // pred_check_branch
      %205 = sbr.rel (0) target = $region117
    $region116: #{_forward_core.1} parent=1 // pred_region
      %206 = dma.done [#allocation15], 32
    $region117: #{_forward_core.1} parent=1 // pred_fallthru
      _
    // Predicated region
    $region118: #{_forward_core.1} parent=1 // pred_check
      _
    $region119: #{_forward_core.1} parent=1 // pred_check_branch
      %208 = sbr.rel (0) target = $region121
    $region120: #{_forward_core.1} parent=1 // pred_region
      %209 = dma.done [#allocation18], 1536
    $region121: #{_forward_core.1} parent=1 // pred_fallthru
      _
    // Predicated region
    $region122: #{_forward_core.1} parent=1 // pred_check
      _
    $region123: #{_forward_core.1} parent=1 // pred_check_branch
      %211 = sbr.rel (0) target = $region125
    $region124: #{_forward_core.1} parent=1 // pred_region
      %212 = dma.done [#allocation18], 16
    $region125: #{_forward_core.1} parent=1 // pred_fallthru
      _
    // Predicated region
    $region126: #{_forward_core.1} parent=1 // pred_check
      _
    $region127: #{_forward_core.1} parent=1 // pred_check_branch
      %214 = sbr.rel (0) target = $region129
    $region128: #{_forward_core.1} parent=1 // pred_region
      %215 = dma.done [#allocation21], 16
    $region129: #{_forward_core.1} parent=1 // pred_fallthru
      _
    %v216 = vld [vmem:[%s0] sm:$0xff]
    %v217 = vld [vmem:[%s0 + $0x8] sm:$0xff]
    %v218 = vld [vmem:[%s1] sm:$0xff]
    %v219 = vld [vmem:[%s1 + $0x8] sm:$0xff]
    %v220 = vld [vmem:[%s2] sm:$0xff]
    %v221 = vld [vmem:[%s2 + $0x8] sm:$0xff]
    %224 = vrot.lane.b32.xlu0 %v218, 6
    %v225 = vpop.permute.xlu0 %224
    %226 = vrot.lane.b32.xlu0 %v219, 6
    %v227 = vpop.permute.xlu0 %226
    %232 = vrot.lane.b32.xlu0 %v220, 11
    %v233 = vpop.permute.xlu0 %232
    %234 = vrot.lane.b32.xlu0 %v221, 11
    %v235 = vpop.permute.xlu0 %234
    %vm238 = vcmask 48128
    %v239 = vsel %vm238, %v216, %v225
    %v240 = vsel %vm238, %v217, %v227
    %vm241 = vcmask 89088
    %v242 = vsel %vm241, %v239, %v233
    %v243 = vsel %vm241, %v240, %v235
    %v244 = vld [vmem:[#allocation2] sm:$0xff]
    %v245 = vld [vmem:[#allocation2 + $0x8] sm:$0x7f]
    %v246 = vld [vmem:[#allocation5] sm:$0x1]
    %v248 = vlaneseq
    %v249 = vshrl.u32 %v248, 7
    %v250 = vsub.s32 0, %v249
    %v251 = vrot.slane %v246, %v250
    %vm253 = vcmask 121856
    %v255 = vsel %vm253, %v242, 0
    %v258 = vsel %vm253, %v243, 0
    %vm260 = vcmask 1046528
    %v262 = vsel %vm260, %v245, 0
    %264 = vmatprep.subr.mxu0 0.0
    %265 = vmatpush1.msra.mxu0 0.0
    %266 = vmatprep.subr.mxu0 0.0
    %267 = vmatpush1.msra.mxu0 0.0
    %268 = vmatprep.subr.mxu0 0.0
    %269 = vmatpush1.msra.mxu0 0.0
    %270 = vmatprep.subr.mxu0 0.0
    %271 = vmatpush1.msra.mxu0 0.0
    %272 = vmatprep.subr.mxu0 0.0
    %273 = vmatpush1.msra.mxu0 0.0
    %274 = vmatprep.subr.mxu0 0.0
    %275 = vmatpush1.msra.mxu0 0.0
    %276 = vmatprep.subr.mxu0 0.0
    %277 = vmatpush1.msra.mxu0 0.0
    %278 = vmatprep.subr.mxu0 0.0
    %279 = vmatpush1.msra.mxu0 0.0
    %280 = vmatprep.subr.mxu0 0.0
    %281 = vmatpush1.msra.mxu0 0.0
    %282 = vmatprep.subr.mxu0 0.0
    %283 = vmatpush1.msra.mxu0 0.0
    %284 = vmatprep.subr.mxu0 0.0
    %285 = vmatpush1.msra.mxu0 0.0
    %286 = vmatprep.subr.mxu0 0.0
    %287 = vmatpush1.msra.mxu0 0.0
    %288 = vmatprep.subr.mxu0 0.0
    %289 = vmatpush1.msra.mxu0 0.0
    %290 = vmatprep.subr.mxu0 0.0
    %291 = vmatpush1.msra.mxu0 0.0
    %292 = vmatprep.subr.mxu0 0.0
    %293 = vmatpush1.msra.mxu0 %v262
    %294 = vmatprep.subr.mxu0 0.0
    %295 = vmatpush1.msra.mxu0 %v244
    %296 = vmatprep.subr.mxu0 0.0
    %297 = vmatpush2.msra.mxu0 0.0
    %298 = vmatprep.subr.mxu0 0.0
    %299 = vmatpush2.msra.mxu0 0.0
    %300 = vmatprep.subr.mxu0 0.0
    %301 = vmatpush2.msra.mxu0 0.0
    %302 = vmatprep.subr.mxu0 0.0
    %303 = vmatpush2.msra.mxu0 0.0
    %304 = vmatprep.subr.mxu0 0.0
    %305 = vmatpush2.msra.mxu0 0.0
    %306 = vmatprep.subr.mxu0 0.0
    %307 = vmatpush2.msra.mxu0 0.0
    %308 = vmatprep.subr.mxu0 0.0
    %309 = vmatpush2.msra.mxu0 0.0
    %310 = vmatprep.subr.mxu0 0.0
    %311 = vmatpush2.msra.mxu0 0.0
    %312 = vmatprep.subr.mxu0 0.0
    %313 = vmatpush2.msra.mxu0 0.0
    %314 = vmatprep.subr.mxu0 0.0
    %315 = vmatpush2.msra.mxu0 0.0
    %316 = vmatprep.subr.mxu0 0.0
    %317 = vmatpush2.msra.mxu0 0.0
    %318 = vmatprep.subr.mxu0 0.0
    %319 = vmatpush2.msra.mxu0 0.0
    %320 = vmatprep.subr.mxu0 0.0
    %321 = vmatpush2.msra.mxu0 0.0
    %322 = vmatprep.subr.mxu0 0.0
    %323 = vmatpush2.msra.mxu0 0.0
    %324 = vmatprep.subr.mxu0 0.0
    %325 = vmatpush2.msra.mxu0 0.0
    %326 = vmatprep.subr.mxu0 0.0
    %327 = vmatpush2.msra.mxu0 0.0
    %328 = vmatprep.mubr.f32.mxu0 0.0
    %329 = vmatmul.mubr.f32.gmra.mxu0 %v255
    %v330 = vpop.f32.mrf.mxu0
    %v331 = vadd.f32 %v251, %v330
    %v332 = vpop.f32.mrf.mxu0
    %333 = vmatprep.mubr.f32.mxu0 0.0
    %334 = vmatmul.mubr.f32.gmra.mxu0 %v258
    %v335 = vpop.f32.mrf.mxu0
    %v336 = vadd.f32 %v251, %v335
    %v337 = vpop.f32.mrf.mxu0
    %338 = vdwg.mxu0
    %v339 = vld [vmem:[%s3] sm:$0xf]
    %v340 = vld [vmem:[#allocation7] sm:$0xff]
    %v341 = vld [vmem:[#allocation7 + $0x8] sm:$0xff]
    %v342 = vld [vmem:[#allocation7 + $0x10] sm:$0xff]
    %v343 = vld [vmem:[#allocation7 + $0x18] sm:$0xff]
    %v344 = vld [vmem:[#allocation7 + $0x20] sm:$0xff]
    %v345 = vld [vmem:[#allocation7 + $0x28] sm:$0xff]
    %v346 = vld [vmem:[#allocation7 + $0x30] sm:$0xff]
    %v347 = vld [vmem:[#allocation7 + $0x38] sm:$0xff]
    %v348 = vld [vmem:[#allocation7 + $0x40] sm:$0xff]
    %v349 = vld [vmem:[#allocation7 + $0x48] sm:$0xff]
    %v350 = vld [vmem:[#allocation7 + $0x50] sm:$0xff]
    %v351 = vld [vmem:[#allocation7 + $0x58] sm:$0xff]
    %v352 = vld [vmem:[#allocation7 + $0x60] sm:$0xff]
    %v353 = vld [vmem:[#allocation7 + $0x68] sm:$0xff]
    %v354 = vld [vmem:[#allocation7 + $0x70] sm:$0xff]
    %v355 = vld [vmem:[#allocation7 + $0x78] sm:$0xff]
    %v356 = vld [vmem:[#allocation7 + $0x80] sm:$0xff]
    %v357 = vld [vmem:[#allocation7 + $0x88] sm:$0xff]
    %v358 = vld [vmem:[#allocation7 + $0x90] sm:$0xff]
    %v359 = vld [vmem:[#allocation7 + $0x98] sm:$0xff]
    %v360 = vld [vmem:[#allocation7 + $0xa0] sm:$0xff]
    %v361 = vld [vmem:[#allocation7 + $0xa8] sm:$0xff]
    %v362 = vld [vmem:[#allocation7 + $0xb0] sm:$0xff]
    %v363 = vld [vmem:[#allocation7 + $0xb8] sm:$0xff]
    %v364 = vld [vmem:[#allocation7 + $0xc0] sm:$0xff]
    %v365 = vld [vmem:[#allocation7 + $0xc8] sm:$0xff]
    %v366 = vld [vmem:[#allocation7 + $0xd0] sm:$0xff]
    %v367 = vld [vmem:[#allocation7 + $0xd8] sm:$0xff]
    %v368 = vld [vmem:[#allocation7 + $0xe0] sm:$0xff]
    %v369 = vld [vmem:[#allocation7 + $0xe8] sm:$0xff]
    %v370 = vld [vmem:[#allocation7 + $0xf0] sm:$0xff]
    %v371 = vld [vmem:[#allocation7 + $0xf8] sm:$0xff]
    %v372 = vld [vmem:[#allocation7 + $0x100] sm:$0xff]
    %v373 = vld [vmem:[#allocation7 + $0x108] sm:$0xff]
    %v374 = vld [vmem:[#allocation7 + $0x110] sm:$0xff]
    %v375 = vld [vmem:[#allocation7 + $0x118] sm:$0xff]
    %v376 = vld [vmem:[#allocation7 + $0x120] sm:$0xff]
    %v377 = vld [vmem:[#allocation7 + $0x128] sm:$0xff]
    %v378 = vld [vmem:[#allocation7 + $0x130] sm:$0xff]
    %v379 = vld [vmem:[#allocation7 + $0x138] sm:$0xff]
    %v380 = vld [vmem:[#allocation7 + $0x140] sm:$0xff]
    %v381 = vld [vmem:[#allocation7 + $0x148] sm:$0xff]
    %v382 = vld [vmem:[#allocation7 + $0x150] sm:$0xff]
    %v383 = vld [vmem:[#allocation7 + $0x158] sm:$0xff]
    %v384 = vld [vmem:[#allocation7 + $0x160] sm:$0xff]
    %v385 = vld [vmem:[#allocation7 + $0x168] sm:$0xff]
    %v386 = vld [vmem:[#allocation7 + $0x170] sm:$0xff]
    %v387 = vld [vmem:[#allocation7 + $0x178] sm:$0xff]
    %v388 = vld [vmem:[#allocation8] sm:$0x3]
    %v390 = vlaneseq
    %v391 = vshrl.u32 %v390, 7
    %v392 = vsub.s32 0, %v391
    %v393 = vrot.slane %v388, %v392
    %v394 = vlaneseq
    %v395 = vshrl.u32 %v394, 7
    %v396 = vsub.s32 1, %v395
    %v397 = vrot.slane %v388, %v396
    %v402 = vunpack.c.l.s4 1983009808
    %v403 = vunpack.c.0.s8 %v402
    %v404 = vlaneseq
    %v405 = vshrl.u32 %v404, 7
    %v406 = vsub.s32 %v403, %v405
    %v407 = vrot.slane %v339, %v406
    %v408 = vcombine.high %v407, %v407
    %vm410 = vcmask 523264
    %v411 = vsel %vm410, %v408, 0
    %413 = vmatprep.subr.mxu0 %v371
    %414 = vmatpush1.msra.mxu0 %v370
    %415 = vmatprep.subr.mxu0 %v369
    %416 = vmatpush1.msra.mxu0 %v368
    %417 = vmatprep.subr.mxu0 %v367
    %418 = vmatpush1.msra.mxu0 %v366
    %419 = vmatprep.subr.mxu0 %v365
    %420 = vmatpush1.msra.mxu0 %v364
    %421 = vmatprep.subr.mxu0 %v363
    %422 = vmatpush1.msra.mxu0 %v362
    %423 = vmatprep.subr.mxu0 %v361
    %424 = vmatpush1.msra.mxu0 %v360
    %425 = vmatprep.subr.mxu0 %v359
    %426 = vmatpush1.msra.mxu0 %v358
    %427 = vmatprep.subr.mxu0 %v357
    %428 = vmatpush1.msra.mxu0 %v356
    %429 = vmatprep.subr.mxu0 %v355
    %430 = vmatpush1.msra.mxu0 %v354
    %431 = vmatprep.subr.mxu0 %v353
    %432 = vmatpush1.msra.mxu0 %v352
    %433 = vmatprep.subr.mxu0 %v351
    %434 = vmatpush1.msra.mxu0 %v350
    %435 = vmatprep.subr.mxu0 %v349
    %436 = vmatpush1.msra.mxu0 %v348
    %437 = vmatprep.subr.mxu0 %v347
    %438 = vmatpush1.msra.mxu0 %v346
    %439 = vmatprep.subr.mxu0 %v345
    %440 = vmatpush1.msra.mxu0 %v344
    %441 = vmatprep.subr.mxu0 %v343
    %442 = vmatpush1.msra.mxu0 %v342
    %443 = vmatprep.subr.mxu0 %v341
    %444 = vmatpush1.msra.mxu0 %v340
    %445 = vmatprep.subr.mxu0 0.0
    %446 = vmatpush2.msra.mxu0 0.0
    %447 = vmatprep.subr.mxu0 0.0
    %448 = vmatpush2.msra.mxu0 0.0
    %449 = vmatprep.subr.mxu0 0.0
    %450 = vmatpush2.msra.mxu0 0.0
    %451 = vmatprep.subr.mxu0 0.0
    %452 = vmatpush2.msra.mxu0 0.0
    %453 = vmatprep.subr.mxu0 0.0
    %454 = vmatpush2.msra.mxu0 0.0
    %455 = vmatprep.subr.mxu0 0.0
    %456 = vmatpush2.msra.mxu0 0.0
    %457 = vmatprep.subr.mxu0 0.0
    %458 = vmatpush2.msra.mxu0 0.0
    %459 = vmatprep.subr.mxu0 0.0
    %460 = vmatpush2.msra.mxu0 0.0
    %461 = vmatprep.subr.mxu0 %v387
    %462 = vmatpush2.msra.mxu0 %v386
    %463 = vmatprep.subr.mxu0 %v385
    %464 = vmatpush2.msra.mxu0 %v384
    %465 = vmatprep.subr.mxu0 %v383
    %466 = vmatpush2.msra.mxu0 %v382
    %467 = vmatprep.subr.mxu0 %v381
    %468 = vmatpush2.msra.mxu0 %v380
    %469 = vmatprep.subr.mxu0 %v379
    %470 = vmatpush2.msra.mxu0 %v378
    %471 = vmatprep.subr.mxu0 %v377
    %472 = vmatpush2.msra.mxu0 %v376
    %473 = vmatprep.subr.mxu0 %v375
    %474 = vmatpush2.msra.mxu0 %v374
    %475 = vmatprep.subr.mxu0 %v373
    %476 = vmatpush2.msra.mxu0 %v372
    %477 = vmatprep.mubr.f32.mxu0 %v411
    %478 = vmatmul.mubr.f32.gmra.mxu0 %v407
    %v479 = vpop.f32.mrf.mxu0
    %v480 = vadd.f32 %v393, %v479
    %v481 = vpop.f32.mrf.mxu0
    %v482 = vadd.f32 %v397, %v481
    %483 = vdwg.mxu0
    %v485 = vrot.slane %v480, 7
    %486 = vrot.lane.b32.xlu0 %v485, 96
    %v487 = vpop.permute.xlu0 %486
    %v489 = vrot.slane %v480, 6
    %490 = vrot.lane.b32.xlu0 %v489, 64
    %v491 = vpop.permute.xlu0 %490
    %v493 = vrot.slane %v480, 5
    %494 = vrot.lane.b32.xlu0 %v493, 32
    %v495 = vpop.permute.xlu0 %494
    %v498 = vrot.slane %v482, 4
    %v500 = vrot.slane %v482, 3
    %501 = vrot.lane.b32.xlu0 %v500, 96
    %v502 = vpop.permute.xlu0 %501
    %v504 = vrot.slane %v482, 2
    %505 = vrot.lane.b32.xlu0 %v504, 64
    %v506 = vpop.permute.xlu0 %505
    %v508 = vrot.slane %v482, 1
    %509 = vrot.lane.b32.xlu0 %v508, 32
    %v510 = vpop.permute.xlu0 %509
    %v512 = vrot.slane %v480, 1
    %514 = vrot.lane.b32.xlu0 %v480, 96
    %v515 = vpop.permute.xlu0 %514
    %517 = vrot.lane.b32.xlu0 %v485, 64
    %v518 = vpop.permute.xlu0 %517
    %520 = vrot.lane.b32.xlu0 %v489, 32
    %v521 = vpop.permute.xlu0 %520
    %v523 = vrot.slane %v482, 5
    %525 = vrot.lane.b32.xlu0 %v498, 96
    %v526 = vpop.permute.xlu0 %525
    %528 = vrot.lane.b32.xlu0 %v500, 64
    %v529 = vpop.permute.xlu0 %528
    %531 = vrot.lane.b32.xlu0 %v504, 32
    %v532 = vpop.permute.xlu0 %531
    %vm534 = vcmask 1040384
    %v535 = vsel %vm534, %v480, %v487
    %vm536 = vcmask 1041408
    %v537 = vsel %vm536, %v535, %v491
    %vm538 = vcmask 1042432
    %v539 = vsel %vm538, %v537, %v495
    %vm540 = vcmask 1043456
    %v541 = vsel %vm540, %v539, %v498
    %vm542 = vcmask 1044480
    %v543 = vsel %vm542, %v541, %v502
    %vm544 = vcmask 1045504
    %v545 = vsel %vm544, %v543, %v506
    %v546 = vsel %vm260, %v545, %v510
    %v547 = vsel %vm534, %v512, %v515
    %v548 = vsel %vm536, %v547, %v518
    %v549 = vsel %vm538, %v548, %v521
    %v550 = vsel %vm540, %v549, %v523
    %v551 = vsel %vm542, %v550, %v526
    %v552 = vsel %vm544, %v551, %v529
    %v553 = vsel %vm260, %v552, %v532
    %556 = vrot.lane.b32.xlu0 %v546, 64
    %v557 = vpop.permute.xlu0 %556
    %558 = vrot.lane.b32.xlu0 %v553, 64
    %v559 = vpop.permute.xlu0 %558
    %v562 = vsel %vm410, %v331, %v557
    %v563 = vsel %vm410, %v336, %v559
    %v564 = vld [vmem:[%s8] sm:$0xff]
    %v565 = vld [vmem:[%s8 + $0x8] sm:$0xff]
    %v566 = vld [vmem:[%s8 + $0x10] sm:$0xff]
    %v567 = vld [vmem:[%s8 + $0x18] sm:$0xff]
    %v568 = vld [vmem:[%s8 + $0x20] sm:$0xff]
    %v569 = vld [vmem:[%s8 + $0x28] sm:$0xff]
    %v570 = vld [vmem:[%s8 + $0x30] sm:$0xff]
    %v571 = vld [vmem:[%s8 + $0x38] sm:$0xff]
    %v572 = vld [vmem:[%s8 + $0x40] sm:$0xff]
    %v573 = vld [vmem:[%s8 + $0x48] sm:$0xff]
    %v574 = vld [vmem:[%s8 + $0x50] sm:$0xff]
    %v575 = vld [vmem:[%s8 + $0x58] sm:$0xff]
    %v576 = vld [vmem:[#allocation10] sm:$0x1]
    %v578 = vlaneseq
    %v579 = vshrl.u32 %v578, 7
    %v580 = vsub.s32 0, %v579
    %v581 = vrot.slane %v576, %v580
    %vm583 = vcmask 785408
    %v585 = vsel %vm583, %v562, 0
    %v588 = vsel %vm583, %v563, 0
    %590 = vmatprep.subr.mxu0 0.0
    %591 = vmatpush1.msra.mxu0 0.0
    %592 = vmatprep.subr.mxu0 0.0
    %593 = vmatpush1.msra.mxu0 0.0
    %594 = vmatprep.subr.mxu0 0.0
    %595 = vmatpush1.msra.mxu0 0.0
    %596 = vmatprep.subr.mxu0 0.0
    %597 = vmatpush1.msra.mxu0 0.0
    %598 = vmatprep.subr.mxu0 0.0
    %599 = vmatpush1.msra.mxu0 %v575
    %600 = vmatprep.subr.mxu0 0.0
    %601 = vmatpush1.msra.mxu0 %v574
    %602 = vmatprep.subr.mxu0 0.0
    %603 = vmatpush1.msra.mxu0 %v573
    %604 = vmatprep.subr.mxu0 0.0
    %605 = vmatpush1.msra.mxu0 %v572
    %606 = vmatprep.subr.mxu0 0.0
    %607 = vmatpush1.msra.mxu0 %v571
    %608 = vmatprep.subr.mxu0 0.0
    %609 = vmatpush1.msra.mxu0 %v570
    %610 = vmatprep.subr.mxu0 0.0
    %611 = vmatpush1.msra.mxu0 %v569
    %612 = vmatprep.subr.mxu0 0.0
    %613 = vmatpush1.msra.mxu0 %v568
    %614 = vmatprep.subr.mxu0 0.0
    %615 = vmatpush1.msra.mxu0 %v567
    %616 = vmatprep.subr.mxu0 0.0
    %617 = vmatpush1.msra.mxu0 %v566
    %618 = vmatprep.subr.mxu0 0.0
    %619 = vmatpush1.msra.mxu0 %v565
    %620 = vmatprep.subr.mxu0 0.0
    %621 = vmatpush1.msra.mxu0 %v564
    %622 = vmatprep.subr.mxu0 0.0
    %623 = vmatpush2.msra.mxu0 0.0
    %624 = vmatprep.subr.mxu0 0.0
    %625 = vmatpush2.msra.mxu0 0.0
    %626 = vmatprep.subr.mxu0 0.0
    %627 = vmatpush2.msra.mxu0 0.0
    %628 = vmatprep.subr.mxu0 0.0
    %629 = vmatpush2.msra.mxu0 0.0
    %630 = vmatprep.subr.mxu0 0.0
    %631 = vmatpush2.msra.mxu0 0.0
    %632 = vmatprep.subr.mxu0 0.0
    %633 = vmatpush2.msra.mxu0 0.0
    %634 = vmatprep.subr.mxu0 0.0
    %635 = vmatpush2.msra.mxu0 0.0
    %636 = vmatprep.subr.mxu0 0.0
    %637 = vmatpush2.msra.mxu0 0.0
    %638 = vmatprep.subr.mxu0 0.0
    %639 = vmatpush2.msra.mxu0 0.0
    %640 = vmatprep.subr.mxu0 0.0
    %641 = vmatpush2.msra.mxu0 0.0
    %642 = vmatprep.subr.mxu0 0.0
    %643 = vmatpush2.msra.mxu0 0.0
    %644 = vmatprep.subr.mxu0 0.0
    %645 = vmatpush2.msra.mxu0 0.0
    %646 = vmatprep.subr.mxu0 0.0
    %647 = vmatpush2.msra.mxu0 0.0
    %648 = vmatprep.subr.mxu0 0.0
    %649 = vmatpush2.msra.mxu0 0.0
    %650 = vmatprep.subr.mxu0 0.0
    %651 = vmatpush2.msra.mxu0 0.0
    %652 = vmatprep.subr.mxu0 0.0
    %653 = vmatpush2.msra.mxu0 0.0
    %654 = vmatprep.mubr.f32.mxu0 0.0
    %655 = vmatmul.mubr.f32.gmra.mxu0 %v585
    %v656 = vpop.f32.mrf.mxu0
    %v657 = vadd.f32 %v581, %v656
    %v658 = vpop.f32.mrf.mxu0
    %659 = vmatprep.mubr.f32.mxu0 0.0
    %660 = vmatmul.mubr.f32.gmra.mxu0 %v588
    %v661 = vpop.f32.mrf.mxu0
    %v662 = vadd.f32 %v581, %v661
    %v663 = vpop.f32.mrf.mxu0
    %664 = vdwg.mxu0
    %v665 = vld [vmem:[%s10] sm:$0xff]
    %v666 = vld [vmem:[%s10 + $0x8] sm:$0xff]
    %v667 = vld [vmem:[%s10 + $0x10] sm:$0xff]
    %v668 = vld [vmem:[%s10 + $0x18] sm:$0xff]
    %v669 = vld [vmem:[%s10 + $0x20] sm:$0xff]
    %v670 = vld [vmem:[%s10 + $0x28] sm:$0xff]
    %v671 = vld [vmem:[%s10 + $0x30] sm:$0xff]
    %v672 = vld [vmem:[%s10 + $0x38] sm:$0xff]
    %v673 = vld [vmem:[%s10 + $0x40] sm:$0xff]
    %v674 = vld [vmem:[%s10 + $0x48] sm:$0xff]
    %v675 = vld [vmem:[%s10 + $0x50] sm:$0xff]
    %v676 = vld [vmem:[%s10 + $0x58] sm:$0xff]
    %v677 = vld [vmem:[#allocation11] sm:$0x1]
    %v679 = vlaneseq
    %v680 = vshrl.u32 %v679, 7
    %v681 = vsub.s32 0, %v680
    %v682 = vrot.slane %v677, %v681
    %v685 = vsel %vm583, %v657, 0
    %v688 = vsel %vm583, %v662, 0
    %690 = vmatprep.subr.mxu0 0.0
    %691 = vmatpush1.msra.mxu0 0.0
    %692 = vmatprep.subr.mxu0 0.0
    %693 = vmatpush1.msra.mxu0 0.0
    %694 = vmatprep.subr.mxu0 0.0
    %695 = vmatpush1.msra.mxu0 0.0
    %696 = vmatprep.subr.mxu0 0.0
    %697 = vmatpush1.msra.mxu0 0.0
    %698 = vmatprep.subr.mxu0 0.0
    %699 = vmatpush1.msra.mxu0 %v676
    %700 = vmatprep.subr.mxu0 0.0
    %701 = vmatpush1.msra.mxu0 %v675
    %702 = vmatprep.subr.mxu0 0.0
    %703 = vmatpush1.msra.mxu0 %v674
    %704 = vmatprep.subr.mxu0 0.0
    %705 = vmatpush1.msra.mxu0 %v673
    %706 = vmatprep.subr.mxu0 0.0
    %707 = vmatpush1.msra.mxu0 %v672
    %708 = vmatprep.subr.mxu0 0.0
    %709 = vmatpush1.msra.mxu0 %v671
    %710 = vmatprep.subr.mxu0 0.0
    %711 = vmatpush1.msra.mxu0 %v670
    %712 = vmatprep.subr.mxu0 0.0
    %713 = vmatpush1.msra.mxu0 %v669
    %714 = vmatprep.subr.mxu0 0.0
    %715 = vmatpush1.msra.mxu0 %v668
    %716 = vmatprep.subr.mxu0 0.0
    %717 = vmatpush1.msra.mxu0 %v667
    %718 = vmatprep.subr.mxu0 0.0
    %719 = vmatpush1.msra.mxu0 %v666
    %720 = vmatprep.subr.mxu0 0.0
    %721 = vmatpush1.msra.mxu0 %v665
    %722 = vmatprep.subr.mxu0 0.0
    %723 = vmatpush2.msra.mxu0 0.0
    %724 = vmatprep.subr.mxu0 0.0
    %725 = vmatpush2.msra.mxu0 0.0
    %726 = vmatprep.subr.mxu0 0.0
    %727 = vmatpush2.msra.mxu0 0.0
    %728 = vmatprep.subr.mxu0 0.0
    %729 = vmatpush2.msra.mxu0 0.0
    %730 = vmatprep.subr.mxu0 0.0
    %731 = vmatpush2.msra.mxu0 0.0
    %732 = vmatprep.subr.mxu0 0.0
    %733 = vmatpush2.msra.mxu0 0.0
    %734 = vmatprep.subr.mxu0 0.0
    %735 = vmatpush2.msra.mxu0 0.0
    %736 = vmatprep.subr.mxu0 0.0
    %737 = vmatpush2.msra.mxu0 0.0
    %738 = vmatprep.subr.mxu0 0.0
    %739 = vmatpush2.msra.mxu0 0.0
    %740 = vmatprep.subr.mxu0 0.0
    %741 = vmatpush2.msra.mxu0 0.0
    %742 = vmatprep.subr.mxu0 0.0
    %743 = vmatpush2.msra.mxu0 0.0
    %744 = vmatprep.subr.mxu0 0.0
    %745 = vmatpush2.msra.mxu0 0.0
    %746 = vmatprep.subr.mxu0 0.0
    %747 = vmatpush2.msra.mxu0 0.0
    %748 = vmatprep.subr.mxu0 0.0
    %749 = vmatpush2.msra.mxu0 0.0
    %750 = vmatprep.subr.mxu0 0.0
    %751 = vmatpush2.msra.mxu0 0.0
    %752 = vmatprep.subr.mxu0 0.0
    %753 = vmatpush2.msra.mxu0 0.0
    %754 = vmatprep.mubr.f32.mxu0 0.0
    %755 = vmatmul.mubr.f32.gmra.mxu0 %v685
    %v756 = vpop.f32.mrf.mxu0
    %v757 = vadd.f32 %v682, %v756
    %v758 = vpop.f32.mrf.mxu0
    %759 = vmatprep.mubr.f32.mxu0 0.0
    %760 = vmatmul.mubr.f32.gmra.mxu0 %v688
    %v761 = vpop.f32.mrf.mxu0
    %v762 = vadd.f32 %v682, %v761
    %v763 = vpop.f32.mrf.mxu0
    %764 = vdwg.mxu0
    %v765 = vsub.f32 %v657, %v562
    %v766 = vsub.f32 %v662, %v563
    %v767 = vmul.f32 %v765, %v765
    %v768 = vmul.f32 %v766, %v766
    %v769 = vsel %vm583, %v767, 0.0
    %770 = vadd.xlane.f32.xlu0 %v769
    %v771 = vpop.xlane.xlu0 %770
    %v772 = vsel %vm583, %v768, 0.0
    %773 = vadd.xlane.f32.xlu0 %v772
    %v774 = vpop.xlane.xlu0 %773
    %v775 = vadd.f32 %v771, %v774
    %v776 = vrot.slane %v775, 4
    %v777 = vadd.f32 %v775, %v776
    %v778 = vrot.slane %v777, 2
    %v779 = vadd.f32 %v777, %v778
    %v780 = vrot.slane %v779, 1
    %v781 = vadd.f32 %v779, %v780
    %v782 = vmul.f32 %v781, 0.0006510417
    %v783 = vsub.f32 %v757, %v562
    %v784 = vsub.f32 %v762, %v563
    %v785 = vmul.f32 %v783, %v783
    %v786 = vmul.f32 %v784, %v784
    %v787 = vsel %vm583, %v785, 0.0
    %788 = vadd.xlane.f32.xlu0 %v787
    %v789 = vpop.xlane.xlu0 %788
    %v790 = vsel %vm583, %v786, 0.0
    %791 = vadd.xlane.f32.xlu0 %v790
    %v792 = vpop.xlane.xlu0 %791
    %v793 = vadd.f32 %v789, %v792
    %v794 = vrot.slane %v793, 4
    %v795 = vadd.f32 %v793, %v794
    %v796 = vrot.slane %v795, 2
    %v797 = vadd.f32 %v795, %v796
    %v798 = vrot.slane %v797, 1
    %v799 = vadd.f32 %v797, %v798
    %v800 = vmul.f32 %v799, 0.0006510417
    %vm801 = vcmask 7168
    %v802 = vsel %vm801, %v782, %v800
    %vm803 = vcmask 8192
    %804 = vst.msk [vmem:[#allocation23] sm:$0x1] %vm803, %v802
    %807 = vrot.lane.b32.xlu0 %v331, 64
    %v808 = vpop.permute.xlu0 %807
    %809 = vrot.lane.b32.xlu0 %v336, 64
    %v810 = vpop.permute.xlu0 %809
    %813 = vrot.lane.b32.xlu0 %v331, 96
    %v814 = vpop.permute.xlu0 %813
    %815 = vrot.lane.b32.xlu0 %v336, 96
    %v816 = vpop.permute.xlu0 %815
    %vm819 = vcmask 261120
    %v820 = vsel %vm819, %v808, %v814
    %v821 = vsel %vm819, %v810, %v816
    %v822 = vsel %vm410, %v820, %v331
    %v823 = vsel %vm410, %v821, %v336
    %v824 = vadd.f32 %v562, %v822
    %v825 = vadd.f32 %v563, %v823
    %v826 = vld [vmem:[#allocation13] sm:$0xff]
    %v827 = vld [vmem:[#allocation13 + $0x8] sm:$0xff]
    %v828 = vld [vmem:[#allocation13 + $0x10] sm:$0xff]
    %v829 = vld [vmem:[#allocation13 + $0x18] sm:$0xff]
    %v830 = vld [vmem:[#allocation13 + $0x20] sm:$0xff]
    %v831 = vld [vmem:[#allocation13 + $0x28] sm:$0xff]
    %v832 = vld [vmem:[#allocation13 + $0x30] sm:$0xff]
    %v833 = vld [vmem:[#allocation13 + $0x38] sm:$0xff]
    %v834 = vld [vmem:[#allocation13 + $0x40] sm:$0xff]
    %v835 = vld [vmem:[#allocation13 + $0x48] sm:$0xff]
    %v836 = vld [vmem:[#allocation13 + $0x50] sm:$0xff]
    %v837 = vld [vmem:[#allocation13 + $0x58] sm:$0xff]
    %v838 = vld [vmem:[#allocation14] sm:$0x1]
    %v840 = vlaneseq
    %v841 = vshrl.u32 %v840, 7
    %v842 = vsub.s32 0, %v841
    %v843 = vrot.slane %v838, %v842
    %v846 = vsel %vm583, %v824, 0
    %v849 = vsel %vm583, %v825, 0
    %851 = vmatprep.subr.mxu0 0.0
    %852 = vmatpush1.msra.mxu0 0.0
    %853 = vmatprep.subr.mxu0 0.0
    %854 = vmatpush1.msra.mxu0 0.0
    %855 = vmatprep.subr.mxu0 0.0
    %856 = vmatpush1.msra.mxu0 0.0
    %857 = vmatprep.subr.mxu0 0.0
    %858 = vmatpush1.msra.mxu0 0.0
    %859 = vmatprep.subr.mxu0 0.0
    %860 = vmatpush1.msra.mxu0 %v837
    %861 = vmatprep.subr.mxu0 0.0
    %862 = vmatpush1.msra.mxu0 %v836
    %863 = vmatprep.subr.mxu0 0.0
    %864 = vmatpush1.msra.mxu0 %v835
    %865 = vmatprep.subr.mxu0 0.0
    %866 = vmatpush1.msra.mxu0 %v834
    %867 = vmatprep.subr.mxu0 0.0
    %868 = vmatpush1.msra.mxu0 %v833
    %869 = vmatprep.subr.mxu0 0.0
    %870 = vmatpush1.msra.mxu0 %v832
    %871 = vmatprep.subr.mxu0 0.0
    %872 = vmatpush1.msra.mxu0 %v831
    %873 = vmatprep.subr.mxu0 0.0
    %874 = vmatpush1.msra.mxu0 %v830
    %875 = vmatprep.subr.mxu0 0.0
    %876 = vmatpush1.msra.mxu0 %v829
    %877 = vmatprep.subr.mxu0 0.0
    %878 = vmatpush1.msra.mxu0 %v828
    %879 = vmatprep.subr.mxu0 0.0
    %880 = vmatpush1.msra.mxu0 %v827
    %881 = vmatprep.subr.mxu0 0.0
    %882 = vmatpush1.msra.mxu0 %v826
    %883 = vmatprep.subr.mxu0 0.0
    %884 = vmatpush2.msra.mxu0 0.0
    %885 = vmatprep.subr.mxu0 0.0
    %886 = vmatpush2.msra.mxu0 0.0
    %887 = vmatprep.subr.mxu0 0.0
    %888 = vmatpush2.msra.mxu0 0.0
    %889 = vmatprep.subr.mxu0 0.0
    %890 = vmatpush2.msra.mxu0 0.0
    %891 = vmatprep.subr.mxu0 0.0
    %892 = vmatpush2.msra.mxu0 0.0
    %893 = vmatprep.subr.mxu0 0.0
    %894 = vmatpush2.msra.mxu0 0.0
    %895 = vmatprep.subr.mxu0 0.0
    %896 = vmatpush2.msra.mxu0 0.0
    %897 = vmatprep.subr.mxu0 0.0
    %898 = vmatpush2.msra.mxu0 0.0
    %899 = vmatprep.subr.mxu0 0.0
    %900 = vmatpush2.msra.mxu0 0.0
    %901 = vmatprep.subr.mxu0 0.0
    %902 = vmatpush2.msra.mxu0 0.0
    %903 = vmatprep.subr.mxu0 0.0
    %904 = vmatpush2.msra.mxu0 0.0
    %905 = vmatprep.subr.mxu0 0.0
    %906 = vmatpush2.msra.mxu0 0.0
    %907 = vmatprep.subr.mxu0 0.0
    %908 = vmatpush2.msra.mxu0 0.0
    %909 = vmatprep.subr.mxu0 0.0
    %910 = vmatpush2.msra.mxu0 0.0
    %911 = vmatprep.subr.mxu0 0.0
    %912 = vmatpush2.msra.mxu0 0.0
    %913 = vmatprep.subr.mxu0 0.0
    %914 = vmatpush2.msra.mxu0 0.0
    %915 = vmatprep.mubr.f32.mxu0 0.0
    %916 = vmatmul.mubr.f32.gmra.mxu0 %v846
    %v917 = vpop.f32.mrf.mxu0
    %v918 = vadd.f32 %v843, %v917
    %v919 = vpop.f32.mrf.mxu0
    %920 = vmatprep.mubr.f32.mxu0 0.0
    %921 = vmatmul.mubr.f32.gmra.mxu0 %v849
    %v922 = vpop.f32.mrf.mxu0
    %v923 = vadd.f32 %v843, %v922
    %v924 = vpop.f32.mrf.mxu0
    %925 = vdwg.mxu0
    %926 = vrot.lane.b32.xlu0 %v824, 96
    %v927 = vpop.permute.xlu0 %926
    %928 = vrot.lane.b32.xlu0 %v825, 96
    %v929 = vpop.permute.xlu0 %928
    %930 = vrot.lane.b32.xlu0 %v824, 64
    %v931 = vpop.permute.xlu0 %930
    %932 = vrot.lane.b32.xlu0 %v825, 64
    %v933 = vpop.permute.xlu0 %932
    %v934 = vld [vmem:[%s14] sm:$0xff]
    %v935 = vld [vmem:[%s14 + $0x8] sm:$0xff]
    %v936 = vld [vmem:[%s14 + $0x10] sm:$0xff]
    %v937 = vld [vmem:[%s14 + $0x18] sm:$0xff]
    %v938 = vld [vmem:[%s14 + $0x20] sm:$0xff]
    %v939 = vld [vmem:[%s14 + $0x28] sm:$0xff]
    %v940 = vld [vmem:[%s14 + $0x30] sm:$0xff]
    %v941 = vld [vmem:[%s14 + $0x38] sm:$0xff]
    %v942 = vld [vmem:[#allocation16] sm:$0x3]
    %v944 = vlaneseq
    %v945 = vshrl.u32 %v944, 7
    %v946 = vsub.s32 0, %v945
    %v947 = vrot.slane %v942, %v946
    %v948 = vlaneseq
    %v949 = vshrl.u32 %v948, 7
    %v950 = vsub.s32 1, %v949
    %v951 = vrot.slane %v942, %v950
    %v954 = vsel %vm819, %v824, 0
    %v956 = vsel %vm819, %v825, 0
    %v958 = vsel %vm819, %v927, 0
    %v960 = vsel %vm819, %v929, 0
    %v962 = vsel %vm819, %v931, 0
    %v964 = vsel %vm819, %v933, 0
    %966 = vmatprep.subr.mxu0 0.0
    %967 = vmatpush1.msra.mxu0 0.0
    %968 = vmatprep.subr.mxu0 0.0
    %969 = vmatpush1.msra.mxu0 0.0
    %970 = vmatprep.subr.mxu0 0.0
    %971 = vmatpush1.msra.mxu0 0.0
    %972 = vmatprep.subr.mxu0 0.0
    %973 = vmatpush1.msra.mxu0 0.0
    %974 = vmatprep.subr.mxu0 0.0
    %975 = vmatpush1.msra.mxu0 0.0
    %976 = vmatprep.subr.mxu0 0.0
    %977 = vmatpush1.msra.mxu0 0.0
    %978 = vmatprep.subr.mxu0 0.0
    %979 = vmatpush1.msra.mxu0 0.0
    %980 = vmatprep.subr.mxu0 0.0
    %981 = vmatpush1.msra.mxu0 0.0
    %982 = vmatprep.subr.mxu0 0.0
    %983 = vmatpush1.msra.mxu0 0.0
    %984 = vmatprep.subr.mxu0 0.0
    %985 = vmatpush1.msra.mxu0 0.0
    %986 = vmatprep.subr.mxu0 0.0
    %987 = vmatpush1.msra.mxu0 0.0
    %988 = vmatprep.subr.mxu0 0.0
    %989 = vmatpush1.msra.mxu0 0.0
    %990 = vmatprep.subr.mxu0 %v941
    %991 = vmatpush1.msra.mxu0 %v940
    %992 = vmatprep.subr.mxu0 %v939
    %993 = vmatpush1.msra.mxu0 %v938
    %994 = vmatprep.subr.mxu0 %v937
    %995 = vmatpush1.msra.mxu0 %v936
    %996 = vmatprep.subr.mxu0 %v935
    %997 = vmatpush1.msra.mxu0 %v934
    %998 = vmatprep.subr.mxu0 0.0
    %999 = vmatpush2.msra.mxu0 0.0
    %1000 = vmatprep.subr.mxu0 0.0
    %1001 = vmatpush2.msra.mxu0 0.0
    %1002 = vmatprep.subr.mxu0 0.0
    %1003 = vmatpush2.msra.mxu0 0.0
    %1004 = vmatprep.subr.mxu0 0.0
    %1005 = vmatpush2.msra.mxu0 0.0
    %1006 = vmatprep.subr.mxu0 0.0
    %1007 = vmatpush2.msra.mxu0 0.0
    %1008 = vmatprep.subr.mxu0 0.0
    %1009 = vmatpush2.msra.mxu0 0.0
    %1010 = vmatprep.subr.mxu0 0.0
    %1011 = vmatpush2.msra.mxu0 0.0
    %1012 = vmatprep.subr.mxu0 0.0
    %1013 = vmatpush2.msra.mxu0 0.0
    %1014 = vmatprep.subr.mxu0 0.0
    %1015 = vmatpush2.msra.mxu0 0.0
    %1016 = vmatprep.subr.mxu0 0.0
    %1017 = vmatpush2.msra.mxu0 0.0
    %1018 = vmatprep.subr.mxu0 0.0
    %1019 = vmatpush2.msra.mxu0 0.0
    %1020 = vmatprep.subr.mxu0 0.0
    %1021 = vmatpush2.msra.mxu0 0.0
    %1022 = vmatprep.subr.mxu0 0.0
    %1023 = vmatpush2.msra.mxu0 0.0
    %1024 = vmatprep.subr.mxu0 0.0
    %1025 = vmatpush2.msra.mxu0 0.0
    %1026 = vmatprep.subr.mxu0 0.0
    %1027 = vmatpush2.msra.mxu0 0.0
    %1028 = vmatprep.subr.mxu0 0.0
    %1029 = vmatpush2.msra.mxu0 0.0
    %1030 = vmatprep.mubr.f32.mxu0 0.0
    %1031 = vmatmul.mubr.f32.gmra.mxu0 %v954
    %v1032 = vpop.f32.mrf.mxu0
    %v1033 = vadd.f32 %v947, %v1032
    %v1034 = vpop.f32.mrf.mxu0
    %v1035 = vadd.f32 %v951, %v1034
    %1036 = vmatprep.mubr.f32.mxu0 0.0
    %1037 = vmatmul.mubr.f32.gmra.mxu0 %v956
    %v1038 = vpop.f32.mrf.mxu0
    %v1039 = vadd.f32 %v947, %v1038
    %v1040 = vpop.f32.mrf.mxu0
    %v1041 = vadd.f32 %v951, %v1040
    %1042 = vmatprep.mubr.f32.mxu0 0.0
    %1043 = vmatmul.mubr.f32.gmra.mxu0 %v958
    %v1044 = vpop.f32.mrf.mxu0
    %v1045 = vadd.f32 %v947, %v1044
    %v1046 = vpop.f32.mrf.mxu0
    %v1047 = vadd.f32 %v951, %v1046
    %1048 = vmatprep.mubr.f32.mxu0 0.0
    %1049 = vmatmul.mubr.f32.gmra.mxu0 %v960
    %v1050 = vpop.f32.mrf.mxu0
    %v1051 = vadd.f32 %v947, %v1050
    %v1052 = vpop.f32.mrf.mxu0
    %v1053 = vadd.f32 %v951, %v1052
    %1054 = vmatprep.mubr.f32.mxu0 0.0
    %1055 = vmatmul.mubr.f32.gmra.mxu0 %v962
    %v1056 = vpop.f32.mrf.mxu0
    %v1057 = vadd.f32 %v947, %v1056
    %v1058 = vpop.f32.mrf.mxu0
    %1059 = vmatprep.mubr.f32.mxu0 0.0
    %1060 = vmatmul.mubr.f32.gmra.mxu0 %v964
    %v1061 = vpop.f32.mrf.mxu0
    %v1062 = vadd.f32 %v947, %v1061
    %v1063 = vpop.f32.mrf.mxu0
    %1064 = vdwg.mxu0
    %1067 = vrot.lane.b32.xlu0 %v918, 120
    %v1068 = vpop.permute.xlu0 %1067
    %1069 = vrot.lane.b32.xlu0 %v923, 120
    %v1070 = vpop.permute.xlu0 %1069
    %1071 = vrot.lane.b32.xlu0 %v918, 112
    %v1072 = vpop.permute.xlu0 %1071
    %1073 = vrot.lane.b32.xlu0 %v923, 112
    %v1074 = vpop.permute.xlu0 %1073
    %1075 = vrot.lane.b32.xlu0 %v918, 104
    %v1076 = vpop.permute.xlu0 %1075
    %1077 = vrot.lane.b32.xlu0 %v923, 104
    %v1078 = vpop.permute.xlu0 %1077
    %1079 = vrot.lane.b32.xlu0 %v918, 96
    %v1080 = vpop.permute.xlu0 %1079
    %1081 = vrot.lane.b32.xlu0 %v923, 96
    %v1082 = vpop.permute.xlu0 %1081
    %1083 = vrot.lane.b32.xlu0 %v918, 88
    %v1084 = vpop.permute.xlu0 %1083
    %1085 = vrot.lane.b32.xlu0 %v923, 88
    %v1086 = vpop.permute.xlu0 %1085
    %1087 = vrot.lane.b32.xlu0 %v918, 80
    %v1088 = vpop.permute.xlu0 %1087
    %1089 = vrot.lane.b32.xlu0 %v923, 80
    %v1090 = vpop.permute.xlu0 %1089
    %1091 = vrot.lane.b32.xlu0 %v918, 72
    %v1092 = vpop.permute.xlu0 %1091
    %1093 = vrot.lane.b32.xlu0 %v923, 72
    %v1094 = vpop.permute.xlu0 %1093
    %1095 = vrot.lane.b32.xlu0 %v918, 64
    %v1096 = vpop.permute.xlu0 %1095
    %1097 = vrot.lane.b32.xlu0 %v923, 64
    %v1098 = vpop.permute.xlu0 %1097
    %1099 = vrot.lane.b32.xlu0 %v918, 56
    %v1100 = vpop.permute.xlu0 %1099
    %1101 = vrot.lane.b32.xlu0 %v923, 56
    %v1102 = vpop.permute.xlu0 %1101
    %1103 = vrot.lane.b32.xlu0 %v918, 48
    %v1104 = vpop.permute.xlu0 %1103
    %1105 = vrot.lane.b32.xlu0 %v923, 48
    %v1106 = vpop.permute.xlu0 %1105
    %1107 = vrot.lane.b32.xlu0 %v918, 40
    %v1108 = vpop.permute.xlu0 %1107
    %1109 = vrot.lane.b32.xlu0 %v923, 40
    %v1110 = vpop.permute.xlu0 %1109
    %1115 = vrot.lane.b32.xlu0 %v1045, 120
    %v1116 = vpop.permute.xlu0 %1115
    %1117 = vrot.lane.b32.xlu0 %v1057, 120
    %v1118 = vpop.permute.xlu0 %1117
    %1119 = vrot.lane.b32.xlu0 %v1051, 120
    %v1120 = vpop.permute.xlu0 %1119
    %1121 = vrot.lane.b32.xlu0 %v1062, 120
    %v1122 = vpop.permute.xlu0 %1121
    %1123 = vrot.lane.b32.xlu0 %v1045, 112
    %v1124 = vpop.permute.xlu0 %1123
    %1125 = vrot.lane.b32.xlu0 %v1057, 112
    %v1126 = vpop.permute.xlu0 %1125
    %1127 = vrot.lane.b32.xlu0 %v1051, 112
    %v1128 = vpop.permute.xlu0 %1127
    %1129 = vrot.lane.b32.xlu0 %v1062, 112
    %v1130 = vpop.permute.xlu0 %1129
    %1131 = vrot.lane.b32.xlu0 %v1045, 104
    %v1132 = vpop.permute.xlu0 %1131
    %1133 = vrot.lane.b32.xlu0 %v1057, 104
    %v1134 = vpop.permute.xlu0 %1133
    %1135 = vrot.lane.b32.xlu0 %v1051, 104
    %v1136 = vpop.permute.xlu0 %1135
    %1137 = vrot.lane.b32.xlu0 %v1062, 104
    %v1138 = vpop.permute.xlu0 %1137
    %1141 = vrot.lane.b32.xlu0 %v1033, 64
    %v1142 = vpop.permute.xlu0 %1141
    %1143 = vrot.lane.b32.xlu0 %v1057, 64
    %v1144 = vpop.permute.xlu0 %1143
    %1145 = vrot.lane.b32.xlu0 %v1039, 64
    %v1146 = vpop.permute.xlu0 %1145
    %1147 = vrot.lane.b32.xlu0 %v1062, 64
    %v1148 = vpop.permute.xlu0 %1147
    %1149 = vrot.lane.b32.xlu0 %v1033, 56
    %v1150 = vpop.permute.xlu0 %1149
    %1151 = vrot.lane.b32.xlu0 %v1057, 56
    %v1152 = vpop.permute.xlu0 %1151
    %1153 = vrot.lane.b32.xlu0 %v1039, 56
    %v1154 = vpop.permute.xlu0 %1153
    %1155 = vrot.lane.b32.xlu0 %v1062, 56
    %v1156 = vpop.permute.xlu0 %1155
    %1157 = vrot.lane.b32.xlu0 %v1033, 48
    %v1158 = vpop.permute.xlu0 %1157
    %1159 = vrot.lane.b32.xlu0 %v1057, 48
    %v1160 = vpop.permute.xlu0 %1159
    %1161 = vrot.lane.b32.xlu0 %v1039, 48
    %v1162 = vpop.permute.xlu0 %1161
    %1163 = vrot.lane.b32.xlu0 %v1062, 48
    %v1164 = vpop.permute.xlu0 %1163
    %1165 = vrot.lane.b32.xlu0 %v1033, 40
    %v1166 = vpop.permute.xlu0 %1165
    %1167 = vrot.lane.b32.xlu0 %v1057, 40
    %v1168 = vpop.permute.xlu0 %1167
    %1169 = vrot.lane.b32.xlu0 %v1039, 40
    %v1170 = vpop.permute.xlu0 %1169
    %1171 = vrot.lane.b32.xlu0 %v1062, 40
    %v1172 = vpop.permute.xlu0 %1171
    %1177 = vrot.lane.b32.xlu0 %v1035, 120
    %v1178 = vpop.permute.xlu0 %1177
    %1179 = vrot.lane.b32.xlu0 %v1047, 120
    %v1180 = vpop.permute.xlu0 %1179
    %1181 = vrot.lane.b32.xlu0 %v1041, 120
    %v1182 = vpop.permute.xlu0 %1181
    %1183 = vrot.lane.b32.xlu0 %v1053, 120
    %v1184 = vpop.permute.xlu0 %1183
    %1185 = vrot.lane.b32.xlu0 %v1035, 112
    %v1186 = vpop.permute.xlu0 %1185
    %1187 = vrot.lane.b32.xlu0 %v1047, 112
    %v1188 = vpop.permute.xlu0 %1187
    %1189 = vrot.lane.b32.xlu0 %v1041, 112
    %v1190 = vpop.permute.xlu0 %1189
    %1191 = vrot.lane.b32.xlu0 %v1053, 112
    %v1192 = vpop.permute.xlu0 %1191
    %1193 = vrot.lane.b32.xlu0 %v1035, 104
    %v1194 = vpop.permute.xlu0 %1193
    %1195 = vrot.lane.b32.xlu0 %v1047, 104
    %v1196 = vpop.permute.xlu0 %1195
    %1197 = vrot.lane.b32.xlu0 %v1041, 104
    %v1198 = vpop.permute.xlu0 %1197
    %1199 = vrot.lane.b32.xlu0 %v1053, 104
    %v1200 = vpop.permute.xlu0 %1199
    %vm1201 = vcmask 64512
    %v1202 = vsel %vm1201, %v918, 0
    %v1204 = vsel %vm1201, %v1045, 0
    %v1206 = vsel %vm1201, %v1057, 0
    %1208 = vmatprep.subr.mxu0 0.0
    %1209 = vmatpush1.xpose.msra.mxu0 0.0
    %1210 = vmatprep.subr.mxu0 0.0
    %1211 = vmatpush1.xpose.msra.mxu0 0.0
    %1212 = vmatprep.subr.mxu0 0.0
    %1213 = vmatpush1.xpose.msra.mxu0 0.0
    %1214 = vmatprep.subr.mxu0 0.0
    %1215 = vmatpush1.xpose.msra.mxu0 0.0
    %1216 = vmatprep.subr.mxu0 0.0
    %1217 = vmatpush1.xpose.msra.mxu0 0.0
    %1218 = vmatprep.subr.mxu0 0.0
    %1219 = vmatpush1.xpose.msra.mxu0 0.0
    %1220 = vmatprep.subr.mxu0 0.0
    %1221 = vmatpush1.xpose.msra.mxu0 0.0
    %1222 = vmatprep.subr.mxu0 0.0
    %1223 = vmatpush1.xpose.msra.mxu0 0.0
    %1224 = vmatprep.subr.mxu0 0.0
    %1225 = vmatpush1.xpose.msra.mxu0 0.0
    %1226 = vmatprep.subr.mxu0 0.0
    %1227 = vmatpush1.xpose.msra.mxu0 0.0
    %1228 = vmatprep.subr.mxu0 0.0
    %1229 = vmatpush1.xpose.msra.mxu0 0.0
    %1230 = vmatprep.subr.mxu0 0.0
    %1231 = vmatpush1.xpose.msra.mxu0 0.0
    %1232 = vmatprep.subr.mxu0 0.0
    %1233 = vmatpush1.xpose.msra.mxu0 0.0
    %1234 = vmatprep.subr.mxu0 0.0
    %1235 = vmatpush1.xpose.msra.mxu0 0.0
    %1236 = vmatprep.subr.mxu0 0.0
    %1237 = vmatpush1.xpose.msra.mxu0 %v1206
    %1238 = vmatprep.subr.mxu0 0.0
    %1239 = vmatpush1.xpose.msra.mxu0 %v1204
    %1240 = vmatprep.subr.mxu0 0.0
    %1241 = vmatpush2.xpose.msra.mxu0 0.0
    %1242 = vmatprep.subr.mxu0 0.0
    %1243 = vmatpush2.xpose.msra.mxu0 0.0
    %1244 = vmatprep.subr.mxu0 0.0
    %1245 = vmatpush2.xpose.msra.mxu0 0.0
    %1246 = vmatprep.subr.mxu0 0.0
    %1247 = vmatpush2.xpose.msra.mxu0 0.0
    %1248 = vmatprep.subr.mxu0 0.0
    %1249 = vmatpush2.xpose.msra.mxu0 0.0
    %1250 = vmatprep.subr.mxu0 0.0
    %1251 = vmatpush2.xpose.msra.mxu0 0.0
    %1252 = vmatprep.subr.mxu0 0.0
    %1253 = vmatpush2.xpose.msra.mxu0 0.0
    %1254 = vmatprep.subr.mxu0 0.0
    %1255 = vmatpush2.xpose.msra.mxu0 0.0
    %1256 = vmatprep.subr.mxu0 0.0
    %1257 = vmatpush2.xpose.msra.mxu0 0.0
    %1258 = vmatprep.subr.mxu0 0.0
    %1259 = vmatpush2.xpose.msra.mxu0 0.0
    %1260 = vmatprep.subr.mxu0 0.0
    %1261 = vmatpush2.xpose.msra.mxu0 0.0
    %1262 = vmatprep.subr.mxu0 0.0
    %1263 = vmatpush2.xpose.msra.mxu0 0.0
    %1264 = vmatprep.subr.mxu0 0.0
    %1265 = vmatpush2.xpose.msra.mxu0 0.0
    %1266 = vmatprep.subr.mxu0 0.0
    %1267 = vmatpush2.xpose.msra.mxu0 0.0
    %1268 = vmatprep.subr.mxu0 0.0
    %1269 = vmatpush2.xpose.msra.mxu0 0.0
    %1270 = vmatprep.subr.mxu0 0.0
    %1271 = vmatpush2.xpose.msra.mxu0 0.0
    %1272 = vmatprep.mubr.f32.mxu0 0.0
    %1273 = vmatmul.mubr.f32.gmra.mxu0 %v1202
    %v1274 = vpop.f32.mrf.mxu0
    %v1275 = vadd.f32 0.0, %v1274
    %v1276 = vpop.f32.mrf.mxu0
    %1277 = vdwg.mxu0
    %v1278 = vsel %vm1201, %v923, 0
    %v1280 = vsel %vm1201, %v1051, 0
    %v1282 = vsel %vm1201, %v1062, 0
    %1284 = vmatprep.subr.mxu0 0.0
    %1285 = vmatpush1.xpose.msra.mxu0 0.0
    %1286 = vmatprep.subr.mxu0 0.0
    %1287 = vmatpush1.xpose.msra.mxu0 0.0
    %1288 = vmatprep.subr.mxu0 0.0
    %1289 = vmatpush1.xpose.msra.mxu0 0.0
    %1290 = vmatprep.subr.mxu0 0.0
    %1291 = vmatpush1.xpose.msra.mxu0 0.0
    %1292 = vmatprep.subr.mxu0 0.0
    %1293 = vmatpush1.xpose.msra.mxu0 0.0
    %1294 = vmatprep.subr.mxu0 0.0
    %1295 = vmatpush1.xpose.msra.mxu0 0.0
    %1296 = vmatprep.subr.mxu0 0.0
    %1297 = vmatpush1.xpose.msra.mxu0 0.0
    %1298 = vmatprep.subr.mxu0 0.0
    %1299 = vmatpush1.xpose.msra.mxu0 0.0
    %1300 = vmatprep.subr.mxu0 0.0
    %1301 = vmatpush1.xpose.msra.mxu0 0.0
    %1302 = vmatprep.subr.mxu0 0.0
    %1303 = vmatpush1.xpose.msra.mxu0 0.0
    %1304 = vmatprep.subr.mxu0 0.0
    %1305 = vmatpush1.xpose.msra.mxu0 0.0
    %1306 = vmatprep.subr.mxu0 0.0
    %1307 = vmatpush1.xpose.msra.mxu0 0.0
    %1308 = vmatprep.subr.mxu0 0.0
    %1309 = vmatpush1.xpose.msra.mxu0 0.0
    %1310 = vmatprep.subr.mxu0 0.0
    %1311 = vmatpush1.xpose.msra.mxu0 0.0
    %1312 = vmatprep.subr.mxu0 0.0
    %1313 = vmatpush1.xpose.msra.mxu0 %v1282
    %1314 = vmatprep.subr.mxu0 0.0
    %1315 = vmatpush1.xpose.msra.mxu0 %v1280
    %1316 = vmatprep.subr.mxu0 0.0
    %1317 = vmatpush2.xpose.msra.mxu0 0.0
    %1318 = vmatprep.subr.mxu0 0.0
    %1319 = vmatpush2.xpose.msra.mxu0 0.0
    %1320 = vmatprep.subr.mxu0 0.0
    %1321 = vmatpush2.xpose.msra.mxu0 0.0
    %1322 = vmatprep.subr.mxu0 0.0
    %1323 = vmatpush2.xpose.msra.mxu0 0.0
    %1324 = vmatprep.subr.mxu0 0.0
    %1325 = vmatpush2.xpose.msra.mxu0 0.0
    %1326 = vmatprep.subr.mxu0 0.0
    %1327 = vmatpush2.xpose.msra.mxu0 0.0
    %1328 = vmatprep.subr.mxu0 0.0
    %1329 = vmatpush2.xpose.msra.mxu0 0.0
    %1330 = vmatprep.subr.mxu0 0.0
    %1331 = vmatpush2.xpose.msra.mxu0 0.0
    %1332 = vmatprep.subr.mxu0 0.0
    %1333 = vmatpush2.xpose.msra.mxu0 0.0
    %1334 = vmatprep.subr.mxu0 0.0
    %1335 = vmatpush2.xpose.msra.mxu0 0.0
    %1336 = vmatprep.subr.mxu0 0.0
    %1337 = vmatpush2.xpose.msra.mxu0 0.0
    %1338 = vmatprep.subr.mxu0 0.0
    %1339 = vmatpush2.xpose.msra.mxu0 0.0
    %1340 = vmatprep.subr.mxu0 0.0
    %1341 = vmatpush2.xpose.msra.mxu0 0.0
    %1342 = vmatprep.subr.mxu0 0.0
    %1343 = vmatpush2.xpose.msra.mxu0 0.0
    %1344 = vmatprep.subr.mxu0 0.0
    %1345 = vmatpush2.xpose.msra.mxu0 0.0
    %1346 = vmatprep.subr.mxu0 0.0
    %1347 = vmatpush2.xpose.msra.mxu0 0.0
    %1348 = vmatprep.mubr.f32.mxu0 0.0
    %1349 = vmatmul.mubr.f32.gmra.mxu0 %v1278
    %v1350 = vpop.f32.mrf.mxu0
    %v1351 = vadd.f32 0.0, %v1350
    %v1352 = vpop.f32.mrf.mxu0
    %1353 = vdwg.mxu0
    %v1354 = vsel %vm1201, %v1068, 0
    %v1356 = vsel %vm1201, %v1116, 0
    %v1358 = vsel %vm1201, %v1118, 0
    %1360 = vmatprep.subr.mxu0 0.0
    %1361 = vmatpush1.xpose.msra.mxu0 0.0
    %1362 = vmatprep.subr.mxu0 0.0
    %1363 = vmatpush1.xpose.msra.mxu0 0.0
    %1364 = vmatprep.subr.mxu0 0.0
    %1365 = vmatpush1.xpose.msra.mxu0 0.0
    %1366 = vmatprep.subr.mxu0 0.0
    %1367 = vmatpush1.xpose.msra.mxu0 0.0
    %1368 = vmatprep.subr.mxu0 0.0
    %1369 = vmatpush1.xpose.msra.mxu0 0.0
    %1370 = vmatprep.subr.mxu0 0.0
    %1371 = vmatpush1.xpose.msra.mxu0 0.0
    %1372 = vmatprep.subr.mxu0 0.0
    %1373 = vmatpush1.xpose.msra.mxu0 0.0
    %1374 = vmatprep.subr.mxu0 0.0
    %1375 = vmatpush1.xpose.msra.mxu0 0.0
    %1376 = vmatprep.subr.mxu0 0.0
    %1377 = vmatpush1.xpose.msra.mxu0 0.0
    %1378 = vmatprep.subr.mxu0 0.0
    %1379 = vmatpush1.xpose.msra.mxu0 0.0
    %1380 = vmatprep.subr.mxu0 0.0
    %1381 = vmatpush1.xpose.msra.mxu0 0.0
    %1382 = vmatprep.subr.mxu0 0.0
    %1383 = vmatpush1.xpose.msra.mxu0 0.0
    %1384 = vmatprep.subr.mxu0 0.0
    %1385 = vmatpush1.xpose.msra.mxu0 0.0
    %1386 = vmatprep.subr.mxu0 0.0
    %1387 = vmatpush1.xpose.msra.mxu0 0.0
    %1388 = vmatprep.subr.mxu0 0.0
    %1389 = vmatpush1.xpose.msra.mxu0 %v1358
    %1390 = vmatprep.subr.mxu0 0.0
    %1391 = vmatpush1.xpose.msra.mxu0 %v1356
    %1392 = vmatprep.subr.mxu0 0.0
    %1393 = vmatpush2.xpose.msra.mxu0 0.0
    %1394 = vmatprep.subr.mxu0 0.0
    %1395 = vmatpush2.xpose.msra.mxu0 0.0
    %1396 = vmatprep.subr.mxu0 0.0
    %1397 = vmatpush2.xpose.msra.mxu0 0.0
    %1398 = vmatprep.subr.mxu0 0.0
    %1399 = vmatpush2.xpose.msra.mxu0 0.0
    %1400 = vmatprep.subr.mxu0 0.0
    %1401 = vmatpush2.xpose.msra.mxu0 0.0
    %1402 = vmatprep.subr.mxu0 0.0
    %1403 = vmatpush2.xpose.msra.mxu0 0.0
    %1404 = vmatprep.subr.mxu0 0.0
    %1405 = vmatpush2.xpose.msra.mxu0 0.0
    %1406 = vmatprep.subr.mxu0 0.0
    %1407 = vmatpush2.xpose.msra.mxu0 0.0
    %1408 = vmatprep.subr.mxu0 0.0
    %1409 = vmatpush2.xpose.msra.mxu0 0.0
    %1410 = vmatprep.subr.mxu0 0.0
    %1411 = vmatpush2.xpose.msra.mxu0 0.0
    %1412 = vmatprep.subr.mxu0 0.0
    %1413 = vmatpush2.xpose.msra.mxu0 0.0
    %1414 = vmatprep.subr.mxu0 0.0
    %1415 = vmatpush2.xpose.msra.mxu0 0.0
    %1416 = vmatprep.subr.mxu0 0.0
    %1417 = vmatpush2.xpose.msra.mxu0 0.0
    %1418 = vmatprep.subr.mxu0 0.0
    %1419 = vmatpush2.xpose.msra.mxu0 0.0
    %1420 = vmatprep.subr.mxu0 0.0
    %1421 = vmatpush2.xpose.msra.mxu0 0.0
    %1422 = vmatprep.subr.mxu0 0.0
    %1423 = vmatpush2.xpose.msra.mxu0 0.0
    %1424 = vmatprep.mubr.f32.mxu0 0.0
    %1425 = vmatmul.mubr.f32.gmra.mxu0 %v1354
    %v1426 = vpop.f32.mrf.mxu0
    %v1427 = vadd.f32 0.0, %v1426
    %v1428 = vpop.f32.mrf.mxu0
    %1429 = vdwg.mxu0
    %v1430 = vsel %vm1201, %v1070, 0
    %v1432 = vsel %vm1201, %v1120, 0
    %v1434 = vsel %vm1201, %v1122, 0
    %1436 = vmatprep.subr.mxu0 0.0
    %1437 = vmatpush1.xpose.msra.mxu0 0.0
    %1438 = vmatprep.subr.mxu0 0.0
    %1439 = vmatpush1.xpose.msra.mxu0 0.0
    %1440 = vmatprep.subr.mxu0 0.0
    %1441 = vmatpush1.xpose.msra.mxu0 0.0
    %1442 = vmatprep.subr.mxu0 0.0
    %1443 = vmatpush1.xpose.msra.mxu0 0.0
    %1444 = vmatprep.subr.mxu0 0.0
    %1445 = vmatpush1.xpose.msra.mxu0 0.0
    %1446 = vmatprep.subr.mxu0 0.0
    %1447 = vmatpush1.xpose.msra.mxu0 0.0
    %1448 = vmatprep.subr.mxu0 0.0
    %1449 = vmatpush1.xpose.msra.mxu0 0.0
    %1450 = vmatprep.subr.mxu0 0.0
    %1451 = vmatpush1.xpose.msra.mxu0 0.0
    %1452 = vmatprep.subr.mxu0 0.0
    %1453 = vmatpush1.xpose.msra.mxu0 0.0
    %1454 = vmatprep.subr.mxu0 0.0
    %1455 = vmatpush1.xpose.msra.mxu0 0.0
    %1456 = vmatprep.subr.mxu0 0.0
    %1457 = vmatpush1.xpose.msra.mxu0 0.0
    %1458 = vmatprep.subr.mxu0 0.0
    %1459 = vmatpush1.xpose.msra.mxu0 0.0
    %1460 = vmatprep.subr.mxu0 0.0
    %1461 = vmatpush1.xpose.msra.mxu0 0.0
    %1462 = vmatprep.subr.mxu0 0.0
    %1463 = vmatpush1.xpose.msra.mxu0 0.0
    %1464 = vmatprep.subr.mxu0 0.0
    %1465 = vmatpush1.xpose.msra.mxu0 %v1434
    %1466 = vmatprep.subr.mxu0 0.0
    %1467 = vmatpush1.xpose.msra.mxu0 %v1432
    %1468 = vmatprep.subr.mxu0 0.0
    %1469 = vmatpush2.xpose.msra.mxu0 0.0
    %1470 = vmatprep.subr.mxu0 0.0
    %1471 = vmatpush2.xpose.msra.mxu0 0.0
    %1472 = vmatprep.subr.mxu0 0.0
    %1473 = vmatpush2.xpose.msra.mxu0 0.0
    %1474 = vmatprep.subr.mxu0 0.0
    %1475 = vmatpush2.xpose.msra.mxu0 0.0
    %1476 = vmatprep.subr.mxu0 0.0
    %1477 = vmatpush2.xpose.msra.mxu0 0.0
    %1478 = vmatprep.subr.mxu0 0.0
    %1479 = vmatpush2.xpose.msra.mxu0 0.0
    %1480 = vmatprep.subr.mxu0 0.0
    %1481 = vmatpush2.xpose.msra.mxu0 0.0
    %1482 = vmatprep.subr.mxu0 0.0
    %1483 = vmatpush2.xpose.msra.mxu0 0.0
    %1484 = vmatprep.subr.mxu0 0.0
    %1485 = vmatpush2.xpose.msra.mxu0 0.0
    %1486 = vmatprep.subr.mxu0 0.0
    %1487 = vmatpush2.xpose.msra.mxu0 0.0
    %1488 = vmatprep.subr.mxu0 0.0
    %1489 = vmatpush2.xpose.msra.mxu0 0.0
    %1490 = vmatprep.subr.mxu0 0.0
    %1491 = vmatpush2.xpose.msra.mxu0 0.0
    %1492 = vmatprep.subr.mxu0 0.0
    %1493 = vmatpush2.xpose.msra.mxu0 0.0
    %1494 = vmatprep.subr.mxu0 0.0
    %1495 = vmatpush2.xpose.msra.mxu0 0.0
    %1496 = vmatprep.subr.mxu0 0.0
    %1497 = vmatpush2.xpose.msra.mxu0 0.0
    %1498 = vmatprep.subr.mxu0 0.0
    %1499 = vmatpush2.xpose.msra.mxu0 0.0
    %1500 = vmatprep.mubr.f32.mxu0 0.0
    %1501 = vmatmul.mubr.f32.gmra.mxu0 %v1430
    %v1502 = vpop.f32.mrf.mxu0
    %v1503 = vadd.f32 0.0, %v1502
    %v1504 = vpop.f32.mrf.mxu0
    %1505 = vdwg.mxu0
    %v1506 = vsel %vm1201, %v1072, 0
    %v1508 = vsel %vm1201, %v1124, 0
    %v1510 = vsel %vm1201, %v1126, 0
    %1512 = vmatprep.subr.mxu0 0.0
    %1513 = vmatpush1.xpose.msra.mxu0 0.0
    %1514 = vmatprep.subr.mxu0 0.0
    %1515 = vmatpush1.xpose.msra.mxu0 0.0
    %1516 = vmatprep.subr.mxu0 0.0
    %1517 = vmatpush1.xpose.msra.mxu0 0.0
    %1518 = vmatprep.subr.mxu0 0.0
    %1519 = vmatpush1.xpose.msra.mxu0 0.0
    %1520 = vmatprep.subr.mxu0 0.0
    %1521 = vmatpush1.xpose.msra.mxu0 0.0
    %1522 = vmatprep.subr.mxu0 0.0
    %1523 = vmatpush1.xpose.msra.mxu0 0.0
    %1524 = vmatprep.subr.mxu0 0.0
    %1525 = vmatpush1.xpose.msra.mxu0 0.0
    %1526 = vmatprep.subr.mxu0 0.0
    %1527 = vmatpush1.xpose.msra.mxu0 0.0
    %1528 = vmatprep.subr.mxu0 0.0
    %1529 = vmatpush1.xpose.msra.mxu0 0.0
    %1530 = vmatprep.subr.mxu0 0.0
    %1531 = vmatpush1.xpose.msra.mxu0 0.0
    %1532 = vmatprep.subr.mxu0 0.0
    %1533 = vmatpush1.xpose.msra.mxu0 0.0
    %1534 = vmatprep.subr.mxu0 0.0
    %1535 = vmatpush1.xpose.msra.mxu0 0.0
    %1536 = vmatprep.subr.mxu0 0.0
    %1537 = vmatpush1.xpose.msra.mxu0 0.0
    %1538 = vmatprep.subr.mxu0 0.0
    %1539 = vmatpush1.xpose.msra.mxu0 0.0
    %1540 = vmatprep.subr.mxu0 0.0
    %1541 = vmatpush1.xpose.msra.mxu0 %v1510
    %1542 = vmatprep.subr.mxu0 0.0
    %1543 = vmatpush1.xpose.msra.mxu0 %v1508
    %1544 = vmatprep.subr.mxu0 0.0
    %1545 = vmatpush2.xpose.msra.mxu0 0.0
    %1546 = vmatprep.subr.mxu0 0.0
    %1547 = vmatpush2.xpose.msra.mxu0 0.0
    %1548 = vmatprep.subr.mxu0 0.0
    %1549 = vmatpush2.xpose.msra.mxu0 0.0
    %1550 = vmatprep.subr.mxu0 0.0
    %1551 = vmatpush2.xpose.msra.mxu0 0.0
    %1552 = vmatprep.subr.mxu0 0.0
    %1553 = vmatpush2.xpose.msra.mxu0 0.0
    %1554 = vmatprep.subr.mxu0 0.0
    %1555 = vmatpush2.xpose.msra.mxu0 0.0
    %1556 = vmatprep.subr.mxu0 0.0
    %1557 = vmatpush2.xpose.msra.mxu0 0.0
    %1558 = vmatprep.subr.mxu0 0.0
    %1559 = vmatpush2.xpose.msra.mxu0 0.0
    %1560 = vmatprep.subr.mxu0 0.0
    %1561 = vmatpush2.xpose.msra.mxu0 0.0
    %1562 = vmatprep.subr.mxu0 0.0
    %1563 = vmatpush2.xpose.msra.mxu0 0.0
    %1564 = vmatprep.subr.mxu0 0.0
    %1565 = vmatpush2.xpose.msra.mxu0 0.0
    %1566 = vmatprep.subr.mxu0 0.0
    %1567 = vmatpush2.xpose.msra.mxu0 0.0
    %1568 = vmatprep.subr.mxu0 0.0
    %1569 = vmatpush2.xpose.msra.mxu0 0.0
    %1570 = vmatprep.subr.mxu0 0.0
    %1571 = vmatpush2.xpose.msra.mxu0 0.0
    %1572 = vmatprep.subr.mxu0 0.0
    %1573 = vmatpush2.xpose.msra.mxu0 0.0
    %1574 = vmatprep.subr.mxu0 0.0
    %1575 = vmatpush2.xpose.msra.mxu0 0.0
    %1576 = vmatprep.mubr.f32.mxu0 0.0
    %1577 = vmatmul.mubr.f32.gmra.mxu0 %v1506
    %v1578 = vpop.f32.mrf.mxu0
    %v1579 = vadd.f32 0.0, %v1578
    %v1580 = vpop.f32.mrf.mxu0
    %1581 = vdwg.mxu0
    %v1582 = vsel %vm1201, %v1074, 0
    %v1584 = vsel %vm1201, %v1128, 0
    %v1586 = vsel %vm1201, %v1130, 0
    %1588 = vmatprep.subr.mxu0 0.0
    %1589 = vmatpush1.xpose.msra.mxu0 0.0
    %1590 = vmatprep.subr.mxu0 0.0
    %1591 = vmatpush1.xpose.msra.mxu0 0.0
    %1592 = vmatprep.subr.mxu0 0.0
    %1593 = vmatpush1.xpose.msra.mxu0 0.0
    %1594 = vmatprep.subr.mxu0 0.0
    %1595 = vmatpush1.xpose.msra.mxu0 0.0
    %1596 = vmatprep.subr.mxu0 0.0
    %1597 = vmatpush1.xpose.msra.mxu0 0.0
    %1598 = vmatprep.subr.mxu0 0.0
    %1599 = vmatpush1.xpose.msra.mxu0 0.0
    %1600 = vmatprep.subr.mxu0 0.0
    %1601 = vmatpush1.xpose.msra.mxu0 0.0
    %1602 = vmatprep.subr.mxu0 0.0
    %1603 = vmatpush1.xpose.msra.mxu0 0.0
    %1604 = vmatprep.subr.mxu0 0.0
    %1605 = vmatpush1.xpose.msra.mxu0 0.0
    %1606 = vmatprep.subr.mxu0 0.0
    %1607 = vmatpush1.xpose.msra.mxu0 0.0
    %1608 = vmatprep.subr.mxu0 0.0
    %1609 = vmatpush1.xpose.msra.mxu0 0.0
    %1610 = vmatprep.subr.mxu0 0.0
    %1611 = vmatpush1.xpose.msra.mxu0 0.0
    %1612 = vmatprep.subr.mxu0 0.0
    %1613 = vmatpush1.xpose.msra.mxu0 0.0
    %1614 = vmatprep.subr.mxu0 0.0
    %1615 = vmatpush1.xpose.msra.mxu0 0.0
    %1616 = vmatprep.subr.mxu0 0.0
    %1617 = vmatpush1.xpose.msra.mxu0 %v1586
    %1618 = vmatprep.subr.mxu0 0.0
    %1619 = vmatpush1.xpose.msra.mxu0 %v1584
    %1620 = vmatprep.subr.mxu0 0.0
    %1621 = vmatpush2.xpose.msra.mxu0 0.0
    %1622 = vmatprep.subr.mxu0 0.0
    %1623 = vmatpush2.xpose.msra.mxu0 0.0
    %1624 = vmatprep.subr.mxu0 0.0
    %1625 = vmatpush2.xpose.msra.mxu0 0.0
    %1626 = vmatprep.subr.mxu0 0.0
    %1627 = vmatpush2.xpose.msra.mxu0 0.0
    %1628 = vmatprep.subr.mxu0 0.0
    %1629 = vmatpush2.xpose.msra.mxu0 0.0
    %1630 = vmatprep.subr.mxu0 0.0
    %1631 = vmatpush2.xpose.msra.mxu0 0.0
    %1632 = vmatprep.subr.mxu0 0.0
    %1633 = vmatpush2.xpose.msra.mxu0 0.0
    %1634 = vmatprep.subr.mxu0 0.0
    %1635 = vmatpush2.xpose.msra.mxu0 0.0
    %1636 = vmatprep.subr.mxu0 0.0
    %1637 = vmatpush2.xpose.msra.mxu0 0.0
    %1638 = vmatprep.subr.mxu0 0.0
    %1639 = vmatpush2.xpose.msra.mxu0 0.0
    %1640 = vmatprep.subr.mxu0 0.0
    %1641 = vmatpush2.xpose.msra.mxu0 0.0
    %1642 = vmatprep.subr.mxu0 0.0
    %1643 = vmatpush2.xpose.msra.mxu0 0.0
    %1644 = vmatprep.subr.mxu0 0.0
    %1645 = vmatpush2.xpose.msra.mxu0 0.0
    %1646 = vmatprep.subr.mxu0 0.0
    %1647 = vmatpush2.xpose.msra.mxu0 0.0
    %1648 = vmatprep.subr.mxu0 0.0
    %1649 = vmatpush2.xpose.msra.mxu0 0.0
    %1650 = vmatprep.subr.mxu0 0.0
    %1651 = vmatpush2.xpose.msra.mxu0 0.0
    %1652 = vmatprep.mubr.f32.mxu0 0.0
    %1653 = vmatmul.mubr.f32.gmra.mxu0 %v1582
    %v1654 = vpop.f32.mrf.mxu0
    %v1655 = vadd.f32 0.0, %v1654
    %v1656 = vpop.f32.mrf.mxu0
    %1657 = vdwg.mxu0
    %v1658 = vsel %vm1201, %v1076, 0
    %v1660 = vsel %vm1201, %v1132, 0
    %v1662 = vsel %vm1201, %v1134, 0
    %1664 = vmatprep.subr.mxu0 0.0
    %1665 = vmatpush1.xpose.msra.mxu0 0.0
    %1666 = vmatprep.subr.mxu0 0.0
    %1667 = vmatpush1.xpose.msra.mxu0 0.0
    %1668 = vmatprep.subr.mxu0 0.0
    %1669 = vmatpush1.xpose.msra.mxu0 0.0
    %1670 = vmatprep.subr.mxu0 0.0
    %1671 = vmatpush1.xpose.msra.mxu0 0.0
    %1672 = vmatprep.subr.mxu0 0.0
    %1673 = vmatpush1.xpose.msra.mxu0 0.0
    %1674 = vmatprep.subr.mxu0 0.0
    %1675 = vmatpush1.xpose.msra.mxu0 0.0
    %1676 = vmatprep.subr.mxu0 0.0
    %1677 = vmatpush1.xpose.msra.mxu0 0.0
    %1678 = vmatprep.subr.mxu0 0.0
    %1679 = vmatpush1.xpose.msra.mxu0 0.0
    %1680 = vmatprep.subr.mxu0 0.0
    %1681 = vmatpush1.xpose.msra.mxu0 0.0
    %1682 = vmatprep.subr.mxu0 0.0
    %1683 = vmatpush1.xpose.msra.mxu0 0.0
    %1684 = vmatprep.subr.mxu0 0.0
    %1685 = vmatpush1.xpose.msra.mxu0 0.0
    %1686 = vmatprep.subr.mxu0 0.0
    %1687 = vmatpush1.xpose.msra.mxu0 0.0
    %1688 = vmatprep.subr.mxu0 0.0
    %1689 = vmatpush1.xpose.msra.mxu0 0.0
    %1690 = vmatprep.subr.mxu0 0.0
    %1691 = vmatpush1.xpose.msra.mxu0 0.0
    %1692 = vmatprep.subr.mxu0 0.0
    %1693 = vmatpush1.xpose.msra.mxu0 %v1662
    %1694 = vmatprep.subr.mxu0 0.0
    %1695 = vmatpush1.xpose.msra.mxu0 %v1660
    %1696 = vmatprep.subr.mxu0 0.0
    %1697 = vmatpush2.xpose.msra.mxu0 0.0
    %1698 = vmatprep.subr.mxu0 0.0
    %1699 = vmatpush2.xpose.msra.mxu0 0.0
    %1700 = vmatprep.subr.mxu0 0.0
    %1701 = vmatpush2.xpose.msra.mxu0 0.0
    %1702 = vmatprep.subr.mxu0 0.0
    %1703 = vmatpush2.xpose.msra.mxu0 0.0
    %1704 = vmatprep.subr.mxu0 0.0
    %1705 = vmatpush2.xpose.msra.mxu0 0.0
    %1706 = vmatprep.subr.mxu0 0.0
    %1707 = vmatpush2.xpose.msra.mxu0 0.0
    %1708 = vmatprep.subr.mxu0 0.0
    %1709 = vmatpush2.xpose.msra.mxu0 0.0
    %1710 = vmatprep.subr.mxu0 0.0
    %1711 = vmatpush2.xpose.msra.mxu0 0.0
    %1712 = vmatprep.subr.mxu0 0.0
    %1713 = vmatpush2.xpose.msra.mxu0 0.0
    %1714 = vmatprep.subr.mxu0 0.0
    %1715 = vmatpush2.xpose.msra.mxu0 0.0
    %1716 = vmatprep.subr.mxu0 0.0
    %1717 = vmatpush2.xpose.msra.mxu0 0.0
    %1718 = vmatprep.subr.mxu0 0.0
    %1719 = vmatpush2.xpose.msra.mxu0 0.0
    %1720 = vmatprep.subr.mxu0 0.0
    %1721 = vmatpush2.xpose.msra.mxu0 0.0
    %1722 = vmatprep.subr.mxu0 0.0
    %1723 = vmatpush2.xpose.msra.mxu0 0.0
    %1724 = vmatprep.subr.mxu0 0.0
    %1725 = vmatpush2.xpose.msra.mxu0 0.0
    %1726 = vmatprep.subr.mxu0 0.0
    %1727 = vmatpush2.xpose.msra.mxu0 0.0
    %1728 = vmatprep.mubr.f32.mxu0 0.0
    %1729 = vmatmul.mubr.f32.gmra.mxu0 %v1658
    %v1730 = vpop.f32.mrf.mxu0
    %v1731 = vadd.f32 0.0, %v1730
    %v1732 = vpop.f32.mrf.mxu0
    %1733 = vdwg.mxu0
    %v1734 = vsel %vm1201, %v1078, 0
    %v1736 = vsel %vm1201, %v1136, 0
    %v1738 = vsel %vm1201, %v1138, 0
    %1740 = vmatprep.subr.mxu0 0.0
    %1741 = vmatpush1.xpose.msra.mxu0 0.0
    %1742 = vmatprep.subr.mxu0 0.0
    %1743 = vmatpush1.xpose.msra.mxu0 0.0
    %1744 = vmatprep.subr.mxu0 0.0
    %1745 = vmatpush1.xpose.msra.mxu0 0.0
    %1746 = vmatprep.subr.mxu0 0.0
    %1747 = vmatpush1.xpose.msra.mxu0 0.0
    %1748 = vmatprep.subr.mxu0 0.0
    %1749 = vmatpush1.xpose.msra.mxu0 0.0
    %1750 = vmatprep.subr.mxu0 0.0
    %1751 = vmatpush1.xpose.msra.mxu0 0.0
    %1752 = vmatprep.subr.mxu0 0.0
    %1753 = vmatpush1.xpose.msra.mxu0 0.0
    %1754 = vmatprep.subr.mxu0 0.0
    %1755 = vmatpush1.xpose.msra.mxu0 0.0
    %1756 = vmatprep.subr.mxu0 0.0
    %1757 = vmatpush1.xpose.msra.mxu0 0.0
    %1758 = vmatprep.subr.mxu0 0.0
    %1759 = vmatpush1.xpose.msra.mxu0 0.0
    %1760 = vmatprep.subr.mxu0 0.0
    %1761 = vmatpush1.xpose.msra.mxu0 0.0
    %1762 = vmatprep.subr.mxu0 0.0
    %1763 = vmatpush1.xpose.msra.mxu0 0.0
    %1764 = vmatprep.subr.mxu0 0.0
    %1765 = vmatpush1.xpose.msra.mxu0 0.0
    %1766 = vmatprep.subr.mxu0 0.0
    %1767 = vmatpush1.xpose.msra.mxu0 0.0
    %1768 = vmatprep.subr.mxu0 0.0
    %1769 = vmatpush1.xpose.msra.mxu0 %v1738
    %1770 = vmatprep.subr.mxu0 0.0
    %1771 = vmatpush1.xpose.msra.mxu0 %v1736
    %1772 = vmatprep.subr.mxu0 0.0
    %1773 = vmatpush2.xpose.msra.mxu0 0.0
    %1774 = vmatprep.subr.mxu0 0.0
    %1775 = vmatpush2.xpose.msra.mxu0 0.0
    %1776 = vmatprep.subr.mxu0 0.0
    %1777 = vmatpush2.xpose.msra.mxu0 0.0
    %1778 = vmatprep.subr.mxu0 0.0
    %1779 = vmatpush2.xpose.msra.mxu0 0.0
    %1780 = vmatprep.subr.mxu0 0.0
    %1781 = vmatpush2.xpose.msra.mxu0 0.0
    %1782 = vmatprep.subr.mxu0 0.0
    %1783 = vmatpush2.xpose.msra.mxu0 0.0
    %1784 = vmatprep.subr.mxu0 0.0
    %1785 = vmatpush2.xpose.msra.mxu0 0.0
    %1786 = vmatprep.subr.mxu0 0.0
    %1787 = vmatpush2.xpose.msra.mxu0 0.0
    %1788 = vmatprep.subr.mxu0 0.0
    %1789 = vmatpush2.xpose.msra.mxu0 0.0
    %1790 = vmatprep.subr.mxu0 0.0
    %1791 = vmatpush2.xpose.msra.mxu0 0.0
    %1792 = vmatprep.subr.mxu0 0.0
    %1793 = vmatpush2.xpose.msra.mxu0 0.0
    %1794 = vmatprep.subr.mxu0 0.0
    %1795 = vmatpush2.xpose.msra.mxu0 0.0
    %1796 = vmatprep.subr.mxu0 0.0
    %1797 = vmatpush2.xpose.msra.mxu0 0.0
    %1798 = vmatprep.subr.mxu0 0.0
    %1799 = vmatpush2.xpose.msra.mxu0 0.0
    %1800 = vmatprep.subr.mxu0 0.0
    %1801 = vmatpush2.xpose.msra.mxu0 0.0
    %1802 = vmatprep.subr.mxu0 0.0
    %1803 = vmatpush2.xpose.msra.mxu0 0.0
    %1804 = vmatprep.mubr.f32.mxu0 0.0
    %1805 = vmatmul.mubr.f32.gmra.mxu0 %v1734
    %v1806 = vpop.f32.mrf.mxu0
    %v1807 = vadd.f32 0.0, %v1806
    %v1808 = vpop.f32.mrf.mxu0
    %1809 = vdwg.mxu0
    %v1810 = vsel %vm1201, %v1080, 0
    %v1812 = vsel %vm1201, %v1142, 0
    %v1814 = vsel %vm1201, %v1144, 0
    %1816 = vmatprep.subr.mxu0 0.0
    %1817 = vmatpush1.xpose.msra.mxu0 0.0
    %1818 = vmatprep.subr.mxu0 0.0
    %1819 = vmatpush1.xpose.msra.mxu0 0.0
    %1820 = vmatprep.subr.mxu0 0.0
    %1821 = vmatpush1.xpose.msra.mxu0 0.0
    %1822 = vmatprep.subr.mxu0 0.0
    %1823 = vmatpush1.xpose.msra.mxu0 0.0
    %1824 = vmatprep.subr.mxu0 0.0
    %1825 = vmatpush1.xpose.msra.mxu0 0.0
    %1826 = vmatprep.subr.mxu0 0.0
    %1827 = vmatpush1.xpose.msra.mxu0 0.0
    %1828 = vmatprep.subr.mxu0 0.0
    %1829 = vmatpush1.xpose.msra.mxu0 0.0
    %1830 = vmatprep.subr.mxu0 0.0
    %1831 = vmatpush1.xpose.msra.mxu0 0.0
    %1832 = vmatprep.subr.mxu0 0.0
    %1833 = vmatpush1.xpose.msra.mxu0 0.0
    %1834 = vmatprep.subr.mxu0 0.0
    %1835 = vmatpush1.xpose.msra.mxu0 0.0
    %1836 = vmatprep.subr.mxu0 0.0
    %1837 = vmatpush1.xpose.msra.mxu0 0.0
    %1838 = vmatprep.subr.mxu0 0.0
    %1839 = vmatpush1.xpose.msra.mxu0 0.0
    %1840 = vmatprep.subr.mxu0 0.0
    %1841 = vmatpush1.xpose.msra.mxu0 0.0
    %1842 = vmatprep.subr.mxu0 0.0
    %1843 = vmatpush1.xpose.msra.mxu0 0.0
    %1844 = vmatprep.subr.mxu0 0.0
    %1845 = vmatpush1.xpose.msra.mxu0 %v1814
    %1846 = vmatprep.subr.mxu0 0.0
    %1847 = vmatpush1.xpose.msra.mxu0 %v1812
    %1848 = vmatprep.subr.mxu0 0.0
    %1849 = vmatpush2.xpose.msra.mxu0 0.0
    %1850 = vmatprep.subr.mxu0 0.0
    %1851 = vmatpush2.xpose.msra.mxu0 0.0
    %1852 = vmatprep.subr.mxu0 0.0
    %1853 = vmatpush2.xpose.msra.mxu0 0.0
    %1854 = vmatprep.subr.mxu0 0.0
    %1855 = vmatpush2.xpose.msra.mxu0 0.0
    %1856 = vmatprep.subr.mxu0 0.0
    %1857 = vmatpush2.xpose.msra.mxu0 0.0
    %1858 = vmatprep.subr.mxu0 0.0
    %1859 = vmatpush2.xpose.msra.mxu0 0.0
    %1860 = vmatprep.subr.mxu0 0.0
    %1861 = vmatpush2.xpose.msra.mxu0 0.0
    %1862 = vmatprep.subr.mxu0 0.0
    %1863 = vmatpush2.xpose.msra.mxu0 0.0
    %1864 = vmatprep.subr.mxu0 0.0
    %1865 = vmatpush2.xpose.msra.mxu0 0.0
    %1866 = vmatprep.subr.mxu0 0.0
    %1867 = vmatpush2.xpose.msra.mxu0 0.0
    %1868 = vmatprep.subr.mxu0 0.0
    %1869 = vmatpush2.xpose.msra.mxu0 0.0
    %1870 = vmatprep.subr.mxu0 0.0
    %1871 = vmatpush2.xpose.msra.mxu0 0.0
    %1872 = vmatprep.subr.mxu0 0.0
    %1873 = vmatpush2.xpose.msra.mxu0 0.0
    %1874 = vmatprep.subr.mxu0 0.0
    %1875 = vmatpush2.xpose.msra.mxu0 0.0
    %1876 = vmatprep.subr.mxu0 0.0
    %1877 = vmatpush2.xpose.msra.mxu0 0.0
    %1878 = vmatprep.subr.mxu0 0.0
    %1879 = vmatpush2.xpose.msra.mxu0 0.0
    %1880 = vmatprep.mubr.f32.mxu0 0.0
    %1881 = vmatmul.mubr.f32.gmra.mxu0 %v1810
    %v1882 = vpop.f32.mrf.mxu0
    %v1883 = vadd.f32 0.0, %v1882
    %v1884 = vpop.f32.mrf.mxu0
    %1885 = vdwg.mxu0
    %v1886 = vsel %vm1201, %v1082, 0
    %v1888 = vsel %vm1201, %v1146, 0
    %v1890 = vsel %vm1201, %v1148, 0
    %1892 = vmatprep.subr.mxu0 0.0
    %1893 = vmatpush1.xpose.msra.mxu0 0.0
    %1894 = vmatprep.subr.mxu0 0.0
    %1895 = vmatpush1.xpose.msra.mxu0 0.0
    %1896 = vmatprep.subr.mxu0 0.0
    %1897 = vmatpush1.xpose.msra.mxu0 0.0
    %1898 = vmatprep.subr.mxu0 0.0
    %1899 = vmatpush1.xpose.msra.mxu0 0.0
    %1900 = vmatprep.subr.mxu0 0.0
    %1901 = vmatpush1.xpose.msra.mxu0 0.0
    %1902 = vmatprep.subr.mxu0 0.0
    %1903 = vmatpush1.xpose.msra.mxu0 0.0
    %1904 = vmatprep.subr.mxu0 0.0
    %1905 = vmatpush1.xpose.msra.mxu0 0.0
    %1906 = vmatprep.subr.mxu0 0.0
    %1907 = vmatpush1.xpose.msra.mxu0 0.0
    %1908 = vmatprep.subr.mxu0 0.0
    %1909 = vmatpush1.xpose.msra.mxu0 0.0
    %1910 = vmatprep.subr.mxu0 0.0
    %1911 = vmatpush1.xpose.msra.mxu0 0.0
    %1912 = vmatprep.subr.mxu0 0.0
    %1913 = vmatpush1.xpose.msra.mxu0 0.0
    %1914 = vmatprep.subr.mxu0 0.0
    %1915 = vmatpush1.xpose.msra.mxu0 0.0
    %1916 = vmatprep.subr.mxu0 0.0
    %1917 = vmatpush1.xpose.msra.mxu0 0.0
    %1918 = vmatprep.subr.mxu0 0.0
    %1919 = vmatpush1.xpose.msra.mxu0 0.0
    %1920 = vmatprep.subr.mxu0 0.0
    %1921 = vmatpush1.xpose.msra.mxu0 %v1890
    %1922 = vmatprep.subr.mxu0 0.0
    %1923 = vmatpush1.xpose.msra.mxu0 %v1888
    %1924 = vmatprep.subr.mxu0 0.0
    %1925 = vmatpush2.xpose.msra.mxu0 0.0
    %1926 = vmatprep.subr.mxu0 0.0
    %1927 = vmatpush2.xpose.msra.mxu0 0.0
    %1928 = vmatprep.subr.mxu0 0.0
    %1929 = vmatpush2.xpose.msra.mxu0 0.0
    %1930 = vmatprep.subr.mxu0 0.0
    %1931 = vmatpush2.xpose.msra.mxu0 0.0
    %1932 = vmatprep.subr.mxu0 0.0
    %1933 = vmatpush2.xpose.msra.mxu0 0.0
    %1934 = vmatprep.subr.mxu0 0.0
    %1935 = vmatpush2.xpose.msra.mxu0 0.0
    %1936 = vmatprep.subr.mxu0 0.0
    %1937 = vmatpush2.xpose.msra.mxu0 0.0
    %1938 = vmatprep.subr.mxu0 0.0
    %1939 = vmatpush2.xpose.msra.mxu0 0.0
    %1940 = vmatprep.subr.mxu0 0.0
    %1941 = vmatpush2.xpose.msra.mxu0 0.0
    %1942 = vmatprep.subr.mxu0 0.0
    %1943 = vmatpush2.xpose.msra.mxu0 0.0
    %1944 = vmatprep.subr.mxu0 0.0
    %1945 = vmatpush2.xpose.msra.mxu0 0.0
    %1946 = vmatprep.subr.mxu0 0.0
    %1947 = vmatpush2.xpose.msra.mxu0 0.0
    %1948 = vmatprep.subr.mxu0 0.0
    %1949 = vmatpush2.xpose.msra.mxu0 0.0
    %1950 = vmatprep.subr.mxu0 0.0
    %1951 = vmatpush2.xpose.msra.mxu0 0.0
    %1952 = vmatprep.subr.mxu0 0.0
    %1953 = vmatpush2.xpose.msra.mxu0 0.0
    %1954 = vmatprep.subr.mxu0 0.0
    %1955 = vmatpush2.xpose.msra.mxu0 0.0
    %1956 = vmatprep.mubr.f32.mxu0 0.0
    %1957 = vmatmul.mubr.f32.gmra.mxu0 %v1886
    %v1958 = vpop.f32.mrf.mxu0
    %v1959 = vadd.f32 0.0, %v1958
    %v1960 = vpop.f32.mrf.mxu0
    %1961 = vdwg.mxu0
    %v1962 = vsel %vm1201, %v1084, 0
    %v1964 = vsel %vm1201, %v1150, 0
    %v1966 = vsel %vm1201, %v1152, 0
    %1968 = vmatprep.subr.mxu0 0.0
    %1969 = vmatpush1.xpose.msra.mxu0 0.0
    %1970 = vmatprep.subr.mxu0 0.0
    %1971 = vmatpush1.xpose.msra.mxu0 0.0
    %1972 = vmatprep.subr.mxu0 0.0
    %1973 = vmatpush1.xpose.msra.mxu0 0.0
    %1974 = vmatprep.subr.mxu0 0.0
    %1975 = vmatpush1.xpose.msra.mxu0 0.0
    %1976 = vmatprep.subr.mxu0 0.0
    %1977 = vmatpush1.xpose.msra.mxu0 0.0
    %1978 = vmatprep.subr.mxu0 0.0
    %1979 = vmatpush1.xpose.msra.mxu0 0.0
    %1980 = vmatprep.subr.mxu0 0.0
    %1981 = vmatpush1.xpose.msra.mxu0 0.0
    %1982 = vmatprep.subr.mxu0 0.0
    %1983 = vmatpush1.xpose.msra.mxu0 0.0
    %1984 = vmatprep.subr.mxu0 0.0
    %1985 = vmatpush1.xpose.msra.mxu0 0.0
    %1986 = vmatprep.subr.mxu0 0.0
    %1987 = vmatpush1.xpose.msra.mxu0 0.0
    %1988 = vmatprep.subr.mxu0 0.0
    %1989 = vmatpush1.xpose.msra.mxu0 0.0
    %1990 = vmatprep.subr.mxu0 0.0
    %1991 = vmatpush1.xpose.msra.mxu0 0.0
    %1992 = vmatprep.subr.mxu0 0.0
    %1993 = vmatpush1.xpose.msra.mxu0 0.0
    %1994 = vmatprep.subr.mxu0 0.0
    %1995 = vmatpush1.xpose.msra.mxu0 0.0
    %1996 = vmatprep.subr.mxu0 0.0
    %1997 = vmatpush1.xpose.msra.mxu0 %v1966
    %1998 = vmatprep.subr.mxu0 0.0
    %1999 = vmatpush1.xpose.msra.mxu0 %v1964
    %2000 = vmatprep.subr.mxu0 0.0
    %2001 = vmatpush2.xpose.msra.mxu0 0.0
    %2002 = vmatprep.subr.mxu0 0.0
    %2003 = vmatpush2.xpose.msra.mxu0 0.0
    %2004 = vmatprep.subr.mxu0 0.0
    %2005 = vmatpush2.xpose.msra.mxu0 0.0
    %2006 = vmatprep.subr.mxu0 0.0
    %2007 = vmatpush2.xpose.msra.mxu0 0.0
    %2008 = vmatprep.subr.mxu0 0.0
    %2009 = vmatpush2.xpose.msra.mxu0 0.0
    %2010 = vmatprep.subr.mxu0 0.0
    %2011 = vmatpush2.xpose.msra.mxu0 0.0
    %2012 = vmatprep.subr.mxu0 0.0
    %2013 = vmatpush2.xpose.msra.mxu0 0.0
    %2014 = vmatprep.subr.mxu0 0.0
    %2015 = vmatpush2.xpose.msra.mxu0 0.0
    %2016 = vmatprep.subr.mxu0 0.0
    %2017 = vmatpush2.xpose.msra.mxu0 0.0
    %2018 = vmatprep.subr.mxu0 0.0
    %2019 = vmatpush2.xpose.msra.mxu0 0.0
    %2020 = vmatprep.subr.mxu0 0.0
    %2021 = vmatpush2.xpose.msra.mxu0 0.0
    %2022 = vmatprep.subr.mxu0 0.0
    %2023 = vmatpush2.xpose.msra.mxu0 0.0
    %2024 = vmatprep.subr.mxu0 0.0
    %2025 = vmatpush2.xpose.msra.mxu0 0.0
    %2026 = vmatprep.subr.mxu0 0.0
    %2027 = vmatpush2.xpose.msra.mxu0 0.0
    %2028 = vmatprep.subr.mxu0 0.0
    %2029 = vmatpush2.xpose.msra.mxu0 0.0
    %2030 = vmatprep.subr.mxu0 0.0
    %2031 = vmatpush2.xpose.msra.mxu0 0.0
    %2032 = vmatprep.mubr.f32.mxu0 0.0
    %2033 = vmatmul.mubr.f32.gmra.mxu0 %v1962
    %v2034 = vpop.f32.mrf.mxu0
    %v2035 = vadd.f32 0.0, %v2034
    %v2036 = vpop.f32.mrf.mxu0
    %2037 = vdwg.mxu0
    %v2038 = vsel %vm1201, %v1086, 0
    %v2040 = vsel %vm1201, %v1154, 0
    %v2042 = vsel %vm1201, %v1156, 0
    %2044 = vmatprep.subr.mxu0 0.0
    %2045 = vmatpush1.xpose.msra.mxu0 0.0
    %2046 = vmatprep.subr.mxu0 0.0
    %2047 = vmatpush1.xpose.msra.mxu0 0.0
    %2048 = vmatprep.subr.mxu0 0.0
    %2049 = vmatpush1.xpose.msra.mxu0 0.0
    %2050 = vmatprep.subr.mxu0 0.0
    %2051 = vmatpush1.xpose.msra.mxu0 0.0
    %2052 = vmatprep.subr.mxu0 0.0
    %2053 = vmatpush1.xpose.msra.mxu0 0.0
    %2054 = vmatprep.subr.mxu0 0.0
    %2055 = vmatpush1.xpose.msra.mxu0 0.0
    %2056 = vmatprep.subr.mxu0 0.0
    %2057 = vmatpush1.xpose.msra.mxu0 0.0
    %2058 = vmatprep.subr.mxu0 0.0
    %2059 = vmatpush1.xpose.msra.mxu0 0.0
    %2060 = vmatprep.subr.mxu0 0.0
    %2061 = vmatpush1.xpose.msra.mxu0 0.0
    %2062 = vmatprep.subr.mxu0 0.0
    %2063 = vmatpush1.xpose.msra.mxu0 0.0
    %2064 = vmatprep.subr.mxu0 0.0
    %2065 = vmatpush1.xpose.msra.mxu0 0.0
    %2066 = vmatprep.subr.mxu0 0.0
    %2067 = vmatpush1.xpose.msra.mxu0 0.0
    %2068 = vmatprep.subr.mxu0 0.0
    %2069 = vmatpush1.xpose.msra.mxu0 0.0
    %2070 = vmatprep.subr.mxu0 0.0
    %2071 = vmatpush1.xpose.msra.mxu0 0.0
    %2072 = vmatprep.subr.mxu0 0.0
    %2073 = vmatpush1.xpose.msra.mxu0 %v2042
    %2074 = vmatprep.subr.mxu0 0.0
    %2075 = vmatpush1.xpose.msra.mxu0 %v2040
    %2076 = vmatprep.subr.mxu0 0.0
    %2077 = vmatpush2.xpose.msra.mxu0 0.0
    %2078 = vmatprep.subr.mxu0 0.0
    %2079 = vmatpush2.xpose.msra.mxu0 0.0
    %2080 = vmatprep.subr.mxu0 0.0
    %2081 = vmatpush2.xpose.msra.mxu0 0.0
    %2082 = vmatprep.subr.mxu0 0.0
    %2083 = vmatpush2.xpose.msra.mxu0 0.0
    %2084 = vmatprep.subr.mxu0 0.0
    %2085 = vmatpush2.xpose.msra.mxu0 0.0
    %2086 = vmatprep.subr.mxu0 0.0
    %2087 = vmatpush2.xpose.msra.mxu0 0.0
    %2088 = vmatprep.subr.mxu0 0.0
    %2089 = vmatpush2.xpose.msra.mxu0 0.0
    %2090 = vmatprep.subr.mxu0 0.0
    %2091 = vmatpush2.xpose.msra.mxu0 0.0
    %2092 = vmatprep.subr.mxu0 0.0
    %2093 = vmatpush2.xpose.msra.mxu0 0.0
    %2094 = vmatprep.subr.mxu0 0.0
    %2095 = vmatpush2.xpose.msra.mxu0 0.0
    %2096 = vmatprep.subr.mxu0 0.0
    %2097 = vmatpush2.xpose.msra.mxu0 0.0
    %2098 = vmatprep.subr.mxu0 0.0
    %2099 = vmatpush2.xpose.msra.mxu0 0.0
    %2100 = vmatprep.subr.mxu0 0.0
    %2101 = vmatpush2.xpose.msra.mxu0 0.0
    %2102 = vmatprep.subr.mxu0 0.0
    %2103 = vmatpush2.xpose.msra.mxu0 0.0
    %2104 = vmatprep.subr.mxu0 0.0
    %2105 = vmatpush2.xpose.msra.mxu0 0.0
    %2106 = vmatprep.subr.mxu0 0.0
    %2107 = vmatpush2.xpose.msra.mxu0 0.0
    %2108 = vmatprep.mubr.f32.mxu0 0.0
    %2109 = vmatmul.mubr.f32.gmra.mxu0 %v2038
    %v2110 = vpop.f32.mrf.mxu0
    %v2111 = vadd.f32 0.0, %v2110
    %v2112 = vpop.f32.mrf.mxu0
    %2113 = vdwg.mxu0
    %v2114 = vsel %vm1201, %v1088, 0
    %v2116 = vsel %vm1201, %v1158, 0
    %v2118 = vsel %vm1201, %v1160, 0
    %2120 = vmatprep.subr.mxu0 0.0
    %2121 = vmatpush1.xpose.msra.mxu0 0.0
    %2122 = vmatprep.subr.mxu0 0.0
    %2123 = vmatpush1.xpose.msra.mxu0 0.0
    %2124 = vmatprep.subr.mxu0 0.0
    %2125 = vmatpush1.xpose.msra.mxu0 0.0
    %2126 = vmatprep.subr.mxu0 0.0
    %2127 = vmatpush1.xpose.msra.mxu0 0.0
    %2128 = vmatprep.subr.mxu0 0.0
    %2129 = vmatpush1.xpose.msra.mxu0 0.0
    %2130 = vmatprep.subr.mxu0 0.0
    %2131 = vmatpush1.xpose.msra.mxu0 0.0
    %2132 = vmatprep.subr.mxu0 0.0
    %2133 = vmatpush1.xpose.msra.mxu0 0.0
    %2134 = vmatprep.subr.mxu0 0.0
    %2135 = vmatpush1.xpose.msra.mxu0 0.0
    %2136 = vmatprep.subr.mxu0 0.0
    %2137 = vmatpush1.xpose.msra.mxu0 0.0
    %2138 = vmatprep.subr.mxu0 0.0
    %2139 = vmatpush1.xpose.msra.mxu0 0.0
    %2140 = vmatprep.subr.mxu0 0.0
    %2141 = vmatpush1.xpose.msra.mxu0 0.0
    %2142 = vmatprep.subr.mxu0 0.0
    %2143 = vmatpush1.xpose.msra.mxu0 0.0
    %2144 = vmatprep.subr.mxu0 0.0
    %2145 = vmatpush1.xpose.msra.mxu0 0.0
    %2146 = vmatprep.subr.mxu0 0.0
    %2147 = vmatpush1.xpose.msra.mxu0 0.0
    %2148 = vmatprep.subr.mxu0 0.0
    %2149 = vmatpush1.xpose.msra.mxu0 %v2118
    %2150 = vmatprep.subr.mxu0 0.0
    %2151 = vmatpush1.xpose.msra.mxu0 %v2116
    %2152 = vmatprep.subr.mxu0 0.0
    %2153 = vmatpush2.xpose.msra.mxu0 0.0
    %2154 = vmatprep.subr.mxu0 0.0
    %2155 = vmatpush2.xpose.msra.mxu0 0.0
    %2156 = vmatprep.subr.mxu0 0.0
    %2157 = vmatpush2.xpose.msra.mxu0 0.0
    %2158 = vmatprep.subr.mxu0 0.0
    %2159 = vmatpush2.xpose.msra.mxu0 0.0
    %2160 = vmatprep.subr.mxu0 0.0
    %2161 = vmatpush2.xpose.msra.mxu0 0.0
    %2162 = vmatprep.subr.mxu0 0.0
    %2163 = vmatpush2.xpose.msra.mxu0 0.0
    %2164 = vmatprep.subr.mxu0 0.0
    %2165 = vmatpush2.xpose.msra.mxu0 0.0
    %2166 = vmatprep.subr.mxu0 0.0
    %2167 = vmatpush2.xpose.msra.mxu0 0.0
    %2168 = vmatprep.subr.mxu0 0.0
    %2169 = vmatpush2.xpose.msra.mxu0 0.0
    %2170 = vmatprep.subr.mxu0 0.0
    %2171 = vmatpush2.xpose.msra.mxu0 0.0
    %2172 = vmatprep.subr.mxu0 0.0
    %2173 = vmatpush2.xpose.msra.mxu0 0.0
    %2174 = vmatprep.subr.mxu0 0.0
    %2175 = vmatpush2.xpose.msra.mxu0 0.0
    %2176 = vmatprep.subr.mxu0 0.0
    %2177 = vmatpush2.xpose.msra.mxu0 0.0
    %2178 = vmatprep.subr.mxu0 0.0
    %2179 = vmatpush2.xpose.msra.mxu0 0.0
    %2180 = vmatprep.subr.mxu0 0.0
    %2181 = vmatpush2.xpose.msra.mxu0 0.0
    %2182 = vmatprep.subr.mxu0 0.0
    %2183 = vmatpush2.xpose.msra.mxu0 0.0
    %2184 = vmatprep.mubr.f32.mxu0 0.0
    %2185 = vmatmul.mubr.f32.gmra.mxu0 %v2114
    %v2186 = vpop.f32.mrf.mxu0
    %v2187 = vadd.f32 0.0, %v2186
    %v2188 = vpop.f32.mrf.mxu0
    %2189 = vdwg.mxu0
    %v2190 = vsel %vm1201, %v1090, 0
    %v2192 = vsel %vm1201, %v1162, 0
    %v2194 = vsel %vm1201, %v1164, 0
    %2196 = vmatprep.subr.mxu0 0.0
    %2197 = vmatpush1.xpose.msra.mxu0 0.0
    %2198 = vmatprep.subr.mxu0 0.0
    %2199 = vmatpush1.xpose.msra.mxu0 0.0
    %2200 = vmatprep.subr.mxu0 0.0
    %2201 = vmatpush1.xpose.msra.mxu0 0.0
    %2202 = vmatprep.subr.mxu0 0.0
    %2203 = vmatpush1.xpose.msra.mxu0 0.0
    %2204 = vmatprep.subr.mxu0 0.0
    %2205 = vmatpush1.xpose.msra.mxu0 0.0
    %2206 = vmatprep.subr.mxu0 0.0
    %2207 = vmatpush1.xpose.msra.mxu0 0.0
    %2208 = vmatprep.subr.mxu0 0.0
    %2209 = vmatpush1.xpose.msra.mxu0 0.0
    %2210 = vmatprep.subr.mxu0 0.0
    %2211 = vmatpush1.xpose.msra.mxu0 0.0
    %2212 = vmatprep.subr.mxu0 0.0
    %2213 = vmatpush1.xpose.msra.mxu0 0.0
    %2214 = vmatprep.subr.mxu0 0.0
    %2215 = vmatpush1.xpose.msra.mxu0 0.0
    %2216 = vmatprep.subr.mxu0 0.0
    %2217 = vmatpush1.xpose.msra.mxu0 0.0
    %2218 = vmatprep.subr.mxu0 0.0
    %2219 = vmatpush1.xpose.msra.mxu0 0.0
    %2220 = vmatprep.subr.mxu0 0.0
    %2221 = vmatpush1.xpose.msra.mxu0 0.0
    %2222 = vmatprep.subr.mxu0 0.0
    %2223 = vmatpush1.xpose.msra.mxu0 0.0
    %2224 = vmatprep.subr.mxu0 0.0
    %2225 = vmatpush1.xpose.msra.mxu0 %v2194
    %2226 = vmatprep.subr.mxu0 0.0
    %2227 = vmatpush1.xpose.msra.mxu0 %v2192
    %2228 = vmatprep.subr.mxu0 0.0
    %2229 = vmatpush2.xpose.msra.mxu0 0.0
    %2230 = vmatprep.subr.mxu0 0.0
    %2231 = vmatpush2.xpose.msra.mxu0 0.0
    %2232 = vmatprep.subr.mxu0 0.0
    %2233 = vmatpush2.xpose.msra.mxu0 0.0
    %2234 = vmatprep.subr.mxu0 0.0
    %2235 = vmatpush2.xpose.msra.mxu0 0.0
    %2236 = vmatprep.subr.mxu0 0.0
    %2237 = vmatpush2.xpose.msra.mxu0 0.0
    %2238 = vmatprep.subr.mxu0 0.0
    %2239 = vmatpush2.xpose.msra.mxu0 0.0
    %2240 = vmatprep.subr.mxu0 0.0
    %2241 = vmatpush2.xpose.msra.mxu0 0.0
    %2242 = vmatprep.subr.mxu0 0.0
    %2243 = vmatpush2.xpose.msra.mxu0 0.0
    %2244 = vmatprep.subr.mxu0 0.0
    %2245 = vmatpush2.xpose.msra.mxu0 0.0
    %2246 = vmatprep.subr.mxu0 0.0
    %2247 = vmatpush2.xpose.msra.mxu0 0.0
    %2248 = vmatprep.subr.mxu0 0.0
    %2249 = vmatpush2.xpose.msra.mxu0 0.0
    %2250 = vmatprep.subr.mxu0 0.0
    %2251 = vmatpush2.xpose.msra.mxu0 0.0
    %2252 = vmatprep.subr.mxu0 0.0
    %2253 = vmatpush2.xpose.msra.mxu0 0.0
    %2254 = vmatprep.subr.mxu0 0.0
    %2255 = vmatpush2.xpose.msra.mxu0 0.0
    %2256 = vmatprep.subr.mxu0 0.0
    %2257 = vmatpush2.xpose.msra.mxu0 0.0
    %2258 = vmatprep.subr.mxu0 0.0
    %2259 = vmatpush2.xpose.msra.mxu0 0.0
    %2260 = vmatprep.mubr.f32.mxu0 0.0
    %2261 = vmatmul.mubr.f32.gmra.mxu0 %v2190
    %v2262 = vpop.f32.mrf.mxu0
    %v2263 = vadd.f32 0.0, %v2262
    %v2264 = vpop.f32.mrf.mxu0
    %2265 = vdwg.mxu0
    %v2266 = vsel %vm1201, %v1092, 0
    %v2268 = vsel %vm1201, %v1166, 0
    %v2270 = vsel %vm1201, %v1168, 0
    %2272 = vmatprep.subr.mxu0 0.0
    %2273 = vmatpush1.xpose.msra.mxu0 0.0
    %2274 = vmatprep.subr.mxu0 0.0
    %2275 = vmatpush1.xpose.msra.mxu0 0.0
    %2276 = vmatprep.subr.mxu0 0.0
    %2277 = vmatpush1.xpose.msra.mxu0 0.0
    %2278 = vmatprep.subr.mxu0 0.0
    %2279 = vmatpush1.xpose.msra.mxu0 0.0
    %2280 = vmatprep.subr.mxu0 0.0
    %2281 = vmatpush1.xpose.msra.mxu0 0.0
    %2282 = vmatprep.subr.mxu0 0.0
    %2283 = vmatpush1.xpose.msra.mxu0 0.0
    %2284 = vmatprep.subr.mxu0 0.0
    %2285 = vmatpush1.xpose.msra.mxu0 0.0
    %2286 = vmatprep.subr.mxu0 0.0
    %2287 = vmatpush1.xpose.msra.mxu0 0.0
    %2288 = vmatprep.subr.mxu0 0.0
    %2289 = vmatpush1.xpose.msra.mxu0 0.0
    %2290 = vmatprep.subr.mxu0 0.0
    %2291 = vmatpush1.xpose.msra.mxu0 0.0
    %2292 = vmatprep.subr.mxu0 0.0
    %2293 = vmatpush1.xpose.msra.mxu0 0.0
    %2294 = vmatprep.subr.mxu0 0.0
    %2295 = vmatpush1.xpose.msra.mxu0 0.0
    %2296 = vmatprep.subr.mxu0 0.0
    %2297 = vmatpush1.xpose.msra.mxu0 0.0
    %2298 = vmatprep.subr.mxu0 0.0
    %2299 = vmatpush1.xpose.msra.mxu0 0.0
    %2300 = vmatprep.subr.mxu0 0.0
    %2301 = vmatpush1.xpose.msra.mxu0 %v2270
    %2302 = vmatprep.subr.mxu0 0.0
    %2303 = vmatpush1.xpose.msra.mxu0 %v2268
    %2304 = vmatprep.subr.mxu0 0.0
    %2305 = vmatpush2.xpose.msra.mxu0 0.0
    %2306 = vmatprep.subr.mxu0 0.0
    %2307 = vmatpush2.xpose.msra.mxu0 0.0
    %2308 = vmatprep.subr.mxu0 0.0
    %2309 = vmatpush2.xpose.msra.mxu0 0.0
    %2310 = vmatprep.subr.mxu0 0.0
    %2311 = vmatpush2.xpose.msra.mxu0 0.0
    %2312 = vmatprep.subr.mxu0 0.0
    %2313 = vmatpush2.xpose.msra.mxu0 0.0
    %2314 = vmatprep.subr.mxu0 0.0
    %2315 = vmatpush2.xpose.msra.mxu0 0.0
    %2316 = vmatprep.subr.mxu0 0.0
    %2317 = vmatpush2.xpose.msra.mxu0 0.0
    %2318 = vmatprep.subr.mxu0 0.0
    %2319 = vmatpush2.xpose.msra.mxu0 0.0
    %2320 = vmatprep.subr.mxu0 0.0
    %2321 = vmatpush2.xpose.msra.mxu0 0.0
    %2322 = vmatprep.subr.mxu0 0.0
    %2323 = vmatpush2.xpose.msra.mxu0 0.0
    %2324 = vmatprep.subr.mxu0 0.0
    %2325 = vmatpush2.xpose.msra.mxu0 0.0
    %2326 = vmatprep.subr.mxu0 0.0
    %2327 = vmatpush2.xpose.msra.mxu0 0.0
    %2328 = vmatprep.subr.mxu0 0.0
    %2329 = vmatpush2.xpose.msra.mxu0 0.0
    %2330 = vmatprep.subr.mxu0 0.0
    %2331 = vmatpush2.xpose.msra.mxu0 0.0
    %2332 = vmatprep.subr.mxu0 0.0
    %2333 = vmatpush2.xpose.msra.mxu0 0.0
    %2334 = vmatprep.subr.mxu0 0.0
    %2335 = vmatpush2.xpose.msra.mxu0 0.0
    %2336 = vmatprep.mubr.f32.mxu0 0.0
    %2337 = vmatmul.mubr.f32.gmra.mxu0 %v2266
    %v2338 = vpop.f32.mrf.mxu0
    %v2339 = vadd.f32 0.0, %v2338
    %v2340 = vpop.f32.mrf.mxu0
    %2341 = vdwg.mxu0
    %v2342 = vsel %vm1201, %v1094, 0
    %v2344 = vsel %vm1201, %v1170, 0
    %v2346 = vsel %vm1201, %v1172, 0
    %2348 = vmatprep.subr.mxu0 0.0
    %2349 = vmatpush1.xpose.msra.mxu0 0.0
    %2350 = vmatprep.subr.mxu0 0.0
    %2351 = vmatpush1.xpose.msra.mxu0 0.0
    %2352 = vmatprep.subr.mxu0 0.0
    %2353 = vmatpush1.xpose.msra.mxu0 0.0
    %2354 = vmatprep.subr.mxu0 0.0
    %2355 = vmatpush1.xpose.msra.mxu0 0.0
    %2356 = vmatprep.subr.mxu0 0.0
    %2357 = vmatpush1.xpose.msra.mxu0 0.0
    %2358 = vmatprep.subr.mxu0 0.0
    %2359 = vmatpush1.xpose.msra.mxu0 0.0
    %2360 = vmatprep.subr.mxu0 0.0
    %2361 = vmatpush1.xpose.msra.mxu0 0.0
    %2362 = vmatprep.subr.mxu0 0.0
    %2363 = vmatpush1.xpose.msra.mxu0 0.0
    %2364 = vmatprep.subr.mxu0 0.0
    %2365 = vmatpush1.xpose.msra.mxu0 0.0
    %2366 = vmatprep.subr.mxu0 0.0
    %2367 = vmatpush1.xpose.msra.mxu0 0.0
    %2368 = vmatprep.subr.mxu0 0.0
    %2369 = vmatpush1.xpose.msra.mxu0 0.0
    %2370 = vmatprep.subr.mxu0 0.0
    %2371 = vmatpush1.xpose.msra.mxu0 0.0
    %2372 = vmatprep.subr.mxu0 0.0
    %2373 = vmatpush1.xpose.msra.mxu0 0.0
    %2374 = vmatprep.subr.mxu0 0.0
    %2375 = vmatpush1.xpose.msra.mxu0 0.0
    %2376 = vmatprep.subr.mxu0 0.0
    %2377 = vmatpush1.xpose.msra.mxu0 %v2346
    %2378 = vmatprep.subr.mxu0 0.0
    %2379 = vmatpush1.xpose.msra.mxu0 %v2344
    %2380 = vmatprep.subr.mxu0 0.0
    %2381 = vmatpush2.xpose.msra.mxu0 0.0
    %2382 = vmatprep.subr.mxu0 0.0
    %2383 = vmatpush2.xpose.msra.mxu0 0.0
    %2384 = vmatprep.subr.mxu0 0.0
    %2385 = vmatpush2.xpose.msra.mxu0 0.0
    %2386 = vmatprep.subr.mxu0 0.0
    %2387 = vmatpush2.xpose.msra.mxu0 0.0
    %2388 = vmatprep.subr.mxu0 0.0
    %2389 = vmatpush2.xpose.msra.mxu0 0.0
    %2390 = vmatprep.subr.mxu0 0.0
    %2391 = vmatpush2.xpose.msra.mxu0 0.0
    %2392 = vmatprep.subr.mxu0 0.0
    %2393 = vmatpush2.xpose.msra.mxu0 0.0
    %2394 = vmatprep.subr.mxu0 0.0
    %2395 = vmatpush2.xpose.msra.mxu0 0.0
    %2396 = vmatprep.subr.mxu0 0.0
    %2397 = vmatpush2.xpose.msra.mxu0 0.0
    %2398 = vmatprep.subr.mxu0 0.0
    %2399 = vmatpush2.xpose.msra.mxu0 0.0
    %2400 = vmatprep.subr.mxu0 0.0
    %2401 = vmatpush2.xpose.msra.mxu0 0.0
    %2402 = vmatprep.subr.mxu0 0.0
    %2403 = vmatpush2.xpose.msra.mxu0 0.0
    %2404 = vmatprep.subr.mxu0 0.0
    %2405 = vmatpush2.xpose.msra.mxu0 0.0
    %2406 = vmatprep.subr.mxu0 0.0
    %2407 = vmatpush2.xpose.msra.mxu0 0.0
    %2408 = vmatprep.subr.mxu0 0.0
    %2409 = vmatpush2.xpose.msra.mxu0 0.0
    %2410 = vmatprep.subr.mxu0 0.0
    %2411 = vmatpush2.xpose.msra.mxu0 0.0
    %2412 = vmatprep.mubr.f32.mxu0 0.0
    %2413 = vmatmul.mubr.f32.gmra.mxu0 %v2342
    %v2414 = vpop.f32.mrf.mxu0
    %v2415 = vadd.f32 0.0, %v2414
    %v2416 = vpop.f32.mrf.mxu0
    %2417 = vdwg.mxu0
    %v2418 = vsel %vm1201, %v1096, 0
    %v2420 = vsel %vm1201, %v1035, 0
    %v2422 = vsel %vm1201, %v1047, 0
    %2424 = vmatprep.subr.mxu0 0.0
    %2425 = vmatpush1.xpose.msra.mxu0 0.0
    %2426 = vmatprep.subr.mxu0 0.0
    %2427 = vmatpush1.xpose.msra.mxu0 0.0
    %2428 = vmatprep.subr.mxu0 0.0
    %2429 = vmatpush1.xpose.msra.mxu0 0.0
    %2430 = vmatprep.subr.mxu0 0.0
    %2431 = vmatpush1.xpose.msra.mxu0 0.0
    %2432 = vmatprep.subr.mxu0 0.0
    %2433 = vmatpush1.xpose.msra.mxu0 0.0
    %2434 = vmatprep.subr.mxu0 0.0
    %2435 = vmatpush1.xpose.msra.mxu0 0.0
    %2436 = vmatprep.subr.mxu0 0.0
    %2437 = vmatpush1.xpose.msra.mxu0 0.0
    %2438 = vmatprep.subr.mxu0 0.0
    %2439 = vmatpush1.xpose.msra.mxu0 0.0
    %2440 = vmatprep.subr.mxu0 0.0
    %2441 = vmatpush1.xpose.msra.mxu0 0.0
    %2442 = vmatprep.subr.mxu0 0.0
    %2443 = vmatpush1.xpose.msra.mxu0 0.0
    %2444 = vmatprep.subr.mxu0 0.0
    %2445 = vmatpush1.xpose.msra.mxu0 0.0
    %2446 = vmatprep.subr.mxu0 0.0
    %2447 = vmatpush1.xpose.msra.mxu0 0.0
    %2448 = vmatprep.subr.mxu0 0.0
    %2449 = vmatpush1.xpose.msra.mxu0 0.0
    %2450 = vmatprep.subr.mxu0 0.0
    %2451 = vmatpush1.xpose.msra.mxu0 0.0
    %2452 = vmatprep.subr.mxu0 0.0
    %2453 = vmatpush1.xpose.msra.mxu0 %v2422
    %2454 = vmatprep.subr.mxu0 0.0
    %2455 = vmatpush1.xpose.msra.mxu0 %v2420
    %2456 = vmatprep.subr.mxu0 0.0
    %2457 = vmatpush2.xpose.msra.mxu0 0.0
    %2458 = vmatprep.subr.mxu0 0.0
    %2459 = vmatpush2.xpose.msra.mxu0 0.0
    %2460 = vmatprep.subr.mxu0 0.0
    %2461 = vmatpush2.xpose.msra.mxu0 0.0
    %2462 = vmatprep.subr.mxu0 0.0
    %2463 = vmatpush2.xpose.msra.mxu0 0.0
    %2464 = vmatprep.subr.mxu0 0.0
    %2465 = vmatpush2.xpose.msra.mxu0 0.0
    %2466 = vmatprep.subr.mxu0 0.0
    %2467 = vmatpush2.xpose.msra.mxu0 0.0
    %2468 = vmatprep.subr.mxu0 0.0
    %2469 = vmatpush2.xpose.msra.mxu0 0.0
    %2470 = vmatprep.subr.mxu0 0.0
    %2471 = vmatpush2.xpose.msra.mxu0 0.0
    %2472 = vmatprep.subr.mxu0 0.0
    %2473 = vmatpush2.xpose.msra.mxu0 0.0
    %2474 = vmatprep.subr.mxu0 0.0
    %2475 = vmatpush2.xpose.msra.mxu0 0.0
    %2476 = vmatprep.subr.mxu0 0.0
    %2477 = vmatpush2.xpose.msra.mxu0 0.0
    %2478 = vmatprep.subr.mxu0 0.0
    %2479 = vmatpush2.xpose.msra.mxu0 0.0
    %2480 = vmatprep.subr.mxu0 0.0
    %2481 = vmatpush2.xpose.msra.mxu0 0.0
    %2482 = vmatprep.subr.mxu0 0.0
    %2483 = vmatpush2.xpose.msra.mxu0 0.0
    %2484 = vmatprep.subr.mxu0 0.0
    %2485 = vmatpush2.xpose.msra.mxu0 0.0
    %2486 = vmatprep.subr.mxu0 0.0
    %2487 = vmatpush2.xpose.msra.mxu0 0.0
    %2488 = vmatprep.mubr.f32.mxu0 0.0
    %2489 = vmatmul.mubr.f32.gmra.mxu0 %v2418
    %v2490 = vpop.f32.mrf.mxu0
    %v2491 = vadd.f32 0.0, %v2490
    %v2492 = vpop.f32.mrf.mxu0
    %2493 = vdwg.mxu0
    %v2494 = vsel %vm1201, %v1098, 0
    %v2496 = vsel %vm1201, %v1041, 0
    %v2498 = vsel %vm1201, %v1053, 0
    %2500 = vmatprep.subr.mxu0 0.0
    %2501 = vmatpush1.xpose.msra.mxu0 0.0
    %2502 = vmatprep.subr.mxu0 0.0
    %2503 = vmatpush1.xpose.msra.mxu0 0.0
    %2504 = vmatprep.subr.mxu0 0.0
    %2505 = vmatpush1.xpose.msra.mxu0 0.0
    %2506 = vmatprep.subr.mxu0 0.0
    %2507 = vmatpush1.xpose.msra.mxu0 0.0
    %2508 = vmatprep.subr.mxu0 0.0
    %2509 = vmatpush1.xpose.msra.mxu0 0.0
    %2510 = vmatprep.subr.mxu0 0.0
    %2511 = vmatpush1.xpose.msra.mxu0 0.0
    %2512 = vmatprep.subr.mxu0 0.0
    %2513 = vmatpush1.xpose.msra.mxu0 0.0
    %2514 = vmatprep.subr.mxu0 0.0
    %2515 = vmatpush1.xpose.msra.mxu0 0.0
    %2516 = vmatprep.subr.mxu0 0.0
    %2517 = vmatpush1.xpose.msra.mxu0 0.0
    %2518 = vmatprep.subr.mxu0 0.0
    %2519 = vmatpush1.xpose.msra.mxu0 0.0
    %2520 = vmatprep.subr.mxu0 0.0
    %2521 = vmatpush1.xpose.msra.mxu0 0.0
    %2522 = vmatprep.subr.mxu0 0.0
    %2523 = vmatpush1.xpose.msra.mxu0 0.0
    %2524 = vmatprep.subr.mxu0 0.0
    %2525 = vmatpush1.xpose.msra.mxu0 0.0
    %2526 = vmatprep.subr.mxu0 0.0
    %2527 = vmatpush1.xpose.msra.mxu0 0.0
    %2528 = vmatprep.subr.mxu0 0.0
    %2529 = vmatpush1.xpose.msra.mxu0 %v2498
    %2530 = vmatprep.subr.mxu0 0.0
    %2531 = vmatpush1.xpose.msra.mxu0 %v2496
    %2532 = vmatprep.subr.mxu0 0.0
    %2533 = vmatpush2.xpose.msra.mxu0 0.0
    %2534 = vmatprep.subr.mxu0 0.0
    %2535 = vmatpush2.xpose.msra.mxu0 0.0
    %2536 = vmatprep.subr.mxu0 0.0
    %2537 = vmatpush2.xpose.msra.mxu0 0.0
    %2538 = vmatprep.subr.mxu0 0.0
    %2539 = vmatpush2.xpose.msra.mxu0 0.0
    %2540 = vmatprep.subr.mxu0 0.0
    %2541 = vmatpush2.xpose.msra.mxu0 0.0
    %2542 = vmatprep.subr.mxu0 0.0
    %2543 = vmatpush2.xpose.msra.mxu0 0.0
    %2544 = vmatprep.subr.mxu0 0.0
    %2545 = vmatpush2.xpose.msra.mxu0 0.0
    %2546 = vmatprep.subr.mxu0 0.0
    %2547 = vmatpush2.xpose.msra.mxu0 0.0
    %2548 = vmatprep.subr.mxu0 0.0
    %2549 = vmatpush2.xpose.msra.mxu0 0.0
    %2550 = vmatprep.subr.mxu0 0.0
    %2551 = vmatpush2.xpose.msra.mxu0 0.0
    %2552 = vmatprep.subr.mxu0 0.0
    %2553 = vmatpush2.xpose.msra.mxu0 0.0
    %2554 = vmatprep.subr.mxu0 0.0
    %2555 = vmatpush2.xpose.msra.mxu0 0.0
    %2556 = vmatprep.subr.mxu0 0.0
    %2557 = vmatpush2.xpose.msra.mxu0 0.0
    %2558 = vmatprep.subr.mxu0 0.0
    %2559 = vmatpush2.xpose.msra.mxu0 0.0
    %2560 = vmatprep.subr.mxu0 0.0
    %2561 = vmatpush2.xpose.msra.mxu0 0.0
    %2562 = vmatprep.subr.mxu0 0.0
    %2563 = vmatpush2.xpose.msra.mxu0 0.0
    %2564 = vmatprep.mubr.f32.mxu0 0.0
    %2565 = vmatmul.mubr.f32.gmra.mxu0 %v2494
    %v2566 = vpop.f32.mrf.mxu0
    %v2567 = vadd.f32 0.0, %v2566
    %v2568 = vpop.f32.mrf.mxu0
    %2569 = vdwg.mxu0
    %v2570 = vsel %vm1201, %v1100, 0
    %v2572 = vsel %vm1201, %v1178, 0
    %v2574 = vsel %vm1201, %v1180, 0
    %2576 = vmatprep.subr.mxu0 0.0
    %2577 = vmatpush1.xpose.msra.mxu0 0.0
    %2578 = vmatprep.subr.mxu0 0.0
    %2579 = vmatpush1.xpose.msra.mxu0 0.0
    %2580 = vmatprep.subr.mxu0 0.0
    %2581 = vmatpush1.xpose.msra.mxu0 0.0
    %2582 = vmatprep.subr.mxu0 0.0
    %2583 = vmatpush1.xpose.msra.mxu0 0.0
    %2584 = vmatprep.subr.mxu0 0.0
    %2585 = vmatpush1.xpose.msra.mxu0 0.0
    %2586 = vmatprep.subr.mxu0 0.0
    %2587 = vmatpush1.xpose.msra.mxu0 0.0
    %2588 = vmatprep.subr.mxu0 0.0
    %2589 = vmatpush1.xpose.msra.mxu0 0.0
    %2590 = vmatprep.subr.mxu0 0.0
    %2591 = vmatpush1.xpose.msra.mxu0 0.0
    %2592 = vmatprep.subr.mxu0 0.0
    %2593 = vmatpush1.xpose.msra.mxu0 0.0
    %2594 = vmatprep.subr.mxu0 0.0
    %2595 = vmatpush1.xpose.msra.mxu0 0.0
    %2596 = vmatprep.subr.mxu0 0.0
    %2597 = vmatpush1.xpose.msra.mxu0 0.0
    %2598 = vmatprep.subr.mxu0 0.0
    %2599 = vmatpush1.xpose.msra.mxu0 0.0
    %2600 = vmatprep.subr.mxu0 0.0
    %2601 = vmatpush1.xpose.msra.mxu0 0.0
    %2602 = vmatprep.subr.mxu0 0.0
    %2603 = vmatpush1.xpose.msra.mxu0 0.0
    %2604 = vmatprep.subr.mxu0 0.0
    %2605 = vmatpush1.xpose.msra.mxu0 %v2574
    %2606 = vmatprep.subr.mxu0 0.0
    %2607 = vmatpush1.xpose.msra.mxu0 %v2572
    %2608 = vmatprep.subr.mxu0 0.0
    %2609 = vmatpush2.xpose.msra.mxu0 0.0
    %2610 = vmatprep.subr.mxu0 0.0
    %2611 = vmatpush2.xpose.msra.mxu0 0.0
    %2612 = vmatprep.subr.mxu0 0.0
    %2613 = vmatpush2.xpose.msra.mxu0 0.0
    %2614 = vmatprep.subr.mxu0 0.0
    %2615 = vmatpush2.xpose.msra.mxu0 0.0
    %2616 = vmatprep.subr.mxu0 0.0
    %2617 = vmatpush2.xpose.msra.mxu0 0.0
    %2618 = vmatprep.subr.mxu0 0.0
    %2619 = vmatpush2.xpose.msra.mxu0 0.0
    %2620 = vmatprep.subr.mxu0 0.0
    %2621 = vmatpush2.xpose.msra.mxu0 0.0
    %2622 = vmatprep.subr.mxu0 0.0
    %2623 = vmatpush2.xpose.msra.mxu0 0.0
    %2624 = vmatprep.subr.mxu0 0.0
    %2625 = vmatpush2.xpose.msra.mxu0 0.0
    %2626 = vmatprep.subr.mxu0 0.0
    %2627 = vmatpush2.xpose.msra.mxu0 0.0
    %2628 = vmatprep.subr.mxu0 0.0
    %2629 = vmatpush2.xpose.msra.mxu0 0.0
    %2630 = vmatprep.subr.mxu0 0.0
    %2631 = vmatpush2.xpose.msra.mxu0 0.0
    %2632 = vmatprep.subr.mxu0 0.0
    %2633 = vmatpush2.xpose.msra.mxu0 0.0
    %2634 = vmatprep.subr.mxu0 0.0
    %2635 = vmatpush2.xpose.msra.mxu0 0.0
    %2636 = vmatprep.subr.mxu0 0.0
    %2637 = vmatpush2.xpose.msra.mxu0 0.0
    %2638 = vmatprep.subr.mxu0 0.0
    %2639 = vmatpush2.xpose.msra.mxu0 0.0
    %2640 = vmatprep.mubr.f32.mxu0 0.0
    %2641 = vmatmul.mubr.f32.gmra.mxu0 %v2570
    %v2642 = vpop.f32.mrf.mxu0
    %v2643 = vadd.f32 0.0, %v2642
    %v2644 = vpop.f32.mrf.mxu0
    %2645 = vdwg.mxu0
    %v2646 = vsel %vm1201, %v1102, 0
    %v2648 = vsel %vm1201, %v1182, 0
    %v2650 = vsel %vm1201, %v1184, 0
    %2652 = vmatprep.subr.mxu0 0.0
    %2653 = vmatpush1.xpose.msra.mxu0 0.0
    %2654 = vmatprep.subr.mxu0 0.0
    %2655 = vmatpush1.xpose.msra.mxu0 0.0
    %2656 = vmatprep.subr.mxu0 0.0
    %2657 = vmatpush1.xpose.msra.mxu0 0.0
    %2658 = vmatprep.subr.mxu0 0.0
    %2659 = vmatpush1.xpose.msra.mxu0 0.0
    %2660 = vmatprep.subr.mxu0 0.0
    %2661 = vmatpush1.xpose.msra.mxu0 0.0
    %2662 = vmatprep.subr.mxu0 0.0
    %2663 = vmatpush1.xpose.msra.mxu0 0.0
    %2664 = vmatprep.subr.mxu0 0.0
    %2665 = vmatpush1.xpose.msra.mxu0 0.0
    %2666 = vmatprep.subr.mxu0 0.0
    %2667 = vmatpush1.xpose.msra.mxu0 0.0
    %2668 = vmatprep.subr.mxu0 0.0
    %2669 = vmatpush1.xpose.msra.mxu0 0.0
    %2670 = vmatprep.subr.mxu0 0.0
    %2671 = vmatpush1.xpose.msra.mxu0 0.0
    %2672 = vmatprep.subr.mxu0 0.0
    %2673 = vmatpush1.xpose.msra.mxu0 0.0
    %2674 = vmatprep.subr.mxu0 0.0
    %2675 = vmatpush1.xpose.msra.mxu0 0.0
    %2676 = vmatprep.subr.mxu0 0.0
    %2677 = vmatpush1.xpose.msra.mxu0 0.0
    %2678 = vmatprep.subr.mxu0 0.0
    %2679 = vmatpush1.xpose.msra.mxu0 0.0
    %2680 = vmatprep.subr.mxu0 0.0
    %2681 = vmatpush1.xpose.msra.mxu0 %v2650
    %2682 = vmatprep.subr.mxu0 0.0
    %2683 = vmatpush1.xpose.msra.mxu0 %v2648
    %2684 = vmatprep.subr.mxu0 0.0
    %2685 = vmatpush2.xpose.msra.mxu0 0.0
    %2686 = vmatprep.subr.mxu0 0.0
    %2687 = vmatpush2.xpose.msra.mxu0 0.0
    %2688 = vmatprep.subr.mxu0 0.0
    %2689 = vmatpush2.xpose.msra.mxu0 0.0
    %2690 = vmatprep.subr.mxu0 0.0
    %2691 = vmatpush2.xpose.msra.mxu0 0.0
    %2692 = vmatprep.subr.mxu0 0.0
    %2693 = vmatpush2.xpose.msra.mxu0 0.0
    %2694 = vmatprep.subr.mxu0 0.0
    %2695 = vmatpush2.xpose.msra.mxu0 0.0
    %2696 = vmatprep.subr.mxu0 0.0
    %2697 = vmatpush2.xpose.msra.mxu0 0.0
    %2698 = vmatprep.subr.mxu0 0.0
    %2699 = vmatpush2.xpose.msra.mxu0 0.0
    %2700 = vmatprep.subr.mxu0 0.0
    %2701 = vmatpush2.xpose.msra.mxu0 0.0
    %2702 = vmatprep.subr.mxu0 0.0
    %2703 = vmatpush2.xpose.msra.mxu0 0.0
    %2704 = vmatprep.subr.mxu0 0.0
    %2705 = vmatpush2.xpose.msra.mxu0 0.0
    %2706 = vmatprep.subr.mxu0 0.0
    %2707 = vmatpush2.xpose.msra.mxu0 0.0
    %2708 = vmatprep.subr.mxu0 0.0
    %2709 = vmatpush2.xpose.msra.mxu0 0.0
    %2710 = vmatprep.subr.mxu0 0.0
    %2711 = vmatpush2.xpose.msra.mxu0 0.0
    %2712 = vmatprep.subr.mxu0 0.0
    %2713 = vmatpush2.xpose.msra.mxu0 0.0
    %2714 = vmatprep.subr.mxu0 0.0
    %2715 = vmatpush2.xpose.msra.mxu0 0.0
    %2716 = vmatprep.mubr.f32.mxu0 0.0
    %2717 = vmatmul.mubr.f32.gmra.mxu0 %v2646
    %v2718 = vpop.f32.mrf.mxu0
    %v2719 = vadd.f32 0.0, %v2718
    %v2720 = vpop.f32.mrf.mxu0
    %2721 = vdwg.mxu0
    %v2722 = vsel %vm1201, %v1104, 0
    %v2724 = vsel %vm1201, %v1186, 0
    %v2726 = vsel %vm1201, %v1188, 0
    %2728 = vmatprep.subr.mxu0 0.0
    %2729 = vmatpush1.xpose.msra.mxu0 0.0
    %2730 = vmatprep.subr.mxu0 0.0
    %2731 = vmatpush1.xpose.msra.mxu0 0.0
    %2732 = vmatprep.subr.mxu0 0.0
    %2733 = vmatpush1.xpose.msra.mxu0 0.0
    %2734 = vmatprep.subr.mxu0 0.0
    %2735 = vmatpush1.xpose.msra.mxu0 0.0
    %2736 = vmatprep.subr.mxu0 0.0
    %2737 = vmatpush1.xpose.msra.mxu0 0.0
    %2738 = vmatprep.subr.mxu0 0.0
    %2739 = vmatpush1.xpose.msra.mxu0 0.0
    %2740 = vmatprep.subr.mxu0 0.0
    %2741 = vmatpush1.xpose.msra.mxu0 0.0
    %2742 = vmatprep.subr.mxu0 0.0
    %2743 = vmatpush1.xpose.msra.mxu0 0.0
    %2744 = vmatprep.subr.mxu0 0.0
    %2745 = vmatpush1.xpose.msra.mxu0 0.0
    %2746 = vmatprep.subr.mxu0 0.0
    %2747 = vmatpush1.xpose.msra.mxu0 0.0
    %2748 = vmatprep.subr.mxu0 0.0
    %2749 = vmatpush1.xpose.msra.mxu0 0.0
    %2750 = vmatprep.subr.mxu0 0.0
    %2751 = vmatpush1.xpose.msra.mxu0 0.0
    %2752 = vmatprep.subr.mxu0 0.0
    %2753 = vmatpush1.xpose.msra.mxu0 0.0
    %2754 = vmatprep.subr.mxu0 0.0
    %2755 = vmatpush1.xpose.msra.mxu0 0.0
    %2756 = vmatprep.subr.mxu0 0.0
    %2757 = vmatpush1.xpose.msra.mxu0 %v2726
    %2758 = vmatprep.subr.mxu0 0.0
    %2759 = vmatpush1.xpose.msra.mxu0 %v2724
    %2760 = vmatprep.subr.mxu0 0.0
    %2761 = vmatpush2.xpose.msra.mxu0 0.0
    %2762 = vmatprep.subr.mxu0 0.0
    %2763 = vmatpush2.xpose.msra.mxu0 0.0
    %2764 = vmatprep.subr.mxu0 0.0
    %2765 = vmatpush2.xpose.msra.mxu0 0.0
    %2766 = vmatprep.subr.mxu0 0.0
    %2767 = vmatpush2.xpose.msra.mxu0 0.0
    %2768 = vmatprep.subr.mxu0 0.0
    %2769 = vmatpush2.xpose.msra.mxu0 0.0
    %2770 = vmatprep.subr.mxu0 0.0
    %2771 = vmatpush2.xpose.msra.mxu0 0.0
    %2772 = vmatprep.subr.mxu0 0.0
    %2773 = vmatpush2.xpose.msra.mxu0 0.0
    %2774 = vmatprep.subr.mxu0 0.0
    %2775 = vmatpush2.xpose.msra.mxu0 0.0
    %2776 = vmatprep.subr.mxu0 0.0
    %2777 = vmatpush2.xpose.msra.mxu0 0.0
    %2778 = vmatprep.subr.mxu0 0.0
    %2779 = vmatpush2.xpose.msra.mxu0 0.0
    %2780 = vmatprep.subr.mxu0 0.0
    %2781 = vmatpush2.xpose.msra.mxu0 0.0
    %2782 = vmatprep.subr.mxu0 0.0
    %2783 = vmatpush2.xpose.msra.mxu0 0.0
    %2784 = vmatprep.subr.mxu0 0.0
    %2785 = vmatpush2.xpose.msra.mxu0 0.0
    %2786 = vmatprep.subr.mxu0 0.0
    %2787 = vmatpush2.xpose.msra.mxu0 0.0
    %2788 = vmatprep.subr.mxu0 0.0
    %2789 = vmatpush2.xpose.msra.mxu0 0.0
    %2790 = vmatprep.subr.mxu0 0.0
    %2791 = vmatpush2.xpose.msra.mxu0 0.0
    %2792 = vmatprep.mubr.f32.mxu0 0.0
    %2793 = vmatmul.mubr.f32.gmra.mxu0 %v2722
    %v2794 = vpop.f32.mrf.mxu0
    %v2795 = vadd.f32 0.0, %v2794
    %v2796 = vpop.f32.mrf.mxu0
    %2797 = vdwg.mxu0
    %v2798 = vsel %vm1201, %v1106, 0
    %v2800 = vsel %vm1201, %v1190, 0
    %v2802 = vsel %vm1201, %v1192, 0
    %2804 = vmatprep.subr.mxu0 0.0
    %2805 = vmatpush1.xpose.msra.mxu0 0.0
    %2806 = vmatprep.subr.mxu0 0.0
    %2807 = vmatpush1.xpose.msra.mxu0 0.0
    %2808 = vmatprep.subr.mxu0 0.0
    %2809 = vmatpush1.xpose.msra.mxu0 0.0
    %2810 = vmatprep.subr.mxu0 0.0
    %2811 = vmatpush1.xpose.msra.mxu0 0.0
    %2812 = vmatprep.subr.mxu0 0.0
    %2813 = vmatpush1.xpose.msra.mxu0 0.0
    %2814 = vmatprep.subr.mxu0 0.0
    %2815 = vmatpush1.xpose.msra.mxu0 0.0
    %2816 = vmatprep.subr.mxu0 0.0
    %2817 = vmatpush1.xpose.msra.mxu0 0.0
    %2818 = vmatprep.subr.mxu0 0.0
    %2819 = vmatpush1.xpose.msra.mxu0 0.0
    %2820 = vmatprep.subr.mxu0 0.0
    %2821 = vmatpush1.xpose.msra.mxu0 0.0
    %2822 = vmatprep.subr.mxu0 0.0
    %2823 = vmatpush1.xpose.msra.mxu0 0.0
    %2824 = vmatprep.subr.mxu0 0.0
    %2825 = vmatpush1.xpose.msra.mxu0 0.0
    %2826 = vmatprep.subr.mxu0 0.0
    %2827 = vmatpush1.xpose.msra.mxu0 0.0
    %2828 = vmatprep.subr.mxu0 0.0
    %2829 = vmatpush1.xpose.msra.mxu0 0.0
    %2830 = vmatprep.subr.mxu0 0.0
    %2831 = vmatpush1.xpose.msra.mxu0 0.0
    %2832 = vmatprep.subr.mxu0 0.0
    %2833 = vmatpush1.xpose.msra.mxu0 %v2802
    %2834 = vmatprep.subr.mxu0 0.0
    %2835 = vmatpush1.xpose.msra.mxu0 %v2800
    %2836 = vmatprep.subr.mxu0 0.0
    %2837 = vmatpush2.xpose.msra.mxu0 0.0
    %2838 = vmatprep.subr.mxu0 0.0
    %2839 = vmatpush2.xpose.msra.mxu0 0.0
    %2840 = vmatprep.subr.mxu0 0.0
    %2841 = vmatpush2.xpose.msra.mxu0 0.0
    %2842 = vmatprep.subr.mxu0 0.0
    %2843 = vmatpush2.xpose.msra.mxu0 0.0
    %2844 = vmatprep.subr.mxu0 0.0
    %2845 = vmatpush2.xpose.msra.mxu0 0.0
    %2846 = vmatprep.subr.mxu0 0.0
    %2847 = vmatpush2.xpose.msra.mxu0 0.0
    %2848 = vmatprep.subr.mxu0 0.0
    %2849 = vmatpush2.xpose.msra.mxu0 0.0
    %2850 = vmatprep.subr.mxu0 0.0
    %2851 = vmatpush2.xpose.msra.mxu0 0.0
    %2852 = vmatprep.subr.mxu0 0.0
    %2853 = vmatpush2.xpose.msra.mxu0 0.0
    %2854 = vmatprep.subr.mxu0 0.0
    %2855 = vmatpush2.xpose.msra.mxu0 0.0
    %2856 = vmatprep.subr.mxu0 0.0
    %2857 = vmatpush2.xpose.msra.mxu0 0.0
    %2858 = vmatprep.subr.mxu0 0.0
    %2859 = vmatpush2.xpose.msra.mxu0 0.0
    %2860 = vmatprep.subr.mxu0 0.0
    %2861 = vmatpush2.xpose.msra.mxu0 0.0
    %2862 = vmatprep.subr.mxu0 0.0
    %2863 = vmatpush2.xpose.msra.mxu0 0.0
    %2864 = vmatprep.subr.mxu0 0.0
    %2865 = vmatpush2.xpose.msra.mxu0 0.0
    %2866 = vmatprep.subr.mxu0 0.0
    %2867 = vmatpush2.xpose.msra.mxu0 0.0
    %2868 = vmatprep.mubr.f32.mxu0 0.0
    %2869 = vmatmul.mubr.f32.gmra.mxu0 %v2798
    %v2870 = vpop.f32.mrf.mxu0
    %v2871 = vadd.f32 0.0, %v2870
    %v2872 = vpop.f32.mrf.mxu0
    %2873 = vdwg.mxu0
    %v2874 = vsel %vm1201, %v1108, 0
    %v2876 = vsel %vm1201, %v1194, 0
    %v2878 = vsel %vm1201, %v1196, 0
    %2880 = vmatprep.subr.mxu0 0.0
    %2881 = vmatpush1.xpose.msra.mxu0 0.0
    %2882 = vmatprep.subr.mxu0 0.0
    %2883 = vmatpush1.xpose.msra.mxu0 0.0
    %2884 = vmatprep.subr.mxu0 0.0
    %2885 = vmatpush1.xpose.msra.mxu0 0.0
    %2886 = vmatprep.subr.mxu0 0.0
    %2887 = vmatpush1.xpose.msra.mxu0 0.0
    %2888 = vmatprep.subr.mxu0 0.0
    %2889 = vmatpush1.xpose.msra.mxu0 0.0
    %2890 = vmatprep.subr.mxu0 0.0
    %2891 = vmatpush1.xpose.msra.mxu0 0.0
    %2892 = vmatprep.subr.mxu0 0.0
    %2893 = vmatpush1.xpose.msra.mxu0 0.0
    %2894 = vmatprep.subr.mxu0 0.0
    %2895 = vmatpush1.xpose.msra.mxu0 0.0
    %2896 = vmatprep.subr.mxu0 0.0
    %2897 = vmatpush1.xpose.msra.mxu0 0.0
    %2898 = vmatprep.subr.mxu0 0.0
    %2899 = vmatpush1.xpose.msra.mxu0 0.0
    %2900 = vmatprep.subr.mxu0 0.0
    %2901 = vmatpush1.xpose.msra.mxu0 0.0
    %2902 = vmatprep.subr.mxu0 0.0
    %2903 = vmatpush1.xpose.msra.mxu0 0.0
    %2904 = vmatprep.subr.mxu0 0.0
    %2905 = vmatpush1.xpose.msra.mxu0 0.0
    %2906 = vmatprep.subr.mxu0 0.0
    %2907 = vmatpush1.xpose.msra.mxu0 0.0
    %2908 = vmatprep.subr.mxu0 0.0
    %2909 = vmatpush1.xpose.msra.mxu0 %v2878
    %2910 = vmatprep.subr.mxu0 0.0
    %2911 = vmatpush1.xpose.msra.mxu0 %v2876
    %2912 = vmatprep.subr.mxu0 0.0
    %2913 = vmatpush2.xpose.msra.mxu0 0.0
    %2914 = vmatprep.subr.mxu0 0.0
    %2915 = vmatpush2.xpose.msra.mxu0 0.0
    %2916 = vmatprep.subr.mxu0 0.0
    %2917 = vmatpush2.xpose.msra.mxu0 0.0
    %2918 = vmatprep.subr.mxu0 0.0
    %2919 = vmatpush2.xpose.msra.mxu0 0.0
    %2920 = vmatprep.subr.mxu0 0.0
    %2921 = vmatpush2.xpose.msra.mxu0 0.0
    %2922 = vmatprep.subr.mxu0 0.0
    %2923 = vmatpush2.xpose.msra.mxu0 0.0
    %2924 = vmatprep.subr.mxu0 0.0
    %2925 = vmatpush2.xpose.msra.mxu0 0.0
    %2926 = vmatprep.subr.mxu0 0.0
    %2927 = vmatpush2.xpose.msra.mxu0 0.0
    %2928 = vmatprep.subr.mxu0 0.0
    %2929 = vmatpush2.xpose.msra.mxu0 0.0
    %2930 = vmatprep.subr.mxu0 0.0
    %2931 = vmatpush2.xpose.msra.mxu0 0.0
    %2932 = vmatprep.subr.mxu0 0.0
    %2933 = vmatpush2.xpose.msra.mxu0 0.0
    %2934 = vmatprep.subr.mxu0 0.0
    %2935 = vmatpush2.xpose.msra.mxu0 0.0
    %2936 = vmatprep.subr.mxu0 0.0
    %2937 = vmatpush2.xpose.msra.mxu0 0.0
    %2938 = vmatprep.subr.mxu0 0.0
    %2939 = vmatpush2.xpose.msra.mxu0 0.0
    %2940 = vmatprep.subr.mxu0 0.0
    %2941 = vmatpush2.xpose.msra.mxu0 0.0
    %2942 = vmatprep.subr.mxu0 0.0
    %2943 = vmatpush2.xpose.msra.mxu0 0.0
    %2944 = vmatprep.mubr.f32.mxu0 0.0
    %2945 = vmatmul.mubr.f32.gmra.mxu0 %v2874
    %v2946 = vpop.f32.mrf.mxu0
    %v2947 = vadd.f32 0.0, %v2946
    %v2948 = vpop.f32.mrf.mxu0
    %2949 = vdwg.mxu0
    %v2950 = vsel %vm1201, %v1110, 0
    %v2952 = vsel %vm1201, %v1198, 0
    %v2954 = vsel %vm1201, %v1200, 0
    %2956 = vmatprep.subr.mxu0 0.0
    %2957 = vmatpush1.xpose.msra.mxu0 0.0
    %2958 = vmatprep.subr.mxu0 0.0
    %2959 = vmatpush1.xpose.msra.mxu0 0.0
    %2960 = vmatprep.subr.mxu0 0.0
    %2961 = vmatpush1.xpose.msra.mxu0 0.0
    %2962 = vmatprep.subr.mxu0 0.0
    %2963 = vmatpush1.xpose.msra.mxu0 0.0
    %2964 = vmatprep.subr.mxu0 0.0
    %2965 = vmatpush1.xpose.msra.mxu0 0.0
    %2966 = vmatprep.subr.mxu0 0.0
    %2967 = vmatpush1.xpose.msra.mxu0 0.0
    %2968 = vmatprep.subr.mxu0 0.0
    %2969 = vmatpush1.xpose.msra.mxu0 0.0
    %2970 = vmatprep.subr.mxu0 0.0
    %2971 = vmatpush1.xpose.msra.mxu0 0.0
    %2972 = vmatprep.subr.mxu0 0.0
    %2973 = vmatpush1.xpose.msra.mxu0 0.0
    %2974 = vmatprep.subr.mxu0 0.0
    %2975 = vmatpush1.xpose.msra.mxu0 0.0
    %2976 = vmatprep.subr.mxu0 0.0
    %2977 = vmatpush1.xpose.msra.mxu0 0.0
    %2978 = vmatprep.subr.mxu0 0.0
    %2979 = vmatpush1.xpose.msra.mxu0 0.0
    %2980 = vmatprep.subr.mxu0 0.0
    %2981 = vmatpush1.xpose.msra.mxu0 0.0
    %2982 = vmatprep.subr.mxu0 0.0
    %2983 = vmatpush1.xpose.msra.mxu0 0.0
    %2984 = vmatprep.subr.mxu0 0.0
    %2985 = vmatpush1.xpose.msra.mxu0 %v2954
    %2986 = vmatprep.subr.mxu0 0.0
    %2987 = vmatpush1.xpose.msra.mxu0 %v2952
    %2988 = vmatprep.subr.mxu0 0.0
    %2989 = vmatpush2.xpose.msra.mxu0 0.0
    %2990 = vmatprep.subr.mxu0 0.0
    %2991 = vmatpush2.xpose.msra.mxu0 0.0
    %2992 = vmatprep.subr.mxu0 0.0
    %2993 = vmatpush2.xpose.msra.mxu0 0.0
    %2994 = vmatprep.subr.mxu0 0.0
    %2995 = vmatpush2.xpose.msra.mxu0 0.0
    %2996 = vmatprep.subr.mxu0 0.0
    %2997 = vmatpush2.xpose.msra.mxu0 0.0
    %2998 = vmatprep.subr.mxu0 0.0
    %2999 = vmatpush2.xpose.msra.mxu0 0.0
    %3000 = vmatprep.subr.mxu0 0.0
    %3001 = vmatpush2.xpose.msra.mxu0 0.0
    %3002 = vmatprep.subr.mxu0 0.0
    %3003 = vmatpush2.xpose.msra.mxu0 0.0
    %3004 = vmatprep.subr.mxu0 0.0
    %3005 = vmatpush2.xpose.msra.mxu0 0.0
    %3006 = vmatprep.subr.mxu0 0.0
    %3007 = vmatpush2.xpose.msra.mxu0 0.0
    %3008 = vmatprep.subr.mxu0 0.0
    %3009 = vmatpush2.xpose.msra.mxu0 0.0
    %3010 = vmatprep.subr.mxu0 0.0
    %3011 = vmatpush2.xpose.msra.mxu0 0.0
    %3012 = vmatprep.subr.mxu0 0.0
    %3013 = vmatpush2.xpose.msra.mxu0 0.0
    %3014 = vmatprep.subr.mxu0 0.0
    %3015 = vmatpush2.xpose.msra.mxu0 0.0
    %3016 = vmatprep.subr.mxu0 0.0
    %3017 = vmatpush2.xpose.msra.mxu0 0.0
    %3018 = vmatprep.subr.mxu0 0.0
    %3019 = vmatpush2.xpose.msra.mxu0 0.0
    %3020 = vmatprep.mubr.f32.mxu0 0.0
    %3021 = vmatmul.mubr.f32.gmra.mxu0 %v2950
    %v3022 = vpop.f32.mrf.mxu0
    %v3023 = vadd.f32 0.0, %v3022
    %v3024 = vpop.f32.mrf.mxu0
    %3025 = vdwg.mxu0
    %vm3026 = vcmask 130048
    %v3027 = vsel %vm3026, %v1275, -inf
    %3028 = vmax.xlane.f32.xlu0 %v3027
    %v3029 = vpop.xlane.xlu0 %3028
    %v3030 = vsel %vm3026, %v1351, -inf
    %3031 = vmax.xlane.f32.xlu0 %v3030
    %v3032 = vpop.xlane.xlu0 %3031
    %v3033 = vsel %vm3026, %v1427, -inf
    %3034 = vmax.xlane.f32.xlu0 %v3033
    %v3035 = vpop.xlane.xlu0 %3034
    %v3036 = vsel %vm3026, %v1503, -inf
    %3037 = vmax.xlane.f32.xlu0 %v3036
    %v3038 = vpop.xlane.xlu0 %3037
    %v3039 = vsel %vm3026, %v1579, -inf
    %3040 = vmax.xlane.f32.xlu0 %v3039
    %v3041 = vpop.xlane.xlu0 %3040
    %v3042 = vsel %vm3026, %v1655, -inf
    %3043 = vmax.xlane.f32.xlu0 %v3042
    %v3044 = vpop.xlane.xlu0 %3043
    %v3045 = vsel %vm3026, %v1731, -inf
    %3046 = vmax.xlane.f32.xlu0 %v3045
    %v3047 = vpop.xlane.xlu0 %3046
    %v3048 = vsel %vm3026, %v1807, -inf
    %3049 = vmax.xlane.f32.xlu0 %v3048
    %v3050 = vpop.xlane.xlu0 %3049
    %v3051 = vsel %vm3026, %v1883, -inf
    %3052 = vmax.xlane.f32.xlu0 %v3051
    %v3053 = vpop.xlane.xlu0 %3052
    %v3054 = vsel %vm3026, %v1959, -inf
    %3055 = vmax.xlane.f32.xlu0 %v3054
    %v3056 = vpop.xlane.xlu0 %3055
    %v3057 = vsel %vm3026, %v2035, -inf
    %3058 = vmax.xlane.f32.xlu0 %v3057
    %v3059 = vpop.xlane.xlu0 %3058
    %v3060 = vsel %vm3026, %v2111, -inf
    %3061 = vmax.xlane.f32.xlu0 %v3060
    %v3062 = vpop.xlane.xlu0 %3061
    %v3063 = vsel %vm3026, %v2187, -inf
    %3064 = vmax.xlane.f32.xlu0 %v3063
    %v3065 = vpop.xlane.xlu0 %3064
    %v3066 = vsel %vm3026, %v2263, -inf
    %3067 = vmax.xlane.f32.xlu0 %v3066
    %v3068 = vpop.xlane.xlu0 %3067
    %v3069 = vsel %vm3026, %v2339, -inf
    %3070 = vmax.xlane.f32.xlu0 %v3069
    %v3071 = vpop.xlane.xlu0 %3070
    %v3072 = vsel %vm3026, %v2415, -inf
    %3073 = vmax.xlane.f32.xlu0 %v3072
    %v3074 = vpop.xlane.xlu0 %3073
    %v3075 = vsel %vm3026, %v2491, -inf
    %3076 = vmax.xlane.f32.xlu0 %v3075
    %v3077 = vpop.xlane.xlu0 %3076
    %v3078 = vsel %vm3026, %v2567, -inf
    %3079 = vmax.xlane.f32.xlu0 %v3078
    %v3080 = vpop.xlane.xlu0 %3079
    %v3081 = vsel %vm3026, %v2643, -inf
    %3082 = vmax.xlane.f32.xlu0 %v3081
    %v3083 = vpop.xlane.xlu0 %3082
    %v3084 = vsel %vm3026, %v2719, -inf
    %3085 = vmax.xlane.f32.xlu0 %v3084
    %v3086 = vpop.xlane.xlu0 %3085
    %v3087 = vsel %vm3026, %v2795, -inf
    %3088 = vmax.xlane.f32.xlu0 %v3087
    %v3089 = vpop.xlane.xlu0 %3088
    %v3090 = vsel %vm3026, %v2871, -inf
    %3091 = vmax.xlane.f32.xlu0 %v3090
    %v3092 = vpop.xlane.xlu0 %3091
    %v3093 = vsel %vm3026, %v2947, -inf
    %3094 = vmax.xlane.f32.xlu0 %v3093
    %v3095 = vpop.xlane.xlu0 %3094
    %v3096 = vsel %vm3026, %v3023, -inf
    %3097 = vmax.xlane.f32.xlu0 %v3096
    %v3098 = vpop.xlane.xlu0 %3097
    %v3099 = vsub.f32 %v1275, %v3029
    %v3100 = vsub.f32 %v1351, %v3032
    %v3101 = vsub.f32 %v1427, %v3035
    %v3102 = vsub.f32 %v1503, %v3038
    %v3103 = vsub.f32 %v1579, %v3041
    %v3104 = vsub.f32 %v1655, %v3044
    %v3105 = vsub.f32 %v1731, %v3047
    %v3106 = vsub.f32 %v1807, %v3050
    %v3107 = vsub.f32 %v1883, %v3053
    %v3108 = vsub.f32 %v1959, %v3056
    %v3109 = vsub.f32 %v2035, %v3059
    %v3110 = vsub.f32 %v2111, %v3062
    %v3111 = vsub.f32 %v2187, %v3065
    %v3112 = vsub.f32 %v2263, %v3068
    %v3113 = vsub.f32 %v2339, %v3071
    %v3114 = vsub.f32 %v2415, %v3074
    %v3115 = vsub.f32 %v2491, %v3077
    %v3116 = vsub.f32 %v2567, %v3080
    %v3117 = vsub.f32 %v2643, %v3083
    %v3118 = vsub.f32 %v2719, %v3086
    %v3119 = vsub.f32 %v2795, %v3089
    %v3120 = vsub.f32 %v2871, %v3092
    %v3121 = vsub.f32 %v2947, %v3095
    %v3122 = vsub.f32 %v3023, %v3098
    %v3123 = vmul.f32 %v3099, 1.442695
    %v3124 = vpow.pop %v3123
    %v3125 = vmul.f32 %v3100, 1.442695
    %v3126 = vpow.pop %v3125
    %v3127 = vmul.f32 %v3101, 1.442695
    %v3128 = vpow.pop %v3127
    %v3129 = vmul.f32 %v3102, 1.442695
    %v3130 = vpow.pop %v3129
    %v3131 = vmul.f32 %v3103, 1.442695
    %v3132 = vpow.pop %v3131
    %v3133 = vmul.f32 %v3104, 1.442695
    %v3134 = vpow.pop %v3133
    %v3135 = vmul.f32 %v3105, 1.442695
    %v3136 = vpow.pop %v3135
    %v3137 = vmul.f32 %v3106, 1.442695
    %v3138 = vpow.pop %v3137
    %v3139 = vmul.f32 %v3107, 1.442695
    %v3140 = vpow.pop %v3139
    %v3141 = vmul.f32 %v3108, 1.442695
    %v3142 = vpow.pop %v3141
    %v3143 = vmul.f32 %v3109, 1.442695
    %v3144 = vpow.pop %v3143
    %v3145 = vmul.f32 %v3110, 1.442695
    %v3146 = vpow.pop %v3145
    %v3147 = vmul.f32 %v3111, 1.442695
    %v3148 = vpow.pop %v3147
    %v3149 = vmul.f32 %v3112, 1.442695
    %v3150 = vpow.pop %v3149
    %v3151 = vmul.f32 %v3113, 1.442695
    %v3152 = vpow.pop %v3151
    %v3153 = vmul.f32 %v3114, 1.442695
    %v3154 = vpow.pop %v3153
    %v3155 = vmul.f32 %v3115, 1.442695
    %v3156 = vpow.pop %v3155
    %v3157 = vmul.f32 %v3116, 1.442695
    %v3158 = vpow.pop %v3157
    %v3159 = vmul.f32 %v3117, 1.442695
    %v3160 = vpow.pop %v3159
    %v3161 = vmul.f32 %v3118, 1.442695
    %v3162 = vpow.pop %v3161
    %v3163 = vmul.f32 %v3119, 1.442695
    %v3164 = vpow.pop %v3163
    %v3165 = vmul.f32 %v3120, 1.442695
    %v3166 = vpow.pop %v3165
    %v3167 = vmul.f32 %v3121, 1.442695
    %v3168 = vpow.pop %v3167
    %v3169 = vmul.f32 %v3122, 1.442695
    %v3170 = vpow.pop %v3169
    %v3171 = vsel %vm3026, %v3124, 0.0
    %3172 = vadd.xlane.f32.xlu0 %v3171
    %v3173 = vpop.xlane.xlu0 %3172
    %v3174 = vsel %vm3026, %v3126, 0.0
    %3175 = vadd.xlane.f32.xlu0 %v3174
    %v3176 = vpop.xlane.xlu0 %3175
    %v3177 = vsel %vm3026, %v3128, 0.0
    %3178 = vadd.xlane.f32.xlu0 %v3177
    %v3179 = vpop.xlane.xlu0 %3178
    %v3180 = vsel %vm3026, %v3130, 0.0
    %3181 = vadd.xlane.f32.xlu0 %v3180
    %v3182 = vpop.xlane.xlu0 %3181
    %v3183 = vsel %vm3026, %v3132, 0.0
    %3184 = vadd.xlane.f32.xlu0 %v3183
    %v3185 = vpop.xlane.xlu0 %3184
    %v3186 = vsel %vm3026, %v3134, 0.0
    %3187 = vadd.xlane.f32.xlu0 %v3186
    %v3188 = vpop.xlane.xlu0 %3187
    %v3189 = vsel %vm3026, %v3136, 0.0
    %3190 = vadd.xlane.f32.xlu0 %v3189
    %v3191 = vpop.xlane.xlu0 %3190
    %v3192 = vsel %vm3026, %v3138, 0.0
    %3193 = vadd.xlane.f32.xlu0 %v3192
    %v3194 = vpop.xlane.xlu0 %3193
    %v3195 = vsel %vm3026, %v3140, 0.0
    %3196 = vadd.xlane.f32.xlu0 %v3195
    %v3197 = vpop.xlane.xlu0 %3196
    %v3198 = vsel %vm3026, %v3142, 0.0
    %3199 = vadd.xlane.f32.xlu0 %v3198
    %v3200 = vpop.xlane.xlu0 %3199
    %v3201 = vsel %vm3026, %v3144, 0.0
    %3202 = vadd.xlane.f32.xlu0 %v3201
    %v3203 = vpop.xlane.xlu0 %3202
    %v3204 = vsel %vm3026, %v3146, 0.0
    %3205 = vadd.xlane.f32.xlu0 %v3204
    %v3206 = vpop.xlane.xlu0 %3205
    %v3207 = vsel %vm3026, %v3148, 0.0
    %3208 = vadd.xlane.f32.xlu0 %v3207
    %v3209 = vpop.xlane.xlu0 %3208
    %v3210 = vsel %vm3026, %v3150, 0.0
    %3211 = vadd.xlane.f32.xlu0 %v3210
    %v3212 = vpop.xlane.xlu0 %3211
    %v3213 = vsel %vm3026, %v3152, 0.0
    %3214 = vadd.xlane.f32.xlu0 %v3213
    %v3215 = vpop.xlane.xlu0 %3214
    %v3216 = vsel %vm3026, %v3154, 0.0
    %3217 = vadd.xlane.f32.xlu0 %v3216
    %v3218 = vpop.xlane.xlu0 %3217
    %v3219 = vsel %vm3026, %v3156, 0.0
    %3220 = vadd.xlane.f32.xlu0 %v3219
    %v3221 = vpop.xlane.xlu0 %3220
    %v3222 = vsel %vm3026, %v3158, 0.0
    %3223 = vadd.xlane.f32.xlu0 %v3222
    %v3224 = vpop.xlane.xlu0 %3223
    %v3225 = vsel %vm3026, %v3160, 0.0
    %3226 = vadd.xlane.f32.xlu0 %v3225
    %v3227 = vpop.xlane.xlu0 %3226
    %v3228 = vsel %vm3026, %v3162, 0.0
    %3229 = vadd.xlane.f32.xlu0 %v3228
    %v3230 = vpop.xlane.xlu0 %3229
    %v3231 = vsel %vm3026, %v3164, 0.0
    %3232 = vadd.xlane.f32.xlu0 %v3231
    %v3233 = vpop.xlane.xlu0 %3232
    %v3234 = vsel %vm3026, %v3166, 0.0
    %3235 = vadd.xlane.f32.xlu0 %v3234
    %v3236 = vpop.xlane.xlu0 %3235
    %v3237 = vsel %vm3026, %v3168, 0.0
    %3238 = vadd.xlane.f32.xlu0 %v3237
    %v3239 = vpop.xlane.xlu0 %3238
    %v3240 = vsel %vm3026, %v3170, 0.0
    %3241 = vadd.xlane.f32.xlu0 %v3240
    %v3242 = vpop.xlane.xlu0 %3241
    %v3243 = vrcp.pop %v3173
    %v3244 = vrcp.pop %v3176
    %v3245 = vrcp.pop %v3179
    %v3246 = vrcp.pop %v3182
    %v3247 = vrcp.pop %v3185
    %v3248 = vrcp.pop %v3188
    %v3249 = vrcp.pop %v3191
    %v3250 = vrcp.pop %v3194
    %v3251 = vrcp.pop %v3197
    %v3252 = vrcp.pop %v3200
    %v3253 = vrcp.pop %v3203
    %v3254 = vrcp.pop %v3206
    %v3255 = vrcp.pop %v3209
    %v3256 = vrcp.pop %v3212
    %v3257 = vrcp.pop %v3215
    %v3258 = vrcp.pop %v3218
    %v3259 = vrcp.pop %v3221
    %v3260 = vrcp.pop %v3224
    %v3261 = vrcp.pop %v3227
    %v3262 = vrcp.pop %v3230
    %v3263 = vrcp.pop %v3233
    %v3264 = vrcp.pop %v3236
    %v3265 = vrcp.pop %v3239
    %v3266 = vrcp.pop %v3242
    %v3267 = vmul.f32 %v3124, %v3243
    %v3268 = vmul.f32 %v3126, %v3244
    %v3269 = vmul.f32 %v3128, %v3245
    %v3270 = vmul.f32 %v3130, %v3246
    %v3271 = vmul.f32 %v3132, %v3247
    %v3272 = vmul.f32 %v3134, %v3248
    %v3273 = vmul.f32 %v3136, %v3249
    %v3274 = vmul.f32 %v3138, %v3250
    %v3275 = vmul.f32 %v3140, %v3251
    %v3276 = vmul.f32 %v3142, %v3252
    %v3277 = vmul.f32 %v3144, %v3253
    %v3278 = vmul.f32 %v3146, %v3254
    %v3279 = vmul.f32 %v3148, %v3255
    %v3280 = vmul.f32 %v3150, %v3256
    %v3281 = vmul.f32 %v3152, %v3257
    %v3282 = vmul.f32 %v3154, %v3258
    %v3283 = vmul.f32 %v3156, %v3259
    %v3284 = vmul.f32 %v3158, %v3260
    %v3285 = vmul.f32 %v3160, %v3261
    %v3286 = vmul.f32 %v3162, %v3262
    %v3287 = vmul.f32 %v3164, %v3263
    %v3288 = vmul.f32 %v3166, %v3264
    %v3289 = vmul.f32 %v3168, %v3265
    %v3290 = vmul.f32 %v3170, %v3266
    %3291 = vrot.lane.b32.xlu0 %v1045, 96
    %v3292 = vpop.permute.xlu0 %3291
    %3293 = vrot.lane.b32.xlu0 %v1057, 96
    %v3294 = vpop.permute.xlu0 %3293
    %v3298 = vsel %vm3026, %v3267, 0
    %3300 = vmatprep.subr.mxu0 0.0
    %3301 = vmatpush1.msra.mxu0 0.0
    %3302 = vmatprep.subr.mxu0 0.0
    %3303 = vmatpush1.msra.mxu0 0.0
    %3304 = vmatprep.subr.mxu0 0.0
    %3305 = vmatpush1.msra.mxu0 0.0
    %3306 = vmatprep.subr.mxu0 0.0
    %3307 = vmatpush1.msra.mxu0 0.0
    %3308 = vmatprep.subr.mxu0 0.0
    %3309 = vmatpush1.msra.mxu0 0.0
    %3310 = vmatprep.subr.mxu0 0.0
    %3311 = vmatpush1.msra.mxu0 0.0
    %3312 = vmatprep.subr.mxu0 0.0
    %3313 = vmatpush1.msra.mxu0 0.0
    %3314 = vmatprep.subr.mxu0 0.0
    %3315 = vmatpush1.msra.mxu0 0.0
    %3316 = vmatprep.subr.mxu0 0.0
    %3317 = vmatpush1.msra.mxu0 0.0
    %3318 = vmatprep.subr.mxu0 0.0
    %3319 = vmatpush1.msra.mxu0 0.0
    %3320 = vmatprep.subr.mxu0 0.0
    %3321 = vmatpush1.msra.mxu0 0.0
    %3322 = vmatprep.subr.mxu0 0.0
    %3323 = vmatpush1.msra.mxu0 0.0
    %3324 = vmatprep.subr.mxu0 0.0
    %3325 = vmatpush1.msra.mxu0 0.0
    %3326 = vmatprep.subr.mxu0 0.0
    %3327 = vmatpush1.msra.mxu0 0.0
    %3328 = vmatprep.subr.mxu0 0.0
    %3329 = vmatpush1.msra.mxu0 %v3294
    %3330 = vmatprep.subr.mxu0 0.0
    %3331 = vmatpush1.msra.mxu0 %v3292
    %3332 = vmatprep.subr.mxu0 0.0
    %3333 = vmatpush2.msra.mxu0 0.0
    %3334 = vmatprep.subr.mxu0 0.0
    %3335 = vmatpush2.msra.mxu0 0.0
    %3336 = vmatprep.subr.mxu0 0.0
    %3337 = vmatpush2.msra.mxu0 0.0
    %3338 = vmatprep.subr.mxu0 0.0
    %3339 = vmatpush2.msra.mxu0 0.0
    %3340 = vmatprep.subr.mxu0 0.0
    %3341 = vmatpush2.msra.mxu0 0.0
    %3342 = vmatprep.subr.mxu0 0.0
    %3343 = vmatpush2.msra.mxu0 0.0
    %3344 = vmatprep.subr.mxu0 0.0
    %3345 = vmatpush2.msra.mxu0 0.0
    %3346 = vmatprep.subr.mxu0 0.0
    %3347 = vmatpush2.msra.mxu0 0.0
    %3348 = vmatprep.subr.mxu0 0.0
    %3349 = vmatpush2.msra.mxu0 0.0
    %3350 = vmatprep.subr.mxu0 0.0
    %3351 = vmatpush2.msra.mxu0 0.0
    %3352 = vmatprep.subr.mxu0 0.0
    %3353 = vmatpush2.msra.mxu0 0.0
    %3354 = vmatprep.subr.mxu0 0.0
    %3355 = vmatpush2.msra.mxu0 0.0
    %3356 = vmatprep.subr.mxu0 0.0
    %3357 = vmatpush2.msra.mxu0 0.0
    %3358 = vmatprep.subr.mxu0 0.0
    %3359 = vmatpush2.msra.mxu0 0.0
    %3360 = vmatprep.subr.mxu0 0.0
    %3361 = vmatpush2.msra.mxu0 0.0
    %3362 = vmatprep.subr.mxu0 0.0
    %3363 = vmatpush2.msra.mxu0 0.0
    %3364 = vmatprep.mubr.f32.mxu0 0.0
    %3365 = vmatmul.mubr.f32.gmra.mxu0 %v3298
    %v3366 = vpop.f32.mrf.mxu0
    %v3367 = vadd.f32 0.0, %v3366
    %v3368 = vpop.f32.mrf.mxu0
    %3369 = vdwg.mxu0
    %3370 = vrot.lane.b32.xlu0 %v1051, 96
    %v3371 = vpop.permute.xlu0 %3370
    %3372 = vrot.lane.b32.xlu0 %v1062, 96
    %v3373 = vpop.permute.xlu0 %3372
    %v3377 = vsel %vm3026, %v3268, 0
    %3379 = vmatprep.subr.mxu0 0.0
    %3380 = vmatpush1.msra.mxu0 0.0
    %3381 = vmatprep.subr.mxu0 0.0
    %3382 = vmatpush1.msra.mxu0 0.0
    %3383 = vmatprep.subr.mxu0 0.0
    %3384 = vmatpush1.msra.mxu0 0.0
    %3385 = vmatprep.subr.mxu0 0.0
    %3386 = vmatpush1.msra.mxu0 0.0
    %3387 = vmatprep.subr.mxu0 0.0
    %3388 = vmatpush1.msra.mxu0 0.0
    %3389 = vmatprep.subr.mxu0 0.0
    %3390 = vmatpush1.msra.mxu0 0.0
    %3391 = vmatprep.subr.mxu0 0.0
    %3392 = vmatpush1.msra.mxu0 0.0
    %3393 = vmatprep.subr.mxu0 0.0
    %3394 = vmatpush1.msra.mxu0 0.0
    %3395 = vmatprep.subr.mxu0 0.0
    %3396 = vmatpush1.msra.mxu0 0.0
    %3397 = vmatprep.subr.mxu0 0.0
    %3398 = vmatpush1.msra.mxu0 0.0
    %3399 = vmatprep.subr.mxu0 0.0
    %3400 = vmatpush1.msra.mxu0 0.0
    %3401 = vmatprep.subr.mxu0 0.0
    %3402 = vmatpush1.msra.mxu0 0.0
    %3403 = vmatprep.subr.mxu0 0.0
    %3404 = vmatpush1.msra.mxu0 0.0
    %3405 = vmatprep.subr.mxu0 0.0
    %3406 = vmatpush1.msra.mxu0 0.0
    %3407 = vmatprep.subr.mxu0 0.0
    %3408 = vmatpush1.msra.mxu0 %v3373
    %3409 = vmatprep.subr.mxu0 0.0
    %3410 = vmatpush1.msra.mxu0 %v3371
    %3411 = vmatprep.subr.mxu0 0.0
    %3412 = vmatpush2.msra.mxu0 0.0
    %3413 = vmatprep.subr.mxu0 0.0
    %3414 = vmatpush2.msra.mxu0 0.0
    %3415 = vmatprep.subr.mxu0 0.0
    %3416 = vmatpush2.msra.mxu0 0.0
    %3417 = vmatprep.subr.mxu0 0.0
    %3418 = vmatpush2.msra.mxu0 0.0
    %3419 = vmatprep.subr.mxu0 0.0
    %3420 = vmatpush2.msra.mxu0 0.0
    %3421 = vmatprep.subr.mxu0 0.0
    %3422 = vmatpush2.msra.mxu0 0.0
    %3423 = vmatprep.subr.mxu0 0.0
    %3424 = vmatpush2.msra.mxu0 0.0
    %3425 = vmatprep.subr.mxu0 0.0
    %3426 = vmatpush2.msra.mxu0 0.0
    %3427 = vmatprep.subr.mxu0 0.0
    %3428 = vmatpush2.msra.mxu0 0.0
    %3429 = vmatprep.subr.mxu0 0.0
    %3430 = vmatpush2.msra.mxu0 0.0
    %3431 = vmatprep.subr.mxu0 0.0
    %3432 = vmatpush2.msra.mxu0 0.0
    %3433 = vmatprep.subr.mxu0 0.0
    %3434 = vmatpush2.msra.mxu0 0.0
    %3435 = vmatprep.subr.mxu0 0.0
    %3436 = vmatpush2.msra.mxu0 0.0
    %3437 = vmatprep.subr.mxu0 0.0
    %3438 = vmatpush2.msra.mxu0 0.0
    %3439 = vmatprep.subr.mxu0 0.0
    %3440 = vmatpush2.msra.mxu0 0.0
    %3441 = vmatprep.subr.mxu0 0.0
    %3442 = vmatpush2.msra.mxu0 0.0
    %3443 = vmatprep.mubr.f32.mxu0 0.0
    %3444 = vmatmul.mubr.f32.gmra.mxu0 %v3377
    %v3445 = vpop.f32.mrf.mxu0
    %v3446 = vadd.f32 0.0, %v3445
    %v3447 = vpop.f32.mrf.mxu0
    %3448 = vdwg.mxu0
    %3449 = vrot.lane.b32.xlu0 %v1116, 96
    %v3450 = vpop.permute.xlu0 %3449
    %3451 = vrot.lane.b32.xlu0 %v1118, 96
    %v3452 = vpop.permute.xlu0 %3451
    %v3456 = vsel %vm3026, %v3269, 0
    %3458 = vmatprep.subr.mxu0 0.0
    %3459 = vmatpush1.msra.mxu0 0.0
    %3460 = vmatprep.subr.mxu0 0.0
    %3461 = vmatpush1.msra.mxu0 0.0
    %3462 = vmatprep.subr.mxu0 0.0
    %3463 = vmatpush1.msra.mxu0 0.0
    %3464 = vmatprep.subr.mxu0 0.0
    %3465 = vmatpush1.msra.mxu0 0.0
    %3466 = vmatprep.subr.mxu0 0.0
    %3467 = vmatpush1.msra.mxu0 0.0
    %3468 = vmatprep.subr.mxu0 0.0
    %3469 = vmatpush1.msra.mxu0 0.0
    %3470 = vmatprep.subr.mxu0 0.0
    %3471 = vmatpush1.msra.mxu0 0.0
    %3472 = vmatprep.subr.mxu0 0.0
    %3473 = vmatpush1.msra.mxu0 0.0
    %3474 = vmatprep.subr.mxu0 0.0
    %3475 = vmatpush1.msra.mxu0 0.0
    %3476 = vmatprep.subr.mxu0 0.0
    %3477 = vmatpush1.msra.mxu0 0.0
    %3478 = vmatprep.subr.mxu0 0.0
    %3479 = vmatpush1.msra.mxu0 0.0
    %3480 = vmatprep.subr.mxu0 0.0
    %3481 = vmatpush1.msra.mxu0 0.0
    %3482 = vmatprep.subr.mxu0 0.0
    %3483 = vmatpush1.msra.mxu0 0.0
    %3484 = vmatprep.subr.mxu0 0.0
    %3485 = vmatpush1.msra.mxu0 0.0
    %3486 = vmatprep.subr.mxu0 0.0
    %3487 = vmatpush1.msra.mxu0 %v3452
    %3488 = vmatprep.subr.mxu0 0.0
    %3489 = vmatpush1.msra.mxu0 %v3450
    %3490 = vmatprep.subr.mxu0 0.0
    %3491 = vmatpush2.msra.mxu0 0.0
    %3492 = vmatprep.subr.mxu0 0.0
    %3493 = vmatpush2.msra.mxu0 0.0
    %3494 = vmatprep.subr.mxu0 0.0
    %3495 = vmatpush2.msra.mxu0 0.0
    %3496 = vmatprep.subr.mxu0 0.0
    %3497 = vmatpush2.msra.mxu0 0.0
    %3498 = vmatprep.subr.mxu0 0.0
    %3499 = vmatpush2.msra.mxu0 0.0
    %3500 = vmatprep.subr.mxu0 0.0
    %3501 = vmatpush2.msra.mxu0 0.0
    %3502 = vmatprep.subr.mxu0 0.0
    %3503 = vmatpush2.msra.mxu0 0.0
    %3504 = vmatprep.subr.mxu0 0.0
    %3505 = vmatpush2.msra.mxu0 0.0
    %3506 = vmatprep.subr.mxu0 0.0
    %3507 = vmatpush2.msra.mxu0 0.0
    %3508 = vmatprep.subr.mxu0 0.0
    %3509 = vmatpush2.msra.mxu0 0.0
    %3510 = vmatprep.subr.mxu0 0.0
    %3511 = vmatpush2.msra.mxu0 0.0
    %3512 = vmatprep.subr.mxu0 0.0
    %3513 = vmatpush2.msra.mxu0 0.0
    %3514 = vmatprep.subr.mxu0 0.0
    %3515 = vmatpush2.msra.mxu0 0.0
    %3516 = vmatprep.subr.mxu0 0.0
    %3517 = vmatpush2.msra.mxu0 0.0
    %3518 = vmatprep.subr.mxu0 0.0
    %3519 = vmatpush2.msra.mxu0 0.0
    %3520 = vmatprep.subr.mxu0 0.0
    %3521 = vmatpush2.msra.mxu0 0.0
    %3522 = vmatprep.mubr.f32.mxu0 0.0
    %3523 = vmatmul.mubr.f32.gmra.mxu0 %v3456
    %v3524 = vpop.f32.mrf.mxu0
    %v3525 = vadd.f32 0.0, %v3524
    %v3526 = vpop.f32.mrf.mxu0
    %3527 = vdwg.mxu0
    %3528 = vrot.lane.b32.xlu0 %v1120, 96
    %v3529 = vpop.permute.xlu0 %3528
    %3530 = vrot.lane.b32.xlu0 %v1122, 96
    %v3531 = vpop.permute.xlu0 %3530
    %v3535 = vsel %vm3026, %v3270, 0
    %3537 = vmatprep.subr.mxu0 0.0
    %3538 = vmatpush1.msra.mxu0 0.0
    %3539 = vmatprep.subr.mxu0 0.0
    %3540 = vmatpush1.msra.mxu0 0.0
    %3541 = vmatprep.subr.mxu0 0.0
    %3542 = vmatpush1.msra.mxu0 0.0
    %3543 = vmatprep.subr.mxu0 0.0
    %3544 = vmatpush1.msra.mxu0 0.0
    %3545 = vmatprep.subr.mxu0 0.0
    %3546 = vmatpush1.msra.mxu0 0.0
    %3547 = vmatprep.subr.mxu0 0.0
    %3548 = vmatpush1.msra.mxu0 0.0
    %3549 = vmatprep.subr.mxu0 0.0
    %3550 = vmatpush1.msra.mxu0 0.0
    %3551 = vmatprep.subr.mxu0 0.0
    %3552 = vmatpush1.msra.mxu0 0.0
    %3553 = vmatprep.subr.mxu0 0.0
    %3554 = vmatpush1.msra.mxu0 0.0
    %3555 = vmatprep.subr.mxu0 0.0
    %3556 = vmatpush1.msra.mxu0 0.0
    %3557 = vmatprep.subr.mxu0 0.0
    %3558 = vmatpush1.msra.mxu0 0.0
    %3559 = vmatprep.subr.mxu0 0.0
    %3560 = vmatpush1.msra.mxu0 0.0
    %3561 = vmatprep.subr.mxu0 0.0
    %3562 = vmatpush1.msra.mxu0 0.0
    %3563 = vmatprep.subr.mxu0 0.0
    %3564 = vmatpush1.msra.mxu0 0.0
    %3565 = vmatprep.subr.mxu0 0.0
    %3566 = vmatpush1.msra.mxu0 %v3531
    %3567 = vmatprep.subr.mxu0 0.0
    %3568 = vmatpush1.msra.mxu0 %v3529
    %3569 = vmatprep.subr.mxu0 0.0
    %3570 = vmatpush2.msra.mxu0 0.0
    %3571 = vmatprep.subr.mxu0 0.0
    %3572 = vmatpush2.msra.mxu0 0.0
    %3573 = vmatprep.subr.mxu0 0.0
    %3574 = vmatpush2.msra.mxu0 0.0
    %3575 = vmatprep.subr.mxu0 0.0
    %3576 = vmatpush2.msra.mxu0 0.0
    %3577 = vmatprep.subr.mxu0 0.0
    %3578 = vmatpush2.msra.mxu0 0.0
    %3579 = vmatprep.subr.mxu0 0.0
    %3580 = vmatpush2.msra.mxu0 0.0
    %3581 = vmatprep.subr.mxu0 0.0
    %3582 = vmatpush2.msra.mxu0 0.0
    %3583 = vmatprep.subr.mxu0 0.0
    %3584 = vmatpush2.msra.mxu0 0.0
    %3585 = vmatprep.subr.mxu0 0.0
    %3586 = vmatpush2.msra.mxu0 0.0
    %3587 = vmatprep.subr.mxu0 0.0
    %3588 = vmatpush2.msra.mxu0 0.0
    %3589 = vmatprep.subr.mxu0 0.0
    %3590 = vmatpush2.msra.mxu0 0.0
    %3591 = vmatprep.subr.mxu0 0.0
    %3592 = vmatpush2.msra.mxu0 0.0
    %3593 = vmatprep.subr.mxu0 0.0
    %3594 = vmatpush2.msra.mxu0 0.0
    %3595 = vmatprep.subr.mxu0 0.0
    %3596 = vmatpush2.msra.mxu0 0.0
    %3597 = vmatprep.subr.mxu0 0.0
    %3598 = vmatpush2.msra.mxu0 0.0
    %3599 = vmatprep.subr.mxu0 0.0
    %3600 = vmatpush2.msra.mxu0 0.0
    %3601 = vmatprep.mubr.f32.mxu0 0.0
    %3602 = vmatmul.mubr.f32.gmra.mxu0 %v3535
    %v3603 = vpop.f32.mrf.mxu0
    %v3604 = vadd.f32 0.0, %v3603
    %v3605 = vpop.f32.mrf.mxu0
    %3606 = vdwg.mxu0
    %3607 = vrot.lane.b32.xlu0 %v1124, 96
    %v3608 = vpop.permute.xlu0 %3607
    %3609 = vrot.lane.b32.xlu0 %v1126, 96
    %v3610 = vpop.permute.xlu0 %3609
    %v3614 = vsel %vm3026, %v3271, 0
    %3616 = vmatprep.subr.mxu0 0.0
    %3617 = vmatpush1.msra.mxu0 0.0
    %3618 = vmatprep.subr.mxu0 0.0
    %3619 = vmatpush1.msra.mxu0 0.0
    %3620 = vmatprep.subr.mxu0 0.0
    %3621 = vmatpush1.msra.mxu0 0.0
    %3622 = vmatprep.subr.mxu0 0.0
    %3623 = vmatpush1.msra.mxu0 0.0
    %3624 = vmatprep.subr.mxu0 0.0
    %3625 = vmatpush1.msra.mxu0 0.0
    %3626 = vmatprep.subr.mxu0 0.0
    %3627 = vmatpush1.msra.mxu0 0.0
    %3628 = vmatprep.subr.mxu0 0.0
    %3629 = vmatpush1.msra.mxu0 0.0
    %3630 = vmatprep.subr.mxu0 0.0
    %3631 = vmatpush1.msra.mxu0 0.0
    %3632 = vmatprep.subr.mxu0 0.0
    %3633 = vmatpush1.msra.mxu0 0.0
    %3634 = vmatprep.subr.mxu0 0.0
    %3635 = vmatpush1.msra.mxu0 0.0
    %3636 = vmatprep.subr.mxu0 0.0
    %3637 = vmatpush1.msra.mxu0 0.0
    %3638 = vmatprep.subr.mxu0 0.0
    %3639 = vmatpush1.msra.mxu0 0.0
    %3640 = vmatprep.subr.mxu0 0.0
    %3641 = vmatpush1.msra.mxu0 0.0
    %3642 = vmatprep.subr.mxu0 0.0
    %3643 = vmatpush1.msra.mxu0 0.0
    %3644 = vmatprep.subr.mxu0 0.0
    %3645 = vmatpush1.msra.mxu0 %v3610
    %3646 = vmatprep.subr.mxu0 0.0
    %3647 = vmatpush1.msra.mxu0 %v3608
    %3648 = vmatprep.subr.mxu0 0.0
    %3649 = vmatpush2.msra.mxu0 0.0
    %3650 = vmatprep.subr.mxu0 0.0
    %3651 = vmatpush2.msra.mxu0 0.0
    %3652 = vmatprep.subr.mxu0 0.0
    %3653 = vmatpush2.msra.mxu0 0.0
    %3654 = vmatprep.subr.mxu0 0.0
    %3655 = vmatpush2.msra.mxu0 0.0
    %3656 = vmatprep.subr.mxu0 0.0
    %3657 = vmatpush2.msra.mxu0 0.0
    %3658 = vmatprep.subr.mxu0 0.0
    %3659 = vmatpush2.msra.mxu0 0.0
    %3660 = vmatprep.subr.mxu0 0.0
    %3661 = vmatpush2.msra.mxu0 0.0
    %3662 = vmatprep.subr.mxu0 0.0
    %3663 = vmatpush2.msra.mxu0 0.0
    %3664 = vmatprep.subr.mxu0 0.0
    %3665 = vmatpush2.msra.mxu0 0.0
    %3666 = vmatprep.subr.mxu0 0.0
    %3667 = vmatpush2.msra.mxu0 0.0
    %3668 = vmatprep.subr.mxu0 0.0
    %3669 = vmatpush2.msra.mxu0 0.0
    %3670 = vmatprep.subr.mxu0 0.0
    %3671 = vmatpush2.msra.mxu0 0.0
    %3672 = vmatprep.subr.mxu0 0.0
    %3673 = vmatpush2.msra.mxu0 0.0
    %3674 = vmatprep.subr.mxu0 0.0
    %3675 = vmatpush2.msra.mxu0 0.0
    %3676 = vmatprep.subr.mxu0 0.0
    %3677 = vmatpush2.msra.mxu0 0.0
    %3678 = vmatprep.subr.mxu0 0.0
    %3679 = vmatpush2.msra.mxu0 0.0
    %3680 = vmatprep.mubr.f32.mxu0 0.0
    %3681 = vmatmul.mubr.f32.gmra.mxu0 %v3614
    %v3682 = vpop.f32.mrf.mxu0
    %v3683 = vadd.f32 0.0, %v3682
    %v3684 = vpop.f32.mrf.mxu0
    %3685 = vdwg.mxu0
    %3686 = vrot.lane.b32.xlu0 %v1128, 96
    %v3687 = vpop.permute.xlu0 %3686
    %3688 = vrot.lane.b32.xlu0 %v1130, 96
    %v3689 = vpop.permute.xlu0 %3688
    %v3693 = vsel %vm3026, %v3272, 0
    %3695 = vmatprep.subr.mxu0 0.0
    %3696 = vmatpush1.msra.mxu0 0.0
    %3697 = vmatprep.subr.mxu0 0.0
    %3698 = vmatpush1.msra.mxu0 0.0
    %3699 = vmatprep.subr.mxu0 0.0
    %3700 = vmatpush1.msra.mxu0 0.0
    %3701 = vmatprep.subr.mxu0 0.0
    %3702 = vmatpush1.msra.mxu0 0.0
    %3703 = vmatprep.subr.mxu0 0.0
    %3704 = vmatpush1.msra.mxu0 0.0
    %3705 = vmatprep.subr.mxu0 0.0
    %3706 = vmatpush1.msra.mxu0 0.0
    %3707 = vmatprep.subr.mxu0 0.0
    %3708 = vmatpush1.msra.mxu0 0.0
    %3709 = vmatprep.subr.mxu0 0.0
    %3710 = vmatpush1.msra.mxu0 0.0
    %3711 = vmatprep.subr.mxu0 0.0
    %3712 = vmatpush1.msra.mxu0 0.0
    %3713 = vmatprep.subr.mxu0 0.0
    %3714 = vmatpush1.msra.mxu0 0.0
    %3715 = vmatprep.subr.mxu0 0.0
    %3716 = vmatpush1.msra.mxu0 0.0
    %3717 = vmatprep.subr.mxu0 0.0
    %3718 = vmatpush1.msra.mxu0 0.0
    %3719 = vmatprep.subr.mxu0 0.0
    %3720 = vmatpush1.msra.mxu0 0.0
    %3721 = vmatprep.subr.mxu0 0.0
    %3722 = vmatpush1.msra.mxu0 0.0
    %3723 = vmatprep.subr.mxu0 0.0
    %3724 = vmatpush1.msra.mxu0 %v3689
    %3725 = vmatprep.subr.mxu0 0.0
    %3726 = vmatpush1.msra.mxu0 %v3687
    %3727 = vmatprep.subr.mxu0 0.0
    %3728 = vmatpush2.msra.mxu0 0.0
    %3729 = vmatprep.subr.mxu0 0.0
    %3730 = vmatpush2.msra.mxu0 0.0
    %3731 = vmatprep.subr.mxu0 0.0
    %3732 = vmatpush2.msra.mxu0 0.0
    %3733 = vmatprep.subr.mxu0 0.0
    %3734 = vmatpush2.msra.mxu0 0.0
    %3735 = vmatprep.subr.mxu0 0.0
    %3736 = vmatpush2.msra.mxu0 0.0
    %3737 = vmatprep.subr.mxu0 0.0
    %3738 = vmatpush2.msra.mxu0 0.0
    %3739 = vmatprep.subr.mxu0 0.0
    %3740 = vmatpush2.msra.mxu0 0.0
    %3741 = vmatprep.subr.mxu0 0.0
    %3742 = vmatpush2.msra.mxu0 0.0
    %3743 = vmatprep.subr.mxu0 0.0
    %3744 = vmatpush2.msra.mxu0 0.0
    %3745 = vmatprep.subr.mxu0 0.0
    %3746 = vmatpush2.msra.mxu0 0.0
    %3747 = vmatprep.subr.mxu0 0.0
    %3748 = vmatpush2.msra.mxu0 0.0
    %3749 = vmatprep.subr.mxu0 0.0
    %3750 = vmatpush2.msra.mxu0 0.0
    %3751 = vmatprep.subr.mxu0 0.0
    %3752 = vmatpush2.msra.mxu0 0.0
    %3753 = vmatprep.subr.mxu0 0.0
    %3754 = vmatpush2.msra.mxu0 0.0
    %3755 = vmatprep.subr.mxu0 0.0
    %3756 = vmatpush2.msra.mxu0 0.0
    %3757 = vmatprep.subr.mxu0 0.0
    %3758 = vmatpush2.msra.mxu0 0.0
    %3759 = vmatprep.mubr.f32.mxu0 0.0
    %3760 = vmatmul.mubr.f32.gmra.mxu0 %v3693
    %v3761 = vpop.f32.mrf.mxu0
    %v3762 = vadd.f32 0.0, %v3761
    %v3763 = vpop.f32.mrf.mxu0
    %3764 = vdwg.mxu0
    %3765 = vrot.lane.b32.xlu0 %v1132, 96
    %v3766 = vpop.permute.xlu0 %3765
    %3767 = vrot.lane.b32.xlu0 %v1134, 96
    %v3768 = vpop.permute.xlu0 %3767
    %v3772 = vsel %vm3026, %v3273, 0
    %3774 = vmatprep.subr.mxu0 0.0
    %3775 = vmatpush1.msra.mxu0 0.0
    %3776 = vmatprep.subr.mxu0 0.0
    %3777 = vmatpush1.msra.mxu0 0.0
    %3778 = vmatprep.subr.mxu0 0.0
    %3779 = vmatpush1.msra.mxu0 0.0
    %3780 = vmatprep.subr.mxu0 0.0
    %3781 = vmatpush1.msra.mxu0 0.0
    %3782 = vmatprep.subr.mxu0 0.0
    %3783 = vmatpush1.msra.mxu0 0.0
    %3784 = vmatprep.subr.mxu0 0.0
    %3785 = vmatpush1.msra.mxu0 0.0
    %3786 = vmatprep.subr.mxu0 0.0
    %3787 = vmatpush1.msra.mxu0 0.0
    %3788 = vmatprep.subr.mxu0 0.0
    %3789 = vmatpush1.msra.mxu0 0.0
    %3790 = vmatprep.subr.mxu0 0.0
    %3791 = vmatpush1.msra.mxu0 0.0
    %3792 = vmatprep.subr.mxu0 0.0
    %3793 = vmatpush1.msra.mxu0 0.0
    %3794 = vmatprep.subr.mxu0 0.0
    %3795 = vmatpush1.msra.mxu0 0.0
    %3796 = vmatprep.subr.mxu0 0.0
    %3797 = vmatpush1.msra.mxu0 0.0
    %3798 = vmatprep.subr.mxu0 0.0
    %3799 = vmatpush1.msra.mxu0 0.0
    %3800 = vmatprep.subr.mxu0 0.0
    %3801 = vmatpush1.msra.mxu0 0.0
    %3802 = vmatprep.subr.mxu0 0.0
    %3803 = vmatpush1.msra.mxu0 %v3768
    %3804 = vmatprep.subr.mxu0 0.0
    %3805 = vmatpush1.msra.mxu0 %v3766
    %3806 = vmatprep.subr.mxu0 0.0
    %3807 = vmatpush2.msra.mxu0 0.0
    %3808 = vmatprep.subr.mxu0 0.0
    %3809 = vmatpush2.msra.mxu0 0.0
    %3810 = vmatprep.subr.mxu0 0.0
    %3811 = vmatpush2.msra.mxu0 0.0
    %3812 = vmatprep.subr.mxu0 0.0
    %3813 = vmatpush2.msra.mxu0 0.0
    %3814 = vmatprep.subr.mxu0 0.0
    %3815 = vmatpush2.msra.mxu0 0.0
    %3816 = vmatprep.subr.mxu0 0.0
    %3817 = vmatpush2.msra.mxu0 0.0
    %3818 = vmatprep.subr.mxu0 0.0
    %3819 = vmatpush2.msra.mxu0 0.0
    %3820 = vmatprep.subr.mxu0 0.0
    %3821 = vmatpush2.msra.mxu0 0.0
    %3822 = vmatprep.subr.mxu0 0.0
    %3823 = vmatpush2.msra.mxu0 0.0
    %3824 = vmatprep.subr.mxu0 0.0
    %3825 = vmatpush2.msra.mxu0 0.0
    %3826 = vmatprep.subr.mxu0 0.0
    %3827 = vmatpush2.msra.mxu0 0.0
    %3828 = vmatprep.subr.mxu0 0.0
    %3829 = vmatpush2.msra.mxu0 0.0
    %3830 = vmatprep.subr.mxu0 0.0
    %3831 = vmatpush2.msra.mxu0 0.0
    %3832 = vmatprep.subr.mxu0 0.0
    %3833 = vmatpush2.msra.mxu0 0.0
    %3834 = vmatprep.subr.mxu0 0.0
    %3835 = vmatpush2.msra.mxu0 0.0
    %3836 = vmatprep.subr.mxu0 0.0
    %3837 = vmatpush2.msra.mxu0 0.0
    %3838 = vmatprep.mubr.f32.mxu0 0.0
    %3839 = vmatmul.mubr.f32.gmra.mxu0 %v3772
    %v3840 = vpop.f32.mrf.mxu0
    %v3841 = vadd.f32 0.0, %v3840
    %v3842 = vpop.f32.mrf.mxu0
    %3843 = vdwg.mxu0
    %3844 = vrot.lane.b32.xlu0 %v1136, 96
    %v3845 = vpop.permute.xlu0 %3844
    %3846 = vrot.lane.b32.xlu0 %v1138, 96
    %v3847 = vpop.permute.xlu0 %3846
    %v3851 = vsel %vm3026, %v3274, 0
    %3853 = vmatprep.subr.mxu0 0.0
    %3854 = vmatpush1.msra.mxu0 0.0
    %3855 = vmatprep.subr.mxu0 0.0
    %3856 = vmatpush1.msra.mxu0 0.0
    %3857 = vmatprep.subr.mxu0 0.0
    %3858 = vmatpush1.msra.mxu0 0.0
    %3859 = vmatprep.subr.mxu0 0.0
    %3860 = vmatpush1.msra.mxu0 0.0
    %3861 = vmatprep.subr.mxu0 0.0
    %3862 = vmatpush1.msra.mxu0 0.0
    %3863 = vmatprep.subr.mxu0 0.0
    %3864 = vmatpush1.msra.mxu0 0.0
    %3865 = vmatprep.subr.mxu0 0.0
    %3866 = vmatpush1.msra.mxu0 0.0
    %3867 = vmatprep.subr.mxu0 0.0
    %3868 = vmatpush1.msra.mxu0 0.0
    %3869 = vmatprep.subr.mxu0 0.0
    %3870 = vmatpush1.msra.mxu0 0.0
    %3871 = vmatprep.subr.mxu0 0.0
    %3872 = vmatpush1.msra.mxu0 0.0
    %3873 = vmatprep.subr.mxu0 0.0
    %3874 = vmatpush1.msra.mxu0 0.0
    %3875 = vmatprep.subr.mxu0 0.0
    %3876 = vmatpush1.msra.mxu0 0.0
    %3877 = vmatprep.subr.mxu0 0.0
    %3878 = vmatpush1.msra.mxu0 0.0
    %3879 = vmatprep.subr.mxu0 0.0
    %3880 = vmatpush1.msra.mxu0 0.0
    %3881 = vmatprep.subr.mxu0 0.0
    %3882 = vmatpush1.msra.mxu0 %v3847
    %3883 = vmatprep.subr.mxu0 0.0
    %3884 = vmatpush1.msra.mxu0 %v3845
    %3885 = vmatprep.subr.mxu0 0.0
    %3886 = vmatpush2.msra.mxu0 0.0
    %3887 = vmatprep.subr.mxu0 0.0
    %3888 = vmatpush2.msra.mxu0 0.0
    %3889 = vmatprep.subr.mxu0 0.0
    %3890 = vmatpush2.msra.mxu0 0.0
    %3891 = vmatprep.subr.mxu0 0.0
    %3892 = vmatpush2.msra.mxu0 0.0
    %3893 = vmatprep.subr.mxu0 0.0
    %3894 = vmatpush2.msra.mxu0 0.0
    %3895 = vmatprep.subr.mxu0 0.0
    %3896 = vmatpush2.msra.mxu0 0.0
    %3897 = vmatprep.subr.mxu0 0.0
    %3898 = vmatpush2.msra.mxu0 0.0
    %3899 = vmatprep.subr.mxu0 0.0
    %3900 = vmatpush2.msra.mxu0 0.0
    %3901 = vmatprep.subr.mxu0 0.0
    %3902 = vmatpush2.msra.mxu0 0.0
    %3903 = vmatprep.subr.mxu0 0.0
    %3904 = vmatpush2.msra.mxu0 0.0
    %3905 = vmatprep.subr.mxu0 0.0
    %3906 = vmatpush2.msra.mxu0 0.0
    %3907 = vmatprep.subr.mxu0 0.0
    %3908 = vmatpush2.msra.mxu0 0.0
    %3909 = vmatprep.subr.mxu0 0.0
    %3910 = vmatpush2.msra.mxu0 0.0
    %3911 = vmatprep.subr.mxu0 0.0
    %3912 = vmatpush2.msra.mxu0 0.0
    %3913 = vmatprep.subr.mxu0 0.0
    %3914 = vmatpush2.msra.mxu0 0.0
    %3915 = vmatprep.subr.mxu0 0.0
    %3916 = vmatpush2.msra.mxu0 0.0
    %3917 = vmatprep.mubr.f32.mxu0 0.0
    %3918 = vmatmul.mubr.f32.gmra.mxu0 %v3851
    %v3919 = vpop.f32.mrf.mxu0
    %v3920 = vadd.f32 0.0, %v3919
    %v3921 = vpop.f32.mrf.mxu0
    %3922 = vdwg.mxu0
    %3923 = vrot.lane.b32.xlu0 %v1142, 96
    %v3924 = vpop.permute.xlu0 %3923
    %3925 = vrot.lane.b32.xlu0 %v1144, 96
    %v3926 = vpop.permute.xlu0 %3925
    %v3930 = vsel %vm3026, %v3275, 0
    %3932 = vmatprep.subr.mxu0 0.0
    %3933 = vmatpush1.msra.mxu0 0.0
    %3934 = vmatprep.subr.mxu0 0.0
    %3935 = vmatpush1.msra.mxu0 0.0
    %3936 = vmatprep.subr.mxu0 0.0
    %3937 = vmatpush1.msra.mxu0 0.0
    %3938 = vmatprep.subr.mxu0 0.0
    %3939 = vmatpush1.msra.mxu0 0.0
    %3940 = vmatprep.subr.mxu0 0.0
    %3941 = vmatpush1.msra.mxu0 0.0
    %3942 = vmatprep.subr.mxu0 0.0
    %3943 = vmatpush1.msra.mxu0 0.0
    %3944 = vmatprep.subr.mxu0 0.0
    %3945 = vmatpush1.msra.mxu0 0.0
    %3946 = vmatprep.subr.mxu0 0.0
    %3947 = vmatpush1.msra.mxu0 0.0
    %3948 = vmatprep.subr.mxu0 0.0
    %3949 = vmatpush1.msra.mxu0 0.0
    %3950 = vmatprep.subr.mxu0 0.0
    %3951 = vmatpush1.msra.mxu0 0.0
    %3952 = vmatprep.subr.mxu0 0.0
    %3953 = vmatpush1.msra.mxu0 0.0
    %3954 = vmatprep.subr.mxu0 0.0
    %3955 = vmatpush1.msra.mxu0 0.0
    %3956 = vmatprep.subr.mxu0 0.0
    %3957 = vmatpush1.msra.mxu0 0.0
    %3958 = vmatprep.subr.mxu0 0.0
    %3959 = vmatpush1.msra.mxu0 0.0
    %3960 = vmatprep.subr.mxu0 0.0
    %3961 = vmatpush1.msra.mxu0 %v3926
    %3962 = vmatprep.subr.mxu0 0.0
    %3963 = vmatpush1.msra.mxu0 %v3924
    %3964 = vmatprep.subr.mxu0 0.0
    %3965 = vmatpush2.msra.mxu0 0.0
    %3966 = vmatprep.subr.mxu0 0.0
    %3967 = vmatpush2.msra.mxu0 0.0
    %3968 = vmatprep.subr.mxu0 0.0
    %3969 = vmatpush2.msra.mxu0 0.0
    %3970 = vmatprep.subr.mxu0 0.0
    %3971 = vmatpush2.msra.mxu0 0.0
    %3972 = vmatprep.subr.mxu0 0.0
    %3973 = vmatpush2.msra.mxu0 0.0
    %3974 = vmatprep.subr.mxu0 0.0
    %3975 = vmatpush2.msra.mxu0 0.0
    %3976 = vmatprep.subr.mxu0 0.0
    %3977 = vmatpush2.msra.mxu0 0.0
    %3978 = vmatprep.subr.mxu0 0.0
    %3979 = vmatpush2.msra.mxu0 0.0
    %3980 = vmatprep.subr.mxu0 0.0
    %3981 = vmatpush2.msra.mxu0 0.0
    %3982 = vmatprep.subr.mxu0 0.0
    %3983 = vmatpush2.msra.mxu0 0.0
    %3984 = vmatprep.subr.mxu0 0.0
    %3985 = vmatpush2.msra.mxu0 0.0
    %3986 = vmatprep.subr.mxu0 0.0
    %3987 = vmatpush2.msra.mxu0 0.0
    %3988 = vmatprep.subr.mxu0 0.0
    %3989 = vmatpush2.msra.mxu0 0.0
    %3990 = vmatprep.subr.mxu0 0.0
    %3991 = vmatpush2.msra.mxu0 0.0
    %3992 = vmatprep.subr.mxu0 0.0
    %3993 = vmatpush2.msra.mxu0 0.0
    %3994 = vmatprep.subr.mxu0 0.0
    %3995 = vmatpush2.msra.mxu0 0.0
    %3996 = vmatprep.mubr.f32.mxu0 0.0
    %3997 = vmatmul.mubr.f32.gmra.mxu0 %v3930
    %v3998 = vpop.f32.mrf.mxu0
    %v3999 = vadd.f32 0.0, %v3998
    %v4000 = vpop.f32.mrf.mxu0
    %4001 = vdwg.mxu0
    %4002 = vrot.lane.b32.xlu0 %v1146, 96
    %v4003 = vpop.permute.xlu0 %4002
    %4004 = vrot.lane.b32.xlu0 %v1148, 96
    %v4005 = vpop.permute.xlu0 %4004
    %v4009 = vsel %vm3026, %v3276, 0
    %4011 = vmatprep.subr.mxu0 0.0
    %4012 = vmatpush1.msra.mxu0 0.0
    %4013 = vmatprep.subr.mxu0 0.0
    %4014 = vmatpush1.msra.mxu0 0.0
    %4015 = vmatprep.subr.mxu0 0.0
    %4016 = vmatpush1.msra.mxu0 0.0
    %4017 = vmatprep.subr.mxu0 0.0
    %4018 = vmatpush1.msra.mxu0 0.0
    %4019 = vmatprep.subr.mxu0 0.0
    %4020 = vmatpush1.msra.mxu0 0.0
    %4021 = vmatprep.subr.mxu0 0.0
    %4022 = vmatpush1.msra.mxu0 0.0
    %4023 = vmatprep.subr.mxu0 0.0
    %4024 = vmatpush1.msra.mxu0 0.0
    %4025 = vmatprep.subr.mxu0 0.0
    %4026 = vmatpush1.msra.mxu0 0.0
    %4027 = vmatprep.subr.mxu0 0.0
    %4028 = vmatpush1.msra.mxu0 0.0
    %4029 = vmatprep.subr.mxu0 0.0
    %4030 = vmatpush1.msra.mxu0 0.0
    %4031 = vmatprep.subr.mxu0 0.0
    %4032 = vmatpush1.msra.mxu0 0.0
    %4033 = vmatprep.subr.mxu0 0.0
    %4034 = vmatpush1.msra.mxu0 0.0
    %4035 = vmatprep.subr.mxu0 0.0
    %4036 = vmatpush1.msra.mxu0 0.0
    %4037 = vmatprep.subr.mxu0 0.0
    %4038 = vmatpush1.msra.mxu0 0.0
    %4039 = vmatprep.subr.mxu0 0.0
    %4040 = vmatpush1.msra.mxu0 %v4005
    %4041 = vmatprep.subr.mxu0 0.0
    %4042 = vmatpush1.msra.mxu0 %v4003
    %4043 = vmatprep.subr.mxu0 0.0
    %4044 = vmatpush2.msra.mxu0 0.0
    %4045 = vmatprep.subr.mxu0 0.0
    %4046 = vmatpush2.msra.mxu0 0.0
    %4047 = vmatprep.subr.mxu0 0.0
    %4048 = vmatpush2.msra.mxu0 0.0
    %4049 = vmatprep.subr.mxu0 0.0
    %4050 = vmatpush2.msra.mxu0 0.0
    %4051 = vmatprep.subr.mxu0 0.0
    %4052 = vmatpush2.msra.mxu0 0.0
    %4053 = vmatprep.subr.mxu0 0.0
    %4054 = vmatpush2.msra.mxu0 0.0
    %4055 = vmatprep.subr.mxu0 0.0
    %4056 = vmatpush2.msra.mxu0 0.0
    %4057 = vmatprep.subr.mxu0 0.0
    %4058 = vmatpush2.msra.mxu0 0.0
    %4059 = vmatprep.subr.mxu0 0.0
    %4060 = vmatpush2.msra.mxu0 0.0
    %4061 = vmatprep.subr.mxu0 0.0
    %4062 = vmatpush2.msra.mxu0 0.0
    %4063 = vmatprep.subr.mxu0 0.0
    %4064 = vmatpush2.msra.mxu0 0.0
    %4065 = vmatprep.subr.mxu0 0.0
    %4066 = vmatpush2.msra.mxu0 0.0
    %4067 = vmatprep.subr.mxu0 0.0
    %4068 = vmatpush2.msra.mxu0 0.0
    %4069 = vmatprep.subr.mxu0 0.0
    %4070 = vmatpush2.msra.mxu0 0.0
    %4071 = vmatprep.subr.mxu0 0.0
    %4072 = vmatpush2.msra.mxu0 0.0
    %4073 = vmatprep.subr.mxu0 0.0
    %4074 = vmatpush2.msra.mxu0 0.0
    %4075 = vmatprep.mubr.f32.mxu0 0.0
    %4076 = vmatmul.mubr.f32.gmra.mxu0 %v4009
    %v4077 = vpop.f32.mrf.mxu0
    %v4078 = vadd.f32 0.0, %v4077
    %v4079 = vpop.f32.mrf.mxu0
    %4080 = vdwg.mxu0
    %4081 = vrot.lane.b32.xlu0 %v1150, 96
    %v4082 = vpop.permute.xlu0 %4081
    %4083 = vrot.lane.b32.xlu0 %v1152, 96
    %v4084 = vpop.permute.xlu0 %4083
    %v4088 = vsel %vm3026, %v3277, 0
    %4090 = vmatprep.subr.mxu0 0.0
    %4091 = vmatpush1.msra.mxu0 0.0
    %4092 = vmatprep.subr.mxu0 0.0
    %4093 = vmatpush1.msra.mxu0 0.0
    %4094 = vmatprep.subr.mxu0 0.0
    %4095 = vmatpush1.msra.mxu0 0.0
    %4096 = vmatprep.subr.mxu0 0.0
    %4097 = vmatpush1.msra.mxu0 0.0
    %4098 = vmatprep.subr.mxu0 0.0
    %4099 = vmatpush1.msra.mxu0 0.0
    %4100 = vmatprep.subr.mxu0 0.0
    %4101 = vmatpush1.msra.mxu0 0.0
    %4102 = vmatprep.subr.mxu0 0.0
    %4103 = vmatpush1.msra.mxu0 0.0
    %4104 = vmatprep.subr.mxu0 0.0
    %4105 = vmatpush1.msra.mxu0 0.0
    %4106 = vmatprep.subr.mxu0 0.0
    %4107 = vmatpush1.msra.mxu0 0.0
    %4108 = vmatprep.subr.mxu0 0.0
    %4109 = vmatpush1.msra.mxu0 0.0
    %4110 = vmatprep.subr.mxu0 0.0
    %4111 = vmatpush1.msra.mxu0 0.0
    %4112 = vmatprep.subr.mxu0 0.0
    %4113 = vmatpush1.msra.mxu0 0.0
    %4114 = vmatprep.subr.mxu0 0.0
    %4115 = vmatpush1.msra.mxu0 0.0
    %4116 = vmatprep.subr.mxu0 0.0
    %4117 = vmatpush1.msra.mxu0 0.0
    %4118 = vmatprep.subr.mxu0 0.0
    %4119 = vmatpush1.msra.mxu0 %v4084
    %4120 = vmatprep.subr.mxu0 0.0
    %4121 = vmatpush1.msra.mxu0 %v4082
    %4122 = vmatprep.subr.mxu0 0.0
    %4123 = vmatpush2.msra.mxu0 0.0
    %4124 = vmatprep.subr.mxu0 0.0
    %4125 = vmatpush2.msra.mxu0 0.0
    %4126 = vmatprep.subr.mxu0 0.0
    %4127 = vmatpush2.msra.mxu0 0.0
    %4128 = vmatprep.subr.mxu0 0.0
    %4129 = vmatpush2.msra.mxu0 0.0
    %4130 = vmatprep.subr.mxu0 0.0
    %4131 = vmatpush2.msra.mxu0 0.0
    %4132 = vmatprep.subr.mxu0 0.0
    %4133 = vmatpush2.msra.mxu0 0.0
    %4134 = vmatprep.subr.mxu0 0.0
    %4135 = vmatpush2.msra.mxu0 0.0
    %4136 = vmatprep.subr.mxu0 0.0
    %4137 = vmatpush2.msra.mxu0 0.0
    %4138 = vmatprep.subr.mxu0 0.0
    %4139 = vmatpush2.msra.mxu0 0.0
    %4140 = vmatprep.subr.mxu0 0.0
    %4141 = vmatpush2.msra.mxu0 0.0
    %4142 = vmatprep.subr.mxu0 0.0
    %4143 = vmatpush2.msra.mxu0 0.0
    %4144 = vmatprep.subr.mxu0 0.0
    %4145 = vmatpush2.msra.mxu0 0.0
    %4146 = vmatprep.subr.mxu0 0.0
    %4147 = vmatpush2.msra.mxu0 0.0
    %4148 = vmatprep.subr.mxu0 0.0
    %4149 = vmatpush2.msra.mxu0 0.0
    %4150 = vmatprep.subr.mxu0 0.0
    %4151 = vmatpush2.msra.mxu0 0.0
    %4152 = vmatprep.subr.mxu0 0.0
    %4153 = vmatpush2.msra.mxu0 0.0
    %4154 = vmatprep.mubr.f32.mxu0 0.0
    %4155 = vmatmul.mubr.f32.gmra.mxu0 %v4088
    %v4156 = vpop.f32.mrf.mxu0
    %v4157 = vadd.f32 0.0, %v4156
    %v4158 = vpop.f32.mrf.mxu0
    %4159 = vdwg.mxu0
    %4160 = vrot.lane.b32.xlu0 %v1154, 96
    %v4161 = vpop.permute.xlu0 %4160
    %4162 = vrot.lane.b32.xlu0 %v1156, 96
    %v4163 = vpop.permute.xlu0 %4162
    %v4167 = vsel %vm3026, %v3278, 0
    %4169 = vmatprep.subr.mxu0 0.0
    %4170 = vmatpush1.msra.mxu0 0.0
    %4171 = vmatprep.subr.mxu0 0.0
    %4172 = vmatpush1.msra.mxu0 0.0
    %4173 = vmatprep.subr.mxu0 0.0
    %4174 = vmatpush1.msra.mxu0 0.0
    %4175 = vmatprep.subr.mxu0 0.0
    %4176 = vmatpush1.msra.mxu0 0.0
    %4177 = vmatprep.subr.mxu0 0.0
    %4178 = vmatpush1.msra.mxu0 0.0
    %4179 = vmatprep.subr.mxu0 0.0
    %4180 = vmatpush1.msra.mxu0 0.0
    %4181 = vmatprep.subr.mxu0 0.0
    %4182 = vmatpush1.msra.mxu0 0.0
    %4183 = vmatprep.subr.mxu0 0.0
    %4184 = vmatpush1.msra.mxu0 0.0
    %4185 = vmatprep.subr.mxu0 0.0
    %4186 = vmatpush1.msra.mxu0 0.0
    %4187 = vmatprep.subr.mxu0 0.0
    %4188 = vmatpush1.msra.mxu0 0.0
    %4189 = vmatprep.subr.mxu0 0.0
    %4190 = vmatpush1.msra.mxu0 0.0
    %4191 = vmatprep.subr.mxu0 0.0
    %4192 = vmatpush1.msra.mxu0 0.0
    %4193 = vmatprep.subr.mxu0 0.0
    %4194 = vmatpush1.msra.mxu0 0.0
    %4195 = vmatprep.subr.mxu0 0.0
    %4196 = vmatpush1.msra.mxu0 0.0
    %4197 = vmatprep.subr.mxu0 0.0
    %4198 = vmatpush1.msra.mxu0 %v4163
    %4199 = vmatprep.subr.mxu0 0.0
    %4200 = vmatpush1.msra.mxu0 %v4161
    %4201 = vmatprep.subr.mxu0 0.0
    %4202 = vmatpush2.msra.mxu0 0.0
    %4203 = vmatprep.subr.mxu0 0.0
    %4204 = vmatpush2.msra.mxu0 0.0
    %4205 = vmatprep.subr.mxu0 0.0
    %4206 = vmatpush2.msra.mxu0 0.0
    %4207 = vmatprep.subr.mxu0 0.0
    %4208 = vmatpush2.msra.mxu0 0.0
    %4209 = vmatprep.subr.mxu0 0.0
    %4210 = vmatpush2.msra.mxu0 0.0
    %4211 = vmatprep.subr.mxu0 0.0
    %4212 = vmatpush2.msra.mxu0 0.0
    %4213 = vmatprep.subr.mxu0 0.0
    %4214 = vmatpush2.msra.mxu0 0.0
    %4215 = vmatprep.subr.mxu0 0.0
    %4216 = vmatpush2.msra.mxu0 0.0
    %4217 = vmatprep.subr.mxu0 0.0
    %4218 = vmatpush2.msra.mxu0 0.0
    %4219 = vmatprep.subr.mxu0 0.0
    %4220 = vmatpush2.msra.mxu0 0.0
    %4221 = vmatprep.subr.mxu0 0.0
    %4222 = vmatpush2.msra.mxu0 0.0
    %4223 = vmatprep.subr.mxu0 0.0
    %4224 = vmatpush2.msra.mxu0 0.0
    %4225 = vmatprep.subr.mxu0 0.0
    %4226 = vmatpush2.msra.mxu0 0.0
    %4227 = vmatprep.subr.mxu0 0.0
    %4228 = vmatpush2.msra.mxu0 0.0
    %4229 = vmatprep.subr.mxu0 0.0
    %4230 = vmatpush2.msra.mxu0 0.0
    %4231 = vmatprep.subr.mxu0 0.0
    %4232 = vmatpush2.msra.mxu0 0.0
    %4233 = vmatprep.mubr.f32.mxu0 0.0
    %4234 = vmatmul.mubr.f32.gmra.mxu0 %v4167
    %v4235 = vpop.f32.mrf.mxu0
    %v4236 = vadd.f32 0.0, %v4235
    %v4237 = vpop.f32.mrf.mxu0
    %4238 = vdwg.mxu0
    %4239 = vrot.lane.b32.xlu0 %v1158, 96
    %v4240 = vpop.permute.xlu0 %4239
    %4241 = vrot.lane.b32.xlu0 %v1160, 96
    %v4242 = vpop.permute.xlu0 %4241
    %v4246 = vsel %vm3026, %v3279, 0
    %4248 = vmatprep.subr.mxu0 0.0
    %4249 = vmatpush1.msra.mxu0 0.0
    %4250 = vmatprep.subr.mxu0 0.0
    %4251 = vmatpush1.msra.mxu0 0.0
    %4252 = vmatprep.subr.mxu0 0.0
    %4253 = vmatpush1.msra.mxu0 0.0
    %4254 = vmatprep.subr.mxu0 0.0
    %4255 = vmatpush1.msra.mxu0 0.0
    %4256 = vmatprep.subr.mxu0 0.0
    %4257 = vmatpush1.msra.mxu0 0.0
    %4258 = vmatprep.subr.mxu0 0.0
    %4259 = vmatpush1.msra.mxu0 0.0
    %4260 = vmatprep.subr.mxu0 0.0
    %4261 = vmatpush1.msra.mxu0 0.0
    %4262 = vmatprep.subr.mxu0 0.0
    %4263 = vmatpush1.msra.mxu0 0.0
    %4264 = vmatprep.subr.mxu0 0.0
    %4265 = vmatpush1.msra.mxu0 0.0
    %4266 = vmatprep.subr.mxu0 0.0
    %4267 = vmatpush1.msra.mxu0 0.0
    %4268 = vmatprep.subr.mxu0 0.0
    %4269 = vmatpush1.msra.mxu0 0.0
    %4270 = vmatprep.subr.mxu0 0.0
    %4271 = vmatpush1.msra.mxu0 0.0
    %4272 = vmatprep.subr.mxu0 0.0
    %4273 = vmatpush1.msra.mxu0 0.0
    %4274 = vmatprep.subr.mxu0 0.0
    %4275 = vmatpush1.msra.mxu0 0.0
    %4276 = vmatprep.subr.mxu0 0.0
    %4277 = vmatpush1.msra.mxu0 %v4242
    %4278 = vmatprep.subr.mxu0 0.0
    %4279 = vmatpush1.msra.mxu0 %v4240
    %4280 = vmatprep.subr.mxu0 0.0
    %4281 = vmatpush2.msra.mxu0 0.0
    %4282 = vmatprep.subr.mxu0 0.0
    %4283 = vmatpush2.msra.mxu0 0.0
    %4284 = vmatprep.subr.mxu0 0.0
    %4285 = vmatpush2.msra.mxu0 0.0
    %4286 = vmatprep.subr.mxu0 0.0
    %4287 = vmatpush2.msra.mxu0 0.0
    %4288 = vmatprep.subr.mxu0 0.0
    %4289 = vmatpush2.msra.mxu0 0.0
    %4290 = vmatprep.subr.mxu0 0.0
    %4291 = vmatpush2.msra.mxu0 0.0
    %4292 = vmatprep.subr.mxu0 0.0
    %4293 = vmatpush2.msra.mxu0 0.0
    %4294 = vmatprep.subr.mxu0 0.0
    %4295 = vmatpush2.msra.mxu0 0.0
    %4296 = vmatprep.subr.mxu0 0.0
    %4297 = vmatpush2.msra.mxu0 0.0
    %4298 = vmatprep.subr.mxu0 0.0
    %4299 = vmatpush2.msra.mxu0 0.0
    %4300 = vmatprep.subr.mxu0 0.0
    %4301 = vmatpush2.msra.mxu0 0.0
    %4302 = vmatprep.subr.mxu0 0.0
    %4303 = vmatpush2.msra.mxu0 0.0
    %4304 = vmatprep.subr.mxu0 0.0
    %4305 = vmatpush2.msra.mxu0 0.0
    %4306 = vmatprep.subr.mxu0 0.0
    %4307 = vmatpush2.msra.mxu0 0.0
    %4308 = vmatprep.subr.mxu0 0.0
    %4309 = vmatpush2.msra.mxu0 0.0
    %4310 = vmatprep.subr.mxu0 0.0
    %4311 = vmatpush2.msra.mxu0 0.0
    %4312 = vmatprep.mubr.f32.mxu0 0.0
    %4313 = vmatmul.mubr.f32.gmra.mxu0 %v4246
    %v4314 = vpop.f32.mrf.mxu0
    %v4315 = vadd.f32 0.0, %v4314
    %v4316 = vpop.f32.mrf.mxu0
    %4317 = vdwg.mxu0
    %4318 = vrot.lane.b32.xlu0 %v1162, 96
    %v4319 = vpop.permute.xlu0 %4318
    %4320 = vrot.lane.b32.xlu0 %v1164, 96
    %v4321 = vpop.permute.xlu0 %4320
    %v4325 = vsel %vm3026, %v3280, 0
    %4327 = vmatprep.subr.mxu0 0.0
    %4328 = vmatpush1.msra.mxu0 0.0
    %4329 = vmatprep.subr.mxu0 0.0
    %4330 = vmatpush1.msra.mxu0 0.0
    %4331 = vmatprep.subr.mxu0 0.0
    %4332 = vmatpush1.msra.mxu0 0.0
    %4333 = vmatprep.subr.mxu0 0.0
    %4334 = vmatpush1.msra.mxu0 0.0
    %4335 = vmatprep.subr.mxu0 0.0
    %4336 = vmatpush1.msra.mxu0 0.0
    %4337 = vmatprep.subr.mxu0 0.0
    %4338 = vmatpush1.msra.mxu0 0.0
    %4339 = vmatprep.subr.mxu0 0.0
    %4340 = vmatpush1.msra.mxu0 0.0
    %4341 = vmatprep.subr.mxu0 0.0
    %4342 = vmatpush1.msra.mxu0 0.0
    %4343 = vmatprep.subr.mxu0 0.0
    %4344 = vmatpush1.msra.mxu0 0.0
    %4345 = vmatprep.subr.mxu0 0.0
    %4346 = vmatpush1.msra.mxu0 0.0
    %4347 = vmatprep.subr.mxu0 0.0
    %4348 = vmatpush1.msra.mxu0 0.0
    %4349 = vmatprep.subr.mxu0 0.0
    %4350 = vmatpush1.msra.mxu0 0.0
    %4351 = vmatprep.subr.mxu0 0.0
    %4352 = vmatpush1.msra.mxu0 0.0
    %4353 = vmatprep.subr.mxu0 0.0
    %4354 = vmatpush1.msra.mxu0 0.0
    %4355 = vmatprep.subr.mxu0 0.0
    %4356 = vmatpush1.msra.mxu0 %v4321
    %4357 = vmatprep.subr.mxu0 0.0
    %4358 = vmatpush1.msra.mxu0 %v4319
    %4359 = vmatprep.subr.mxu0 0.0
    %4360 = vmatpush2.msra.mxu0 0.0
    %4361 = vmatprep.subr.mxu0 0.0
    %4362 = vmatpush2.msra.mxu0 0.0
    %4363 = vmatprep.subr.mxu0 0.0
    %4364 = vmatpush2.msra.mxu0 0.0
    %4365 = vmatprep.subr.mxu0 0.0
    %4366 = vmatpush2.msra.mxu0 0.0
    %4367 = vmatprep.subr.mxu0 0.0
    %4368 = vmatpush2.msra.mxu0 0.0
    %4369 = vmatprep.subr.mxu0 0.0
    %4370 = vmatpush2.msra.mxu0 0.0
    %4371 = vmatprep.subr.mxu0 0.0
    %4372 = vmatpush2.msra.mxu0 0.0
    %4373 = vmatprep.subr.mxu0 0.0
    %4374 = vmatpush2.msra.mxu0 0.0
    %4375 = vmatprep.subr.mxu0 0.0
    %4376 = vmatpush2.msra.mxu0 0.0
    %4377 = vmatprep.subr.mxu0 0.0
    %4378 = vmatpush2.msra.mxu0 0.0
    %4379 = vmatprep.subr.mxu0 0.0
    %4380 = vmatpush2.msra.mxu0 0.0
    %4381 = vmatprep.subr.mxu0 0.0
    %4382 = vmatpush2.msra.mxu0 0.0
    %4383 = vmatprep.subr.mxu0 0.0
    %4384 = vmatpush2.msra.mxu0 0.0
    %4385 = vmatprep.subr.mxu0 0.0
    %4386 = vmatpush2.msra.mxu0 0.0
    %4387 = vmatprep.subr.mxu0 0.0
    %4388 = vmatpush2.msra.mxu0 0.0
    %4389 = vmatprep.subr.mxu0 0.0
    %4390 = vmatpush2.msra.mxu0 0.0
    %4391 = vmatprep.mubr.f32.mxu0 0.0
    %4392 = vmatmul.mubr.f32.gmra.mxu0 %v4325
    %v4393 = vpop.f32.mrf.mxu0
    %v4394 = vadd.f32 0.0, %v4393
    %v4395 = vpop.f32.mrf.mxu0
    %4396 = vdwg.mxu0
    %4397 = vrot.lane.b32.xlu0 %v1166, 96
    %v4398 = vpop.permute.xlu0 %4397
    %4399 = vrot.lane.b32.xlu0 %v1168, 96
    %v4400 = vpop.permute.xlu0 %4399
    %v4404 = vsel %vm3026, %v3281, 0
    %4406 = vmatprep.subr.mxu0 0.0
    %4407 = vmatpush1.msra.mxu0 0.0
    %4408 = vmatprep.subr.mxu0 0.0
    %4409 = vmatpush1.msra.mxu0 0.0
    %4410 = vmatprep.subr.mxu0 0.0
    %4411 = vmatpush1.msra.mxu0 0.0
    %4412 = vmatprep.subr.mxu0 0.0
    %4413 = vmatpush1.msra.mxu0 0.0
    %4414 = vmatprep.subr.mxu0 0.0
    %4415 = vmatpush1.msra.mxu0 0.0
    %4416 = vmatprep.subr.mxu0 0.0
    %4417 = vmatpush1.msra.mxu0 0.0
    %4418 = vmatprep.subr.mxu0 0.0
    %4419 = vmatpush1.msra.mxu0 0.0
    %4420 = vmatprep.subr.mxu0 0.0
    %4421 = vmatpush1.msra.mxu0 0.0
    %4422 = vmatprep.subr.mxu0 0.0
    %4423 = vmatpush1.msra.mxu0 0.0
    %4424 = vmatprep.subr.mxu0 0.0
    %4425 = vmatpush1.msra.mxu0 0.0
    %4426 = vmatprep.subr.mxu0 0.0
    %4427 = vmatpush1.msra.mxu0 0.0
    %4428 = vmatprep.subr.mxu0 0.0
    %4429 = vmatpush1.msra.mxu0 0.0
    %4430 = vmatprep.subr.mxu0 0.0
    %4431 = vmatpush1.msra.mxu0 0.0
    %4432 = vmatprep.subr.mxu0 0.0
    %4433 = vmatpush1.msra.mxu0 0.0
    %4434 = vmatprep.subr.mxu0 0.0
    %4435 = vmatpush1.msra.mxu0 %v4400
    %4436 = vmatprep.subr.mxu0 0.0
    %4437 = vmatpush1.msra.mxu0 %v4398
    %4438 = vmatprep.subr.mxu0 0.0
    %4439 = vmatpush2.msra.mxu0 0.0
    %4440 = vmatprep.subr.mxu0 0.0
    %4441 = vmatpush2.msra.mxu0 0.0
    %4442 = vmatprep.subr.mxu0 0.0
    %4443 = vmatpush2.msra.mxu0 0.0
    %4444 = vmatprep.subr.mxu0 0.0
    %4445 = vmatpush2.msra.mxu0 0.0
    %4446 = vmatprep.subr.mxu0 0.0
    %4447 = vmatpush2.msra.mxu0 0.0
    %4448 = vmatprep.subr.mxu0 0.0
    %4449 = vmatpush2.msra.mxu0 0.0
    %4450 = vmatprep.subr.mxu0 0.0
    %4451 = vmatpush2.msra.mxu0 0.0
    %4452 = vmatprep.subr.mxu0 0.0
    %4453 = vmatpush2.msra.mxu0 0.0
    %4454 = vmatprep.subr.mxu0 0.0
    %4455 = vmatpush2.msra.mxu0 0.0
    %4456 = vmatprep.subr.mxu0 0.0
    %4457 = vmatpush2.msra.mxu0 0.0
    %4458 = vmatprep.subr.mxu0 0.0
    %4459 = vmatpush2.msra.mxu0 0.0
    %4460 = vmatprep.subr.mxu0 0.0
    %4461 = vmatpush2.msra.mxu0 0.0
    %4462 = vmatprep.subr.mxu0 0.0
    %4463 = vmatpush2.msra.mxu0 0.0
    %4464 = vmatprep.subr.mxu0 0.0
    %4465 = vmatpush2.msra.mxu0 0.0
    %4466 = vmatprep.subr.mxu0 0.0
    %4467 = vmatpush2.msra.mxu0 0.0
    %4468 = vmatprep.subr.mxu0 0.0
    %4469 = vmatpush2.msra.mxu0 0.0
    %4470 = vmatprep.mubr.f32.mxu0 0.0
    %4471 = vmatmul.mubr.f32.gmra.mxu0 %v4404
    %v4472 = vpop.f32.mrf.mxu0
    %v4473 = vadd.f32 0.0, %v4472
    %v4474 = vpop.f32.mrf.mxu0
    %4475 = vdwg.mxu0
    %4476 = vrot.lane.b32.xlu0 %v1170, 96
    %v4477 = vpop.permute.xlu0 %4476
    %4478 = vrot.lane.b32.xlu0 %v1172, 96
    %v4479 = vpop.permute.xlu0 %4478
    %v4483 = vsel %vm3026, %v3282, 0
    %4485 = vmatprep.subr.mxu0 0.0
    %4486 = vmatpush1.msra.mxu0 0.0
    %4487 = vmatprep.subr.mxu0 0.0
    %4488 = vmatpush1.msra.mxu0 0.0
    %4489 = vmatprep.subr.mxu0 0.0
    %4490 = vmatpush1.msra.mxu0 0.0
    %4491 = vmatprep.subr.mxu0 0.0
    %4492 = vmatpush1.msra.mxu0 0.0
    %4493 = vmatprep.subr.mxu0 0.0
    %4494 = vmatpush1.msra.mxu0 0.0
    %4495 = vmatprep.subr.mxu0 0.0
    %4496 = vmatpush1.msra.mxu0 0.0
    %4497 = vmatprep.subr.mxu0 0.0
    %4498 = vmatpush1.msra.mxu0 0.0
    %4499 = vmatprep.subr.mxu0 0.0
    %4500 = vmatpush1.msra.mxu0 0.0
    %4501 = vmatprep.subr.mxu0 0.0
    %4502 = vmatpush1.msra.mxu0 0.0
    %4503 = vmatprep.subr.mxu0 0.0
    %4504 = vmatpush1.msra.mxu0 0.0
    %4505 = vmatprep.subr.mxu0 0.0
    %4506 = vmatpush1.msra.mxu0 0.0
    %4507 = vmatprep.subr.mxu0 0.0
    %4508 = vmatpush1.msra.mxu0 0.0
    %4509 = vmatprep.subr.mxu0 0.0
    %4510 = vmatpush1.msra.mxu0 0.0
    %4511 = vmatprep.subr.mxu0 0.0
    %4512 = vmatpush1.msra.mxu0 0.0
    %4513 = vmatprep.subr.mxu0 0.0
    %4514 = vmatpush1.msra.mxu0 %v4479
    %4515 = vmatprep.subr.mxu0 0.0
    %4516 = vmatpush1.msra.mxu0 %v4477
    %4517 = vmatprep.subr.mxu0 0.0
    %4518 = vmatpush2.msra.mxu0 0.0
    %4519 = vmatprep.subr.mxu0 0.0
    %4520 = vmatpush2.msra.mxu0 0.0
    %4521 = vmatprep.subr.mxu0 0.0
    %4522 = vmatpush2.msra.mxu0 0.0
    %4523 = vmatprep.subr.mxu0 0.0
    %4524 = vmatpush2.msra.mxu0 0.0
    %4525 = vmatprep.subr.mxu0 0.0
    %4526 = vmatpush2.msra.mxu0 0.0
    %4527 = vmatprep.subr.mxu0 0.0
    %4528 = vmatpush2.msra.mxu0 0.0
    %4529 = vmatprep.subr.mxu0 0.0
    %4530 = vmatpush2.msra.mxu0 0.0
    %4531 = vmatprep.subr.mxu0 0.0
    %4532 = vmatpush2.msra.mxu0 0.0
    %4533 = vmatprep.subr.mxu0 0.0
    %4534 = vmatpush2.msra.mxu0 0.0
    %4535 = vmatprep.subr.mxu0 0.0
    %4536 = vmatpush2.msra.mxu0 0.0
    %4537 = vmatprep.subr.mxu0 0.0
    %4538 = vmatpush2.msra.mxu0 0.0
    %4539 = vmatprep.subr.mxu0 0.0
    %4540 = vmatpush2.msra.mxu0 0.0
    %4541 = vmatprep.subr.mxu0 0.0
    %4542 = vmatpush2.msra.mxu0 0.0
    %4543 = vmatprep.subr.mxu0 0.0
    %4544 = vmatpush2.msra.mxu0 0.0
    %4545 = vmatprep.subr.mxu0 0.0
    %4546 = vmatpush2.msra.mxu0 0.0
    %4547 = vmatprep.subr.mxu0 0.0
    %4548 = vmatpush2.msra.mxu0 0.0
    %4549 = vmatprep.mubr.f32.mxu0 0.0
    %4550 = vmatmul.mubr.f32.gmra.mxu0 %v4483
    %v4551 = vpop.f32.mrf.mxu0
    %v4552 = vadd.f32 0.0, %v4551
    %v4553 = vpop.f32.mrf.mxu0
    %4554 = vdwg.mxu0
    %4555 = vrot.lane.b32.xlu0 %v1035, 96
    %v4556 = vpop.permute.xlu0 %4555
    %4557 = vrot.lane.b32.xlu0 %v1047, 96
    %v4558 = vpop.permute.xlu0 %4557
    %v4562 = vsel %vm3026, %v3283, 0
    %4564 = vmatprep.subr.mxu0 0.0
    %4565 = vmatpush1.msra.mxu0 0.0
    %4566 = vmatprep.subr.mxu0 0.0
    %4567 = vmatpush1.msra.mxu0 0.0
    %4568 = vmatprep.subr.mxu0 0.0
    %4569 = vmatpush1.msra.mxu0 0.0
    %4570 = vmatprep.subr.mxu0 0.0
    %4571 = vmatpush1.msra.mxu0 0.0
    %4572 = vmatprep.subr.mxu0 0.0
    %4573 = vmatpush1.msra.mxu0 0.0
    %4574 = vmatprep.subr.mxu0 0.0
    %4575 = vmatpush1.msra.mxu0 0.0
    %4576 = vmatprep.subr.mxu0 0.0
    %4577 = vmatpush1.msra.mxu0 0.0
    %4578 = vmatprep.subr.mxu0 0.0
    %4579 = vmatpush1.msra.mxu0 0.0
    %4580 = vmatprep.subr.mxu0 0.0
    %4581 = vmatpush1.msra.mxu0 0.0
    %4582 = vmatprep.subr.mxu0 0.0
    %4583 = vmatpush1.msra.mxu0 0.0
    %4584 = vmatprep.subr.mxu0 0.0
    %4585 = vmatpush1.msra.mxu0 0.0
    %4586 = vmatprep.subr.mxu0 0.0
    %4587 = vmatpush1.msra.mxu0 0.0
    %4588 = vmatprep.subr.mxu0 0.0
    %4589 = vmatpush1.msra.mxu0 0.0
    %4590 = vmatprep.subr.mxu0 0.0
    %4591 = vmatpush1.msra.mxu0 0.0
    %4592 = vmatprep.subr.mxu0 0.0
    %4593 = vmatpush1.msra.mxu0 %v4558
    %4594 = vmatprep.subr.mxu0 0.0
    %4595 = vmatpush1.msra.mxu0 %v4556
    %4596 = vmatprep.subr.mxu0 0.0
    %4597 = vmatpush2.msra.mxu0 0.0
    %4598 = vmatprep.subr.mxu0 0.0
    %4599 = vmatpush2.msra.mxu0 0.0
    %4600 = vmatprep.subr.mxu0 0.0
    %4601 = vmatpush2.msra.mxu0 0.0
    %4602 = vmatprep.subr.mxu0 0.0
    %4603 = vmatpush2.msra.mxu0 0.0
    %4604 = vmatprep.subr.mxu0 0.0
    %4605 = vmatpush2.msra.mxu0 0.0
    %4606 = vmatprep.subr.mxu0 0.0
    %4607 = vmatpush2.msra.mxu0 0.0
    %4608 = vmatprep.subr.mxu0 0.0
    %4609 = vmatpush2.msra.mxu0 0.0
    %4610 = vmatprep.subr.mxu0 0.0
    %4611 = vmatpush2.msra.mxu0 0.0
    %4612 = vmatprep.subr.mxu0 0.0
    %4613 = vmatpush2.msra.mxu0 0.0
    %4614 = vmatprep.subr.mxu0 0.0
    %4615 = vmatpush2.msra.mxu0 0.0
    %4616 = vmatprep.subr.mxu0 0.0
    %4617 = vmatpush2.msra.mxu0 0.0
    %4618 = vmatprep.subr.mxu0 0.0
    %4619 = vmatpush2.msra.mxu0 0.0
    %4620 = vmatprep.subr.mxu0 0.0
    %4621 = vmatpush2.msra.mxu0 0.0
    %4622 = vmatprep.subr.mxu0 0.0
    %4623 = vmatpush2.msra.mxu0 0.0
    %4624 = vmatprep.subr.mxu0 0.0
    %4625 = vmatpush2.msra.mxu0 0.0
    %4626 = vmatprep.subr.mxu0 0.0
    %4627 = vmatpush2.msra.mxu0 0.0
    %4628 = vmatprep.mubr.f32.mxu0 0.0
    %4629 = vmatmul.mubr.f32.gmra.mxu0 %v4562
    %v4630 = vpop.f32.mrf.mxu0
    %v4631 = vadd.f32 0.0, %v4630
    %v4632 = vpop.f32.mrf.mxu0
    %4633 = vdwg.mxu0
    %4634 = vrot.lane.b32.xlu0 %v1041, 96
    %v4635 = vpop.permute.xlu0 %4634
    %4636 = vrot.lane.b32.xlu0 %v1053, 96
    %v4637 = vpop.permute.xlu0 %4636
    %v4641 = vsel %vm3026, %v3284, 0
    %4643 = vmatprep.subr.mxu0 0.0
    %4644 = vmatpush1.msra.mxu0 0.0
    %4645 = vmatprep.subr.mxu0 0.0
    %4646 = vmatpush1.msra.mxu0 0.0
    %4647 = vmatprep.subr.mxu0 0.0
    %4648 = vmatpush1.msra.mxu0 0.0
    %4649 = vmatprep.subr.mxu0 0.0
    %4650 = vmatpush1.msra.mxu0 0.0
    %4651 = vmatprep.subr.mxu0 0.0
    %4652 = vmatpush1.msra.mxu0 0.0
    %4653 = vmatprep.subr.mxu0 0.0
    %4654 = vmatpush1.msra.mxu0 0.0
    %4655 = vmatprep.subr.mxu0 0.0
    %4656 = vmatpush1.msra.mxu0 0.0
    %4657 = vmatprep.subr.mxu0 0.0
    %4658 = vmatpush1.msra.mxu0 0.0
    %4659 = vmatprep.subr.mxu0 0.0
    %4660 = vmatpush1.msra.mxu0 0.0
    %4661 = vmatprep.subr.mxu0 0.0
    %4662 = vmatpush1.msra.mxu0 0.0
    %4663 = vmatprep.subr.mxu0 0.0
    %4664 = vmatpush1.msra.mxu0 0.0
    %4665 = vmatprep.subr.mxu0 0.0
    %4666 = vmatpush1.msra.mxu0 0.0
    %4667 = vmatprep.subr.mxu0 0.0
    %4668 = vmatpush1.msra.mxu0 0.0
    %4669 = vmatprep.subr.mxu0 0.0
    %4670 = vmatpush1.msra.mxu0 0.0
    %4671 = vmatprep.subr.mxu0 0.0
    %4672 = vmatpush1.msra.mxu0 %v4637
    %4673 = vmatprep.subr.mxu0 0.0
    %4674 = vmatpush1.msra.mxu0 %v4635
    %4675 = vmatprep.subr.mxu0 0.0
    %4676 = vmatpush2.msra.mxu0 0.0
    %4677 = vmatprep.subr.mxu0 0.0
    %4678 = vmatpush2.msra.mxu0 0.0
    %4679 = vmatprep.subr.mxu0 0.0
    %4680 = vmatpush2.msra.mxu0 0.0
    %4681 = vmatprep.subr.mxu0 0.0
    %4682 = vmatpush2.msra.mxu0 0.0
    %4683 = vmatprep.subr.mxu0 0.0
    %4684 = vmatpush2.msra.mxu0 0.0
    %4685 = vmatprep.subr.mxu0 0.0
    %4686 = vmatpush2.msra.mxu0 0.0
    %4687 = vmatprep.subr.mxu0 0.0
    %4688 = vmatpush2.msra.mxu0 0.0
    %4689 = vmatprep.subr.mxu0 0.0
    %4690 = vmatpush2.msra.mxu0 0.0
    %4691 = vmatprep.subr.mxu0 0.0
    %4692 = vmatpush2.msra.mxu0 0.0
    %4693 = vmatprep.subr.mxu0 0.0
    %4694 = vmatpush2.msra.mxu0 0.0
    %4695 = vmatprep.subr.mxu0 0.0
    %4696 = vmatpush2.msra.mxu0 0.0
    %4697 = vmatprep.subr.mxu0 0.0
    %4698 = vmatpush2.msra.mxu0 0.0
    %4699 = vmatprep.subr.mxu0 0.0
    %4700 = vmatpush2.msra.mxu0 0.0
    %4701 = vmatprep.subr.mxu0 0.0
    %4702 = vmatpush2.msra.mxu0 0.0
    %4703 = vmatprep.subr.mxu0 0.0
    %4704 = vmatpush2.msra.mxu0 0.0
    %4705 = vmatprep.subr.mxu0 0.0
    %4706 = vmatpush2.msra.mxu0 0.0
    %4707 = vmatprep.mubr.f32.mxu0 0.0
    %4708 = vmatmul.mubr.f32.gmra.mxu0 %v4641
    %v4709 = vpop.f32.mrf.mxu0
    %v4710 = vadd.f32 0.0, %v4709
    %v4711 = vpop.f32.mrf.mxu0
    %4712 = vdwg.mxu0
    %4713 = vrot.lane.b32.xlu0 %v1178, 96
    %v4714 = vpop.permute.xlu0 %4713
    %4715 = vrot.lane.b32.xlu0 %v1180, 96
    %v4716 = vpop.permute.xlu0 %4715
    %v4720 = vsel %vm3026, %v3285, 0
    %4722 = vmatprep.subr.mxu0 0.0
    %4723 = vmatpush1.msra.mxu0 0.0
    %4724 = vmatprep.subr.mxu0 0.0
    %4725 = vmatpush1.msra.mxu0 0.0
    %4726 = vmatprep.subr.mxu0 0.0
    %4727 = vmatpush1.msra.mxu0 0.0
    %4728 = vmatprep.subr.mxu0 0.0
    %4729 = vmatpush1.msra.mxu0 0.0
    %4730 = vmatprep.subr.mxu0 0.0
    %4731 = vmatpush1.msra.mxu0 0.0
    %4732 = vmatprep.subr.mxu0 0.0
    %4733 = vmatpush1.msra.mxu0 0.0
    %4734 = vmatprep.subr.mxu0 0.0
    %4735 = vmatpush1.msra.mxu0 0.0
    %4736 = vmatprep.subr.mxu0 0.0
    %4737 = vmatpush1.msra.mxu0 0.0
    %4738 = vmatprep.subr.mxu0 0.0
    %4739 = vmatpush1.msra.mxu0 0.0
    %4740 = vmatprep.subr.mxu0 0.0
    %4741 = vmatpush1.msra.mxu0 0.0
    %4742 = vmatprep.subr.mxu0 0.0
    %4743 = vmatpush1.msra.mxu0 0.0
    %4744 = vmatprep.subr.mxu0 0.0
    %4745 = vmatpush1.msra.mxu0 0.0
    %4746 = vmatprep.subr.mxu0 0.0
    %4747 = vmatpush1.msra.mxu0 0.0
    %4748 = vmatprep.subr.mxu0 0.0
    %4749 = vmatpush1.msra.mxu0 0.0
    %4750 = vmatprep.subr.mxu0 0.0
    %4751 = vmatpush1.msra.mxu0 %v4716
    %4752 = vmatprep.subr.mxu0 0.0
    %4753 = vmatpush1.msra.mxu0 %v4714
    %4754 = vmatprep.subr.mxu0 0.0
    %4755 = vmatpush2.msra.mxu0 0.0
    %4756 = vmatprep.subr.mxu0 0.0
    %4757 = vmatpush2.msra.mxu0 0.0
    %4758 = vmatprep.subr.mxu0 0.0
    %4759 = vmatpush2.msra.mxu0 0.0
    %4760 = vmatprep.subr.mxu0 0.0
    %4761 = vmatpush2.msra.mxu0 0.0
    %4762 = vmatprep.subr.mxu0 0.0
    %4763 = vmatpush2.msra.mxu0 0.0
    %4764 = vmatprep.subr.mxu0 0.0
    %4765 = vmatpush2.msra.mxu0 0.0
    %4766 = vmatprep.subr.mxu0 0.0
    %4767 = vmatpush2.msra.mxu0 0.0
    %4768 = vmatprep.subr.mxu0 0.0
    %4769 = vmatpush2.msra.mxu0 0.0
    %4770 = vmatprep.subr.mxu0 0.0
    %4771 = vmatpush2.msra.mxu0 0.0
    %4772 = vmatprep.subr.mxu0 0.0
    %4773 = vmatpush2.msra.mxu0 0.0
    %4774 = vmatprep.subr.mxu0 0.0
    %4775 = vmatpush2.msra.mxu0 0.0
    %4776 = vmatprep.subr.mxu0 0.0
    %4777 = vmatpush2.msra.mxu0 0.0
    %4778 = vmatprep.subr.mxu0 0.0
    %4779 = vmatpush2.msra.mxu0 0.0
    %4780 = vmatprep.subr.mxu0 0.0
    %4781 = vmatpush2.msra.mxu0 0.0
    %4782 = vmatprep.subr.mxu0 0.0
    %4783 = vmatpush2.msra.mxu0 0.0
    %4784 = vmatprep.subr.mxu0 0.0
    %4785 = vmatpush2.msra.mxu0 0.0
    %4786 = vmatprep.mubr.f32.mxu0 0.0
    %4787 = vmatmul.mubr.f32.gmra.mxu0 %v4720
    %v4788 = vpop.f32.mrf.mxu0
    %v4789 = vadd.f32 0.0, %v4788
    %v4790 = vpop.f32.mrf.mxu0
    %4791 = vdwg.mxu0
    %4792 = vrot.lane.b32.xlu0 %v1182, 96
    %v4793 = vpop.permute.xlu0 %4792
    %4794 = vrot.lane.b32.xlu0 %v1184, 96
    %v4795 = vpop.permute.xlu0 %4794
    %v4799 = vsel %vm3026, %v3286, 0
    %4801 = vmatprep.subr.mxu0 0.0
    %4802 = vmatpush1.msra.mxu0 0.0
    %4803 = vmatprep.subr.mxu0 0.0
    %4804 = vmatpush1.msra.mxu0 0.0
    %4805 = vmatprep.subr.mxu0 0.0
    %4806 = vmatpush1.msra.mxu0 0.0
    %4807 = vmatprep.subr.mxu0 0.0
    %4808 = vmatpush1.msra.mxu0 0.0
    %4809 = vmatprep.subr.mxu0 0.0
    %4810 = vmatpush1.msra.mxu0 0.0
    %4811 = vmatprep.subr.mxu0 0.0
    %4812 = vmatpush1.msra.mxu0 0.0
    %4813 = vmatprep.subr.mxu0 0.0
    %4814 = vmatpush1.msra.mxu0 0.0
    %4815 = vmatprep.subr.mxu0 0.0
    %4816 = vmatpush1.msra.mxu0 0.0
    %4817 = vmatprep.subr.mxu0 0.0
    %4818 = vmatpush1.msra.mxu0 0.0
    %4819 = vmatprep.subr.mxu0 0.0
    %4820 = vmatpush1.msra.mxu0 0.0
    %4821 = vmatprep.subr.mxu0 0.0
    %4822 = vmatpush1.msra.mxu0 0.0
    %4823 = vmatprep.subr.mxu0 0.0
    %4824 = vmatpush1.msra.mxu0 0.0
    %4825 = vmatprep.subr.mxu0 0.0
    %4826 = vmatpush1.msra.mxu0 0.0
    %4827 = vmatprep.subr.mxu0 0.0
    %4828 = vmatpush1.msra.mxu0 0.0
    %4829 = vmatprep.subr.mxu0 0.0
    %4830 = vmatpush1.msra.mxu0 %v4795
    %4831 = vmatprep.subr.mxu0 0.0
    %4832 = vmatpush1.msra.mxu0 %v4793
    %4833 = vmatprep.subr.mxu0 0.0
    %4834 = vmatpush2.msra.mxu0 0.0
    %4835 = vmatprep.subr.mxu0 0.0
    %4836 = vmatpush2.msra.mxu0 0.0
    %4837 = vmatprep.subr.mxu0 0.0
    %4838 = vmatpush2.msra.mxu0 0.0
    %4839 = vmatprep.subr.mxu0 0.0
    %4840 = vmatpush2.msra.mxu0 0.0
    %4841 = vmatprep.subr.mxu0 0.0
    %4842 = vmatpush2.msra.mxu0 0.0
    %4843 = vmatprep.subr.mxu0 0.0
    %4844 = vmatpush2.msra.mxu0 0.0
    %4845 = vmatprep.subr.mxu0 0.0
    %4846 = vmatpush2.msra.mxu0 0.0
    %4847 = vmatprep.subr.mxu0 0.0
    %4848 = vmatpush2.msra.mxu0 0.0
    %4849 = vmatprep.subr.mxu0 0.0
    %4850 = vmatpush2.msra.mxu0 0.0
    %4851 = vmatprep.subr.mxu0 0.0
    %4852 = vmatpush2.msra.mxu0 0.0
    %4853 = vmatprep.subr.mxu0 0.0
    %4854 = vmatpush2.msra.mxu0 0.0
    %4855 = vmatprep.subr.mxu0 0.0
    %4856 = vmatpush2.msra.mxu0 0.0
    %4857 = vmatprep.subr.mxu0 0.0
    %4858 = vmatpush2.msra.mxu0 0.0
    %4859 = vmatprep.subr.mxu0 0.0
    %4860 = vmatpush2.msra.mxu0 0.0
    %4861 = vmatprep.subr.mxu0 0.0
    %4862 = vmatpush2.msra.mxu0 0.0
    %4863 = vmatprep.subr.mxu0 0.0
    %4864 = vmatpush2.msra.mxu0 0.0
    %4865 = vmatprep.mubr.f32.mxu0 0.0
    %4866 = vmatmul.mubr.f32.gmra.mxu0 %v4799
    %v4867 = vpop.f32.mrf.mxu0
    %v4868 = vadd.f32 0.0, %v4867
    %v4869 = vpop.f32.mrf.mxu0
    %4870 = vdwg.mxu0
    %4871 = vrot.lane.b32.xlu0 %v1186, 96
    %v4872 = vpop.permute.xlu0 %4871
    %4873 = vrot.lane.b32.xlu0 %v1188, 96
    %v4874 = vpop.permute.xlu0 %4873
    %v4878 = vsel %vm3026, %v3287, 0
    %4880 = vmatprep.subr.mxu0 0.0
    %4881 = vmatpush1.msra.mxu0 0.0
    %4882 = vmatprep.subr.mxu0 0.0
    %4883 = vmatpush1.msra.mxu0 0.0
    %4884 = vmatprep.subr.mxu0 0.0
    %4885 = vmatpush1.msra.mxu0 0.0
    %4886 = vmatprep.subr.mxu0 0.0
    %4887 = vmatpush1.msra.mxu0 0.0
    %4888 = vmatprep.subr.mxu0 0.0
    %4889 = vmatpush1.msra.mxu0 0.0
    %4890 = vmatprep.subr.mxu0 0.0
    %4891 = vmatpush1.msra.mxu0 0.0
    %4892 = vmatprep.subr.mxu0 0.0
    %4893 = vmatpush1.msra.mxu0 0.0
    %4894 = vmatprep.subr.mxu0 0.0
    %4895 = vmatpush1.msra.mxu0 0.0
    %4896 = vmatprep.subr.mxu0 0.0
    %4897 = vmatpush1.msra.mxu0 0.0
    %4898 = vmatprep.subr.mxu0 0.0
    %4899 = vmatpush1.msra.mxu0 0.0
    %4900 = vmatprep.subr.mxu0 0.0
    %4901 = vmatpush1.msra.mxu0 0.0
    %4902 = vmatprep.subr.mxu0 0.0
    %4903 = vmatpush1.msra.mxu0 0.0
    %4904 = vmatprep.subr.mxu0 0.0
    %4905 = vmatpush1.msra.mxu0 0.0
    %4906 = vmatprep.subr.mxu0 0.0
    %4907 = vmatpush1.msra.mxu0 0.0
    %4908 = vmatprep.subr.mxu0 0.0
    %4909 = vmatpush1.msra.mxu0 %v4874
    %4910 = vmatprep.subr.mxu0 0.0
    %4911 = vmatpush1.msra.mxu0 %v4872
    %4912 = vmatprep.subr.mxu0 0.0
    %4913 = vmatpush2.msra.mxu0 0.0
    %4914 = vmatprep.subr.mxu0 0.0
    %4915 = vmatpush2.msra.mxu0 0.0
    %4916 = vmatprep.subr.mxu0 0.0
    %4917 = vmatpush2.msra.mxu0 0.0
    %4918 = vmatprep.subr.mxu0 0.0
    %4919 = vmatpush2.msra.mxu0 0.0
    %4920 = vmatprep.subr.mxu0 0.0
    %4921 = vmatpush2.msra.mxu0 0.0
    %4922 = vmatprep.subr.mxu0 0.0
    %4923 = vmatpush2.msra.mxu0 0.0
    %4924 = vmatprep.subr.mxu0 0.0
    %4925 = vmatpush2.msra.mxu0 0.0
    %4926 = vmatprep.subr.mxu0 0.0
    %4927 = vmatpush2.msra.mxu0 0.0
    %4928 = vmatprep.subr.mxu0 0.0
    %4929 = vmatpush2.msra.mxu0 0.0
    %4930 = vmatprep.subr.mxu0 0.0
    %4931 = vmatpush2.msra.mxu0 0.0
    %4932 = vmatprep.subr.mxu0 0.0
    %4933 = vmatpush2.msra.mxu0 0.0
    %4934 = vmatprep.subr.mxu0 0.0
    %4935 = vmatpush2.msra.mxu0 0.0
    %4936 = vmatprep.subr.mxu0 0.0
    %4937 = vmatpush2.msra.mxu0 0.0
    %4938 = vmatprep.subr.mxu0 0.0
    %4939 = vmatpush2.msra.mxu0 0.0
    %4940 = vmatprep.subr.mxu0 0.0
    %4941 = vmatpush2.msra.mxu0 0.0
    %4942 = vmatprep.subr.mxu0 0.0
    %4943 = vmatpush2.msra.mxu0 0.0
    %4944 = vmatprep.mubr.f32.mxu0 0.0
    %4945 = vmatmul.mubr.f32.gmra.mxu0 %v4878
    %v4946 = vpop.f32.mrf.mxu0
    %v4947 = vadd.f32 0.0, %v4946
    %v4948 = vpop.f32.mrf.mxu0
    %4949 = vdwg.mxu0
    %4950 = vrot.lane.b32.xlu0 %v1190, 96
    %v4951 = vpop.permute.xlu0 %4950
    %4952 = vrot.lane.b32.xlu0 %v1192, 96
    %v4953 = vpop.permute.xlu0 %4952
    %v4957 = vsel %vm3026, %v3288, 0
    %4959 = vmatprep.subr.mxu0 0.0
    %4960 = vmatpush1.msra.mxu0 0.0
    %4961 = vmatprep.subr.mxu0 0.0
    %4962 = vmatpush1.msra.mxu0 0.0
    %4963 = vmatprep.subr.mxu0 0.0
    %4964 = vmatpush1.msra.mxu0 0.0
    %4965 = vmatprep.subr.mxu0 0.0
    %4966 = vmatpush1.msra.mxu0 0.0
    %4967 = vmatprep.subr.mxu0 0.0
    %4968 = vmatpush1.msra.mxu0 0.0
    %4969 = vmatprep.subr.mxu0 0.0
    %4970 = vmatpush1.msra.mxu0 0.0
    %4971 = vmatprep.subr.mxu0 0.0
    %4972 = vmatpush1.msra.mxu0 0.0
    %4973 = vmatprep.subr.mxu0 0.0
    %4974 = vmatpush1.msra.mxu0 0.0
    %4975 = vmatprep.subr.mxu0 0.0
    %4976 = vmatpush1.msra.mxu0 0.0
    %4977 = vmatprep.subr.mxu0 0.0
    %4978 = vmatpush1.msra.mxu0 0.0
    %4979 = vmatprep.subr.mxu0 0.0
    %4980 = vmatpush1.msra.mxu0 0.0
    %4981 = vmatprep.subr.mxu0 0.0
    %4982 = vmatpush1.msra.mxu0 0.0
    %4983 = vmatprep.subr.mxu0 0.0
    %4984 = vmatpush1.msra.mxu0 0.0
    %4985 = vmatprep.subr.mxu0 0.0
    %4986 = vmatpush1.msra.mxu0 0.0
    %4987 = vmatprep.subr.mxu0 0.0
    %4988 = vmatpush1.msra.mxu0 %v4953
    %4989 = vmatprep.subr.mxu0 0.0
    %4990 = vmatpush1.msra.mxu0 %v4951
    %4991 = vmatprep.subr.mxu0 0.0
    %4992 = vmatpush2.msra.mxu0 0.0
    %4993 = vmatprep.subr.mxu0 0.0
    %4994 = vmatpush2.msra.mxu0 0.0
    %4995 = vmatprep.subr.mxu0 0.0
    %4996 = vmatpush2.msra.mxu0 0.0
    %4997 = vmatprep.subr.mxu0 0.0
    %4998 = vmatpush2.msra.mxu0 0.0
    %4999 = vmatprep.subr.mxu0 0.0
    %5000 = vmatpush2.msra.mxu0 0.0
    %5001 = vmatprep.subr.mxu0 0.0
    %5002 = vmatpush2.msra.mxu0 0.0
    %5003 = vmatprep.subr.mxu0 0.0
    %5004 = vmatpush2.msra.mxu0 0.0
    %5005 = vmatprep.subr.mxu0 0.0
    %5006 = vmatpush2.msra.mxu0 0.0
    %5007 = vmatprep.subr.mxu0 0.0
    %5008 = vmatpush2.msra.mxu0 0.0
    %5009 = vmatprep.subr.mxu0 0.0
    %5010 = vmatpush2.msra.mxu0 0.0
    %5011 = vmatprep.subr.mxu0 0.0
    %5012 = vmatpush2.msra.mxu0 0.0
    %5013 = vmatprep.subr.mxu0 0.0
    %5014 = vmatpush2.msra.mxu0 0.0
    %5015 = vmatprep.subr.mxu0 0.0
    %5016 = vmatpush2.msra.mxu0 0.0
    %5017 = vmatprep.subr.mxu0 0.0
    %5018 = vmatpush2.msra.mxu0 0.0
    %5019 = vmatprep.subr.mxu0 0.0
    %5020 = vmatpush2.msra.mxu0 0.0
    %5021 = vmatprep.subr.mxu0 0.0
    %5022 = vmatpush2.msra.mxu0 0.0
    %5023 = vmatprep.mubr.f32.mxu0 0.0
    %5024 = vmatmul.mubr.f32.gmra.mxu0 %v4957
    %v5025 = vpop.f32.mrf.mxu0
    %v5026 = vadd.f32 0.0, %v5025
    %v5027 = vpop.f32.mrf.mxu0
    %5028 = vdwg.mxu0
    %5029 = vrot.lane.b32.xlu0 %v1194, 96
    %v5030 = vpop.permute.xlu0 %5029
    %5031 = vrot.lane.b32.xlu0 %v1196, 96
    %v5032 = vpop.permute.xlu0 %5031
    %v5036 = vsel %vm3026, %v3289, 0
    %5038 = vmatprep.subr.mxu0 0.0
    %5039 = vmatpush1.msra.mxu0 0.0
    %5040 = vmatprep.subr.mxu0 0.0
    %5041 = vmatpush1.msra.mxu0 0.0
    %5042 = vmatprep.subr.mxu0 0.0
    %5043 = vmatpush1.msra.mxu0 0.0
    %5044 = vmatprep.subr.mxu0 0.0
    %5045 = vmatpush1.msra.mxu0 0.0
    %5046 = vmatprep.subr.mxu0 0.0
    %5047 = vmatpush1.msra.mxu0 0.0
    %5048 = vmatprep.subr.mxu0 0.0
    %5049 = vmatpush1.msra.mxu0 0.0
    %5050 = vmatprep.subr.mxu0 0.0
    %5051 = vmatpush1.msra.mxu0 0.0
    %5052 = vmatprep.subr.mxu0 0.0
    %5053 = vmatpush1.msra.mxu0 0.0
    %5054 = vmatprep.subr.mxu0 0.0
    %5055 = vmatpush1.msra.mxu0 0.0
    %5056 = vmatprep.subr.mxu0 0.0
    %5057 = vmatpush1.msra.mxu0 0.0
    %5058 = vmatprep.subr.mxu0 0.0
    %5059 = vmatpush1.msra.mxu0 0.0
    %5060 = vmatprep.subr.mxu0 0.0
    %5061 = vmatpush1.msra.mxu0 0.0
    %5062 = vmatprep.subr.mxu0 0.0
    %5063 = vmatpush1.msra.mxu0 0.0
    %5064 = vmatprep.subr.mxu0 0.0
    %5065 = vmatpush1.msra.mxu0 0.0
    %5066 = vmatprep.subr.mxu0 0.0
    %5067 = vmatpush1.msra.mxu0 %v5032
    %5068 = vmatprep.subr.mxu0 0.0
    %5069 = vmatpush1.msra.mxu0 %v5030
    %5070 = vmatprep.subr.mxu0 0.0
    %5071 = vmatpush2.msra.mxu0 0.0
    %5072 = vmatprep.subr.mxu0 0.0
    %5073 = vmatpush2.msra.mxu0 0.0
    %5074 = vmatprep.subr.mxu0 0.0
    %5075 = vmatpush2.msra.mxu0 0.0
    %5076 = vmatprep.subr.mxu0 0.0
    %5077 = vmatpush2.msra.mxu0 0.0
    %5078 = vmatprep.subr.mxu0 0.0
    %5079 = vmatpush2.msra.mxu0 0.0
    %5080 = vmatprep.subr.mxu0 0.0
    %5081 = vmatpush2.msra.mxu0 0.0
    %5082 = vmatprep.subr.mxu0 0.0
    %5083 = vmatpush2.msra.mxu0 0.0
    %5084 = vmatprep.subr.mxu0 0.0
    %5085 = vmatpush2.msra.mxu0 0.0
    %5086 = vmatprep.subr.mxu0 0.0
    %5087 = vmatpush2.msra.mxu0 0.0
    %5088 = vmatprep.subr.mxu0 0.0
    %5089 = vmatpush2.msra.mxu0 0.0
    %5090 = vmatprep.subr.mxu0 0.0
    %5091 = vmatpush2.msra.mxu0 0.0
    %5092 = vmatprep.subr.mxu0 0.0
    %5093 = vmatpush2.msra.mxu0 0.0
    %5094 = vmatprep.subr.mxu0 0.0
    %5095 = vmatpush2.msra.mxu0 0.0
    %5096 = vmatprep.subr.mxu0 0.0
    %5097 = vmatpush2.msra.mxu0 0.0
    %5098 = vmatprep.subr.mxu0 0.0
    %5099 = vmatpush2.msra.mxu0 0.0
    %5100 = vmatprep.subr.mxu0 0.0
    %5101 = vmatpush2.msra.mxu0 0.0
    %5102 = vmatprep.mubr.f32.mxu0 0.0
    %5103 = vmatmul.mubr.f32.gmra.mxu0 %v5036
    %v5104 = vpop.f32.mrf.mxu0
    %v5105 = vadd.f32 0.0, %v5104
    %v5106 = vpop.f32.mrf.mxu0
    %5107 = vdwg.mxu0
    %5108 = vrot.lane.b32.xlu0 %v1198, 96
    %v5109 = vpop.permute.xlu0 %5108
    %5110 = vrot.lane.b32.xlu0 %v1200, 96
    %v5111 = vpop.permute.xlu0 %5110
    %v5115 = vsel %vm3026, %v3290, 0
    %5117 = vmatprep.subr.mxu0 0.0
    %5118 = vmatpush1.msra.mxu0 0.0
    %5119 = vmatprep.subr.mxu0 0.0
    %5120 = vmatpush1.msra.mxu0 0.0
    %5121 = vmatprep.subr.mxu0 0.0
    %5122 = vmatpush1.msra.mxu0 0.0
    %5123 = vmatprep.subr.mxu0 0.0
    %5124 = vmatpush1.msra.mxu0 0.0
    %5125 = vmatprep.subr.mxu0 0.0
    %5126 = vmatpush1.msra.mxu0 0.0
    %5127 = vmatprep.subr.mxu0 0.0
    %5128 = vmatpush1.msra.mxu0 0.0
    %5129 = vmatprep.subr.mxu0 0.0
    %5130 = vmatpush1.msra.mxu0 0.0
    %5131 = vmatprep.subr.mxu0 0.0
    %5132 = vmatpush1.msra.mxu0 0.0
    %5133 = vmatprep.subr.mxu0 0.0
    %5134 = vmatpush1.msra.mxu0 0.0
    %5135 = vmatprep.subr.mxu0 0.0
    %5136 = vmatpush1.msra.mxu0 0.0
    %5137 = vmatprep.subr.mxu0 0.0
    %5138 = vmatpush1.msra.mxu0 0.0
    %5139 = vmatprep.subr.mxu0 0.0
    %5140 = vmatpush1.msra.mxu0 0.0
    %5141 = vmatprep.subr.mxu0 0.0
    %5142 = vmatpush1.msra.mxu0 0.0
    %5143 = vmatprep.subr.mxu0 0.0
    %5144 = vmatpush1.msra.mxu0 0.0
    %5145 = vmatprep.subr.mxu0 0.0
    %5146 = vmatpush1.msra.mxu0 %v5111
    %5147 = vmatprep.subr.mxu0 0.0
    %5148 = vmatpush1.msra.mxu0 %v5109
    %5149 = vmatprep.subr.mxu0 0.0
    %5150 = vmatpush2.msra.mxu0 0.0
    %5151 = vmatprep.subr.mxu0 0.0
    %5152 = vmatpush2.msra.mxu0 0.0
    %5153 = vmatprep.subr.mxu0 0.0
    %5154 = vmatpush2.msra.mxu0 0.0
    %5155 = vmatprep.subr.mxu0 0.0
    %5156 = vmatpush2.msra.mxu0 0.0
    %5157 = vmatprep.subr.mxu0 0.0
    %5158 = vmatpush2.msra.mxu0 0.0
    %5159 = vmatprep.subr.mxu0 0.0
    %5160 = vmatpush2.msra.mxu0 0.0
    %5161 = vmatprep.subr.mxu0 0.0
    %5162 = vmatpush2.msra.mxu0 0.0
    %5163 = vmatprep.subr.mxu0 0.0
    %5164 = vmatpush2.msra.mxu0 0.0
    %5165 = vmatprep.subr.mxu0 0.0
    %5166 = vmatpush2.msra.mxu0 0.0
    %5167 = vmatprep.subr.mxu0 0.0
    %5168 = vmatpush2.msra.mxu0 0.0
    %5169 = vmatprep.subr.mxu0 0.0
    %5170 = vmatpush2.msra.mxu0 0.0
    %5171 = vmatprep.subr.mxu0 0.0
    %5172 = vmatpush2.msra.mxu0 0.0
    %5173 = vmatprep.subr.mxu0 0.0
    %5174 = vmatpush2.msra.mxu0 0.0
    %5175 = vmatprep.subr.mxu0 0.0
    %5176 = vmatpush2.msra.mxu0 0.0
    %5177 = vmatprep.subr.mxu0 0.0
    %5178 = vmatpush2.msra.mxu0 0.0
    %5179 = vmatprep.subr.mxu0 0.0
    %5180 = vmatpush2.msra.mxu0 0.0
    %5181 = vmatprep.mubr.f32.mxu0 0.0
    %5182 = vmatmul.mubr.f32.gmra.mxu0 %v5115
    %v5183 = vpop.f32.mrf.mxu0
    %v5184 = vadd.f32 0.0, %v5183
    %v5185 = vpop.f32.mrf.mxu0
    %5186 = vdwg.mxu0
    %5189 = vrot.lane.b32.xlu0 %v3525, 8
    %v5190 = vpop.permute.xlu0 %5189
    %5191 = vrot.lane.b32.xlu0 %v3604, 8
    %v5192 = vpop.permute.xlu0 %5191
    %5197 = vrot.lane.b32.xlu0 %v3683, 16
    %v5198 = vpop.permute.xlu0 %5197
    %5199 = vrot.lane.b32.xlu0 %v3762, 16
    %v5200 = vpop.permute.xlu0 %5199
    %5205 = vrot.lane.b32.xlu0 %v3841, 24
    %v5206 = vpop.permute.xlu0 %5205
    %5207 = vrot.lane.b32.xlu0 %v3920, 24
    %v5208 = vpop.permute.xlu0 %5207
    %v5211 = vsel %vm1201, %v3367, %v5190
    %v5212 = vsel %vm1201, %v3446, %v5192
    %v5213 = vsel %vm3026, %v5211, %v5198
    %v5214 = vsel %vm3026, %v5212, %v5200
    %vm5215 = vcmask 195584
    %v5216 = vsel %vm5215, %v5213, %v5206
    %v5217 = vsel %vm5215, %v5214, %v5208
    %5220 = vrot.lane.b32.xlu0 %v4157, 8
    %v5221 = vpop.permute.xlu0 %5220
    %5222 = vrot.lane.b32.xlu0 %v4236, 8
    %v5223 = vpop.permute.xlu0 %5222
    %5228 = vrot.lane.b32.xlu0 %v4315, 16
    %v5229 = vpop.permute.xlu0 %5228
    %5230 = vrot.lane.b32.xlu0 %v4394, 16
    %v5231 = vpop.permute.xlu0 %5230
    %5236 = vrot.lane.b32.xlu0 %v4473, 24
    %v5237 = vpop.permute.xlu0 %5236
    %5238 = vrot.lane.b32.xlu0 %v4552, 24
    %v5239 = vpop.permute.xlu0 %5238
    %v5242 = vsel %vm1201, %v3999, %v5221
    %v5243 = vsel %vm1201, %v4078, %v5223
    %v5244 = vsel %vm3026, %v5242, %v5229
    %v5245 = vsel %vm3026, %v5243, %v5231
    %v5246 = vsel %vm5215, %v5244, %v5237
    %v5247 = vsel %vm5215, %v5245, %v5239
    %5250 = vrot.lane.b32.xlu0 %v4789, 8
    %v5251 = vpop.permute.xlu0 %5250
    %5252 = vrot.lane.b32.xlu0 %v4868, 8
    %v5253 = vpop.permute.xlu0 %5252
    %5258 = vrot.lane.b32.xlu0 %v4947, 16
    %v5259 = vpop.permute.xlu0 %5258
    %5260 = vrot.lane.b32.xlu0 %v5026, 16
    %v5261 = vpop.permute.xlu0 %5260
    %5266 = vrot.lane.b32.xlu0 %v5105, 24
    %v5267 = vpop.permute.xlu0 %5266
    %5268 = vrot.lane.b32.xlu0 %v5184, 24
    %v5269 = vpop.permute.xlu0 %5268
    %v5272 = vsel %vm1201, %v4631, %v5251
    %v5273 = vsel %vm1201, %v4710, %v5253
    %v5274 = vsel %vm3026, %v5272, %v5259
    %v5275 = vsel %vm3026, %v5273, %v5261
    %v5276 = vsel %vm5215, %v5274, %v5267
    %v5277 = vsel %vm5215, %v5275, %v5269
    %5280 = vrot.lane.b32.xlu0 %v5246, 32
    %v5281 = vpop.permute.xlu0 %5280
    %5282 = vrot.lane.b32.xlu0 %v5247, 32
    %v5283 = vpop.permute.xlu0 %5282
    %5288 = vrot.lane.b32.xlu0 %v5276, 64
    %v5289 = vpop.permute.xlu0 %5288
    %5290 = vrot.lane.b32.xlu0 %v5277, 64
    %v5291 = vpop.permute.xlu0 %5290
    %v5294 = vsel %vm819, %v5216, %v5281
    %v5295 = vsel %vm819, %v5217, %v5283
    %v5296 = vsel %vm410, %v5294, %v5289
    %v5297 = vsel %vm410, %v5295, %v5291
    %v5298 = vld [vmem:[#allocation17] sm:$0xff]
    %v5299 = vld [vmem:[#allocation17 + $0x8] sm:$0xff]
    %v5300 = vld [vmem:[#allocation17 + $0x10] sm:$0xff]
    %v5301 = vld [vmem:[#allocation17 + $0x18] sm:$0xff]
    %v5302 = vld [vmem:[#allocation17 + $0x20] sm:$0xff]
    %v5303 = vld [vmem:[#allocation17 + $0x28] sm:$0xff]
    %v5304 = vld [vmem:[#allocation17 + $0x30] sm:$0xff]
    %v5305 = vld [vmem:[#allocation17 + $0x38] sm:$0xff]
    %v5306 = vld [vmem:[#allocation17 + $0x40] sm:$0xff]
    %v5307 = vld [vmem:[#allocation17 + $0x48] sm:$0xff]
    %v5308 = vld [vmem:[#allocation17 + $0x50] sm:$0xff]
    %v5309 = vld [vmem:[#allocation17 + $0x58] sm:$0xff]
    %v5310 = vld [vmem:[#allocation19] sm:$0x1]
    %v5312 = vlaneseq
    %v5313 = vshrl.u32 %v5312, 7
    %v5314 = vsub.s32 0, %v5313
    %v5315 = vrot.slane %v5310, %v5314
    %v5318 = vsel %vm583, %v5296, 0
    %v5321 = vsel %vm583, %v5297, 0
    %5323 = vmatprep.subr.mxu0 0.0
    %5324 = vmatpush1.msra.mxu0 0.0
    %5325 = vmatprep.subr.mxu0 0.0
    %5326 = vmatpush1.msra.mxu0 0.0
    %5327 = vmatprep.subr.mxu0 0.0
    %5328 = vmatpush1.msra.mxu0 0.0
    %5329 = vmatprep.subr.mxu0 0.0
    %5330 = vmatpush1.msra.mxu0 0.0
    %5331 = vmatprep.subr.mxu0 0.0
    %5332 = vmatpush1.msra.mxu0 %v5309
    %5333 = vmatprep.subr.mxu0 0.0
    %5334 = vmatpush1.msra.mxu0 %v5308
    %5335 = vmatprep.subr.mxu0 0.0
    %5336 = vmatpush1.msra.mxu0 %v5307
    %5337 = vmatprep.subr.mxu0 0.0
    %5338 = vmatpush1.msra.mxu0 %v5306
    %5339 = vmatprep.subr.mxu0 0.0
    %5340 = vmatpush1.msra.mxu0 %v5305
    %5341 = vmatprep.subr.mxu0 0.0
    %5342 = vmatpush1.msra.mxu0 %v5304
    %5343 = vmatprep.subr.mxu0 0.0
    %5344 = vmatpush1.msra.mxu0 %v5303
    %5345 = vmatprep.subr.mxu0 0.0
    %5346 = vmatpush1.msra.mxu0 %v5302
    %5347 = vmatprep.subr.mxu0 0.0
    %5348 = vmatpush1.msra.mxu0 %v5301
    %5349 = vmatprep.subr.mxu0 0.0
    %5350 = vmatpush1.msra.mxu0 %v5300
    %5351 = vmatprep.subr.mxu0 0.0
    %5352 = vmatpush1.msra.mxu0 %v5299
    %5353 = vmatprep.subr.mxu0 0.0
    %5354 = vmatpush1.msra.mxu0 %v5298
    %5355 = vmatprep.subr.mxu0 0.0
    %5356 = vmatpush2.msra.mxu0 0.0
    %5357 = vmatprep.subr.mxu0 0.0
    %5358 = vmatpush2.msra.mxu0 0.0
    %5359 = vmatprep.subr.mxu0 0.0
    %5360 = vmatpush2.msra.mxu0 0.0
    %5361 = vmatprep.subr.mxu0 0.0
    %5362 = vmatpush2.msra.mxu0 0.0
    %5363 = vmatprep.subr.mxu0 0.0
    %5364 = vmatpush2.msra.mxu0 0.0
    %5365 = vmatprep.subr.mxu0 0.0
    %5366 = vmatpush2.msra.mxu0 0.0
    %5367 = vmatprep.subr.mxu0 0.0
    %5368 = vmatpush2.msra.mxu0 0.0
    %5369 = vmatprep.subr.mxu0 0.0
    %5370 = vmatpush2.msra.mxu0 0.0
    %5371 = vmatprep.subr.mxu0 0.0
    %5372 = vmatpush2.msra.mxu0 0.0
    %5373 = vmatprep.subr.mxu0 0.0
    %5374 = vmatpush2.msra.mxu0 0.0
    %5375 = vmatprep.subr.mxu0 0.0
    %5376 = vmatpush2.msra.mxu0 0.0
    %5377 = vmatprep.subr.mxu0 0.0
    %5378 = vmatpush2.msra.mxu0 0.0
    %5379 = vmatprep.subr.mxu0 0.0
    %5380 = vmatpush2.msra.mxu0 0.0
    %5381 = vmatprep.subr.mxu0 0.0
    %5382 = vmatpush2.msra.mxu0 0.0
    %5383 = vmatprep.subr.mxu0 0.0
    %5384 = vmatpush2.msra.mxu0 0.0
    %5385 = vmatprep.subr.mxu0 0.0
    %5386 = vmatpush2.msra.mxu0 0.0
    %5387 = vmatprep.mubr.f32.mxu0 0.0
    %5388 = vmatmul.mubr.f32.gmra.mxu0 %v5318
    %v5389 = vpop.f32.mrf.mxu0
    %v5390 = vadd.f32 %v5315, %v5389
    %v5391 = vpop.f32.mrf.mxu0
    %5392 = vmatprep.mubr.f32.mxu0 0.0
    %5393 = vmatmul.mubr.f32.gmra.mxu0 %v5321
    %v5394 = vpop.f32.mrf.mxu0
    %v5395 = vadd.f32 %v5315, %v5394
    %v5396 = vpop.f32.mrf.mxu0
    %5397 = vdwg.mxu0
    %v5398 = vsel %vm583, %v5390, 0.0
    %v5399 = vrot.slane %v5398, 4
    %v5400 = vadd.f32 %v5398, %v5399
    %v5401 = vrot.slane %v5400, 2
    %v5402 = vadd.f32 %v5400, %v5401
    %v5403 = vrot.slane %v5402, 1
    %v5404 = vadd.f32 %v5402, %v5403
    %v5405 = vmul.f32 %v5404, 0.125
    %v5406 = vsel %vm583, %v5395, 0.0
    %v5407 = vrot.slane %v5406, 4
    %v5408 = vadd.f32 %v5406, %v5407
    %v5409 = vrot.slane %v5408, 2
    %v5410 = vadd.f32 %v5408, %v5409
    %v5411 = vrot.slane %v5410, 1
    %v5412 = vadd.f32 %v5410, %v5411
    %v5413 = vmul.f32 %v5412, 0.125
    %v5414 = vsel %vm534, %v5405, %v5413
    %v5415 = vld [vmem:[%s18] sm:$0xff]
    %v5416 = vld [vmem:[%s18 + $0x8] sm:$0xff]
    %v5417 = vld [vmem:[%s18 + $0x10] sm:$0xff]
    %v5418 = vld [vmem:[%s18 + $0x18] sm:$0xff]
    %v5419 = vld [vmem:[%s18 + $0x20] sm:$0xff]
    %v5420 = vld [vmem:[%s18 + $0x28] sm:$0xff]
    %v5421 = vld [vmem:[%s18 + $0x30] sm:$0xff]
    %v5422 = vld [vmem:[%s18 + $0x38] sm:$0xff]
    %v5423 = vld [vmem:[%s18 + $0x40] sm:$0xff]
    %v5424 = vld [vmem:[%s18 + $0x48] sm:$0xff]
    %v5425 = vld [vmem:[%s18 + $0x50] sm:$0xff]
    %v5426 = vld [vmem:[%s18 + $0x58] sm:$0xff]
    %v5427 = vld [vmem:[#allocation20] sm:$0x1]
    %v5429 = vlaneseq
    %v5430 = vshrl.u32 %v5429, 7
    %v5431 = vsub.s32 0, %v5430
    %v5432 = vrot.slane %v5427, %v5431
    %v5435 = vsel %vm583, %v5414, 0
    %5437 = vmatprep.subr.mxu0 0.0
    %5438 = vmatpush1.msra.mxu0 0.0
    %5439 = vmatprep.subr.mxu0 0.0
    %5440 = vmatpush1.msra.mxu0 0.0
    %5441 = vmatprep.subr.mxu0 0.0
    %5442 = vmatpush1.msra.mxu0 0.0
    %5443 = vmatprep.subr.mxu0 0.0
    %5444 = vmatpush1.msra.mxu0 0.0
    %5445 = vmatprep.subr.mxu0 0.0
    %5446 = vmatpush1.msra.mxu0 %v5426
    %5447 = vmatprep.subr.mxu0 0.0
    %5448 = vmatpush1.msra.mxu0 %v5425
    %5449 = vmatprep.subr.mxu0 0.0
    %5450 = vmatpush1.msra.mxu0 %v5424
    %5451 = vmatprep.subr.mxu0 0.0
    %5452 = vmatpush1.msra.mxu0 %v5423
    %5453 = vmatprep.subr.mxu0 0.0
    %5454 = vmatpush1.msra.mxu0 %v5422
    %5455 = vmatprep.subr.mxu0 0.0
    %5456 = vmatpush1.msra.mxu0 %v5421
    %5457 = vmatprep.subr.mxu0 0.0
    %5458 = vmatpush1.msra.mxu0 %v5420
    %5459 = vmatprep.subr.mxu0 0.0
    %5460 = vmatpush1.msra.mxu0 %v5419
    %5461 = vmatprep.subr.mxu0 0.0
    %5462 = vmatpush1.msra.mxu0 %v5418
    %5463 = vmatprep.subr.mxu0 0.0
    %5464 = vmatpush1.msra.mxu0 %v5417
    %5465 = vmatprep.subr.mxu0 0.0
    %5466 = vmatpush1.msra.mxu0 %v5416
    %5467 = vmatprep.subr.mxu0 0.0
    %5468 = vmatpush1.msra.mxu0 %v5415
    %5469 = vmatprep.subr.mxu0 0.0
    %5470 = vmatpush2.msra.mxu0 0.0
    %5471 = vmatprep.subr.mxu0 0.0
    %5472 = vmatpush2.msra.mxu0 0.0
    %5473 = vmatprep.subr.mxu0 0.0
    %5474 = vmatpush2.msra.mxu0 0.0
    %5475 = vmatprep.subr.mxu0 0.0
    %5476 = vmatpush2.msra.mxu0 0.0
    %5477 = vmatprep.subr.mxu0 0.0
    %5478 = vmatpush2.msra.mxu0 0.0
    %5479 = vmatprep.subr.mxu0 0.0
    %5480 = vmatpush2.msra.mxu0 0.0
    %5481 = vmatprep.subr.mxu0 0.0
    %5482 = vmatpush2.msra.mxu0 0.0
    %5483 = vmatprep.subr.mxu0 0.0
    %5484 = vmatpush2.msra.mxu0 0.0
    %5485 = vmatprep.subr.mxu0 0.0
    %5486 = vmatpush2.msra.mxu0 0.0
    %5487 = vmatprep.subr.mxu0 0.0
    %5488 = vmatpush2.msra.mxu0 0.0
    %5489 = vmatprep.subr.mxu0 0.0
    %5490 = vmatpush2.msra.mxu0 0.0
    %5491 = vmatprep.subr.mxu0 0.0
    %5492 = vmatpush2.msra.mxu0 0.0
    %5493 = vmatprep.subr.mxu0 0.0
    %5494 = vmatpush2.msra.mxu0 0.0
    %5495 = vmatprep.subr.mxu0 0.0
    %5496 = vmatpush2.msra.mxu0 0.0
    %5497 = vmatprep.subr.mxu0 0.0
    %5498 = vmatpush2.msra.mxu0 0.0
    %5499 = vmatprep.subr.mxu0 0.0
    %5500 = vmatpush2.msra.mxu0 0.0
    %5501 = vmatprep.mubr.f32.mxu0 0.0
    %5502 = vmatmul.mubr.f32.gmra.mxu0 %v5435
    %v5503 = vpop.f32.mrf.mxu0
    %v5504 = vadd.f32 %v5432, %v5503
    %v5505 = vpop.f32.mrf.mxu0
    %5506 = vdwg.mxu0
    %vm5507 = vcmask 123904
    %5508 = vst.msk [vmem:[#allocation22] sm:$0x3] %vm5507, %v5504
    // Predicated region
    $region130: #{_forward_core.1} parent=1 // pred_check
      _
    $region131: #{_forward_core.1} parent=1 // pred_check_branch
      %5510 = sbr.rel (0) target = $region133
    $region132: #{_forward_core.1} parent=1 // pred_region
      %s5512 = ssub.s32 32, 32
      %5513 = vsyncadd [#allocation4], %s5512
      %s5515 = sshll.u32 [#allocation22], 4
      %s5516 = int_to_ptr.vmem [resolvable:$true] %s5515
      %5518 = dma.vmem_to_hbm [thread:$0]  %s5516, 32, %s20, [#allocation4]
    $region133: #{_forward_core.1} parent=1 // pred_fallthru
      _
    // Predicated region
    $region134: #{_forward_core.1} parent=1 // pred_check
      _
    $region135: #{_forward_core.1} parent=1 // pred_check_branch
      %5520 = sbr.rel (0) target = $region137
    $region136: #{_forward_core.1} parent=1 // pred_region
      %s5522 = ssub.s32 16, 16
      %5523 = vsyncadd [#allocation24], %s5522
      %s5525 = sshll.u32 [#allocation23], 4
      %s5526 = int_to_ptr.vmem [resolvable:$true] %s5525
      %5528 = dma.vmem_to_hbm [thread:$0]  %s5526, 16, %s21, [#allocation24]
    $region137: #{_forward_core.1} parent=1 // pred_fallthru
      _
    // Predicated region
    $region138: #{_forward_core.1} parent=1 // pred_check
      _
    $region139: #{_forward_core.1} parent=1 // pred_check_branch
      %5530 = sbr.rel (0) target = $region141
    $region140: #{_forward_core.1} parent=1 // pred_region
      %5531 = dma.done [#allocation4], 32
    $region141: #{_forward_core.1} parent=1 // pred_fallthru
      _
    // Predicated region
    $region142: #{_forward_core.1} parent=1 // pred_check
      _
    $region143: #{_forward_core.1} parent=1 // pred_check_branch
      %5533 = sbr.rel (0) target = $region145
    $region144: #{_forward_core.1} parent=1 // pred_region
      %5534 = dma.done [#allocation24], 16
    $region145: #{_forward_core.1} parent=1 // pred_fallthru
      _
    %5535 = vsyncpa [#allocation3], 1
    %5536 = vsyncpa [#allocation6], 1
    %5537 = vsyncpa [#allocation9], 1
    %5538 = vsyncpa [#allocation12], 1
    %5539 = vsyncpa [#allocation15], 1
    %5540 = vsyncpa [#allocation18], 1
    %5541 = vsyncpa [#allocation21], 1
    %5542 = vsyncpa [#allocation4], 1
    %5543 = vsyncpa [#allocation24], 1

</llo_original>
